<compile_context>
chip_gen: v6e
topology: v6e:2x2x1
jax: 0.10.0
libtpu: 0.0.40
codegen_flags: <defaults>
</compile_context>

<pallas_src>
import functools

import jax
import jax.numpy as jnp
from jax.experimental import pallas as pl
from jax.experimental.pallas import tpu as pltpu

BN_EPS = 1e-5
_MXU_DTYPE = jnp.bfloat16          # matmul operand dtype (fp32 accumulation)
_ACT_DTYPE = jnp.bfloat16          # inter-stage activation storage dtype
_BLOCK_BUDGET = 4 << 20            # target bytes for one block's working set
_VMEM_LIMIT = 48 * 1024 * 1024     # < v7x 64 MiB physical, > all scoped defaults
_MIN_GRID_STEPS = 8                # keep v7x's two TensorCores pipelined


# ----------------------------------------------------------------------------
# tile-size helpers (robust: budget-capped, grid kept deep, (8,128)-rule safe)
# ----------------------------------------------------------------------------
def _largest_divisor(n, cap, multiple=1):
    """Largest divisor of n that is <= cap and a multiple of `multiple` (or 0)."""
    cap = max(1, min(cap, n))
    best, d = 0, 1
    while d * d <= n:
        if n % d == 0:
            for c in (d, n // d):
                if c <= cap and c % multiple == 0 and c > best:
                    best = c
        d += 1
    return best


def _pick_leading_tile(n, bytes_per_unit, *, budget=_BLOCK_BUDGET,
                       min_steps=_MIN_GRID_STEPS):
    """Tile for a leading block dim (no sublane/lane constraint)."""
    cap_budget = budget // max(1, bytes_per_unit)
    cap_steps = n // min(min_steps, n)
    cap = max(1, min(cap_budget, cap_steps))
    return max(1, _largest_divisor(n, cap, multiple=1))


def _pick_sublane_tile(n, bytes_per_row, *, budget=_BLOCK_BUDGET,
                       min_steps=_MIN_GRID_STEPS):
    """Tile for a dim landing on the sublane axis: multiple of 8 or full dim."""
    cap_budget = budget // max(1, bytes_per_row)
    cap_steps = n // max(1, min_steps)
    cap = max(8, min(cap_budget, cap_steps))
    t = _largest_divisor(n, cap, multiple=8)
    # TODO(synk): masked tail tiles would avoid the full-dim fallback below.
    return t if t > 0 else n


# ----------------------------------------------------------------------------
# Pallas kernels
# ----------------------------------------------------------------------------
def _make_fused_conv1_spatial_kernel(TB, H, W, Cin, Cp, emit_out1):
    """conv1(1x1x1)+bn1+relu fused with conv2(1,3,3)+bn2+relu on TB frames."""
    def kernel(x_ref, w1_ref, b1_ref, w2_ref, b2_ref, *rest):
        if emit_out1:
            o_ref, o1_ref, xp_scr = rest
        else:
            o_ref, xp_scr = rest
            o1_ref = None

        # ---- conv1 + bn1 + relu (rows = TB*H*W, channels on lanes) ----------
        x = x_ref[...].reshape(TB * H * W, Cin)
        h1 = jnp.dot(x, w1_ref[...], preferred_element_type=jnp.float32)
        h1 = jnp.maximum(h1 + b1_ref[...], 0.0)
        if emit_out1:
            o1_ref[...] = h1.reshape(TB, H, W, Cp).astype(o1_ref.dtype)

        # ---- build zero-halo frame in VMEM (no HBM pad pass) ----------------
        xp_scr[...] = jnp.zeros_like(xp_scr)
        xp_scr[:, pl.ds(1, H), pl.ds(1, W), :] = h1.reshape(TB, H, W, Cp)

        # ---- conv2 (1,3,3) + bn2 + relu: 9 windowed *ref* reads -------------
        acc = jnp.zeros((TB * H * W, Cp), jnp.float32)
        for kh in range(3):
            for kw in range(3):
                xk = xp_scr[:, pl.ds(kh, H), pl.ds(kw, W), :]
                xk = xk.reshape(TB * H * W, Cp).astype(_MXU_DTYPE)
                acc = acc + jnp.dot(xk, w2_ref[3 * kh + kw],
                                    preferred_element_type=jnp.float32)
        y = jnp.maximum(acc + b2_ref[...], 0.0)
        o_ref[...] = y.reshape(TB, H, W, Cp).astype(o_ref.dtype)
    return kernel


def _make_temporal_kernel(D, THW, C, Cout, has_add):
    """conv_T (3,1,1) + bn3 + relu (+ optional post-add) on one (D, THW) tile."""
    def kernel(*refs):
        if has_add:
            x_ref, w_ref, b_ref, a_ref, o_ref, xp_scr = refs
        else:
            x_ref, w_ref, b_ref, o_ref, xp_scr = refs

        # zero-halo copy in VMEM (only the two halo D-rows are zeroed)
        zrow = jnp.zeros((1, THW, C), xp_scr.dtype)
        xp_scr[pl.ds(0, 1)] = zrow
        xp_scr[pl.ds(D + 1, 1)] = zrow
        xp_scr[pl.ds(1, D)] = x_ref[0]

        acc = jnp.zeros((D * THW, Cout), jnp.float32)
        for kd in range(3):
            xk = xp_scr[pl.ds(kd, D)].reshape(D * THW, C)
            acc = acc + jnp.dot(xk, w_ref[kd],
                                preferred_element_type=jnp.float32)
        y = jnp.maximum(acc + b_ref[...], 0.0)
        if has_add:
            y = y + a_ref[0].reshape(D * THW, Cout).astype(jnp.float32)
        o_ref[...] = y.reshape(1, D, THW, Cout).astype(o_ref.dtype)
    return kernel


def _pw_residual_kernel(x_ref, w_ref, b_ref, r_ref, o_ref):
    """conv4 (1x1x1) + bn4 + identity residual + relu on one row tile."""
    y = jnp.dot(x_ref[...], w_ref[...], preferred_element_type=jnp.float32)
    y = y + b_ref[...] + r_ref[...].astype(jnp.float32)
    o_ref[...] = jnp.maximum(y, 0.0).astype(o_ref.dtype)


# ----------------------------------------------------------------------------
# pallas_call wrappers (tiled, pipelined)
# ----------------------------------------------------------------------------
def fused_conv1_spatial(x4d, w1, b1, w2, b2, *, emit_out1=False):
    """x4d: (B, H, W, Cin) bf16, B = N*D frames.
    Returns relu(bn2(conv2(relu(bn1(conv1(x)))))) as (B, H, W, Cp) bf16,
    optionally also relu(bn1(conv1(x))) (needed for the ST='B' branch)."""
    B, H, W, Cin = x4d.shape
    Cp = w1.shape[1]
    frame_bytes = (H * W * Cin * 2                     # bf16 input
                   + (H + 2) * (W + 2) * Cp * 4        # f32 halo scratch
                   + (2 if emit_out1 else 1) * H * W * Cp * 2
                   + 2 * H * W * Cp * 4)               # f32 live accumulators
    TB = _pick_leading_tile(B, frame_bytes)
    grid = (B // TB,)

    o_spec = pl.BlockSpec((TB, H, W, Cp), lambda i: (i, 0, 0, 0))
    out_shape = jax.ShapeDtypeStruct((B, H, W, Cp), _ACT_DTYPE)
    out_shapes = (out_shape, out_shape) if emit_out1 else out_shape
    out_specs = (o_spec, o_spec) if emit_out1 else o_spec

    flops = 2 * B * H * W * Cp * (Cin + 9 * Cp)
    bytes_acc = (x4d.size * 2 + w1.size * 2 + w2.size * 2
                 + (2 if emit_out1 else 1) * B * H * W * Cp * 2)
    return pl.pallas_call(
        _make_fused_conv1_spatial_kernel(TB, H, W, Cin, Cp, emit_out1),
        out_shape=out_shapes,
        grid=grid,
        in_specs=[
            pl.BlockSpec((TB, H, W, Cin), lambda i: (i, 0, 0, 0)),
            pl.BlockSpec((Cin, Cp), lambda i: (0, 0)),
            pl.BlockSpec((1, Cp), lambda i: (0, 0)),
            pl.BlockSpec((9, Cp, Cp), lambda i: (0, 0, 0)),
            pl.BlockSpec((1, Cp), lambda i: (0, 0)),
        ],
        out_specs=out_specs,
        scratch_shapes=[pltpu.VMEM((TB, H + 2, W + 2, Cp), jnp.float32)],
        compiler_params=pltpu.CompilerParams(
            dimension_semantics=("parallel",),
            vmem_limit_bytes=_VMEM_LIMIT),
        cost_estimate=pl.CostEstimate(flops=flops, transcendentals=0,
                                      bytes_accessed=bytes_acc),
    )(x4d, w1, b1, w2, b2)


def temporal_conv(y, w3, b3, *, post_add=None):
    """y: (N, D, HW, C) bf16. Returns relu(bn3(conv3(y))) [+ post_add], bf16."""
    N, D, HW, C = y.shape
    Cout = w3.shape[2]
    has_add = post_add is not None
    per_col = ((D + 2) * C * 2 + D * C * 2 + D * Cout * 2 + D * Cout * 4
               + (D * Cout * 2 if has_add else 0))
    min_steps_hw = -(-_MIN_GRID_STEPS // max(1, N))     # ceil
    THW = _pick_sublane_tile(HW, per_col, min_steps=min_steps_hw)
    grid = (N, HW // THW)

    in_specs = [
        pl.BlockSpec((1, D, THW, C), lambda n, j: (n, 0, j, 0)),
        pl.BlockSpec((3, C, Cout), lambda n, j: (0, 0, 0)),
        pl.BlockSpec((1, Cout), lambda n, j: (0, 0)),
    ]
    args = [y, w3, b3]
    if has_add:
        in_specs.append(pl.BlockSpec((1, D, THW, Cout), lambda n, j: (n, 0, j, 0)))
        args.append(post_add)

    flops = 2 * 3 * N * D * HW * C * Cout
    bytes_acc = (y.size * 2 + w3.size * 2 + N * D * HW * Cout * 2
                 + (post_add.size * 2 if has_add else 0))
    return pl.pallas_call(
        _make_temporal_kernel(D, THW, C, Cout, has_add),
        out_shape=jax.ShapeDtypeStruct((N, D, HW, Cout), _ACT_DTYPE),
        grid=grid,
        in_specs=in_specs,
        out_specs=pl.BlockSpec((1, D, THW, Cout), lambda n, j: (n, 0, j, 0)),
        scratch_shapes=[pltpu.VMEM((D + 2, THW, C), _ACT_DTYPE)],
        compiler_params=pltpu.CompilerParams(
            dimension_semantics=("parallel", "parallel"),
            vmem_limit_bytes=_VMEM_LIMIT),
        cost_estimate=pl.CostEstimate(flops=flops, transcendentals=0,
                                      bytes_accessed=bytes_acc),
    )(*args)


def conv4_residual(x2d, w4, b4, residual, out_dtype=jnp.float32):
    """x2d: (M, C) bf16, residual: (M, Cout) bf16. relu(conv4+bn4+residual)."""
    M, C = x2d.shape
    Cout = w4.shape[1]
    row_bytes = (C * 2 + Cout * 2
                 + Cout * jnp.dtype(out_dtype).itemsize + Cout * 4)
    TM = _pick_sublane_tile(M, row_bytes)
    grid = (M // TM,)

    flops = 2 * M * C * Cout
    bytes_acc = (x2d.size * 2 + residual.size * 2 + w4.size * 2
                 + M * Cout * jnp.dtype(out_dtype).itemsize)
    return pl.pallas_call(
        _pw_residual_kernel,
        out_shape=jax.ShapeDtypeStruct((M, Cout), out_dtype),
        grid=grid,
        in_specs=[
            pl.BlockSpec((TM, C), lambda i: (i, 0)),
            pl.BlockSpec((C, Cout), lambda i: (0, 0)),
            pl.BlockSpec((1, Cout), lambda i: (0, 0)),
            pl.BlockSpec((TM, Cout), lambda i: (i, 0)),
        ],
        out_specs=pl.BlockSpec((TM, Cout), lambda i: (i, 0)),
        compiler_params=pltpu.CompilerParams(
            dimension_semantics=("parallel",),
            vmem_limit_bytes=_VMEM_LIMIT),
        cost_estimate=pl.CostEstimate(flops=flops, transcendentals=0,
                                      bytes_accessed=bytes_acc),
    )(x2d, w4, b4, residual)


# ----------------------------------------------------------------------------
# Parameter setup (deterministic, synthetic) + BN folding into weights
# ----------------------------------------------------------------------------
def _bn_init(k, c):
    k1, k2, k3, k4 = jax.random.split(k, 4)
    return dict(
        gamma=jax.random.uniform(k1, (c,), jnp.float32, 0.5, 1.5),
        beta=0.1 * jax.random.normal(k2, (c,), jnp.float32),
        mean=0.1 * jax.random.normal(k3, (c,), jnp.float32),
        var=jax.random.uniform(k4, (c,), jnp.float32, 0.5, 1.5),
    )


def init_params(key, inplanes, planes):
    ks = jax.random.split(key, 8)
    return dict(
        w1=0.1 * jax.random.normal(ks[0], (planes, inplanes, 1, 1, 1), jnp.float32),
        w2=0.1 * jax.random.normal(ks[1], (planes, planes, 1, 3, 3), jnp.float32),
        w3=0.1 * jax.random.normal(ks[2], (planes, planes, 3, 1, 1), jnp.float32),
        w4=0.1 * jax.random.normal(ks[3], (planes * 4, planes, 1, 1, 1), jnp.float32),
        bn1=_bn_init(ks[4], planes),
        bn2=_bn_init(ks[5], planes),
        bn3=_bn_init(ks[6], planes),
        bn4=_bn_init(ks[7], planes * 4),
    )


def _fold_bn(bn):
    inv = bn['gamma'] / jnp.sqrt(bn['var'] + BN_EPS)
    return inv, bn['beta'] - bn['mean'] * inv


def prepare_weights(params):
    """BN scale folded into bf16 matmul weights; bias kept in fp32."""
    s1, b1 = _fold_bn(params['bn1'])
    s2, b2 = _fold_bn(params['bn2'])
    s3, b3 = _fold_bn(params['bn3'])
    s4, b4 = _fold_bn(params['bn4'])
    w1 = (jnp.transpose(params['w1'][:, :, 0, 0, 0]) * s1[None, :]).astype(_MXU_DTYPE)
    w2 = jnp.stack([jnp.transpose(params['w2'][:, :, 0, kh, kw])
                    for kh in range(3) for kw in range(3)], axis=0)
    w2 = (w2 * s2[None, None, :]).astype(_MXU_DTYPE)
    w3 = jnp.stack([jnp.transpose(params['w3'][:, :, kd, 0, 0])
                    for kd in range(3)], axis=0)
    w3 = (w3 * s3[None, None, :]).astype(_MXU_DTYPE)
    w4 = (jnp.transpose(params['w4'][:, :, 0, 0, 0]) * s4[None, :]).astype(_MXU_DTYPE)
    return dict(w1=w1, b1=b1.reshape(1, -1), w2=w2, b2=b2.reshape(1, -1),
                w3=w3, b3=b3.reshape(1, -1), w4=w4, b4=b4.reshape(1, -1))


# ----------------------------------------------------------------------------
# Bottleneck forward (Pallas)
# ----------------------------------------------------------------------------
def bottleneck_forward(x_ncdhw, params, ST='A'):
    N, cin, D, H, W = x_ncdhw.shape
    planes = params['w1'].shape[0]
    assert cin == 4 * planes, \
        "identity residual requires inplanes == planes*4 (downsample=None)"
    # TODO(synk): stride/(1,2,2)/dilation/downsample variants not implemented.
    M = N * D * H * W
    prep = prepare_weights(params)

    # NCDHW -> NDHWC in bf16 once; feeds conv1 AND the residual (bf16 HBM reads).
    x_cl = jnp.transpose(x_ncdhw, (0, 2, 3, 4, 1)).astype(_ACT_DTYPE)
    x_frames = x_cl.reshape(N * D, H, W, cin)

    if ST == 'A':
        s = fused_conv1_spatial(x_frames, prep['w1'], prep['b1'],
                                prep['w2'], prep['b2'])
        t = temporal_conv(s.reshape(N, D, H * W, planes),
                          prep['w3'], prep['b3'])
    elif ST == 'B':
        s, out1 = fused_conv1_spatial(x_frames, prep['w1'], prep['b1'],
                                      prep['w2'], prep['b2'], emit_out1=True)
        t = temporal_conv(out1.reshape(N, D, H * W, planes),
                          prep['w3'], prep['b3'],
                          post_add=s.reshape(N, D, H * W, planes))
    elif ST == 'C':
        s = fused_conv1_spatial(x_frames, prep['w1'], prep['b1'],
                                prep['w2'], prep['b2'])
        s4 = s.reshape(N, D, H * W, planes)
        t = temporal_conv(s4, prep['w3'], prep['b3'], post_add=s4)
    else:
        raise ValueError(ST)

    out = conv4_residual(t.reshape(M, planes), prep['w4'], prep['b4'],
                         x_cl.reshape(M, cin), out_dtype=jnp.float32)
    return jnp.transpose(out.reshape(N, D, H, W, 4 * planes), (0, 4, 1, 2, 3))


# ----------------------------------------------------------------------------
# Pure-JAX reference (mirrors PyTorch NCDHW semantics, fp32 throughout)
# ----------------------------------------------------------------------------
def _ref_bn(x, bn):
    inv = bn['gamma'] / jnp.sqrt(bn['var'] + BN_EPS)
    return (x * inv[None, :, None, None, None]
            + (bn['beta'] - bn['mean'] * inv)[None, :, None, None, None])


def _ref_conv(x, w, padding):
    return jax.lax.conv_general_dilated(
        x, w, window_strides=(1, 1, 1), padding=padding,
        dimension_numbers=('NCDHW', 'OIDHW', 'NCDHW'))


def reference_forward(x, params, ST='A'):
    relu = lambda t: jnp.maximum(t, 0.0)
    out = relu(_ref_bn(_ref_conv(x, params['w1'], [(0, 0)] * 3), params['bn1']))
    spatial = lambda t: relu(_ref_bn(
        _ref_conv(t, params['w2'], [(0, 0), (1, 1), (1, 1)]), params['bn2']))
    temporal = lambda t: relu(_ref_bn(
        _ref_conv(t, params['w3'], [(1, 1), (0, 0), (0, 0)]), params['bn3']))
    if ST == 'A':
        out = temporal(spatial(out))
    elif ST == 'B':
        out = spatial(out) + temporal(out)
    else:
        s = spatial(out)
        out = s + temporal(s)
    out = _ref_bn(_ref_conv(out, params['w4'], [(0, 0)] * 3), params['bn4'])
    return relu(out + x)


# ----------------------------------------------------------------------------
if __name__ == "__main__":
    # inplanes == planes*4 so the identity residual matches (downsample=None).
    N, inplanes, planes, D, H, W = 2, 16, 4, 8, 16, 16
    key = jax.random.PRNGKey(0)
    kp, kx = jax.random.split(key)
    params = init_params(kp, inplanes, planes)
    x = jax.random.normal(kx, (N, inplanes, D, H, W), jnp.float32)

    fwd = jax.jit(functools.partial(bottleneck_forward, ST='A'))
    out = jax.block_until_ready(fwd(x, params))
    ref = reference_forward(x, params, ST='A')

    assert out.shape == (N, planes * 4, D, H, W)
    err = jnp.abs(out - ref)
    max_err = float(jnp.max(err))
    mean_err = float(jnp.mean(err))
    # bf16 inputs / weights / inter-stage activations / residual (fp32 accum)
    # across four stages -> relaxed tolerances; real bugs give O(1) errors.
    assert max_err < 1.25e-1 and mean_err < 1.5e-2, \
        f"mismatch vs reference: max={max_err}, mean={mean_err}"
    print("KERNEL_OK")
</pallas_src>

<mosaic_0001>
module attributes {stable_mosaic.version = 11 : i64} {
  func.func @kernel(%arg0: i32, %arg1: memref<2x16x16x16xbf16, #tpu.memory_space<vmem>>, %arg2: memref<16x4xbf16, #tpu.memory_space<vmem>>, %arg3: memref<1x4xf32, #tpu.memory_space<vmem>>, %arg4: memref<9x4x4xbf16, #tpu.memory_space<vmem>>, %arg5: memref<1x4xf32, #tpu.memory_space<vmem>>, %arg6: memref<2x16x16x4xbf16, #tpu.memory_space<vmem>>, %arg7: memref<2x18x18x4xf32, #tpu.memory_space<vmem>>) attributes {dimension_semantics = [#tpu.dimension_semantics<parallel>], iteration_bounds = array<i64: 8>, scalar_prefetch = 0 : i64, scratch_operands = 1 : i64, tpu.core_type = #tpu.core_type<tc>, window_params = [{transform_indices = @transform_0, window_bounds = array<i64: 2, 16, 16, 16>}, {pipeline_mode = #tpu.pipeline_mode<synchronous>, transform_indices = @transform_1, window_bounds = array<i64: 16, 4>}, {pipeline_mode = #tpu.pipeline_mode<synchronous>, transform_indices = @transform_2, window_bounds = array<i64: 1, 4>}, {pipeline_mode = #tpu.pipeline_mode<synchronous>, transform_indices = @transform_3, window_bounds = array<i64: 9, 4, 4>}, {pipeline_mode = #tpu.pipeline_mode<synchronous>, transform_indices = @transform_4, window_bounds = array<i64: 1, 4>}, {transform_indices = @transform_5, window_bounds = array<i64: 2, 16, 16, 4>}]} {
    %c0 = arith.constant 0 : index
    %c0_0 = arith.constant 0 : index
    %c0_1 = arith.constant 0 : index
    %c0_2 = arith.constant 0 : index
    %0 = vector.load %arg1[%c0, %c0_0, %c0_1, %c0_2] : memref<2x16x16x16xbf16, #tpu.memory_space<vmem>>, vector<2x16x16x16xbf16>
    %1 = vector.shape_cast %0 : vector<2x16x16x16xbf16> to vector<512x16xbf16>
    %c0_3 = arith.constant 0 : index
    %c0_4 = arith.constant 0 : index
    %2 = vector.load %arg2[%c0_3, %c0_4] : memref<16x4xbf16, #tpu.memory_space<vmem>>, vector<16x4xbf16>
    %cst = arith.constant dense<0.000000e+00> : vector<512x4xf32>
    %3 = tpu.matmul %1, %2, %cst {dimension_numbers = #tpu.dot_dimension_numbers<[1], [0], [0], [1], [0, 0, 1, 1], [], []>} : vector<512x16xbf16>, vector<16x4xbf16>, vector<512x4xf32> -> vector<512x4xf32>
    %c0_5 = arith.constant 0 : index
    %c0_6 = arith.constant 0 : index
    %4 = vector.load %arg3[%c0_5, %c0_6] : memref<1x4xf32, #tpu.memory_space<vmem>>, vector<1x4xf32>
    %5 = vector.broadcast %4 : vector<1x4xf32> to vector<512x4xf32>
    %6 = arith.addf %3, %5 : vector<512x4xf32>
    %cst_7 = arith.constant 0.000000e+00 : f32
    %7 = vector.broadcast %cst_7 : f32 to vector<512x4xf32>
    %8 = arith.maximumf %6, %7 : vector<512x4xf32>
    %cst_8 = arith.constant 0.000000e+00 : f32
    %9 = vector.broadcast %cst_8 : f32 to vector<2x18x18x4xf32>
    %c0_9 = arith.constant 0 : index
    %c0_10 = arith.constant 0 : index
    %c0_11 = arith.constant 0 : index
    %c0_12 = arith.constant 0 : index
    %10 = vector.load %arg7[%c0_9, %c0_10, %c0_11, %c0_12] : memref<2x18x18x4xf32, #tpu.memory_space<vmem>>, vector<2x18x18x4xf32>
    tpu.vector_store %arg7[%c0_9, %c0_10, %c0_11, %c0_12], %9 {strides = array<i32>} : memref<2x18x18x4xf32, #tpu.memory_space<vmem>>, vector<2x18x18x4xf32>,
    %11 = vector.shape_cast %8 : vector<512x4xf32> to vector<2x16x16x4xf32>
    %c0_13 = arith.constant 0 : index
    %c1 = arith.constant 1 : index
    %c1_14 = arith.constant 1 : index
    %c0_15 = arith.constant 0 : index
    %12 = vector.load %arg7[%c0_13, %c1, %c1_14, %c0_15] : memref<2x18x18x4xf32, #tpu.memory_space<vmem>>, vector<2x16x16x4xf32>
    tpu.vector_store %arg7[%c0_13, %c1, %c1_14, %c0_15], %11 {strides = array<i32>} : memref<2x18x18x4xf32, #tpu.memory_space<vmem>>, vector<2x16x16x4xf32>,
    %cst_16 = arith.constant 0.000000e+00 : f32
    %13 = vector.broadcast %cst_16 : f32 to vector<512x4xf32>
    %c0_17 = arith.constant 0 : index
    %c0_18 = arith.constant 0 : index
    %c0_19 = arith.constant 0 : index
    %c0_20 = arith.constant 0 : index
    %14 = vector.load %arg7[%c0_17, %c0_18, %c0_19, %c0_20] : memref<2x18x18x4xf32, #tpu.memory_space<vmem>>, vector<2x16x16x4xf32>
    %15 = vector.shape_cast %14 : vector<2x16x16x4xf32> to vector<512x4xf32>
    %16 = arith.truncf %15 : vector<512x4xf32> to vector<512x4xbf16>
    %c0_21 = arith.constant 0 : index
    %c0_22 = arith.constant 0 : index
    %c0_23 = arith.constant 0 : index
    %17 = vector.load %arg4[%c0_21, %c0_22, %c0_23] : memref<9x4x4xbf16, #tpu.memory_space<vmem>>, vector<1x4x4xbf16>
    %18 = vector.shape_cast %17 : vector<1x4x4xbf16> to vector<4x4xbf16>
    %cst_24 = arith.constant dense<0.000000e+00> : vector<512x4xf32>
    %19 = tpu.matmul %16, %18, %cst_24 {dimension_numbers = #tpu.dot_dimension_numbers<[1], [0], [0], [1], [0, 0, 1, 1], [], []>} : vector<512x4xbf16>, vector<4x4xbf16>, vector<512x4xf32> -> vector<512x4xf32>
    %20 = arith.addf %13, %19 : vector<512x4xf32>
    %c0_25 = arith.constant 0 : index
    %c0_26 = arith.constant 0 : index
    %c1_27 = arith.constant 1 : index
    %c0_28 = arith.constant 0 : index
    %21 = vector.load %arg7[%c0_25, %c0_26, %c1_27, %c0_28] : memref<2x18x18x4xf32, #tpu.memory_space<vmem>>, vector<2x16x16x4xf32>
    %22 = vector.shape_cast %21 : vector<2x16x16x4xf32> to vector<512x4xf32>
    %23 = arith.truncf %22 : vector<512x4xf32> to vector<512x4xbf16>
    %c1_29 = arith.constant 1 : index
    %c0_30 = arith.constant 0 : index
    %c0_31 = arith.constant 0 : index
    %24 = vector.load %arg4[%c1_29, %c0_30, %c0_31] : memref<9x4x4xbf16, #tpu.memory_space<vmem>>, vector<1x4x4xbf16>
    %25 = vector.shape_cast %24 : vector<1x4x4xbf16> to vector<4x4xbf16>
    %cst_32 = arith.constant dense<0.000000e+00> : vector<512x4xf32>
    %26 = tpu.matmul %23, %25, %cst_32 {dimension_numbers = #tpu.dot_dimension_numbers<[1], [0], [0], [1], [0, 0, 1, 1], [], []>} : vector<512x4xbf16>, vector<4x4xbf16>, vector<512x4xf32> -> vector<512x4xf32>
    %27 = arith.addf %20, %26 : vector<512x4xf32>
    %c0_33 = arith.constant 0 : index
    %c0_34 = arith.constant 0 : index
    %c2 = arith.constant 2 : index
    %c0_35 = arith.constant 0 : index
    %28 = vector.load %arg7[%c0_33, %c0_34, %c2, %c0_35] : memref<2x18x18x4xf32, #tpu.memory_space<vmem>>, vector<2x16x16x4xf32>
    %29 = vector.shape_cast %28 : vector<2x16x16x4xf32> to vector<512x4xf32>
    %30 = arith.truncf %29 : vector<512x4xf32> to vector<512x4xbf16>
    %c2_36 = arith.constant 2 : index
    %c0_37 = arith.constant 0 : index
    %c0_38 = arith.constant 0 : index
    %31 = vector.load %arg4[%c2_36, %c0_37, %c0_38] : memref<9x4x4xbf16, #tpu.memory_space<vmem>>, vector<1x4x4xbf16>
    %32 = vector.shape_cast %31 : vector<1x4x4xbf16> to vector<4x4xbf16>
    %cst_39 = arith.constant dense<0.000000e+00> : vector<512x4xf32>
    %33 = tpu.matmul %30, %32, %cst_39 {dimension_numbers = #tpu.dot_dimension_numbers<[1], [0], [0], [1], [0, 0, 1, 1], [], []>} : vector<512x4xbf16>, vector<4x4xbf16>, vector<512x4xf32> -> vector<512x4xf32>
    %34 = arith.addf %27, %33 : vector<512x4xf32>
    %c0_40 = arith.constant 0 : index
    %c1_41 = arith.constant 1 : index
    %c0_42 = arith.constant 0 : index
    %c0_43 = arith.constant 0 : index
    %35 = vector.load %arg7[%c0_40, %c1_41, %c0_42, %c0_43] : memref<2x18x18x4xf32, #tpu.memory_space<vmem>>, vector<2x16x16x4xf32>
    %36 = vector.shape_cast %35 : vector<2x16x16x4xf32> to vector<512x4xf32>
    %37 = arith.truncf %36 : vector<512x4xf32> to vector<512x4xbf16>
    %c3 = arith.constant 3 : index
    %c0_44 = arith.constant 0 : index
    %c0_45 = arith.constant 0 : index
    %38 = vector.load %arg4[%c3, %c0_44, %c0_45] : memref<9x4x4xbf16, #tpu.memory_space<vmem>>, vector<1x4x4xbf16>
    %39 = vector.shape_cast %38 : vector<1x4x4xbf16> to vector<4x4xbf16>
    %cst_46 = arith.constant dense<0.000000e+00> : vector<512x4xf32>
    %40 = tpu.matmul %37, %39, %cst_46 {dimension_numbers = #tpu.dot_dimension_numbers<[1], [0], [0], [1], [0, 0, 1, 1], [], []>} : vector<512x4xbf16>, vector<4x4xbf16>, vector<512x4xf32> -> vector<512x4xf32>
    %41 = arith.addf %34, %40 : vector<512x4xf32>
    %c0_47 = arith.constant 0 : index
    %c1_48 = arith.constant 1 : index
    %c1_49 = arith.constant 1 : index
    %c0_50 = arith.constant 0 : index
    %42 = vector.load %arg7[%c0_47, %c1_48, %c1_49, %c0_50] : memref<2x18x18x4xf32, #tpu.memory_space<vmem>>, vector<2x16x16x4xf32>
    %43 = vector.shape_cast %42 : vector<2x16x16x4xf32> to vector<512x4xf32>
    %44 = arith.truncf %43 : vector<512x4xf32> to vector<512x4xbf16>
    %c4 = arith.constant 4 : index
    %c0_51 = arith.constant 0 : index
    %c0_52 = arith.constant 0 : index
    %45 = vector.load %arg4[%c4, %c0_51, %c0_52] : memref<9x4x4xbf16, #tpu.memory_space<vmem>>, vector<1x4x4xbf16>
    %46 = vector.shape_cast %45 : vector<1x4x4xbf16> to vector<4x4xbf16>
    %cst_53 = arith.constant dense<0.000000e+00> : vector<512x4xf32>
    %47 = tpu.matmul %44, %46, %cst_53 {dimension_numbers = #tpu.dot_dimension_numbers<[1], [0], [0], [1], [0, 0, 1, 1], [], []>} : vector<512x4xbf16>, vector<4x4xbf16>, vector<512x4xf32> -> vector<512x4xf32>
    %48 = arith.addf %41, %47 : vector<512x4xf32>
    %c0_54 = arith.constant 0 : index
    %c1_55 = arith.constant 1 : index
    %c2_56 = arith.constant 2 : index
    %c0_57 = arith.constant 0 : index
    %49 = vector.load %arg7[%c0_54, %c1_55, %c2_56, %c0_57] : memref<2x18x18x4xf32, #tpu.memory_space<vmem>>, vector<2x16x16x4xf32>
    %50 = vector.shape_cast %49 : vector<2x16x16x4xf32> to vector<512x4xf32>
    %51 = arith.truncf %50 : vector<512x4xf32> to vector<512x4xbf16>
    %c5 = arith.constant 5 : index
    %c0_58 = arith.constant 0 : index
    %c0_59 = arith.constant 0 : index
    %52 = vector.load %arg4[%c5, %c0_58, %c0_59] : memref<9x4x4xbf16, #tpu.memory_space<vmem>>, vector<1x4x4xbf16>
    %53 = vector.shape_cast %52 : vector<1x4x4xbf16> to vector<4x4xbf16>
    %cst_60 = arith.constant dense<0.000000e+00> : vector<512x4xf32>
    %54 = tpu.matmul %51, %53, %cst_60 {dimension_numbers = #tpu.dot_dimension_numbers<[1], [0], [0], [1], [0, 0, 1, 1], [], []>} : vector<512x4xbf16>, vector<4x4xbf16>, vector<512x4xf32> -> vector<512x4xf32>
    %55 = arith.addf %48, %54 : vector<512x4xf32>
    %c0_61 = arith.constant 0 : index
    %c2_62 = arith.constant 2 : index
    %c0_63 = arith.constant 0 : index
    %c0_64 = arith.constant 0 : index
    %56 = vector.load %arg7[%c0_61, %c2_62, %c0_63, %c0_64] : memref<2x18x18x4xf32, #tpu.memory_space<vmem>>, vector<2x16x16x4xf32>
    %57 = vector.shape_cast %56 : vector<2x16x16x4xf32> to vector<512x4xf32>
    %58 = arith.truncf %57 : vector<512x4xf32> to vector<512x4xbf16>
    %c6 = arith.constant 6 : index
    %c0_65 = arith.constant 0 : index
    %c0_66 = arith.constant 0 : index
    %59 = vector.load %arg4[%c6, %c0_65, %c0_66] : memref<9x4x4xbf16, #tpu.memory_space<vmem>>, vector<1x4x4xbf16>
    %60 = vector.shape_cast %59 : vector<1x4x4xbf16> to vector<4x4xbf16>
    %cst_67 = arith.constant dense<0.000000e+00> : vector<512x4xf32>
    %61 = tpu.matmul %58, %60, %cst_67 {dimension_numbers = #tpu.dot_dimension_numbers<[1], [0], [0], [1], [0, 0, 1, 1], [], []>} : vector<512x4xbf16>, vector<4x4xbf16>, vector<512x4xf32> -> vector<512x4xf32>
    %62 = arith.addf %55, %61 : vector<512x4xf32>
    %c0_68 = arith.constant 0 : index
    %c2_69 = arith.constant 2 : index
    %c1_70 = arith.constant 1 : index
    %c0_71 = arith.constant 0 : index
    %63 = vector.load %arg7[%c0_68, %c2_69, %c1_70, %c0_71] : memref<2x18x18x4xf32, #tpu.memory_space<vmem>>, vector<2x16x16x4xf32>
    %64 = vector.shape_cast %63 : vector<2x16x16x4xf32> to vector<512x4xf32>
    %65 = arith.truncf %64 : vector<512x4xf32> to vector<512x4xbf16>
    %c7 = arith.constant 7 : index
    %c0_72 = arith.constant 0 : index
    %c0_73 = arith.constant 0 : index
    %66 = vector.load %arg4[%c7, %c0_72, %c0_73] : memref<9x4x4xbf16, #tpu.memory_space<vmem>>, vector<1x4x4xbf16>
    %67 = vector.shape_cast %66 : vector<1x4x4xbf16> to vector<4x4xbf16>
    %cst_74 = arith.constant dense<0.000000e+00> : vector<512x4xf32>
    %68 = tpu.matmul %65, %67, %cst_74 {dimension_numbers = #tpu.dot_dimension_numbers<[1], [0], [0], [1], [0, 0, 1, 1], [], []>} : vector<512x4xbf16>, vector<4x4xbf16>, vector<512x4xf32> -> vector<512x4xf32>
    %69 = arith.addf %62, %68 : vector<512x4xf32>
    %c0_75 = arith.constant 0 : index
    %c2_76 = arith.constant 2 : index
    %c2_77 = arith.constant 2 : index
    %c0_78 = arith.constant 0 : index
    %70 = vector.load %arg7[%c0_75, %c2_76, %c2_77, %c0_78] : memref<2x18x18x4xf32, #tpu.memory_space<vmem>>, vector<2x16x16x4xf32>
    %71 = vector.shape_cast %70 : vector<2x16x16x4xf32> to vector<512x4xf32>
    %72 = arith.truncf %71 : vector<512x4xf32> to vector<512x4xbf16>
    %c8 = arith.constant 8 : index
    %c0_79 = arith.constant 0 : index
    %c0_80 = arith.constant 0 : index
    %73 = vector.load %arg4[%c8, %c0_79, %c0_80] : memref<9x4x4xbf16, #tpu.memory_space<vmem>>, vector<1x4x4xbf16>
    %74 = vector.shape_cast %73 : vector<1x4x4xbf16> to vector<4x4xbf16>
    %cst_81 = arith.constant dense<0.000000e+00> : vector<512x4xf32>
    %75 = tpu.matmul %72, %74, %cst_81 {dimension_numbers = #tpu.dot_dimension_numbers<[1], [0], [0], [1], [0, 0, 1, 1], [], []>} : vector<512x4xbf16>, vector<4x4xbf16>, vector<512x4xf32> -> vector<512x4xf32>
    %76 = arith.addf %69, %75 : vector<512x4xf32>
    %c0_82 = arith.constant 0 : index
    %c0_83 = arith.constant 0 : index
    %77 = vector.load %arg5[%c0_82, %c0_83] : memref<1x4xf32, #tpu.memory_space<vmem>>, vector<1x4xf32>
    %78 = vector.broadcast %77 : vector<1x4xf32> to vector<512x4xf32>
    %79 = arith.addf %76, %78 : vector<512x4xf32>
    %cst_84 = arith.constant 0.000000e+00 : f32
    %80 = vector.broadcast %cst_84 : f32 to vector<512x4xf32>
    %81 = arith.maximumf %79, %80 : vector<512x4xf32>
    %82 = vector.shape_cast %81 : vector<512x4xf32> to vector<2x16x16x4xf32>
    %83 = arith.truncf %82 : vector<2x16x16x4xf32> to vector<2x16x16x4xbf16>
    %c0_85 = arith.constant 0 : index
    %c0_86 = arith.constant 0 : index
    %c0_87 = arith.constant 0 : index
    %c0_88 = arith.constant 0 : index
    %84 = vector.load %arg6[%c0_85, %c0_86, %c0_87, %c0_88] : memref<2x16x16x4xbf16, #tpu.memory_space<vmem>>, vector<2x16x16x4xbf16>
    tpu.vector_store %arg6[%c0_85, %c0_86, %c0_87, %c0_88], %83 {strides = array<i32>} : memref<2x16x16x4xbf16, #tpu.memory_space<vmem>>, vector<2x16x16x4xbf16>,
    return
  }
  func.func @transform_0(%arg0: i32) -> (i32, i32, i32, i32) {
    %c0_i32 = arith.constant 0 : i32
    %c0_i32_0 = arith.constant 0 : i32
    %c0_i32_1 = arith.constant 0 : i32
    %c0_i32_2 = arith.constant 0 : i32
    return %arg0, %c0_i32, %c0_i32_0, %c0_i32_1 : i32, i32, i32, i32
  }
  func.func @transform_1(%arg0: i32) -> (i32, i32) {
    %c0_i32 = arith.constant 0 : i32
    %c0_i32_0 = arith.constant 0 : i32
    %c0_i32_1 = arith.constant 0 : i32
    return %c0_i32, %c0_i32_0 : i32, i32
  }
  func.func @transform_2(%arg0: i32) -> (i32, i32) {
    %c0_i32 = arith.constant 0 : i32
    %c0_i32_0 = arith.constant 0 : i32
    %c0_i32_1 = arith.constant 0 : i32
    return %c0_i32, %c0_i32_0 : i32, i32
  }
  func.func @transform_3(%arg0: i32) -> (i32, i32, i32) {
    %c0_i32 = arith.constant 0 : i32
    %c0_i32_0 = arith.constant 0 : i32
    %c0_i32_1 = arith.constant 0 : i32
    %c0_i32_2 = arith.constant 0 : i32
    return %c0_i32, %c0_i32_0, %c0_i32_1 : i32, i32, i32
  }
  func.func @transform_4(%arg0: i32) -> (i32, i32) {
    %c0_i32 = arith.constant 0 : i32
    %c0_i32_0 = arith.constant 0 : i32
    %c0_i32_1 = arith.constant 0 : i32
    return %c0_i32, %c0_i32_0 : i32, i32
  }
  func.func @transform_5(%arg0: i32) -> (i32, i32, i32, i32) {
    %c0_i32 = arith.constant 0 : i32
    %c0_i32_0 = arith.constant 0 : i32
    %c0_i32_1 = arith.constant 0 : i32
    %c0_i32_2 = arith.constant 0 : i32
    return %arg0, %c0_i32, %c0_i32_0, %c0_i32_1 : i32, i32, i32, i32
  }
}

module attributes {stable_mosaic.version = 11 : i64} {
  func.func @kernel(%arg0: i32, %arg1: i32, %arg2: memref<1x8x64x4xbf16, #tpu.memory_space<vmem>>, %arg3: memref<3x4x4xbf16, #tpu.memory_space<vmem>>, %arg4: memref<1x4xf32, #tpu.memory_space<vmem>>, %arg5: memref<1x8x64x4xbf16, #tpu.memory_space<vmem>>, %arg6: memref<10x64x4xbf16, #tpu.memory_space<vmem>>) attributes {dimension_semantics = [#tpu.dimension_semantics<parallel>, #tpu.dimension_semantics<parallel>], iteration_bounds = array<i64: 2, 4>, scalar_prefetch = 0 : i64, scratch_operands = 1 : i64, tpu.core_type = #tpu.core_type<tc>, window_params = [{transform_indices = @transform_0, window_bounds = array<i64: 1, 8, 64, 4>}, {pipeline_mode = #tpu.pipeline_mode<synchronous>, transform_indices = @transform_1, window_bounds = array<i64: 3, 4, 4>}, {pipeline_mode = #tpu.pipeline_mode<synchronous>, transform_indices = @transform_2, window_bounds = array<i64: 1, 4>}, {transform_indices = @transform_3, window_bounds = array<i64: 1, 8, 64, 4>}]} {
    %cst = arith.constant 0.000000e+00 : bf16
    %0 = vector.broadcast %cst : bf16 to vector<1x64x4xbf16>
    %c0 = arith.constant 0 : index
    %c0_0 = arith.constant 0 : index
    %c0_1 = arith.constant 0 : index
    %1 = vector.load %arg6[%c0, %c0_0, %c0_1] : memref<10x64x4xbf16, #tpu.memory_space<vmem>>, vector<1x64x4xbf16>
    tpu.vector_store %arg6[%c0, %c0_0, %c0_1], %0 {strides = array<i32>} : memref<10x64x4xbf16, #tpu.memory_space<vmem>>, vector<1x64x4xbf16>,
    %c9 = arith.constant 9 : index
    %c0_2 = arith.constant 0 : index
    %c0_3 = arith.constant 0 : index
    %2 = vector.load %arg6[%c9, %c0_2, %c0_3] : memref<10x64x4xbf16, #tpu.memory_space<vmem>>, vector<1x64x4xbf16>
    tpu.vector_store %arg6[%c9, %c0_2, %c0_3], %0 {strides = array<i32>} : memref<10x64x4xbf16, #tpu.memory_space<vmem>>, vector<1x64x4xbf16>,
    %c0_4 = arith.constant 0 : index
    %c0_5 = arith.constant 0 : index
    %c0_6 = arith.constant 0 : index
    %c0_7 = arith.constant 0 : index
    %3 = vector.load %arg2[%c0_4, %c0_5, %c0_6, %c0_7] : memref<1x8x64x4xbf16, #tpu.memory_space<vmem>>, vector<1x8x64x4xbf16>
    %4 = vector.shape_cast %3 : vector<1x8x64x4xbf16> to vector<8x64x4xbf16>
    %c1 = arith.constant 1 : index
    %c0_8 = arith.constant 0 : index
    %c0_9 = arith.constant 0 : index
    %5 = vector.load %arg6[%c1, %c0_8, %c0_9] : memref<10x64x4xbf16, #tpu.memory_space<vmem>>, vector<8x64x4xbf16>
    tpu.vector_store %arg6[%c1, %c0_8, %c0_9], %4 {strides = array<i32>} : memref<10x64x4xbf16, #tpu.memory_space<vmem>>, vector<8x64x4xbf16>,
    %cst_10 = arith.constant 0.000000e+00 : f32
    %6 = vector.broadcast %cst_10 : f32 to vector<512x4xf32>
    %c0_11 = arith.constant 0 : index
    %c0_12 = arith.constant 0 : index
    %c0_13 = arith.constant 0 : index
    %7 = vector.load %arg6[%c0_11, %c0_12, %c0_13] : memref<10x64x4xbf16, #tpu.memory_space<vmem>>, vector<8x64x4xbf16>
    %8 = vector.shape_cast %7 : vector<8x64x4xbf16> to vector<512x4xbf16>
    %c0_14 = arith.constant 0 : index
    %c0_15 = arith.constant 0 : index
    %c0_16 = arith.constant 0 : index
    %9 = vector.load %arg3[%c0_14, %c0_15, %c0_16] : memref<3x4x4xbf16, #tpu.memory_space<vmem>>, vector<1x4x4xbf16>
    %10 = vector.shape_cast %9 : vector<1x4x4xbf16> to vector<4x4xbf16>
    %cst_17 = arith.constant dense<0.000000e+00> : vector<512x4xf32>
    %11 = tpu.matmul %8, %10, %cst_17 {dimension_numbers = #tpu.dot_dimension_numbers<[1], [0], [0], [1], [0, 0, 1, 1], [], []>} : vector<512x4xbf16>, vector<4x4xbf16>, vector<512x4xf32> -> vector<512x4xf32>
    %12 = arith.addf %6, %11 : vector<512x4xf32>
    %c1_18 = arith.constant 1 : index
    %c0_19 = arith.constant 0 : index
    %c0_20 = arith.constant 0 : index
    %13 = vector.load %arg6[%c1_18, %c0_19, %c0_20] : memref<10x64x4xbf16, #tpu.memory_space<vmem>>, vector<8x64x4xbf16>
    %14 = vector.shape_cast %13 : vector<8x64x4xbf16> to vector<512x4xbf16>
    %c1_21 = arith.constant 1 : index
    %c0_22 = arith.constant 0 : index
    %c0_23 = arith.constant 0 : index
    %15 = vector.load %arg3[%c1_21, %c0_22, %c0_23] : memref<3x4x4xbf16, #tpu.memory_space<vmem>>, vector<1x4x4xbf16>
    %16 = vector.shape_cast %15 : vector<1x4x4xbf16> to vector<4x4xbf16>
    %cst_24 = arith.constant dense<0.000000e+00> : vector<512x4xf32>
    %17 = tpu.matmul %14, %16, %cst_24 {dimension_numbers = #tpu.dot_dimension_numbers<[1], [0], [0], [1], [0, 0, 1, 1], [], []>} : vector<512x4xbf16>, vector<4x4xbf16>, vector<512x4xf32> -> vector<512x4xf32>
    %18 = arith.addf %12, %17 : vector<512x4xf32>
    %c2 = arith.constant 2 : index
    %c0_25 = arith.constant 0 : index
    %c0_26 = arith.constant 0 : index
    %19 = vector.load %arg6[%c2, %c0_25, %c0_26] : memref<10x64x4xbf16, #tpu.memory_space<vmem>>, vector<8x64x4xbf16>
    %20 = vector.shape_cast %19 : vector<8x64x4xbf16> to vector<512x4xbf16>
    %c2_27 = arith.constant 2 : index
    %c0_28 = arith.constant 0 : index
    %c0_29 = arith.constant 0 : index
    %21 = vector.load %arg3[%c2_27, %c0_28, %c0_29] : memref<3x4x4xbf16, #tpu.memory_space<vmem>>, vector<1x4x4xbf16>
    %22 = vector.shape_cast %21 : vector<1x4x4xbf16> to vector<4x4xbf16>
    %cst_30 = arith.constant dense<0.000000e+00> : vector<512x4xf32>
    %23 = tpu.matmul %20, %22, %cst_30 {dimension_numbers = #tpu.dot_dimension_numbers<[1], [0], [0], [1], [0, 0, 1, 1], [], []>} : vector<512x4xbf16>, vector<4x4xbf16>, vector<512x4xf32> -> vector<512x4xf32>
    %24 = arith.addf %18, %23 : vector<512x4xf32>
    %c0_31 = arith.constant 0 : index
    %c0_32 = arith.constant 0 : index
    %25 = vector.load %arg4[%c0_31, %c0_32] : memref<1x4xf32, #tpu.memory_space<vmem>>, vector<1x4xf32>
    %26 = vector.broadcast %25 : vector<1x4xf32> to vector<512x4xf32>
    %27 = arith.addf %24, %26 : vector<512x4xf32>
    %cst_33 = arith.constant 0.000000e+00 : f32
    %28 = vector.broadcast %cst_33 : f32 to vector<512x4xf32>
    %29 = arith.maximumf %27, %28 : vector<512x4xf32>
    %30 = vector.shape_cast %29 : vector<512x4xf32> to vector<1x8x64x4xf32>
    %31 = arith.truncf %30 : vector<1x8x64x4xf32> to vector<1x8x64x4xbf16>
    %c0_34 = arith.constant 0 : index
    %c0_35 = arith.constant 0 : index
    %c0_36 = arith.constant 0 : index
    %c0_37 = arith.constant 0 : index
    %32 = vector.load %arg5[%c0_34, %c0_35, %c0_36, %c0_37] : memref<1x8x64x4xbf16, #tpu.memory_space<vmem>>, vector<1x8x64x4xbf16>
    tpu.vector_store %arg5[%c0_34, %c0_35, %c0_36, %c0_37], %31 {strides = array<i32>} : memref<1x8x64x4xbf16, #tpu.memory_space<vmem>>, vector<1x8x64x4xbf16>,
    return
  }
  func.func @transform_0(%arg0: i32, %arg1: i32) -> (i32, i32, i32, i32) {
    %c0_i32 = arith.constant 0 : i32
    %c0_i32_0 = arith.constant 0 : i32
    %c0_i32_1 = arith.constant 0 : i32
    return %arg0, %c0_i32, %arg1, %c0_i32_0 : i32, i32, i32, i32
  }
  func.func @transform_1(%arg0: i32, %arg1: i32) -> (i32, i32, i32) {
    %c0_i32 = arith.constant 0 : i32
    %c0_i32_0 = arith.constant 0 : i32
    %c0_i32_1 = arith.constant 0 : i32
    %c0_i32_2 = arith.constant 0 : i32
    return %c0_i32, %c0_i32_0, %c0_i32_1 : i32, i32, i32
  }
  func.func @transform_2(%arg0: i32, %arg1: i32) -> (i32, i32) {
    %c0_i32 = arith.constant 0 : i32
    %c0_i32_0 = arith.constant 0 : i32
    %c0_i32_1 = arith.constant 0 : i32
    return %c0_i32, %c0_i32_0 : i32, i32
  }
  func.func @transform_3(%arg0: i32, %arg1: i32) -> (i32, i32, i32, i32) {
    %c0_i32 = arith.constant 0 : i32
    %c0_i32_0 = arith.constant 0 : i32
    %c0_i32_1 = arith.constant 0 : i32
    return %arg0, %c0_i32, %arg1, %c0_i32_0 : i32, i32, i32, i32
  }
}

module attributes {stable_mosaic.version = 11 : i64} {
  func.func @_pw_residual_kernel(%arg0: i32, %arg1: memref<512x4xbf16, #tpu.memory_space<vmem>>, %arg2: memref<4x16xbf16, #tpu.memory_space<vmem>>, %arg3: memref<1x16xf32, #tpu.memory_space<vmem>>, %arg4: memref<512x16xbf16, #tpu.memory_space<vmem>>, %arg5: memref<512x16xf32, #tpu.memory_space<vmem>>) attributes {dimension_semantics = [#tpu.dimension_semantics<parallel>], iteration_bounds = array<i64: 8>, scalar_prefetch = 0 : i64, scratch_operands = 0 : i64, tpu.core_type = #tpu.core_type<tc>, window_params = [{transform_indices = @transform_0, window_bounds = array<i64: 512, 4>}, {pipeline_mode = #tpu.pipeline_mode<synchronous>, transform_indices = @transform_1, window_bounds = array<i64: 4, 16>}, {pipeline_mode = #tpu.pipeline_mode<synchronous>, transform_indices = @transform_2, window_bounds = array<i64: 1, 16>}, {transform_indices = @transform_3, window_bounds = array<i64: 512, 16>}, {transform_indices = @transform_4, window_bounds = array<i64: 512, 16>}]} {
    %c0 = arith.constant 0 : index
    %c0_0 = arith.constant 0 : index
    %0 = vector.load %arg1[%c0, %c0_0] : memref<512x4xbf16, #tpu.memory_space<vmem>>, vector<512x4xbf16>
    %c0_1 = arith.constant 0 : index
    %c0_2 = arith.constant 0 : index
    %1 = vector.load %arg2[%c0_1, %c0_2] : memref<4x16xbf16, #tpu.memory_space<vmem>>, vector<4x16xbf16>
    %cst = arith.constant dense<0.000000e+00> : vector<512x16xf32>
    %2 = tpu.matmul %0, %1, %cst {dimension_numbers = #tpu.dot_dimension_numbers<[1], [0], [0], [1], [0, 0, 1, 1], [], []>} : vector<512x4xbf16>, vector<4x16xbf16>, vector<512x16xf32> -> vector<512x16xf32>
    %c0_3 = arith.constant 0 : index
    %c0_4 = arith.constant 0 : index
    %3 = vector.load %arg3[%c0_3, %c0_4] : memref<1x16xf32, #tpu.memory_space<vmem>>, vector<1x16xf32>
    %4 = vector.broadcast %3 : vector<1x16xf32> to vector<512x16xf32>
    %5 = arith.addf %2, %4 : vector<512x16xf32>
    %c0_5 = arith.constant 0 : index
    %c0_6 = arith.constant 0 : index
    %6 = vector.load %arg4[%c0_5, %c0_6] : memref<512x16xbf16, #tpu.memory_space<vmem>>, vector<512x16xbf16>
    %7 = arith.extf %6 : vector<512x16xbf16> to vector<512x16xf32>
    %8 = arith.addf %5, %7 : vector<512x16xf32>
    %cst_7 = arith.constant 0.000000e+00 : f32
    %9 = vector.broadcast %cst_7 : f32 to vector<512x16xf32>
    %10 = arith.maximumf %8, %9 : vector<512x16xf32>
    %c0_8 = arith.constant 0 : index
    %c0_9 = arith.constant 0 : index
    %11 = vector.load %arg5[%c0_8, %c0_9] : memref<512x16xf32, #tpu.memory_space<vmem>>, vector<512x16xf32>
    tpu.vector_store %arg5[%c0_8, %c0_9], %10 {strides = array<i32>} : memref<512x16xf32, #tpu.memory_space<vmem>>, vector<512x16xf32>,
    return
  }
  func.func @transform_0(%arg0: i32) -> (i32, i32) {
    %c0_i32 = arith.constant 0 : i32
    %c0_i32_0 = arith.constant 0 : i32
    return %arg0, %c0_i32 : i32, i32
  }
  func.func @transform_1(%arg0: i32) -> (i32, i32) {
    %c0_i32 = arith.constant 0 : i32
    %c0_i32_0 = arith.constant 0 : i32
    %c0_i32_1 = arith.constant 0 : i32
    return %c0_i32, %c0_i32_0 : i32, i32
  }
  func.func @transform_2(%arg0: i32) -> (i32, i32) {
    %c0_i32 = arith.constant 0 : i32
    %c0_i32_0 = arith.constant 0 : i32
    %c0_i32_1 = arith.constant 0 : i32
    return %c0_i32, %c0_i32_0 : i32, i32
  }
  func.func @transform_3(%arg0: i32) -> (i32, i32) {
    %c0_i32 = arith.constant 0 : i32
    %c0_i32_0 = arith.constant 0 : i32
    return %arg0, %c0_i32 : i32, i32
  }
  func.func @transform_4(%arg0: i32) -> (i32, i32) {
    %c0_i32 = arith.constant 0 : i32
    %c0_i32_0 = arith.constant 0 : i32
    return %arg0, %c0_i32 : i32, i32
  }
}

</mosaic_0001>

<llo_original>
// kernel: bottleneck_forward.4
$region0: #{bottleneck_forward.4}
  #allocation0 [shape = 'u32[]', space=smem, size = 0x4, offset = 0x4, fixed_abs, tag = 'smem constant byte address 0x4 - core index']
  #allocation1 [shape = 'u32[144,128]{1,0:T(1,128)}', space=vmem, size = 0x12000, scoped, tag = 'internal scratch']
  #allocation2 [shape = 'bf16[10,64,4]{2,1,0:T(8,128)(2,1)}', space=vmem, size = 0x28000, scoped, tag = 'scratch operand']
  %s0 = inlined_call_operand.vmem [shape: bf16[2,8,256,4], index: 0, kind: input, shape index: {}]
  %s1 = inlined_call_operand.vmem [shape: bf16[3,4,4], index: 1, kind: input, shape index: {}]
  %s2 = inlined_call_operand.vmem [shape: f32[1,4], index: 2, kind: input, shape index: {}]
  %s3 = inlined_call_operand.vmem [shape: bf16[2,8,256,4], index: 3, kind: output, shape index: {}]
  %s4 = sld [smem:[#allocation0]]
  $region123: #{bottleneck_forward.4} parent=0
    _
  %s6 = ssub.s32 1, %s4
  %s7 = scalar_select 0, %s6, %s4
  $region1: #{bottleneck_forward.4} parent=0
    #allocation3 [shape = 'u8[262144]{0}', space=vmem, size = 0x40000, scoped, tag = 'input window, operand 0']
    #allocation4 [shape = 'u8[262144]{0}', space=vmem, size = 0x40000, scoped, tag = 'output window, operand 0']
    loop: start=0, step=1, limit=10
    $region2: #{bottleneck_forward.4} parent=1 // loop_pre_header
      _
    $region3: #{bottleneck_forward.4} parent=1 // loop_header
      %s9 = sphi 0, %s13
      %p10 = scmp.ge.s32.totalorder %s9, 10
      %s16 = sphi 0, %s28
      %s17 = sphi 0, %s24
      %s18 = sphi 0, %s16
      %s19 = sphi 0, %s17
      %s20 = sphi 0, %s18
      %s21 = sphi 0, %s19
      %s33 = sphi 0, %s35
      %s36 = sphi 0, %s33
      %s37 = sphi 0, %s36
      %s53 = sphi 0, %s37
      %s57 = sphi 0, %s57
      %s59 = sphi 0, %s57
      %s60 = sphi 0, %s59
      %s74 = sphi 0, %s60
      %s78 = sphi 0, %s78
      %s80 = sphi 0, %s78
      %s81 = sphi 0, %s80
      %s95 = sphi 0, %s81
      %s103 = sphi 0, %s105
      %s106 = sphi 0, %s103
      %s107 = sphi 0, %s106
      %s123 = sphi 0, %s107
    $region4: #{bottleneck_forward.4} parent=1 // loop_header_branch
      %12 = sbr.rel (%p10) target = $region8
    $region5: #{bottleneck_forward.4} parent=1 // loop_body
      %s14 = ssub.s32 %s9, 1
      %s15 = ssub.s32 %s9, 2
      %s22 = sadd.s32 1, %s17
      %p23 = scmp.ge.s32.totalorder %s22, 4
      %s24 = scalar_select %p23, 0, %s22
      %s25 = sadd.s32 1, %s16
      %s26 = scalar_select %p23, %s25, %s16
      %p27 = scmp.ge.s32.totalorder %s26, 2
      %s28 = scalar_select %p27, 0, %s26
      %s29 = ssub.s32 %s16, %s28
      %s30 = ssub.s32 %s17, %s24
      %s31 = sor.u32 %s29, %s30
      %p32 = scmp.eq.s32.totalorder %s31, 0
      %s34 = sadd.s32 %s33, 1
      %s35 = scalar_select %p32, %s33, %s34
      %p38 = pneg %p32
      %p39 = scmp.eq.s32.totalorder %s9, 7
      %p40 = por %p38, %p39
      %p41 = scmp.ne.s32.totalorder %s33, %s36
      %p42 = scmp.eq.s32.totalorder %s9, 0
      %p43 = por %p41, %p42
      %p44 = scmp.ne.s32.totalorder %s33, %s36
      %p45 = scmp.eq.s32.totalorder %s14, 7
      %p46 = por %p44, %p45
      %p47 = scmp.ne.s32.totalorder %s36, %s37
      %p48 = scmp.eq.s32.totalorder %s14, 0
      %p49 = por %p47, %p48
      %p50 = scmp.ne.s32.totalorder %s36, %s37
      %p51 = scmp.eq.s32.totalorder %s15, 7
      %p52 = por %p50, %p51
      %p54 = scmp.ne.s32.totalorder %s37, %s53
      %p55 = scmp.eq.s32.totalorder %s15, 0
      %p56 = por %p54, %p55
      %s58 = sadd.s32 %s57, 1
      %p61 = scmp.eq.s32.totalorder %s9, 7
      %p62 = scmp.ne.s32.totalorder %s57, %s59
      %p63 = scmp.eq.s32.totalorder %s9, 0
      %p64 = por %p62, %p63
      %p65 = scmp.ne.s32.totalorder %s57, %s59
      %p66 = scmp.eq.s32.totalorder %s14, 7
      %p67 = por %p65, %p66
      %p68 = scmp.ne.s32.totalorder %s59, %s60
      %p69 = scmp.eq.s32.totalorder %s14, 0
      %p70 = por %p68, %p69
      %p71 = scmp.ne.s32.totalorder %s59, %s60
      %p72 = scmp.eq.s32.totalorder %s15, 7
      %p73 = por %p71, %p72
      %p75 = scmp.ne.s32.totalorder %s60, %s74
      %p76 = scmp.eq.s32.totalorder %s15, 0
      %p77 = por %p75, %p76
      %s79 = sadd.s32 %s78, 1
      %p82 = scmp.eq.s32.totalorder %s9, 7
      %p83 = scmp.ne.s32.totalorder %s78, %s80
      %p84 = scmp.eq.s32.totalorder %s9, 0
      %p85 = por %p83, %p84
      %p86 = scmp.ne.s32.totalorder %s78, %s80
      %p87 = scmp.eq.s32.totalorder %s14, 7
      %p88 = por %p86, %p87
      %p89 = scmp.ne.s32.totalorder %s80, %s81
      %p90 = scmp.eq.s32.totalorder %s14, 0
      %p91 = por %p89, %p90
      %p92 = scmp.ne.s32.totalorder %s80, %s81
      %p93 = scmp.eq.s32.totalorder %s15, 7
      %p94 = por %p92, %p93
      %p96 = scmp.ne.s32.totalorder %s81, %s95
      %p97 = scmp.eq.s32.totalorder %s15, 0
      %p98 = por %p96, %p97
      %s99 = ssub.s32 %s16, %s28
      %s100 = ssub.s32 %s17, %s24
      %s101 = sor.u32 %s99, %s100
      %p102 = scmp.eq.s32.totalorder %s101, 0
      %s104 = sadd.s32 %s103, 1
      %s105 = scalar_select %p102, %s103, %s104
      %p108 = pneg %p102
      %p109 = scmp.eq.s32.totalorder %s9, 7
      %p110 = por %p108, %p109
      %p111 = scmp.ne.s32.totalorder %s103, %s106
      %p112 = scmp.eq.s32.totalorder %s9, 0
      %p113 = por %p111, %p112
      %p114 = scmp.ne.s32.totalorder %s103, %s106
      %p115 = scmp.eq.s32.totalorder %s14, 7
      %p116 = por %p114, %p115
      %p117 = scmp.ne.s32.totalorder %s106, %s107
      %p118 = scmp.eq.s32.totalorder %s14, 0
      %p119 = por %p117, %p118
      %p120 = scmp.ne.s32.totalorder %s106, %s107
      %p121 = scmp.eq.s32.totalorder %s15, 7
      %p122 = por %p120, %p121
      %p124 = scmp.ne.s32.totalorder %s107, %s123
      %p125 = scmp.eq.s32.totalorder %s15, 0
      %p126 = por %p124, %p125
      %p127 = scmp.le.s32.totalorder 1, %s9
      %p128 = scmp.lt.s32.totalorder %s9, 9
      %p129 = pnand %p127, %p128
      %p130 = pneg %p129
      // Predicated region
      $region9: #{bottleneck_forward.4} parent=5 // pred_check
        _
      $region10: #{bottleneck_forward.4} parent=5 // pred_check_branch
        %132 = sbr.rel (%p129) target = $region12
      $region11: #{bottleneck_forward.4} parent=5 // pred_region
        %s133 = ssub.s32 %s9, 1
        // Predicated region
        $region13: #{bottleneck_forward.4} parent=11 // pred_check
          %p134 = pneg %p70
        $region14: #{bottleneck_forward.4} parent=11 // pred_check_branch
          %136 = sbr.rel (%p134) target = $region16
        $region15: #{bottleneck_forward.4} parent=11 // pred_region
          _
        $region16: #{bottleneck_forward.4} parent=11 // pred_fallthru
          _
        // Predicated region
        $region17: #{bottleneck_forward.4} parent=11 // pred_check
          %p137 = pneg %p91
        $region18: #{bottleneck_forward.4} parent=11 // pred_check_branch
          %139 = sbr.rel (%p137) target = $region20
        $region19: #{bottleneck_forward.4} parent=11 // pred_region
          _
        $region20: #{bottleneck_forward.4} parent=11 // pred_fallthru
          _
      $region12: #{bottleneck_forward.4} parent=5 // pred_fallthru
        _
      %p140 = scmp.lt.s32.totalorder %s9, 8
      // Predicated region
      $region21: #{bottleneck_forward.4} parent=5 // pred_check
        %p141 = pneg %p140
      $region22: #{bottleneck_forward.4} parent=5 // pred_check_branch
        %143 = sbr.rel (%p141) target = $region24
      $region23: #{bottleneck_forward.4} parent=5 // pred_region
        // Predicated region
        $region25: #{bottleneck_forward.4} parent=23 // pred_check
          %p144 = pneg %p43
        $region26: #{bottleneck_forward.4} parent=23 // pred_check_branch
          %146 = sbr.rel (%p144) target = $region28
        $region27: #{bottleneck_forward.4} parent=23 // pred_region
          %s147 = sand.u32 %s33, 1
          %s148 = sand.u32 %s33, 1
          %s149 = smul.addr %s148, 256
          %s150 = scalar_lea.vmem [#allocation3], %s149
          %s151 = smul.u32 8, %s17
          %s152 = smul.addr %s16, 256
          %s153 = sadd.s32 %s151, %s152
          %s154 = smul.addr %s153, 4
          %s155 = scalar_lea.vmem %s0, %s154
          // Predicated region
          $region29: #{bottleneck_forward.4} parent=27 // pred_check
            _
          $region30: #{bottleneck_forward.4} parent=27 // pred_check_branch
            %157 = sbr.rel (0) target = $region32
          $region31: #{bottleneck_forward.4} parent=27 // pred_region
            // Predicated region
            $region33: #{bottleneck_forward.4} parent=31 // pred_check
              _
            $region34: #{bottleneck_forward.4} parent=31 // pred_check_branch
              %159 = sbr.rel target = $region36
            $region35: #{bottleneck_forward.4} parent=31 // pred_region
              // Predicated region
              $region48: #{bottleneck_forward.4} parent=35 // pred_check
                _
              $region49: #{bottleneck_forward.4} parent=35 // pred_check_branch
                %301 = sbr.rel (0) target = $region51
              $region50: #{bottleneck_forward.4} parent=35 // pred_region
                loop: start=0, step=1, limit=1
                $region52: #{bottleneck_forward.4} parent=50 // loop_pre_header
                  _
                $region53: #{bottleneck_forward.4} parent=50 // loop_header
                  %s303 = sphi 0, %s307
                  %p304 = scmp.ge.s32.totalorder %s303, 1
                  %s308 = sphi %s155, %s155
                  %s309 = sphi %s150, %s150
                $region54: #{bottleneck_forward.4} parent=50 // loop_header_branch
                  %306 = sbr.rel (%p304) target = $region58
                $region55: #{bottleneck_forward.4} parent=50 // loop_body
                  _
                $region56: #{bottleneck_forward.4} parent=50 // loop_footer
                  %s307 = sadd.s32 1, %s303
                $region57: #{bottleneck_forward.4} parent=50 // loop_footer_branch
                  %302 = sbr.rel target = $region53
                $region58: #{bottleneck_forward.4} parent=50 // loop_exit
                  _
                %s311 = ssub.s32 16, 1
                loop: start=0, step=1, limit=1
                $region59: #{bottleneck_forward.4} parent=50 // loop_pre_header
                  _
                $region60: #{bottleneck_forward.4} parent=50 // loop_header
                  %s313 = sphi 0, %s317
                  %p314 = scmp.ge.s32.totalorder %s313, 1
                  %s318 = sphi %s155, %s155
                  %s319 = sphi %s150, %s150
                $region61: #{bottleneck_forward.4} parent=50 // loop_header_branch
                  %316 = sbr.rel (%p314) target = $region65
                $region62: #{bottleneck_forward.4} parent=50 // loop_body
                  %v320 = vld [vmem:[%s318] sm:%s311]
                  %321 = vst [vmem:[%s319] sm:%s311] %v320
                  %v322 = vld [vmem:[%s318 + $0x4] sm:%s311]
                  %323 = vst [vmem:[%s319 + $0x4] sm:%s311] %v322
                  %v324 = vld [vmem:[%s318 + $0x8] sm:%s311]
                  %325 = vst [vmem:[%s319 + $0x8] sm:%s311] %v324
                  %v326 = vld [vmem:[%s318 + $0xc] sm:%s311]
                  %327 = vst [vmem:[%s319 + $0xc] sm:%s311] %v326
                  %v328 = vld [vmem:[%s318 + $0x10] sm:%s311]
                  %329 = vst [vmem:[%s319 + $0x10] sm:%s311] %v328
                  %v330 = vld [vmem:[%s318 + $0x14] sm:%s311]
                  %331 = vst [vmem:[%s319 + $0x14] sm:%s311] %v330
                  %v332 = vld [vmem:[%s318 + $0x18] sm:%s311]
                  %333 = vst [vmem:[%s319 + $0x18] sm:%s311] %v332
                  %v334 = vld [vmem:[%s318 + $0x1c] sm:%s311]
                  %335 = vst [vmem:[%s319 + $0x1c] sm:%s311] %v334
                  %v336 = vld [vmem:[%s318 + $0x80] sm:%s311]
                  %337 = vst [vmem:[%s319 + $0x20] sm:%s311] %v336
                  %v338 = vld [vmem:[%s318 + $0x84] sm:%s311]
                  %339 = vst [vmem:[%s319 + $0x24] sm:%s311] %v338
                  %v340 = vld [vmem:[%s318 + $0x88] sm:%s311]
                  %341 = vst [vmem:[%s319 + $0x28] sm:%s311] %v340
                  %v342 = vld [vmem:[%s318 + $0x8c] sm:%s311]
                  %343 = vst [vmem:[%s319 + $0x2c] sm:%s311] %v342
                  %v344 = vld [vmem:[%s318 + $0x90] sm:%s311]
                  %345 = vst [vmem:[%s319 + $0x30] sm:%s311] %v344
                  %v346 = vld [vmem:[%s318 + $0x94] sm:%s311]
                  %347 = vst [vmem:[%s319 + $0x34] sm:%s311] %v346
                  %v348 = vld [vmem:[%s318 + $0x98] sm:%s311]
                  %349 = vst [vmem:[%s319 + $0x38] sm:%s311] %v348
                  %v350 = vld [vmem:[%s318 + $0x9c] sm:%s311]
                  %351 = vst [vmem:[%s319 + $0x3c] sm:%s311] %v350
                  %v352 = vld [vmem:[%s318 + $0x100] sm:%s311]
                  %353 = vst [vmem:[%s319 + $0x40] sm:%s311] %v352
                  %v354 = vld [vmem:[%s318 + $0x104] sm:%s311]
                  %355 = vst [vmem:[%s319 + $0x44] sm:%s311] %v354
                  %v356 = vld [vmem:[%s318 + $0x108] sm:%s311]
                  %357 = vst [vmem:[%s319 + $0x48] sm:%s311] %v356
                  %v358 = vld [vmem:[%s318 + $0x10c] sm:%s311]
                  %359 = vst [vmem:[%s319 + $0x4c] sm:%s311] %v358
                  %v360 = vld [vmem:[%s318 + $0x110] sm:%s311]
                  %361 = vst [vmem:[%s319 + $0x50] sm:%s311] %v360
                  %v362 = vld [vmem:[%s318 + $0x114] sm:%s311]
                  %363 = vst [vmem:[%s319 + $0x54] sm:%s311] %v362
                  %v364 = vld [vmem:[%s318 + $0x118] sm:%s311]
                  %365 = vst [vmem:[%s319 + $0x58] sm:%s311] %v364
                  %v366 = vld [vmem:[%s318 + $0x11c] sm:%s311]
                  %367 = vst [vmem:[%s319 + $0x5c] sm:%s311] %v366
                  %v368 = vld [vmem:[%s318 + $0x180] sm:%s311]
                  %369 = vst [vmem:[%s319 + $0x60] sm:%s311] %v368
                  %v370 = vld [vmem:[%s318 + $0x184] sm:%s311]
                  %371 = vst [vmem:[%s319 + $0x64] sm:%s311] %v370
                  %v372 = vld [vmem:[%s318 + $0x188] sm:%s311]
                  %373 = vst [vmem:[%s319 + $0x68] sm:%s311] %v372
                  %v374 = vld [vmem:[%s318 + $0x18c] sm:%s311]
                  %375 = vst [vmem:[%s319 + $0x6c] sm:%s311] %v374
                  %v376 = vld [vmem:[%s318 + $0x190] sm:%s311]
                  %377 = vst [vmem:[%s319 + $0x70] sm:%s311] %v376
                  %v378 = vld [vmem:[%s318 + $0x194] sm:%s311]
                  %379 = vst [vmem:[%s319 + $0x74] sm:%s311] %v378
                  %v380 = vld [vmem:[%s318 + $0x198] sm:%s311]
                  %381 = vst [vmem:[%s319 + $0x78] sm:%s311] %v380
                  %v382 = vld [vmem:[%s318 + $0x19c] sm:%s311]
                  %383 = vst [vmem:[%s319 + $0x7c] sm:%s311] %v382
                  %v384 = vld [vmem:[%s318 + $0x200] sm:%s311]
                  %385 = vst [vmem:[%s319 + $0x80] sm:%s311] %v384
                  %v386 = vld [vmem:[%s318 + $0x204] sm:%s311]
                  %387 = vst [vmem:[%s319 + $0x84] sm:%s311] %v386
                  %v388 = vld [vmem:[%s318 + $0x208] sm:%s311]
                  %389 = vst [vmem:[%s319 + $0x88] sm:%s311] %v388
                  %v390 = vld [vmem:[%s318 + $0x20c] sm:%s311]
                  %391 = vst [vmem:[%s319 + $0x8c] sm:%s311] %v390
                  %v392 = vld [vmem:[%s318 + $0x210] sm:%s311]
                  %393 = vst [vmem:[%s319 + $0x90] sm:%s311] %v392
                  %v394 = vld [vmem:[%s318 + $0x214] sm:%s311]
                  %395 = vst [vmem:[%s319 + $0x94] sm:%s311] %v394
                  %v396 = vld [vmem:[%s318 + $0x218] sm:%s311]
                  %397 = vst [vmem:[%s319 + $0x98] sm:%s311] %v396
                  %v398 = vld [vmem:[%s318 + $0x21c] sm:%s311]
                  %399 = vst [vmem:[%s319 + $0x9c] sm:%s311] %v398
                  %v400 = vld [vmem:[%s318 + $0x280] sm:%s311]
                  %401 = vst [vmem:[%s319 + $0xa0] sm:%s311] %v400
                  %v402 = vld [vmem:[%s318 + $0x284] sm:%s311]
                  %403 = vst [vmem:[%s319 + $0xa4] sm:%s311] %v402
                  %v404 = vld [vmem:[%s318 + $0x288] sm:%s311]
                  %405 = vst [vmem:[%s319 + $0xa8] sm:%s311] %v404
                  %v406 = vld [vmem:[%s318 + $0x28c] sm:%s311]
                  %407 = vst [vmem:[%s319 + $0xac] sm:%s311] %v406
                  %v408 = vld [vmem:[%s318 + $0x290] sm:%s311]
                  %409 = vst [vmem:[%s319 + $0xb0] sm:%s311] %v408
                  %v410 = vld [vmem:[%s318 + $0x294] sm:%s311]
                  %411 = vst [vmem:[%s319 + $0xb4] sm:%s311] %v410
                  %v412 = vld [vmem:[%s318 + $0x298] sm:%s311]
                  %413 = vst [vmem:[%s319 + $0xb8] sm:%s311] %v412
                  %v414 = vld [vmem:[%s318 + $0x29c] sm:%s311]
                  %415 = vst [vmem:[%s319 + $0xbc] sm:%s311] %v414
                  %v416 = vld [vmem:[%s318 + $0x300] sm:%s311]
                  %417 = vst [vmem:[%s319 + $0xc0] sm:%s311] %v416
                  %v418 = vld [vmem:[%s318 + $0x304] sm:%s311]
                  %419 = vst [vmem:[%s319 + $0xc4] sm:%s311] %v418
                  %v420 = vld [vmem:[%s318 + $0x308] sm:%s311]
                  %421 = vst [vmem:[%s319 + $0xc8] sm:%s311] %v420
                  %v422 = vld [vmem:[%s318 + $0x30c] sm:%s311]
                  %423 = vst [vmem:[%s319 + $0xcc] sm:%s311] %v422
                  %v424 = vld [vmem:[%s318 + $0x310] sm:%s311]
                  %425 = vst [vmem:[%s319 + $0xd0] sm:%s311] %v424
                  %v426 = vld [vmem:[%s318 + $0x314] sm:%s311]
                  %427 = vst [vmem:[%s319 + $0xd4] sm:%s311] %v426
                  %v428 = vld [vmem:[%s318 + $0x318] sm:%s311]
                  %429 = vst [vmem:[%s319 + $0xd8] sm:%s311] %v428
                  %v430 = vld [vmem:[%s318 + $0x31c] sm:%s311]
                  %431 = vst [vmem:[%s319 + $0xdc] sm:%s311] %v430
                  %v432 = vld [vmem:[%s318 + $0x380] sm:%s311]
                  %433 = vst [vmem:[%s319 + $0xe0] sm:%s311] %v432
                  %v434 = vld [vmem:[%s318 + $0x384] sm:%s311]
                  %435 = vst [vmem:[%s319 + $0xe4] sm:%s311] %v434
                  %v436 = vld [vmem:[%s318 + $0x388] sm:%s311]
                  %437 = vst [vmem:[%s319 + $0xe8] sm:%s311] %v436
                  %v438 = vld [vmem:[%s318 + $0x38c] sm:%s311]
                  %439 = vst [vmem:[%s319 + $0xec] sm:%s311] %v438
                  %v440 = vld [vmem:[%s318 + $0x390] sm:%s311]
                  %441 = vst [vmem:[%s319 + $0xf0] sm:%s311] %v440
                  %v442 = vld [vmem:[%s318 + $0x394] sm:%s311]
                  %443 = vst [vmem:[%s319 + $0xf4] sm:%s311] %v442
                  %v444 = vld [vmem:[%s318 + $0x398] sm:%s311]
                  %445 = vst [vmem:[%s319 + $0xf8] sm:%s311] %v444
                  %v446 = vld [vmem:[%s318 + $0x39c] sm:%s311]
                  %447 = vst [vmem:[%s319 + $0xfc] sm:%s311] %v446
                $region63: #{bottleneck_forward.4} parent=50 // loop_footer
                  %s317 = sadd.s32 1, %s313
                $region64: #{bottleneck_forward.4} parent=50 // loop_footer_branch
                  %312 = sbr.rel target = $region60
                $region65: #{bottleneck_forward.4} parent=50 // loop_exit
                  _
              $region51: #{bottleneck_forward.4} parent=35 // pred_fallthru
                _
            $region36: #{bottleneck_forward.4} parent=31 // pred_fallthru
              _
            // Predicated region
            $region37: #{bottleneck_forward.4} parent=31 // pred_check
              _
            $region38: #{bottleneck_forward.4} parent=31 // pred_check_branch
              %161 = sbr.rel (0) target = $region40
            $region39: #{bottleneck_forward.4} parent=31 // pred_region
              %s163 = ssub.s32 16, 1
              loop: start=0, step=1, limit=1
              $region41: #{bottleneck_forward.4} parent=39 // loop_pre_header
                _
              $region42: #{bottleneck_forward.4} parent=39 // loop_header
                %s165 = sphi 0, %s169
                %p166 = scmp.ge.s32.totalorder %s165, 1
                %s170 = sphi %s155, %s155
                %s171 = sphi %s150, %s150
              $region43: #{bottleneck_forward.4} parent=39 // loop_header_branch
                %168 = sbr.rel (%p166) target = $region47
              $region44: #{bottleneck_forward.4} parent=39 // loop_body
                %v172 = vld [vmem:[%s170] sm:%s163]
                %173 = vst [vmem:[%s171] sm:%s163] %v172
                %v174 = vld [vmem:[%s170 + $0x4] sm:%s163]
                %175 = vst [vmem:[%s171 + $0x4] sm:%s163] %v174
                %v176 = vld [vmem:[%s170 + $0x8] sm:%s163]
                %177 = vst [vmem:[%s171 + $0x8] sm:%s163] %v176
                %v178 = vld [vmem:[%s170 + $0xc] sm:%s163]
                %179 = vst [vmem:[%s171 + $0xc] sm:%s163] %v178
                %v180 = vld [vmem:[%s170 + $0x10] sm:%s163]
                %181 = vst [vmem:[%s171 + $0x10] sm:%s163] %v180
                %v182 = vld [vmem:[%s170 + $0x14] sm:%s163]
                %183 = vst [vmem:[%s171 + $0x14] sm:%s163] %v182
                %v184 = vld [vmem:[%s170 + $0x18] sm:%s163]
                %185 = vst [vmem:[%s171 + $0x18] sm:%s163] %v184
                %v186 = vld [vmem:[%s170 + $0x1c] sm:%s163]
                %187 = vst [vmem:[%s171 + $0x1c] sm:%s163] %v186
                %v188 = vld [vmem:[%s170 + $0x80] sm:%s163]
                %189 = vst [vmem:[%s171 + $0x20] sm:%s163] %v188
                %v190 = vld [vmem:[%s170 + $0x84] sm:%s163]
                %191 = vst [vmem:[%s171 + $0x24] sm:%s163] %v190
                %v192 = vld [vmem:[%s170 + $0x88] sm:%s163]
                %193 = vst [vmem:[%s171 + $0x28] sm:%s163] %v192
                %v194 = vld [vmem:[%s170 + $0x8c] sm:%s163]
                %195 = vst [vmem:[%s171 + $0x2c] sm:%s163] %v194
                %v196 = vld [vmem:[%s170 + $0x90] sm:%s163]
                %197 = vst [vmem:[%s171 + $0x30] sm:%s163] %v196
                %v198 = vld [vmem:[%s170 + $0x94] sm:%s163]
                %199 = vst [vmem:[%s171 + $0x34] sm:%s163] %v198
                %v200 = vld [vmem:[%s170 + $0x98] sm:%s163]
                %201 = vst [vmem:[%s171 + $0x38] sm:%s163] %v200
                %v202 = vld [vmem:[%s170 + $0x9c] sm:%s163]
                %203 = vst [vmem:[%s171 + $0x3c] sm:%s163] %v202
                %v204 = vld [vmem:[%s170 + $0x100] sm:%s163]
                %205 = vst [vmem:[%s171 + $0x40] sm:%s163] %v204
                %v206 = vld [vmem:[%s170 + $0x104] sm:%s163]
                %207 = vst [vmem:[%s171 + $0x44] sm:%s163] %v206
                %v208 = vld [vmem:[%s170 + $0x108] sm:%s163]
                %209 = vst [vmem:[%s171 + $0x48] sm:%s163] %v208
                %v210 = vld [vmem:[%s170 + $0x10c] sm:%s163]
                %211 = vst [vmem:[%s171 + $0x4c] sm:%s163] %v210
                %v212 = vld [vmem:[%s170 + $0x110] sm:%s163]
                %213 = vst [vmem:[%s171 + $0x50] sm:%s163] %v212
                %v214 = vld [vmem:[%s170 + $0x114] sm:%s163]
                %215 = vst [vmem:[%s171 + $0x54] sm:%s163] %v214
                %v216 = vld [vmem:[%s170 + $0x118] sm:%s163]
                %217 = vst [vmem:[%s171 + $0x58] sm:%s163] %v216
                %v218 = vld [vmem:[%s170 + $0x11c] sm:%s163]
                %219 = vst [vmem:[%s171 + $0x5c] sm:%s163] %v218
                %v220 = vld [vmem:[%s170 + $0x180] sm:%s163]
                %221 = vst [vmem:[%s171 + $0x60] sm:%s163] %v220
                %v222 = vld [vmem:[%s170 + $0x184] sm:%s163]
                %223 = vst [vmem:[%s171 + $0x64] sm:%s163] %v222
                %v224 = vld [vmem:[%s170 + $0x188] sm:%s163]
                %225 = vst [vmem:[%s171 + $0x68] sm:%s163] %v224
                %v226 = vld [vmem:[%s170 + $0x18c] sm:%s163]
                %227 = vst [vmem:[%s171 + $0x6c] sm:%s163] %v226
                %v228 = vld [vmem:[%s170 + $0x190] sm:%s163]
                %229 = vst [vmem:[%s171 + $0x70] sm:%s163] %v228
                %v230 = vld [vmem:[%s170 + $0x194] sm:%s163]
                %231 = vst [vmem:[%s171 + $0x74] sm:%s163] %v230
                %v232 = vld [vmem:[%s170 + $0x198] sm:%s163]
                %233 = vst [vmem:[%s171 + $0x78] sm:%s163] %v232
                %v234 = vld [vmem:[%s170 + $0x19c] sm:%s163]
                %235 = vst [vmem:[%s171 + $0x7c] sm:%s163] %v234
                %v236 = vld [vmem:[%s170 + $0x200] sm:%s163]
                %237 = vst [vmem:[%s171 + $0x80] sm:%s163] %v236
                %v238 = vld [vmem:[%s170 + $0x204] sm:%s163]
                %239 = vst [vmem:[%s171 + $0x84] sm:%s163] %v238
                %v240 = vld [vmem:[%s170 + $0x208] sm:%s163]
                %241 = vst [vmem:[%s171 + $0x88] sm:%s163] %v240
                %v242 = vld [vmem:[%s170 + $0x20c] sm:%s163]
                %243 = vst [vmem:[%s171 + $0x8c] sm:%s163] %v242
                %v244 = vld [vmem:[%s170 + $0x210] sm:%s163]
                %245 = vst [vmem:[%s171 + $0x90] sm:%s163] %v244
                %v246 = vld [vmem:[%s170 + $0x214] sm:%s163]
                %247 = vst [vmem:[%s171 + $0x94] sm:%s163] %v246
                %v248 = vld [vmem:[%s170 + $0x218] sm:%s163]
                %249 = vst [vmem:[%s171 + $0x98] sm:%s163] %v248
                %v250 = vld [vmem:[%s170 + $0x21c] sm:%s163]
                %251 = vst [vmem:[%s171 + $0x9c] sm:%s163] %v250
                %v252 = vld [vmem:[%s170 + $0x280] sm:%s163]
                %253 = vst [vmem:[%s171 + $0xa0] sm:%s163] %v252
                %v254 = vld [vmem:[%s170 + $0x284] sm:%s163]
                %255 = vst [vmem:[%s171 + $0xa4] sm:%s163] %v254
                %v256 = vld [vmem:[%s170 + $0x288] sm:%s163]
                %257 = vst [vmem:[%s171 + $0xa8] sm:%s163] %v256
                %v258 = vld [vmem:[%s170 + $0x28c] sm:%s163]
                %259 = vst [vmem:[%s171 + $0xac] sm:%s163] %v258
                %v260 = vld [vmem:[%s170 + $0x290] sm:%s163]
                %261 = vst [vmem:[%s171 + $0xb0] sm:%s163] %v260
                %v262 = vld [vmem:[%s170 + $0x294] sm:%s163]
                %263 = vst [vmem:[%s171 + $0xb4] sm:%s163] %v262
                %v264 = vld [vmem:[%s170 + $0x298] sm:%s163]
                %265 = vst [vmem:[%s171 + $0xb8] sm:%s163] %v264
                %v266 = vld [vmem:[%s170 + $0x29c] sm:%s163]
                %267 = vst [vmem:[%s171 + $0xbc] sm:%s163] %v266
                %v268 = vld [vmem:[%s170 + $0x300] sm:%s163]
                %269 = vst [vmem:[%s171 + $0xc0] sm:%s163] %v268
                %v270 = vld [vmem:[%s170 + $0x304] sm:%s163]
                %271 = vst [vmem:[%s171 + $0xc4] sm:%s163] %v270
                %v272 = vld [vmem:[%s170 + $0x308] sm:%s163]
                %273 = vst [vmem:[%s171 + $0xc8] sm:%s163] %v272
                %v274 = vld [vmem:[%s170 + $0x30c] sm:%s163]
                %275 = vst [vmem:[%s171 + $0xcc] sm:%s163] %v274
                %v276 = vld [vmem:[%s170 + $0x310] sm:%s163]
                %277 = vst [vmem:[%s171 + $0xd0] sm:%s163] %v276
                %v278 = vld [vmem:[%s170 + $0x314] sm:%s163]
                %279 = vst [vmem:[%s171 + $0xd4] sm:%s163] %v278
                %v280 = vld [vmem:[%s170 + $0x318] sm:%s163]
                %281 = vst [vmem:[%s171 + $0xd8] sm:%s163] %v280
                %v282 = vld [vmem:[%s170 + $0x31c] sm:%s163]
                %283 = vst [vmem:[%s171 + $0xdc] sm:%s163] %v282
                %v284 = vld [vmem:[%s170 + $0x380] sm:%s163]
                %285 = vst [vmem:[%s171 + $0xe0] sm:%s163] %v284
                %v286 = vld [vmem:[%s170 + $0x384] sm:%s163]
                %287 = vst [vmem:[%s171 + $0xe4] sm:%s163] %v286
                %v288 = vld [vmem:[%s170 + $0x388] sm:%s163]
                %289 = vst [vmem:[%s171 + $0xe8] sm:%s163] %v288
                %v290 = vld [vmem:[%s170 + $0x38c] sm:%s163]
                %291 = vst [vmem:[%s171 + $0xec] sm:%s163] %v290
                %v292 = vld [vmem:[%s170 + $0x390] sm:%s163]
                %293 = vst [vmem:[%s171 + $0xf0] sm:%s163] %v292
                %v294 = vld [vmem:[%s170 + $0x394] sm:%s163]
                %295 = vst [vmem:[%s171 + $0xf4] sm:%s163] %v294
                %v296 = vld [vmem:[%s170 + $0x398] sm:%s163]
                %297 = vst [vmem:[%s171 + $0xf8] sm:%s163] %v296
                %v298 = vld [vmem:[%s170 + $0x39c] sm:%s163]
                %299 = vst [vmem:[%s171 + $0xfc] sm:%s163] %v298
              $region45: #{bottleneck_forward.4} parent=39 // loop_footer
                %s169 = sadd.s32 1, %s165
              $region46: #{bottleneck_forward.4} parent=39 // loop_footer_branch
                %164 = sbr.rel target = $region42
              $region47: #{bottleneck_forward.4} parent=39 // loop_exit
                _
            $region40: #{bottleneck_forward.4} parent=31 // pred_fallthru
              _
          $region32: #{bottleneck_forward.4} parent=27 // pred_fallthru
            _
          %448 = vnop
        $region28: #{bottleneck_forward.4} parent=23 // pred_fallthru
          _
      $region24: #{bottleneck_forward.4} parent=5 // pred_fallthru
        _
      %p449 = scmp.le.s32.totalorder 1, %s9
      %p450 = scmp.lt.s32.totalorder %s9, 9
      %p451 = pnand %p449, %p450
      %p452 = pneg %p451
      // Predicated region
      $region66: #{bottleneck_forward.4} parent=5 // pred_check
        _
      $region67: #{bottleneck_forward.4} parent=5 // pred_check_branch
        %454 = sbr.rel (%p451) target = $region69
      $region68: #{bottleneck_forward.4} parent=5 // pred_region
        %s455 = ssub.s32 %s9, 1
        %s456 = sand.u32 %s36, 1
        %s457 = sand.u32 %s36, 1
        %s458 = smul.addr %s457, 256
        %s459 = scalar_lea.vmem [#allocation3], %s458
        // Predicated region
        $region70: #{bottleneck_forward.4} parent=68 // pred_check
          %p460 = pneg %p49
        $region71: #{bottleneck_forward.4} parent=68 // pred_check_branch
          %462 = sbr.rel (%p460) target = $region73
        $region72: #{bottleneck_forward.4} parent=68 // pred_region
          _
        $region73: #{bottleneck_forward.4} parent=68 // pred_fallthru
          _
        %s463 = sand.u32 %s36, 1
        %s464 = sand.u32 %s36, 1
        %s465 = smul.addr %s464, 256
        %s466 = scalar_lea.vmem [#allocation3], %s465
        %p467 = pneg %p49
        %p468 = pneg %p46
        %p469 = pneg %p70
        %p470 = pneg %p67
        %p471 = pneg %p91
        %p472 = pneg %p88
        %p473 = pneg %p119
        %p474 = pneg %p116
        %s475 = sand.u32 %s106, 1
        %s476 = sand.u32 %s106, 1
        %s477 = smul.addr %s476, 256
        %s478 = scalar_lea.vmem [#allocation4], %s477
        %s479 = smul.u32 8, %s19
        %s480 = smul.u32 8, %s19
        %vm482 = vcmask 27648
        %483 = vst.msk [vmem:[#allocation2] sm:$0xf] %vm482, 0
        %484 = vst.msk [vmem:[#allocation2 + $0x4] sm:$0xf] %vm482, 0
        %485 = vst.msk [vmem:[#allocation2 + $0x8] sm:$0xf] %vm482, 0
        %486 = vst.msk [vmem:[#allocation2 + $0xc] sm:$0xf] %vm482, 0
        %487 = vst.msk [vmem:[#allocation2 + $0x10] sm:$0xf] %vm482, 0
        %488 = vst.msk [vmem:[#allocation2 + $0x14] sm:$0xf] %vm482, 0
        %489 = vst.msk [vmem:[#allocation2 + $0x18] sm:$0xf] %vm482, 0
        %490 = vst.msk [vmem:[#allocation2 + $0x1c] sm:$0xf] %vm482, 0
        %s491 = scalar_lea.vmem [#allocation2], 288
        %492 = vst.msk [vmem:[%s491] sm:$0xf] %vm482, 0
        %493 = vst.msk [vmem:[%s491 + $0x4] sm:$0xf] %vm482, 0
        %494 = vst.msk [vmem:[%s491 + $0x8] sm:$0xf] %vm482, 0
        %495 = vst.msk [vmem:[%s491 + $0xc] sm:$0xf] %vm482, 0
        %496 = vst.msk [vmem:[%s491 + $0x10] sm:$0xf] %vm482, 0
        %497 = vst.msk [vmem:[%s491 + $0x14] sm:$0xf] %vm482, 0
        %498 = vst.msk [vmem:[%s491 + $0x18] sm:$0xf] %vm482, 0
        %499 = vst.msk [vmem:[%s491 + $0x1c] sm:$0xf] %vm482, 0
        %v500 = vld [vmem:[%s459] sm:$0xf]
        %v501 = vld [vmem:[%s459 + $0x4] sm:$0xf]
        %v502 = vld [vmem:[%s459 + $0x8] sm:$0xf]
        %v503 = vld [vmem:[%s459 + $0xc] sm:$0xf]
        %v504 = vld [vmem:[%s459 + $0x10] sm:$0xf]
        %v505 = vld [vmem:[%s459 + $0x14] sm:$0xf]
        %v506 = vld [vmem:[%s459 + $0x18] sm:$0xf]
        %v507 = vld [vmem:[%s459 + $0x1c] sm:$0xf]
        %v508 = vld [vmem:[%s459 + $0x20] sm:$0xf]
        %v509 = vld [vmem:[%s459 + $0x24] sm:$0xf]
        %v510 = vld [vmem:[%s459 + $0x28] sm:$0xf]
        %v511 = vld [vmem:[%s459 + $0x2c] sm:$0xf]
        %v512 = vld [vmem:[%s459 + $0x30] sm:$0xf]
        %v513 = vld [vmem:[%s459 + $0x34] sm:$0xf]
        %v514 = vld [vmem:[%s459 + $0x38] sm:$0xf]
        %v515 = vld [vmem:[%s459 + $0x3c] sm:$0xf]
        %v516 = vld [vmem:[%s459 + $0x40] sm:$0xf]
        %v517 = vld [vmem:[%s459 + $0x44] sm:$0xf]
        %v518 = vld [vmem:[%s459 + $0x48] sm:$0xf]
        %v519 = vld [vmem:[%s459 + $0x4c] sm:$0xf]
        %v520 = vld [vmem:[%s459 + $0x50] sm:$0xf]
        %v521 = vld [vmem:[%s459 + $0x54] sm:$0xf]
        %v522 = vld [vmem:[%s459 + $0x58] sm:$0xf]
        %v523 = vld [vmem:[%s459 + $0x5c] sm:$0xf]
        %v524 = vld [vmem:[%s459 + $0x60] sm:$0xf]
        %v525 = vld [vmem:[%s459 + $0x64] sm:$0xf]
        %v526 = vld [vmem:[%s459 + $0x68] sm:$0xf]
        %v527 = vld [vmem:[%s459 + $0x6c] sm:$0xf]
        %v528 = vld [vmem:[%s459 + $0x70] sm:$0xf]
        %v529 = vld [vmem:[%s459 + $0x74] sm:$0xf]
        %v530 = vld [vmem:[%s459 + $0x78] sm:$0xf]
        %v531 = vld [vmem:[%s459 + $0x7c] sm:$0xf]
        %v532 = vld [vmem:[%s459 + $0x80] sm:$0xf]
        %v533 = vld [vmem:[%s459 + $0x84] sm:$0xf]
        %v534 = vld [vmem:[%s459 + $0x88] sm:$0xf]
        %v535 = vld [vmem:[%s459 + $0x8c] sm:$0xf]
        %v536 = vld [vmem:[%s459 + $0x90] sm:$0xf]
        %v537 = vld [vmem:[%s459 + $0x94] sm:$0xf]
        %v538 = vld [vmem:[%s459 + $0x98] sm:$0xf]
        %v539 = vld [vmem:[%s459 + $0x9c] sm:$0xf]
        %v540 = vld [vmem:[%s459 + $0xa0] sm:$0xf]
        %v541 = vld [vmem:[%s459 + $0xa4] sm:$0xf]
        %v542 = vld [vmem:[%s459 + $0xa8] sm:$0xf]
        %v543 = vld [vmem:[%s459 + $0xac] sm:$0xf]
        %v544 = vld [vmem:[%s459 + $0xb0] sm:$0xf]
        %v545 = vld [vmem:[%s459 + $0xb4] sm:$0xf]
        %v546 = vld [vmem:[%s459 + $0xb8] sm:$0xf]
        %v547 = vld [vmem:[%s459 + $0xbc] sm:$0xf]
        %v548 = vld [vmem:[%s459 + $0xc0] sm:$0xf]
        %v549 = vld [vmem:[%s459 + $0xc4] sm:$0xf]
        %v550 = vld [vmem:[%s459 + $0xc8] sm:$0xf]
        %v551 = vld [vmem:[%s459 + $0xcc] sm:$0xf]
        %v552 = vld [vmem:[%s459 + $0xd0] sm:$0xf]
        %v553 = vld [vmem:[%s459 + $0xd4] sm:$0xf]
        %v554 = vld [vmem:[%s459 + $0xd8] sm:$0xf]
        %v555 = vld [vmem:[%s459 + $0xdc] sm:$0xf]
        %v556 = vld [vmem:[%s459 + $0xe0] sm:$0xf]
        %v557 = vld [vmem:[%s459 + $0xe4] sm:$0xf]
        %v558 = vld [vmem:[%s459 + $0xe8] sm:$0xf]
        %v559 = vld [vmem:[%s459 + $0xec] sm:$0xf]
        %v560 = vld [vmem:[%s459 + $0xf0] sm:$0xf]
        %v561 = vld [vmem:[%s459 + $0xf4] sm:$0xf]
        %v562 = vld [vmem:[%s459 + $0xf8] sm:$0xf]
        %v563 = vld [vmem:[%s459 + $0xfc] sm:$0xf]
        %s564 = scalar_lea.vmem [#allocation2], 32
        %565 = vst.msk [vmem:[%s564] sm:$0xf] %vm482, %v500
        %566 = vst.msk [vmem:[%s564 + $0x4] sm:$0xf] %vm482, %v501
        %567 = vst.msk [vmem:[%s564 + $0x8] sm:$0xf] %vm482, %v502
        %568 = vst.msk [vmem:[%s564 + $0xc] sm:$0xf] %vm482, %v503
        %569 = vst.msk [vmem:[%s564 + $0x10] sm:$0xf] %vm482, %v504
        %570 = vst.msk [vmem:[%s564 + $0x14] sm:$0xf] %vm482, %v505
        %571 = vst.msk [vmem:[%s564 + $0x18] sm:$0xf] %vm482, %v506
        %572 = vst.msk [vmem:[%s564 + $0x1c] sm:$0xf] %vm482, %v507
        %573 = vst.msk [vmem:[%s564 + $0x20] sm:$0xf] %vm482, %v508
        %574 = vst.msk [vmem:[%s564 + $0x24] sm:$0xf] %vm482, %v509
        %575 = vst.msk [vmem:[%s564 + $0x28] sm:$0xf] %vm482, %v510
        %576 = vst.msk [vmem:[%s564 + $0x2c] sm:$0xf] %vm482, %v511
        %577 = vst.msk [vmem:[%s564 + $0x30] sm:$0xf] %vm482, %v512
        %578 = vst.msk [vmem:[%s564 + $0x34] sm:$0xf] %vm482, %v513
        %579 = vst.msk [vmem:[%s564 + $0x38] sm:$0xf] %vm482, %v514
        %580 = vst.msk [vmem:[%s564 + $0x3c] sm:$0xf] %vm482, %v515
        %581 = vst.msk [vmem:[%s564 + $0x40] sm:$0xf] %vm482, %v516
        %582 = vst.msk [vmem:[%s564 + $0x44] sm:$0xf] %vm482, %v517
        %583 = vst.msk [vmem:[%s564 + $0x48] sm:$0xf] %vm482, %v518
        %584 = vst.msk [vmem:[%s564 + $0x4c] sm:$0xf] %vm482, %v519
        %585 = vst.msk [vmem:[%s564 + $0x50] sm:$0xf] %vm482, %v520
        %586 = vst.msk [vmem:[%s564 + $0x54] sm:$0xf] %vm482, %v521
        %587 = vst.msk [vmem:[%s564 + $0x58] sm:$0xf] %vm482, %v522
        %588 = vst.msk [vmem:[%s564 + $0x5c] sm:$0xf] %vm482, %v523
        %589 = vst.msk [vmem:[%s564 + $0x60] sm:$0xf] %vm482, %v524
        %590 = vst.msk [vmem:[%s564 + $0x64] sm:$0xf] %vm482, %v525
        %591 = vst.msk [vmem:[%s564 + $0x68] sm:$0xf] %vm482, %v526
        %592 = vst.msk [vmem:[%s564 + $0x6c] sm:$0xf] %vm482, %v527
        %593 = vst.msk [vmem:[%s564 + $0x70] sm:$0xf] %vm482, %v528
        %594 = vst.msk [vmem:[%s564 + $0x74] sm:$0xf] %vm482, %v529
        %595 = vst.msk [vmem:[%s564 + $0x78] sm:$0xf] %vm482, %v530
        %596 = vst.msk [vmem:[%s564 + $0x7c] sm:$0xf] %vm482, %v531
        %597 = vst.msk [vmem:[%s564 + $0x80] sm:$0xf] %vm482, %v532
        %598 = vst.msk [vmem:[%s564 + $0x84] sm:$0xf] %vm482, %v533
        %599 = vst.msk [vmem:[%s564 + $0x88] sm:$0xf] %vm482, %v534
        %600 = vst.msk [vmem:[%s564 + $0x8c] sm:$0xf] %vm482, %v535
        %601 = vst.msk [vmem:[%s564 + $0x90] sm:$0xf] %vm482, %v536
        %602 = vst.msk [vmem:[%s564 + $0x94] sm:$0xf] %vm482, %v537
        %603 = vst.msk [vmem:[%s564 + $0x98] sm:$0xf] %vm482, %v538
        %604 = vst.msk [vmem:[%s564 + $0x9c] sm:$0xf] %vm482, %v539
        %605 = vst.msk [vmem:[%s564 + $0xa0] sm:$0xf] %vm482, %v540
        %606 = vst.msk [vmem:[%s564 + $0xa4] sm:$0xf] %vm482, %v541
        %607 = vst.msk [vmem:[%s564 + $0xa8] sm:$0xf] %vm482, %v542
        %608 = vst.msk [vmem:[%s564 + $0xac] sm:$0xf] %vm482, %v543
        %609 = vst.msk [vmem:[%s564 + $0xb0] sm:$0xf] %vm482, %v544
        %610 = vst.msk [vmem:[%s564 + $0xb4] sm:$0xf] %vm482, %v545
        %611 = vst.msk [vmem:[%s564 + $0xb8] sm:$0xf] %vm482, %v546
        %612 = vst.msk [vmem:[%s564 + $0xbc] sm:$0xf] %vm482, %v547
        %613 = vst.msk [vmem:[%s564 + $0xc0] sm:$0xf] %vm482, %v548
        %614 = vst.msk [vmem:[%s564 + $0xc4] sm:$0xf] %vm482, %v549
        %615 = vst.msk [vmem:[%s564 + $0xc8] sm:$0xf] %vm482, %v550
        %616 = vst.msk [vmem:[%s564 + $0xcc] sm:$0xf] %vm482, %v551
        %617 = vst.msk [vmem:[%s564 + $0xd0] sm:$0xf] %vm482, %v552
        %618 = vst.msk [vmem:[%s564 + $0xd4] sm:$0xf] %vm482, %v553
        %619 = vst.msk [vmem:[%s564 + $0xd8] sm:$0xf] %vm482, %v554
        %620 = vst.msk [vmem:[%s564 + $0xdc] sm:$0xf] %vm482, %v555
        %621 = vst.msk [vmem:[%s564 + $0xe0] sm:$0xf] %vm482, %v556
        %622 = vst.msk [vmem:[%s564 + $0xe4] sm:$0xf] %vm482, %v557
        %623 = vst.msk [vmem:[%s564 + $0xe8] sm:$0xf] %vm482, %v558
        %624 = vst.msk [vmem:[%s564 + $0xec] sm:$0xf] %vm482, %v559
        %625 = vst.msk [vmem:[%s564 + $0xf0] sm:$0xf] %vm482, %v560
        %626 = vst.msk [vmem:[%s564 + $0xf4] sm:$0xf] %vm482, %v561
        %627 = vst.msk [vmem:[%s564 + $0xf8] sm:$0xf] %vm482, %v562
        %628 = vst.msk [vmem:[%s564 + $0xfc] sm:$0xf] %vm482, %v563
        %v629 = vld [vmem:[#allocation2] sm:$0xf]
        %v630 = vld [vmem:[#allocation2 + $0x4] sm:$0xf]
        %v631 = vld [vmem:[#allocation2 + $0x8] sm:$0xf]
        %v632 = vld [vmem:[#allocation2 + $0xc] sm:$0xf]
        %v633 = vld [vmem:[#allocation2 + $0x10] sm:$0xf]
        %v634 = vld [vmem:[#allocation2 + $0x14] sm:$0xf]
        %v635 = vld [vmem:[#allocation2 + $0x18] sm:$0xf]
        %v636 = vld [vmem:[#allocation2 + $0x1c] sm:$0xf]
        %v637 = vld [vmem:[#allocation2 + $0x20] sm:$0xf]
        %v638 = vld [vmem:[#allocation2 + $0x24] sm:$0xf]
        %v639 = vld [vmem:[#allocation2 + $0x28] sm:$0xf]
        %v640 = vld [vmem:[#allocation2 + $0x2c] sm:$0xf]
        %v641 = vld [vmem:[#allocation2 + $0x30] sm:$0xf]
        %v642 = vld [vmem:[#allocation2 + $0x34] sm:$0xf]
        %v643 = vld [vmem:[#allocation2 + $0x38] sm:$0xf]
        %v644 = vld [vmem:[#allocation2 + $0x3c] sm:$0xf]
        %v645 = vld [vmem:[#allocation2 + $0x40] sm:$0xf]
        %v646 = vld [vmem:[#allocation2 + $0x44] sm:$0xf]
        %v647 = vld [vmem:[#allocation2 + $0x48] sm:$0xf]
        %v648 = vld [vmem:[#allocation2 + $0x4c] sm:$0xf]
        %v649 = vld [vmem:[#allocation2 + $0x50] sm:$0xf]
        %v650 = vld [vmem:[#allocation2 + $0x54] sm:$0xf]
        %v651 = vld [vmem:[#allocation2 + $0x58] sm:$0xf]
        %v652 = vld [vmem:[#allocation2 + $0x5c] sm:$0xf]
        %v653 = vld [vmem:[#allocation2 + $0x60] sm:$0xf]
        %v654 = vld [vmem:[#allocation2 + $0x64] sm:$0xf]
        %v655 = vld [vmem:[#allocation2 + $0x68] sm:$0xf]
        %v656 = vld [vmem:[#allocation2 + $0x6c] sm:$0xf]
        %v657 = vld [vmem:[#allocation2 + $0x70] sm:$0xf]
        %v658 = vld [vmem:[#allocation2 + $0x74] sm:$0xf]
        %v659 = vld [vmem:[#allocation2 + $0x78] sm:$0xf]
        %v660 = vld [vmem:[#allocation2 + $0x7c] sm:$0xf]
        %v661 = vld [vmem:[#allocation2 + $0x80] sm:$0xf]
        %v662 = vld [vmem:[#allocation2 + $0x84] sm:$0xf]
        %v663 = vld [vmem:[#allocation2 + $0x88] sm:$0xf]
        %v664 = vld [vmem:[#allocation2 + $0x8c] sm:$0xf]
        %v665 = vld [vmem:[#allocation2 + $0x90] sm:$0xf]
        %v666 = vld [vmem:[#allocation2 + $0x94] sm:$0xf]
        %v667 = vld [vmem:[#allocation2 + $0x98] sm:$0xf]
        %v668 = vld [vmem:[#allocation2 + $0x9c] sm:$0xf]
        %v669 = vld [vmem:[#allocation2 + $0xa0] sm:$0xf]
        %v670 = vld [vmem:[#allocation2 + $0xa4] sm:$0xf]
        %v671 = vld [vmem:[#allocation2 + $0xa8] sm:$0xf]
        %v672 = vld [vmem:[#allocation2 + $0xac] sm:$0xf]
        %v673 = vld [vmem:[#allocation2 + $0xb0] sm:$0xf]
        %v674 = vld [vmem:[#allocation2 + $0xb4] sm:$0xf]
        %v675 = vld [vmem:[#allocation2 + $0xb8] sm:$0xf]
        %v676 = vld [vmem:[#allocation2 + $0xbc] sm:$0xf]
        %v677 = vld [vmem:[#allocation2 + $0xc0] sm:$0xf]
        %v678 = vld [vmem:[#allocation2 + $0xc4] sm:$0xf]
        %v679 = vld [vmem:[#allocation2 + $0xc8] sm:$0xf]
        %v680 = vld [vmem:[#allocation2 + $0xcc] sm:$0xf]
        %v681 = vld [vmem:[#allocation2 + $0xd0] sm:$0xf]
        %v682 = vld [vmem:[#allocation2 + $0xd4] sm:$0xf]
        %v683 = vld [vmem:[#allocation2 + $0xd8] sm:$0xf]
        %v684 = vld [vmem:[#allocation2 + $0xdc] sm:$0xf]
        %v685 = vld [vmem:[#allocation2 + $0xe0] sm:$0xf]
        %v686 = vld [vmem:[#allocation2 + $0xe4] sm:$0xf]
        %v687 = vld [vmem:[#allocation2 + $0xe8] sm:$0xf]
        %v688 = vld [vmem:[#allocation2 + $0xec] sm:$0xf]
        %v689 = vld [vmem:[#allocation2 + $0xf0] sm:$0xf]
        %v690 = vld [vmem:[#allocation2 + $0xf4] sm:$0xf]
        %v691 = vld [vmem:[#allocation2 + $0xf8] sm:$0xf]
        %v692 = vld [vmem:[#allocation2 + $0xfc] sm:$0xf]
        %v693 = vld [vmem:[%s1] sm:$0x3]
        %v694 = vld [vmem:[%s564] sm:$0xf]
        %v695 = vld [vmem:[%s564 + $0x4] sm:$0xf]
        %v696 = vld [vmem:[%s564 + $0x8] sm:$0xf]
        %v697 = vld [vmem:[%s564 + $0xc] sm:$0xf]
        %v698 = vld [vmem:[%s564 + $0x10] sm:$0xf]
        %v699 = vld [vmem:[%s564 + $0x14] sm:$0xf]
        %v700 = vld [vmem:[%s564 + $0x18] sm:$0xf]
        %v701 = vld [vmem:[%s564 + $0x1c] sm:$0xf]
        %v702 = vld [vmem:[%s564 + $0x20] sm:$0xf]
        %v703 = vld [vmem:[%s564 + $0x24] sm:$0xf]
        %v704 = vld [vmem:[%s564 + $0x28] sm:$0xf]
        %v705 = vld [vmem:[%s564 + $0x2c] sm:$0xf]
        %v706 = vld [vmem:[%s564 + $0x30] sm:$0xf]
        %v707 = vld [vmem:[%s564 + $0x34] sm:$0xf]
        %v708 = vld [vmem:[%s564 + $0x38] sm:$0xf]
        %v709 = vld [vmem:[%s564 + $0x3c] sm:$0xf]
        %v710 = vld [vmem:[%s564 + $0x40] sm:$0xf]
        %v711 = vld [vmem:[%s564 + $0x44] sm:$0xf]
        %v712 = vld [vmem:[%s564 + $0x48] sm:$0xf]
        %v713 = vld [vmem:[%s564 + $0x4c] sm:$0xf]
        %v714 = vld [vmem:[%s564 + $0x50] sm:$0xf]
        %v715 = vld [vmem:[%s564 + $0x54] sm:$0xf]
        %v716 = vld [vmem:[%s564 + $0x58] sm:$0xf]
        %v717 = vld [vmem:[%s564 + $0x5c] sm:$0xf]
        %v718 = vld [vmem:[%s564 + $0x60] sm:$0xf]
        %v719 = vld [vmem:[%s564 + $0x64] sm:$0xf]
        %v720 = vld [vmem:[%s564 + $0x68] sm:$0xf]
        %v721 = vld [vmem:[%s564 + $0x6c] sm:$0xf]
        %v722 = vld [vmem:[%s564 + $0x70] sm:$0xf]
        %v723 = vld [vmem:[%s564 + $0x74] sm:$0xf]
        %v724 = vld [vmem:[%s564 + $0x78] sm:$0xf]
        %v725 = vld [vmem:[%s564 + $0x7c] sm:$0xf]
        %v726 = vld [vmem:[%s564 + $0x80] sm:$0xf]
        %v727 = vld [vmem:[%s564 + $0x84] sm:$0xf]
        %v728 = vld [vmem:[%s564 + $0x88] sm:$0xf]
        %v729 = vld [vmem:[%s564 + $0x8c] sm:$0xf]
        %v730 = vld [vmem:[%s564 + $0x90] sm:$0xf]
        %v731 = vld [vmem:[%s564 + $0x94] sm:$0xf]
        %v732 = vld [vmem:[%s564 + $0x98] sm:$0xf]
        %v733 = vld [vmem:[%s564 + $0x9c] sm:$0xf]
        %v734 = vld [vmem:[%s564 + $0xa0] sm:$0xf]
        %v735 = vld [vmem:[%s564 + $0xa4] sm:$0xf]
        %v736 = vld [vmem:[%s564 + $0xa8] sm:$0xf]
        %v737 = vld [vmem:[%s564 + $0xac] sm:$0xf]
        %v738 = vld [vmem:[%s564 + $0xb0] sm:$0xf]
        %v739 = vld [vmem:[%s564 + $0xb4] sm:$0xf]
        %v740 = vld [vmem:[%s564 + $0xb8] sm:$0xf]
        %v741 = vld [vmem:[%s564 + $0xbc] sm:$0xf]
        %v742 = vld [vmem:[%s564 + $0xc0] sm:$0xf]
        %v743 = vld [vmem:[%s564 + $0xc4] sm:$0xf]
        %v744 = vld [vmem:[%s564 + $0xc8] sm:$0xf]
        %v745 = vld [vmem:[%s564 + $0xcc] sm:$0xf]
        %v746 = vld [vmem:[%s564 + $0xd0] sm:$0xf]
        %v747 = vld [vmem:[%s564 + $0xd4] sm:$0xf]
        %v748 = vld [vmem:[%s564 + $0xd8] sm:$0xf]
        %v749 = vld [vmem:[%s564 + $0xdc] sm:$0xf]
        %v750 = vld [vmem:[%s564 + $0xe0] sm:$0xf]
        %v751 = vld [vmem:[%s564 + $0xe4] sm:$0xf]
        %v752 = vld [vmem:[%s564 + $0xe8] sm:$0xf]
        %v753 = vld [vmem:[%s564 + $0xec] sm:$0xf]
        %v754 = vld [vmem:[%s564 + $0xf0] sm:$0xf]
        %v755 = vld [vmem:[%s564 + $0xf4] sm:$0xf]
        %v756 = vld [vmem:[%s564 + $0xf8] sm:$0xf]
        %v757 = vld [vmem:[%s564 + $0xfc] sm:$0xf]
        %s758 = scalar_lea.vmem %s1, 2
        %v759 = vld [vmem:[%s758] sm:$0x3]
        %v824 = vunpack.c.l.b16 %v694
        %v825 = vunpack.c.l.b16 %v695
        %v826 = vunpack.c.l.b16 %v696
        %v827 = vunpack.c.l.b16 %v697
        %v828 = vunpack.c.l.b16 %v698
        %v829 = vunpack.c.l.b16 %v699
        %v830 = vunpack.c.l.b16 %v700
        %v831 = vunpack.c.l.b16 %v701
        %v832 = vunpack.c.l.b16 %v702
        %v833 = vunpack.c.l.b16 %v703
        %v834 = vunpack.c.l.b16 %v704
        %v835 = vunpack.c.l.b16 %v705
        %v836 = vunpack.c.l.b16 %v706
        %v837 = vunpack.c.l.b16 %v707
        %v838 = vunpack.c.l.b16 %v708
        %v839 = vunpack.c.l.b16 %v709
        %v840 = vunpack.c.l.b16 %v710
        %v841 = vunpack.c.l.b16 %v711
        %v842 = vunpack.c.l.b16 %v712
        %v843 = vunpack.c.l.b16 %v713
        %v844 = vunpack.c.l.b16 %v714
        %v845 = vunpack.c.l.b16 %v715
        %v846 = vunpack.c.l.b16 %v716
        %v847 = vunpack.c.l.b16 %v717
        %v848 = vunpack.c.l.b16 %v718
        %v849 = vunpack.c.l.b16 %v719
        %v850 = vunpack.c.l.b16 %v720
        %v851 = vunpack.c.l.b16 %v721
        %v852 = vunpack.c.l.b16 %v722
        %v853 = vunpack.c.l.b16 %v723
        %v854 = vunpack.c.l.b16 %v724
        %v855 = vunpack.c.l.b16 %v725
        %v856 = vunpack.c.l.b16 %v726
        %v857 = vunpack.c.l.b16 %v727
        %v858 = vunpack.c.l.b16 %v728
        %v859 = vunpack.c.l.b16 %v729
        %v860 = vunpack.c.l.b16 %v730
        %v861 = vunpack.c.l.b16 %v731
        %v862 = vunpack.c.l.b16 %v732
        %v863 = vunpack.c.l.b16 %v733
        %v864 = vunpack.c.l.b16 %v734
        %v865 = vunpack.c.l.b16 %v735
        %v866 = vunpack.c.l.b16 %v736
        %v867 = vunpack.c.l.b16 %v737
        %v868 = vunpack.c.l.b16 %v738
        %v869 = vunpack.c.l.b16 %v739
        %v870 = vunpack.c.l.b16 %v740
        %v871 = vunpack.c.l.b16 %v741
        %v872 = vunpack.c.l.b16 %v742
        %v873 = vunpack.c.l.b16 %v743
        %v874 = vunpack.c.l.b16 %v744
        %v875 = vunpack.c.l.b16 %v745
        %v876 = vunpack.c.l.b16 %v746
        %v877 = vunpack.c.l.b16 %v747
        %v878 = vunpack.c.l.b16 %v748
        %v879 = vunpack.c.l.b16 %v749
        %v880 = vunpack.c.l.b16 %v750
        %v881 = vunpack.c.l.b16 %v751
        %v882 = vunpack.c.l.b16 %v752
        %v883 = vunpack.c.l.b16 %v753
        %v884 = vunpack.c.l.b16 %v754
        %v885 = vunpack.c.l.b16 %v755
        %v886 = vunpack.c.l.b16 %v756
        %v887 = vunpack.c.l.b16 %v757
        %v888 = vpack.c.b16 %v825, %v824
        %v889 = vpack.c.b16 %v827, %v826
        %v890 = vpack.c.b16 %v829, %v828
        %v891 = vpack.c.b16 %v831, %v830
        %v892 = vpack.c.b16 %v833, %v832
        %v893 = vpack.c.b16 %v835, %v834
        %v894 = vpack.c.b16 %v837, %v836
        %v895 = vpack.c.b16 %v839, %v838
        %v896 = vpack.c.b16 %v841, %v840
        %v897 = vpack.c.b16 %v843, %v842
        %v898 = vpack.c.b16 %v845, %v844
        %v899 = vpack.c.b16 %v847, %v846
        %v900 = vpack.c.b16 %v849, %v848
        %v901 = vpack.c.b16 %v851, %v850
        %v902 = vpack.c.b16 %v853, %v852
        %v903 = vpack.c.b16 %v855, %v854
        %v904 = vpack.c.b16 %v857, %v856
        %v905 = vpack.c.b16 %v859, %v858
        %v906 = vpack.c.b16 %v861, %v860
        %v907 = vpack.c.b16 %v863, %v862
        %v908 = vpack.c.b16 %v865, %v864
        %v909 = vpack.c.b16 %v867, %v866
        %v910 = vpack.c.b16 %v869, %v868
        %v911 = vpack.c.b16 %v871, %v870
        %v912 = vpack.c.b16 %v873, %v872
        %v913 = vpack.c.b16 %v875, %v874
        %v914 = vpack.c.b16 %v877, %v876
        %v915 = vpack.c.b16 %v879, %v878
        %v916 = vpack.c.b16 %v881, %v880
        %v917 = vpack.c.b16 %v883, %v882
        %v918 = vpack.c.b16 %v885, %v884
        %v919 = vpack.c.b16 %v887, %v886
        %vm920 = vcmask 31744
        %v922 = vsel %vm920, %v888, 0
        %v925 = vsel %vm920, %v889, 0
        %v928 = vsel %vm920, %v890, 0
        %v931 = vsel %vm920, %v891, 0
        %v934 = vsel %vm920, %v892, 0
        %v937 = vsel %vm920, %v893, 0
        %v940 = vsel %vm920, %v894, 0
        %v943 = vsel %vm920, %v895, 0
        %v946 = vsel %vm920, %v896, 0
        %v949 = vsel %vm920, %v897, 0
        %v952 = vsel %vm920, %v898, 0
        %v955 = vsel %vm920, %v899, 0
        %v958 = vsel %vm920, %v900, 0
        %v961 = vsel %vm920, %v901, 0
        %v964 = vsel %vm920, %v902, 0
        %v967 = vsel %vm920, %v903, 0
        %v970 = vsel %vm920, %v904, 0
        %v973 = vsel %vm920, %v905, 0
        %v976 = vsel %vm920, %v906, 0
        %v979 = vsel %vm920, %v907, 0
        %v982 = vsel %vm920, %v908, 0
        %v985 = vsel %vm920, %v909, 0
        %v988 = vsel %vm920, %v910, 0
        %v991 = vsel %vm920, %v911, 0
        %v994 = vsel %vm920, %v912, 0
        %v997 = vsel %vm920, %v913, 0
        %v1000 = vsel %vm920, %v914, 0
        %v1003 = vsel %vm920, %v915, 0
        %v1006 = vsel %vm920, %v916, 0
        %v1009 = vsel %vm920, %v917, 0
        %v1012 = vsel %vm920, %v918, 0
        %v1015 = vsel %vm920, %v919, 0
        %vm1017 = vcmask 1041408
        %v1019 = vsel %vm1017, %v759, 0
        %1021 = vmatprep.subr.bf16.mxu0 0
        %1022 = vmatpush1.bf16.msra.mxu0 0
        %1023 = vmatprep.subr.bf16.mxu0 0
        %1024 = vmatpush1.bf16.msra.mxu0 0
        %1025 = vmatprep.subr.bf16.mxu0 0
        %1026 = vmatpush1.bf16.msra.mxu0 0
        %1027 = vmatprep.subr.bf16.mxu0 0
        %1028 = vmatpush1.bf16.msra.mxu0 0
        %1029 = vmatprep.subr.bf16.mxu0 0
        %1030 = vmatpush1.bf16.msra.mxu0 0
        %1031 = vmatprep.subr.bf16.mxu0 0
        %1032 = vmatpush1.bf16.msra.mxu0 0
        %1033 = vmatprep.subr.bf16.mxu0 0
        %1034 = vmatpush1.bf16.msra.mxu0 0
        %1035 = vmatprep.subr.bf16.mxu0 0
        %1036 = vmatpush1.bf16.msra.mxu0 %v1019
        %1037 = vmatprep.subr.bf16.mxu0 0
        %1038 = vmatpush2.bf16.msra.mxu0 0
        %1039 = vmatprep.subr.bf16.mxu0 0
        %1040 = vmatpush2.bf16.msra.mxu0 0
        %1041 = vmatprep.subr.bf16.mxu0 0
        %1042 = vmatpush2.bf16.msra.mxu0 0
        %1043 = vmatprep.subr.bf16.mxu0 0
        %1044 = vmatpush2.bf16.msra.mxu0 0
        %1045 = vmatprep.subr.bf16.mxu0 0
        %1046 = vmatpush2.bf16.msra.mxu0 0
        %1047 = vmatprep.subr.bf16.mxu0 0
        %1048 = vmatpush2.bf16.msra.mxu0 0
        %1049 = vmatprep.subr.bf16.mxu0 0
        %1050 = vmatpush2.bf16.msra.mxu0 0
        %1051 = vmatprep.subr.bf16.mxu0 0
        %1052 = vmatpush2.bf16.msra.mxu0 0
        %1053 = vmatprep.mubr.bf16.mxu0 0
        %1054 = vmatmul.mubr.bf16.gmra.mxu0 %v922
        %v1055 = vpop.f32.mrf.mxu0
        %v1056 = vadd.f32 0.0, %v1055
        %v1057 = vpop.f32.mrf.mxu0
        %v1058 = vpop.f32.mrf.mxu0
        %v1059 = vadd.f32 0.0, %v1058
        %v1060 = vpop.f32.mrf.mxu0
        %1061 = vmatprep.mubr.bf16.mxu0 0
        %1062 = vmatmul.mubr.bf16.gmra.mxu0 %v925
        %v1063 = vpop.f32.mrf.mxu0
        %v1064 = vadd.f32 0.0, %v1063
        %v1065 = vpop.f32.mrf.mxu0
        %v1066 = vpop.f32.mrf.mxu0
        %v1067 = vadd.f32 0.0, %v1066
        %v1068 = vpop.f32.mrf.mxu0
        %1069 = vmatprep.mubr.bf16.mxu0 0
        %1070 = vmatmul.mubr.bf16.gmra.mxu0 %v928
        %v1071 = vpop.f32.mrf.mxu0
        %v1072 = vadd.f32 0.0, %v1071
        %v1073 = vpop.f32.mrf.mxu0
        %v1074 = vpop.f32.mrf.mxu0
        %v1075 = vadd.f32 0.0, %v1074
        %v1076 = vpop.f32.mrf.mxu0
        %1077 = vmatprep.mubr.bf16.mxu0 0
        %1078 = vmatmul.mubr.bf16.gmra.mxu0 %v931
        %v1079 = vpop.f32.mrf.mxu0
        %v1080 = vadd.f32 0.0, %v1079
        %v1081 = vpop.f32.mrf.mxu0
        %v1082 = vpop.f32.mrf.mxu0
        %v1083 = vadd.f32 0.0, %v1082
        %v1084 = vpop.f32.mrf.mxu0
        %1085 = vmatprep.mubr.bf16.mxu0 0
        %1086 = vmatmul.mubr.bf16.gmra.mxu0 %v934
        %v1087 = vpop.f32.mrf.mxu0
        %v1088 = vadd.f32 0.0, %v1087
        %v1089 = vpop.f32.mrf.mxu0
        %v1090 = vpop.f32.mrf.mxu0
        %v1091 = vadd.f32 0.0, %v1090
        %v1092 = vpop.f32.mrf.mxu0
        %1093 = vmatprep.mubr.bf16.mxu0 0
        %1094 = vmatmul.mubr.bf16.gmra.mxu0 %v937
        %v1095 = vpop.f32.mrf.mxu0
        %v1096 = vadd.f32 0.0, %v1095
        %v1097 = vpop.f32.mrf.mxu0
        %v1098 = vpop.f32.mrf.mxu0
        %v1099 = vadd.f32 0.0, %v1098
        %v1100 = vpop.f32.mrf.mxu0
        %1101 = vmatprep.mubr.bf16.mxu0 0
        %1102 = vmatmul.mubr.bf16.gmra.mxu0 %v940
        %v1103 = vpop.f32.mrf.mxu0
        %v1104 = vadd.f32 0.0, %v1103
        %v1105 = vpop.f32.mrf.mxu0
        %v1106 = vpop.f32.mrf.mxu0
        %v1107 = vadd.f32 0.0, %v1106
        %v1108 = vpop.f32.mrf.mxu0
        %1109 = vmatprep.mubr.bf16.mxu0 0
        %1110 = vmatmul.mubr.bf16.gmra.mxu0 %v943
        %v1111 = vpop.f32.mrf.mxu0
        %v1112 = vadd.f32 0.0, %v1111
        %v1113 = vpop.f32.mrf.mxu0
        %v1114 = vpop.f32.mrf.mxu0
        %v1115 = vadd.f32 0.0, %v1114
        %v1116 = vpop.f32.mrf.mxu0
        %1117 = vmatprep.mubr.bf16.mxu0 0
        %1118 = vmatmul.mubr.bf16.gmra.mxu0 %v946
        %v1119 = vpop.f32.mrf.mxu0
        %v1120 = vadd.f32 0.0, %v1119
        %v1121 = vpop.f32.mrf.mxu0
        %v1122 = vpop.f32.mrf.mxu0
        %v1123 = vadd.f32 0.0, %v1122
        %v1124 = vpop.f32.mrf.mxu0
        %1125 = vmatprep.mubr.bf16.mxu0 0
        %1126 = vmatmul.mubr.bf16.gmra.mxu0 %v949
        %v1127 = vpop.f32.mrf.mxu0
        %v1128 = vadd.f32 0.0, %v1127
        %v1129 = vpop.f32.mrf.mxu0
        %v1130 = vpop.f32.mrf.mxu0
        %v1131 = vadd.f32 0.0, %v1130
        %v1132 = vpop.f32.mrf.mxu0
        %1133 = vmatprep.mubr.bf16.mxu0 0
        %1134 = vmatmul.mubr.bf16.gmra.mxu0 %v952
        %v1135 = vpop.f32.mrf.mxu0
        %v1136 = vadd.f32 0.0, %v1135
        %v1137 = vpop.f32.mrf.mxu0
        %v1138 = vpop.f32.mrf.mxu0
        %v1139 = vadd.f32 0.0, %v1138
        %v1140 = vpop.f32.mrf.mxu0
        %1141 = vmatprep.mubr.bf16.mxu0 0
        %1142 = vmatmul.mubr.bf16.gmra.mxu0 %v955
        %v1143 = vpop.f32.mrf.mxu0
        %v1144 = vadd.f32 0.0, %v1143
        %v1145 = vpop.f32.mrf.mxu0
        %v1146 = vpop.f32.mrf.mxu0
        %v1147 = vadd.f32 0.0, %v1146
        %v1148 = vpop.f32.mrf.mxu0
        %1149 = vmatprep.mubr.bf16.mxu0 0
        %1150 = vmatmul.mubr.bf16.gmra.mxu0 %v958
        %v1151 = vpop.f32.mrf.mxu0
        %v1152 = vadd.f32 0.0, %v1151
        %v1153 = vpop.f32.mrf.mxu0
        %v1154 = vpop.f32.mrf.mxu0
        %v1155 = vadd.f32 0.0, %v1154
        %v1156 = vpop.f32.mrf.mxu0
        %1157 = vmatprep.mubr.bf16.mxu0 0
        %1158 = vmatmul.mubr.bf16.gmra.mxu0 %v961
        %v1159 = vpop.f32.mrf.mxu0
        %v1160 = vadd.f32 0.0, %v1159
        %v1161 = vpop.f32.mrf.mxu0
        %v1162 = vpop.f32.mrf.mxu0
        %v1163 = vadd.f32 0.0, %v1162
        %v1164 = vpop.f32.mrf.mxu0
        %1165 = vmatprep.mubr.bf16.mxu0 0
        %1166 = vmatmul.mubr.bf16.gmra.mxu0 %v964
        %v1167 = vpop.f32.mrf.mxu0
        %v1168 = vadd.f32 0.0, %v1167
        %v1169 = vpop.f32.mrf.mxu0
        %v1170 = vpop.f32.mrf.mxu0
        %v1171 = vadd.f32 0.0, %v1170
        %v1172 = vpop.f32.mrf.mxu0
        %1173 = vmatprep.mubr.bf16.mxu0 0
        %1174 = vmatmul.mubr.bf16.gmra.mxu0 %v967
        %v1175 = vpop.f32.mrf.mxu0
        %v1176 = vadd.f32 0.0, %v1175
        %v1177 = vpop.f32.mrf.mxu0
        %v1178 = vpop.f32.mrf.mxu0
        %v1179 = vadd.f32 0.0, %v1178
        %v1180 = vpop.f32.mrf.mxu0
        %1181 = vmatprep.mubr.bf16.mxu0 0
        %1182 = vmatmul.mubr.bf16.gmra.mxu0 %v970
        %v1183 = vpop.f32.mrf.mxu0
        %v1184 = vadd.f32 0.0, %v1183
        %v1185 = vpop.f32.mrf.mxu0
        %v1186 = vpop.f32.mrf.mxu0
        %v1187 = vadd.f32 0.0, %v1186
        %v1188 = vpop.f32.mrf.mxu0
        %1189 = vmatprep.mubr.bf16.mxu0 0
        %1190 = vmatmul.mubr.bf16.gmra.mxu0 %v973
        %v1191 = vpop.f32.mrf.mxu0
        %v1192 = vadd.f32 0.0, %v1191
        %v1193 = vpop.f32.mrf.mxu0
        %v1194 = vpop.f32.mrf.mxu0
        %v1195 = vadd.f32 0.0, %v1194
        %v1196 = vpop.f32.mrf.mxu0
        %1197 = vmatprep.mubr.bf16.mxu0 0
        %1198 = vmatmul.mubr.bf16.gmra.mxu0 %v976
        %v1199 = vpop.f32.mrf.mxu0
        %v1200 = vadd.f32 0.0, %v1199
        %v1201 = vpop.f32.mrf.mxu0
        %v1202 = vpop.f32.mrf.mxu0
        %v1203 = vadd.f32 0.0, %v1202
        %v1204 = vpop.f32.mrf.mxu0
        %1205 = vmatprep.mubr.bf16.mxu0 0
        %1206 = vmatmul.mubr.bf16.gmra.mxu0 %v979
        %v1207 = vpop.f32.mrf.mxu0
        %v1208 = vadd.f32 0.0, %v1207
        %v1209 = vpop.f32.mrf.mxu0
        %v1210 = vpop.f32.mrf.mxu0
        %v1211 = vadd.f32 0.0, %v1210
        %v1212 = vpop.f32.mrf.mxu0
        %1213 = vmatprep.mubr.bf16.mxu0 0
        %1214 = vmatmul.mubr.bf16.gmra.mxu0 %v982
        %v1215 = vpop.f32.mrf.mxu0
        %v1216 = vadd.f32 0.0, %v1215
        %v1217 = vpop.f32.mrf.mxu0
        %v1218 = vpop.f32.mrf.mxu0
        %v1219 = vadd.f32 0.0, %v1218
        %v1220 = vpop.f32.mrf.mxu0
        %1221 = vmatprep.mubr.bf16.mxu0 0
        %1222 = vmatmul.mubr.bf16.gmra.mxu0 %v985
        %v1223 = vpop.f32.mrf.mxu0
        %v1224 = vadd.f32 0.0, %v1223
        %v1225 = vpop.f32.mrf.mxu0
        %v1226 = vpop.f32.mrf.mxu0
        %v1227 = vadd.f32 0.0, %v1226
        %v1228 = vpop.f32.mrf.mxu0
        %1229 = vmatprep.mubr.bf16.mxu0 0
        %1230 = vmatmul.mubr.bf16.gmra.mxu0 %v988
        %v1231 = vpop.f32.mrf.mxu0
        %v1232 = vadd.f32 0.0, %v1231
        %v1233 = vpop.f32.mrf.mxu0
        %v1234 = vpop.f32.mrf.mxu0
        %v1235 = vadd.f32 0.0, %v1234
        %v1236 = vpop.f32.mrf.mxu0
        %1237 = vmatprep.mubr.bf16.mxu0 0
        %1238 = vmatmul.mubr.bf16.gmra.mxu0 %v991
        %v1239 = vpop.f32.mrf.mxu0
        %v1240 = vadd.f32 0.0, %v1239
        %v1241 = vpop.f32.mrf.mxu0
        %v1242 = vpop.f32.mrf.mxu0
        %v1243 = vadd.f32 0.0, %v1242
        %v1244 = vpop.f32.mrf.mxu0
        %1245 = vmatprep.mubr.bf16.mxu0 0
        %1246 = vmatmul.mubr.bf16.gmra.mxu0 %v994
        %v1247 = vpop.f32.mrf.mxu0
        %v1248 = vadd.f32 0.0, %v1247
        %v1249 = vpop.f32.mrf.mxu0
        %v1250 = vpop.f32.mrf.mxu0
        %v1251 = vadd.f32 0.0, %v1250
        %v1252 = vpop.f32.mrf.mxu0
        %1253 = vmatprep.mubr.bf16.mxu0 0
        %1254 = vmatmul.mubr.bf16.gmra.mxu0 %v997
        %v1255 = vpop.f32.mrf.mxu0
        %v1256 = vadd.f32 0.0, %v1255
        %v1257 = vpop.f32.mrf.mxu0
        %v1258 = vpop.f32.mrf.mxu0
        %v1259 = vadd.f32 0.0, %v1258
        %v1260 = vpop.f32.mrf.mxu0
        %1261 = vmatprep.mubr.bf16.mxu0 0
        %1262 = vmatmul.mubr.bf16.gmra.mxu0 %v1000
        %v1263 = vpop.f32.mrf.mxu0
        %v1264 = vadd.f32 0.0, %v1263
        %v1265 = vpop.f32.mrf.mxu0
        %v1266 = vpop.f32.mrf.mxu0
        %v1267 = vadd.f32 0.0, %v1266
        %v1268 = vpop.f32.mrf.mxu0
        %1269 = vmatprep.mubr.bf16.mxu0 0
        %1270 = vmatmul.mubr.bf16.gmra.mxu0 %v1003
        %v1271 = vpop.f32.mrf.mxu0
        %v1272 = vadd.f32 0.0, %v1271
        %v1273 = vpop.f32.mrf.mxu0
        %v1274 = vpop.f32.mrf.mxu0
        %v1275 = vadd.f32 0.0, %v1274
        %v1276 = vpop.f32.mrf.mxu0
        %1277 = vmatprep.mubr.bf16.mxu0 0
        %1278 = vmatmul.mubr.bf16.gmra.mxu0 %v1006
        %v1279 = vpop.f32.mrf.mxu0
        %v1280 = vadd.f32 0.0, %v1279
        %v1281 = vpop.f32.mrf.mxu0
        %v1282 = vpop.f32.mrf.mxu0
        %v1283 = vadd.f32 0.0, %v1282
        %v1284 = vpop.f32.mrf.mxu0
        %1285 = vmatprep.mubr.bf16.mxu0 0
        %1286 = vmatmul.mubr.bf16.gmra.mxu0 %v1009
        %v1287 = vpop.f32.mrf.mxu0
        %v1288 = vadd.f32 0.0, %v1287
        %v1289 = vpop.f32.mrf.mxu0
        %v1290 = vpop.f32.mrf.mxu0
        %v1291 = vadd.f32 0.0, %v1290
        %v1292 = vpop.f32.mrf.mxu0
        %1293 = vmatprep.mubr.bf16.mxu0 0
        %1294 = vmatmul.mubr.bf16.gmra.mxu0 %v1012
        %v1295 = vpop.f32.mrf.mxu0
        %v1296 = vadd.f32 0.0, %v1295
        %v1297 = vpop.f32.mrf.mxu0
        %v1298 = vpop.f32.mrf.mxu0
        %v1299 = vadd.f32 0.0, %v1298
        %v1300 = vpop.f32.mrf.mxu0
        %1301 = vmatprep.mubr.bf16.mxu0 0
        %1302 = vmatmul.mubr.bf16.gmra.mxu0 %v1015
        %v1303 = vpop.f32.mrf.mxu0
        %v1304 = vadd.f32 0.0, %v1303
        %v1305 = vpop.f32.mrf.mxu0
        %v1306 = vpop.f32.mrf.mxu0
        %v1307 = vadd.f32 0.0, %v1306
        %v1308 = vpop.f32.mrf.mxu0
        %1309 = vdwg.mxu0
        %v1374 = vunpack.c.l.b16 %v629
        %v1375 = vunpack.c.l.b16 %v630
        %v1376 = vunpack.c.l.b16 %v631
        %v1377 = vunpack.c.l.b16 %v632
        %v1378 = vunpack.c.l.b16 %v633
        %v1379 = vunpack.c.l.b16 %v634
        %v1380 = vunpack.c.l.b16 %v635
        %v1381 = vunpack.c.l.b16 %v636
        %v1382 = vunpack.c.l.b16 %v637
        %v1383 = vunpack.c.l.b16 %v638
        %v1384 = vunpack.c.l.b16 %v639
        %v1385 = vunpack.c.l.b16 %v640
        %v1386 = vunpack.c.l.b16 %v641
        %v1387 = vunpack.c.l.b16 %v642
        %v1388 = vunpack.c.l.b16 %v643
        %v1389 = vunpack.c.l.b16 %v644
        %v1390 = vunpack.c.l.b16 %v645
        %v1391 = vunpack.c.l.b16 %v646
        %v1392 = vunpack.c.l.b16 %v647
        %v1393 = vunpack.c.l.b16 %v648
        %v1394 = vunpack.c.l.b16 %v649
        %v1395 = vunpack.c.l.b16 %v650
        %v1396 = vunpack.c.l.b16 %v651
        %v1397 = vunpack.c.l.b16 %v652
        %v1398 = vunpack.c.l.b16 %v653
        %v1399 = vunpack.c.l.b16 %v654
        %v1400 = vunpack.c.l.b16 %v655
        %v1401 = vunpack.c.l.b16 %v656
        %v1402 = vunpack.c.l.b16 %v657
        %v1403 = vunpack.c.l.b16 %v658
        %v1404 = vunpack.c.l.b16 %v659
        %v1405 = vunpack.c.l.b16 %v660
        %v1406 = vunpack.c.l.b16 %v661
        %v1407 = vunpack.c.l.b16 %v662
        %v1408 = vunpack.c.l.b16 %v663
        %v1409 = vunpack.c.l.b16 %v664
        %v1410 = vunpack.c.l.b16 %v665
        %v1411 = vunpack.c.l.b16 %v666
        %v1412 = vunpack.c.l.b16 %v667
        %v1413 = vunpack.c.l.b16 %v668
        %v1414 = vunpack.c.l.b16 %v669
        %v1415 = vunpack.c.l.b16 %v670
        %v1416 = vunpack.c.l.b16 %v671
        %v1417 = vunpack.c.l.b16 %v672
        %v1418 = vunpack.c.l.b16 %v673
        %v1419 = vunpack.c.l.b16 %v674
        %v1420 = vunpack.c.l.b16 %v675
        %v1421 = vunpack.c.l.b16 %v676
        %v1422 = vunpack.c.l.b16 %v677
        %v1423 = vunpack.c.l.b16 %v678
        %v1424 = vunpack.c.l.b16 %v679
        %v1425 = vunpack.c.l.b16 %v680
        %v1426 = vunpack.c.l.b16 %v681
        %v1427 = vunpack.c.l.b16 %v682
        %v1428 = vunpack.c.l.b16 %v683
        %v1429 = vunpack.c.l.b16 %v684
        %v1430 = vunpack.c.l.b16 %v685
        %v1431 = vunpack.c.l.b16 %v686
        %v1432 = vunpack.c.l.b16 %v687
        %v1433 = vunpack.c.l.b16 %v688
        %v1434 = vunpack.c.l.b16 %v689
        %v1435 = vunpack.c.l.b16 %v690
        %v1436 = vunpack.c.l.b16 %v691
        %v1437 = vunpack.c.l.b16 %v692
        %v1438 = vpack.c.b16 %v1375, %v1374
        %v1439 = vpack.c.b16 %v1377, %v1376
        %v1440 = vpack.c.b16 %v1379, %v1378
        %v1441 = vpack.c.b16 %v1381, %v1380
        %v1442 = vpack.c.b16 %v1383, %v1382
        %v1443 = vpack.c.b16 %v1385, %v1384
        %v1444 = vpack.c.b16 %v1387, %v1386
        %v1445 = vpack.c.b16 %v1389, %v1388
        %v1446 = vpack.c.b16 %v1391, %v1390
        %v1447 = vpack.c.b16 %v1393, %v1392
        %v1448 = vpack.c.b16 %v1395, %v1394
        %v1449 = vpack.c.b16 %v1397, %v1396
        %v1450 = vpack.c.b16 %v1399, %v1398
        %v1451 = vpack.c.b16 %v1401, %v1400
        %v1452 = vpack.c.b16 %v1403, %v1402
        %v1453 = vpack.c.b16 %v1405, %v1404
        %v1454 = vpack.c.b16 %v1407, %v1406
        %v1455 = vpack.c.b16 %v1409, %v1408
        %v1456 = vpack.c.b16 %v1411, %v1410
        %v1457 = vpack.c.b16 %v1413, %v1412
        %v1458 = vpack.c.b16 %v1415, %v1414
        %v1459 = vpack.c.b16 %v1417, %v1416
        %v1460 = vpack.c.b16 %v1419, %v1418
        %v1461 = vpack.c.b16 %v1421, %v1420
        %v1462 = vpack.c.b16 %v1423, %v1422
        %v1463 = vpack.c.b16 %v1425, %v1424
        %v1464 = vpack.c.b16 %v1427, %v1426
        %v1465 = vpack.c.b16 %v1429, %v1428
        %v1466 = vpack.c.b16 %v1431, %v1430
        %v1467 = vpack.c.b16 %v1433, %v1432
        %v1468 = vpack.c.b16 %v1435, %v1434
        %v1469 = vpack.c.b16 %v1437, %v1436
        %v1471 = vsel %vm920, %v1438, 0
        %v1474 = vsel %vm920, %v1439, 0
        %v1477 = vsel %vm920, %v1440, 0
        %v1480 = vsel %vm920, %v1441, 0
        %v1483 = vsel %vm920, %v1442, 0
        %v1486 = vsel %vm920, %v1443, 0
        %v1489 = vsel %vm920, %v1444, 0
        %v1492 = vsel %vm920, %v1445, 0
        %v1495 = vsel %vm920, %v1446, 0
        %v1498 = vsel %vm920, %v1447, 0
        %v1501 = vsel %vm920, %v1448, 0
        %v1504 = vsel %vm920, %v1449, 0
        %v1507 = vsel %vm920, %v1450, 0
        %v1510 = vsel %vm920, %v1451, 0
        %v1513 = vsel %vm920, %v1452, 0
        %v1516 = vsel %vm920, %v1453, 0
        %v1519 = vsel %vm920, %v1454, 0
        %v1522 = vsel %vm920, %v1455, 0
        %v1525 = vsel %vm920, %v1456, 0
        %v1528 = vsel %vm920, %v1457, 0
        %v1531 = vsel %vm920, %v1458, 0
        %v1534 = vsel %vm920, %v1459, 0
        %v1537 = vsel %vm920, %v1460, 0
        %v1540 = vsel %vm920, %v1461, 0
        %v1543 = vsel %vm920, %v1462, 0
        %v1546 = vsel %vm920, %v1463, 0
        %v1549 = vsel %vm920, %v1464, 0
        %v1552 = vsel %vm920, %v1465, 0
        %v1555 = vsel %vm920, %v1466, 0
        %v1558 = vsel %vm920, %v1467, 0
        %v1561 = vsel %vm920, %v1468, 0
        %v1564 = vsel %vm920, %v1469, 0
        %v1567 = vsel %vm1017, %v693, 0
        %1569 = vmatprep.subr.bf16.mxu0 0
        %1570 = vmatpush1.bf16.msra.mxu0 0
        %1571 = vmatprep.subr.bf16.mxu0 0
        %1572 = vmatpush1.bf16.msra.mxu0 0
        %1573 = vmatprep.subr.bf16.mxu0 0
        %1574 = vmatpush1.bf16.msra.mxu0 0
        %1575 = vmatprep.subr.bf16.mxu0 0
        %1576 = vmatpush1.bf16.msra.mxu0 0
        %1577 = vmatprep.subr.bf16.mxu0 0
        %1578 = vmatpush1.bf16.msra.mxu0 0
        %1579 = vmatprep.subr.bf16.mxu0 0
        %1580 = vmatpush1.bf16.msra.mxu0 0
        %1581 = vmatprep.subr.bf16.mxu0 0
        %1582 = vmatpush1.bf16.msra.mxu0 0
        %1583 = vmatprep.subr.bf16.mxu0 0
        %1584 = vmatpush1.bf16.msra.mxu0 %v1567
        %1585 = vmatprep.subr.bf16.mxu0 0
        %1586 = vmatpush2.bf16.msra.mxu0 0
        %1587 = vmatprep.subr.bf16.mxu0 0
        %1588 = vmatpush2.bf16.msra.mxu0 0
        %1589 = vmatprep.subr.bf16.mxu0 0
        %1590 = vmatpush2.bf16.msra.mxu0 0
        %1591 = vmatprep.subr.bf16.mxu0 0
        %1592 = vmatpush2.bf16.msra.mxu0 0
        %1593 = vmatprep.subr.bf16.mxu0 0
        %1594 = vmatpush2.bf16.msra.mxu0 0
        %1595 = vmatprep.subr.bf16.mxu0 0
        %1596 = vmatpush2.bf16.msra.mxu0 0
        %1597 = vmatprep.subr.bf16.mxu0 0
        %1598 = vmatpush2.bf16.msra.mxu0 0
        %1599 = vmatprep.subr.bf16.mxu0 0
        %1600 = vmatpush2.bf16.msra.mxu0 0
        %1601 = vmatprep.mubr.bf16.mxu0 0
        %1602 = vmatmul.mubr.bf16.gmra.mxu0 %v1471
        %v1603 = vpop.f32.mrf.mxu0
        %v1604 = vadd.f32 %v1056, %v1603
        %v1605 = vpop.f32.mrf.mxu0
        %v1606 = vpop.f32.mrf.mxu0
        %v1607 = vadd.f32 %v1059, %v1606
        %v1608 = vpop.f32.mrf.mxu0
        %1609 = vmatprep.mubr.bf16.mxu0 0
        %1610 = vmatmul.mubr.bf16.gmra.mxu0 %v1474
        %v1611 = vpop.f32.mrf.mxu0
        %v1612 = vadd.f32 %v1064, %v1611
        %v1613 = vpop.f32.mrf.mxu0
        %v1614 = vpop.f32.mrf.mxu0
        %v1615 = vadd.f32 %v1067, %v1614
        %v1616 = vpop.f32.mrf.mxu0
        %1617 = vmatprep.mubr.bf16.mxu0 0
        %1618 = vmatmul.mubr.bf16.gmra.mxu0 %v1477
        %v1619 = vpop.f32.mrf.mxu0
        %v1620 = vadd.f32 %v1072, %v1619
        %v1621 = vpop.f32.mrf.mxu0
        %v1622 = vpop.f32.mrf.mxu0
        %v1623 = vadd.f32 %v1075, %v1622
        %v1624 = vpop.f32.mrf.mxu0
        %1625 = vmatprep.mubr.bf16.mxu0 0
        %1626 = vmatmul.mubr.bf16.gmra.mxu0 %v1480
        %v1627 = vpop.f32.mrf.mxu0
        %v1628 = vadd.f32 %v1080, %v1627
        %v1629 = vpop.f32.mrf.mxu0
        %v1630 = vpop.f32.mrf.mxu0
        %v1631 = vadd.f32 %v1083, %v1630
        %v1632 = vpop.f32.mrf.mxu0
        %1633 = vmatprep.mubr.bf16.mxu0 0
        %1634 = vmatmul.mubr.bf16.gmra.mxu0 %v1483
        %v1635 = vpop.f32.mrf.mxu0
        %v1636 = vadd.f32 %v1088, %v1635
        %v1637 = vpop.f32.mrf.mxu0
        %v1638 = vpop.f32.mrf.mxu0
        %v1639 = vadd.f32 %v1091, %v1638
        %v1640 = vpop.f32.mrf.mxu0
        %1641 = vmatprep.mubr.bf16.mxu0 0
        %1642 = vmatmul.mubr.bf16.gmra.mxu0 %v1486
        %v1643 = vpop.f32.mrf.mxu0
        %v1644 = vadd.f32 %v1096, %v1643
        %v1645 = vpop.f32.mrf.mxu0
        %v1646 = vpop.f32.mrf.mxu0
        %v1647 = vadd.f32 %v1099, %v1646
        %v1648 = vpop.f32.mrf.mxu0
        %1649 = vmatprep.mubr.bf16.mxu0 0
        %1650 = vmatmul.mubr.bf16.gmra.mxu0 %v1489
        %v1651 = vpop.f32.mrf.mxu0
        %v1652 = vadd.f32 %v1104, %v1651
        %v1653 = vpop.f32.mrf.mxu0
        %v1654 = vpop.f32.mrf.mxu0
        %v1655 = vadd.f32 %v1107, %v1654
        %v1656 = vpop.f32.mrf.mxu0
        %1657 = vmatprep.mubr.bf16.mxu0 0
        %1658 = vmatmul.mubr.bf16.gmra.mxu0 %v1492
        %v1659 = vpop.f32.mrf.mxu0
        %v1660 = vadd.f32 %v1112, %v1659
        %v1661 = vpop.f32.mrf.mxu0
        %v1662 = vpop.f32.mrf.mxu0
        %v1663 = vadd.f32 %v1115, %v1662
        %v1664 = vpop.f32.mrf.mxu0
        %1665 = vmatprep.mubr.bf16.mxu0 0
        %1666 = vmatmul.mubr.bf16.gmra.mxu0 %v1495
        %v1667 = vpop.f32.mrf.mxu0
        %v1668 = vadd.f32 %v1120, %v1667
        %v1669 = vpop.f32.mrf.mxu0
        %v1670 = vpop.f32.mrf.mxu0
        %v1671 = vadd.f32 %v1123, %v1670
        %v1672 = vpop.f32.mrf.mxu0
        %1673 = vmatprep.mubr.bf16.mxu0 0
        %1674 = vmatmul.mubr.bf16.gmra.mxu0 %v1498
        %v1675 = vpop.f32.mrf.mxu0
        %v1676 = vadd.f32 %v1128, %v1675
        %v1677 = vpop.f32.mrf.mxu0
        %v1678 = vpop.f32.mrf.mxu0
        %v1679 = vadd.f32 %v1131, %v1678
        %v1680 = vpop.f32.mrf.mxu0
        %1681 = vmatprep.mubr.bf16.mxu0 0
        %1682 = vmatmul.mubr.bf16.gmra.mxu0 %v1501
        %v1683 = vpop.f32.mrf.mxu0
        %v1684 = vadd.f32 %v1136, %v1683
        %v1685 = vpop.f32.mrf.mxu0
        %v1686 = vpop.f32.mrf.mxu0
        %v1687 = vadd.f32 %v1139, %v1686
        %v1688 = vpop.f32.mrf.mxu0
        %1689 = vmatprep.mubr.bf16.mxu0 0
        %1690 = vmatmul.mubr.bf16.gmra.mxu0 %v1504
        %v1691 = vpop.f32.mrf.mxu0
        %v1692 = vadd.f32 %v1144, %v1691
        %v1693 = vpop.f32.mrf.mxu0
        %v1694 = vpop.f32.mrf.mxu0
        %v1695 = vadd.f32 %v1147, %v1694
        %v1696 = vpop.f32.mrf.mxu0
        %1697 = vmatprep.mubr.bf16.mxu0 0
        %1698 = vmatmul.mubr.bf16.gmra.mxu0 %v1507
        %v1699 = vpop.f32.mrf.mxu0
        %v1700 = vadd.f32 %v1152, %v1699
        %v1701 = vpop.f32.mrf.mxu0
        %v1702 = vpop.f32.mrf.mxu0
        %v1703 = vadd.f32 %v1155, %v1702
        %v1704 = vpop.f32.mrf.mxu0
        %1705 = vmatprep.mubr.bf16.mxu0 0
        %1706 = vmatmul.mubr.bf16.gmra.mxu0 %v1510
        %v1707 = vpop.f32.mrf.mxu0
        %v1708 = vadd.f32 %v1160, %v1707
        %v1709 = vpop.f32.mrf.mxu0
        %v1710 = vpop.f32.mrf.mxu0
        %v1711 = vadd.f32 %v1163, %v1710
        %v1712 = vpop.f32.mrf.mxu0
        %1713 = vmatprep.mubr.bf16.mxu0 0
        %1714 = vmatmul.mubr.bf16.gmra.mxu0 %v1513
        %v1715 = vpop.f32.mrf.mxu0
        %v1716 = vadd.f32 %v1168, %v1715
        %v1717 = vpop.f32.mrf.mxu0
        %v1718 = vpop.f32.mrf.mxu0
        %v1719 = vadd.f32 %v1171, %v1718
        %v1720 = vpop.f32.mrf.mxu0
        %1721 = vmatprep.mubr.bf16.mxu0 0
        %1722 = vmatmul.mubr.bf16.gmra.mxu0 %v1516
        %v1723 = vpop.f32.mrf.mxu0
        %v1724 = vadd.f32 %v1176, %v1723
        %v1725 = vpop.f32.mrf.mxu0
        %v1726 = vpop.f32.mrf.mxu0
        %v1727 = vadd.f32 %v1179, %v1726
        %v1728 = vpop.f32.mrf.mxu0
        %1729 = vmatprep.mubr.bf16.mxu0 0
        %1730 = vmatmul.mubr.bf16.gmra.mxu0 %v1519
        %v1731 = vpop.f32.mrf.mxu0
        %v1732 = vadd.f32 %v1184, %v1731
        %v1733 = vpop.f32.mrf.mxu0
        %v1734 = vpop.f32.mrf.mxu0
        %v1735 = vadd.f32 %v1187, %v1734
        %v1736 = vpop.f32.mrf.mxu0
        %1737 = vmatprep.mubr.bf16.mxu0 0
        %1738 = vmatmul.mubr.bf16.gmra.mxu0 %v1522
        %v1739 = vpop.f32.mrf.mxu0
        %v1740 = vadd.f32 %v1192, %v1739
        %v1741 = vpop.f32.mrf.mxu0
        %v1742 = vpop.f32.mrf.mxu0
        %v1743 = vadd.f32 %v1195, %v1742
        %v1744 = vpop.f32.mrf.mxu0
        %1745 = vmatprep.mubr.bf16.mxu0 0
        %1746 = vmatmul.mubr.bf16.gmra.mxu0 %v1525
        %v1747 = vpop.f32.mrf.mxu0
        %v1748 = vadd.f32 %v1200, %v1747
        %v1749 = vpop.f32.mrf.mxu0
        %v1750 = vpop.f32.mrf.mxu0
        %v1751 = vadd.f32 %v1203, %v1750
        %v1752 = vpop.f32.mrf.mxu0
        %1753 = vmatprep.mubr.bf16.mxu0 0
        %1754 = vmatmul.mubr.bf16.gmra.mxu0 %v1528
        %v1755 = vpop.f32.mrf.mxu0
        %v1756 = vadd.f32 %v1208, %v1755
        %v1757 = vpop.f32.mrf.mxu0
        %v1758 = vpop.f32.mrf.mxu0
        %v1759 = vadd.f32 %v1211, %v1758
        %v1760 = vpop.f32.mrf.mxu0
        %1761 = vmatprep.mubr.bf16.mxu0 0
        %1762 = vmatmul.mubr.bf16.gmra.mxu0 %v1531
        %v1763 = vpop.f32.mrf.mxu0
        %v1764 = vadd.f32 %v1216, %v1763
        %v1765 = vpop.f32.mrf.mxu0
        %v1766 = vpop.f32.mrf.mxu0
        %v1767 = vadd.f32 %v1219, %v1766
        %v1768 = vpop.f32.mrf.mxu0
        %1769 = vmatprep.mubr.bf16.mxu0 0
        %1770 = vmatmul.mubr.bf16.gmra.mxu0 %v1534
        %v1771 = vpop.f32.mrf.mxu0
        %v1772 = vadd.f32 %v1224, %v1771
        %v1773 = vpop.f32.mrf.mxu0
        %v1774 = vpop.f32.mrf.mxu0
        %v1775 = vadd.f32 %v1227, %v1774
        %v1776 = vpop.f32.mrf.mxu0
        %1777 = vmatprep.mubr.bf16.mxu0 0
        %1778 = vmatmul.mubr.bf16.gmra.mxu0 %v1537
        %v1779 = vpop.f32.mrf.mxu0
        %v1780 = vadd.f32 %v1232, %v1779
        %v1781 = vpop.f32.mrf.mxu0
        %v1782 = vpop.f32.mrf.mxu0
        %v1783 = vadd.f32 %v1235, %v1782
        %v1784 = vpop.f32.mrf.mxu0
        %1785 = vmatprep.mubr.bf16.mxu0 0
        %1786 = vmatmul.mubr.bf16.gmra.mxu0 %v1540
        %v1787 = vpop.f32.mrf.mxu0
        %v1788 = vadd.f32 %v1240, %v1787
        %v1789 = vpop.f32.mrf.mxu0
        %v1790 = vpop.f32.mrf.mxu0
        %v1791 = vadd.f32 %v1243, %v1790
        %v1792 = vpop.f32.mrf.mxu0
        %1793 = vmatprep.mubr.bf16.mxu0 0
        %1794 = vmatmul.mubr.bf16.gmra.mxu0 %v1543
        %v1795 = vpop.f32.mrf.mxu0
        %v1796 = vadd.f32 %v1248, %v1795
        %v1797 = vpop.f32.mrf.mxu0
        %v1798 = vpop.f32.mrf.mxu0
        %v1799 = vadd.f32 %v1251, %v1798
        %v1800 = vpop.f32.mrf.mxu0
        %1801 = vmatprep.mubr.bf16.mxu0 0
        %1802 = vmatmul.mubr.bf16.gmra.mxu0 %v1546
        %v1803 = vpop.f32.mrf.mxu0
        %v1804 = vadd.f32 %v1256, %v1803
        %v1805 = vpop.f32.mrf.mxu0
        %v1806 = vpop.f32.mrf.mxu0
        %v1807 = vadd.f32 %v1259, %v1806
        %v1808 = vpop.f32.mrf.mxu0
        %1809 = vmatprep.mubr.bf16.mxu0 0
        %1810 = vmatmul.mubr.bf16.gmra.mxu0 %v1549
        %v1811 = vpop.f32.mrf.mxu0
        %v1812 = vadd.f32 %v1264, %v1811
        %v1813 = vpop.f32.mrf.mxu0
        %v1814 = vpop.f32.mrf.mxu0
        %v1815 = vadd.f32 %v1267, %v1814
        %v1816 = vpop.f32.mrf.mxu0
        %1817 = vmatprep.mubr.bf16.mxu0 0
        %1818 = vmatmul.mubr.bf16.gmra.mxu0 %v1552
        %v1819 = vpop.f32.mrf.mxu0
        %v1820 = vadd.f32 %v1272, %v1819
        %v1821 = vpop.f32.mrf.mxu0
        %v1822 = vpop.f32.mrf.mxu0
        %v1823 = vadd.f32 %v1275, %v1822
        %v1824 = vpop.f32.mrf.mxu0
        %1825 = vmatprep.mubr.bf16.mxu0 0
        %1826 = vmatmul.mubr.bf16.gmra.mxu0 %v1555
        %v1827 = vpop.f32.mrf.mxu0
        %v1828 = vadd.f32 %v1280, %v1827
        %v1829 = vpop.f32.mrf.mxu0
        %v1830 = vpop.f32.mrf.mxu0
        %v1831 = vadd.f32 %v1283, %v1830
        %v1832 = vpop.f32.mrf.mxu0
        %1833 = vmatprep.mubr.bf16.mxu0 0
        %1834 = vmatmul.mubr.bf16.gmra.mxu0 %v1558
        %v1835 = vpop.f32.mrf.mxu0
        %v1836 = vadd.f32 %v1288, %v1835
        %v1837 = vpop.f32.mrf.mxu0
        %v1838 = vpop.f32.mrf.mxu0
        %v1839 = vadd.f32 %v1291, %v1838
        %v1840 = vpop.f32.mrf.mxu0
        %1841 = vmatprep.mubr.bf16.mxu0 0
        %1842 = vmatmul.mubr.bf16.gmra.mxu0 %v1561
        %v1843 = vpop.f32.mrf.mxu0
        %v1844 = vadd.f32 %v1296, %v1843
        %v1845 = vpop.f32.mrf.mxu0
        %v1846 = vpop.f32.mrf.mxu0
        %v1847 = vadd.f32 %v1299, %v1846
        %v1848 = vpop.f32.mrf.mxu0
        %1849 = vmatprep.mubr.bf16.mxu0 0
        %1850 = vmatmul.mubr.bf16.gmra.mxu0 %v1564
        %v1851 = vpop.f32.mrf.mxu0
        %v1852 = vadd.f32 %v1304, %v1851
        %v1853 = vpop.f32.mrf.mxu0
        %v1854 = vpop.f32.mrf.mxu0
        %v1855 = vadd.f32 %v1307, %v1854
        %v1856 = vpop.f32.mrf.mxu0
        %1857 = vdwg.mxu0
        %s1858 = scalar_lea.vmem [#allocation2], 64
        %v1859 = vld [vmem:[%s1858] sm:$0xf]
        %v1860 = vld [vmem:[%s1858 + $0x4] sm:$0xf]
        %v1861 = vld [vmem:[%s1858 + $0x8] sm:$0xf]
        %v1862 = vld [vmem:[%s1858 + $0xc] sm:$0xf]
        %v1863 = vld [vmem:[%s1858 + $0x10] sm:$0xf]
        %v1864 = vld [vmem:[%s1858 + $0x14] sm:$0xf]
        %v1865 = vld [vmem:[%s1858 + $0x18] sm:$0xf]
        %v1866 = vld [vmem:[%s1858 + $0x1c] sm:$0xf]
        %v1867 = vld [vmem:[%s1858 + $0x20] sm:$0xf]
        %v1868 = vld [vmem:[%s1858 + $0x24] sm:$0xf]
        %v1869 = vld [vmem:[%s1858 + $0x28] sm:$0xf]
        %v1870 = vld [vmem:[%s1858 + $0x2c] sm:$0xf]
        %v1871 = vld [vmem:[%s1858 + $0x30] sm:$0xf]
        %v1872 = vld [vmem:[%s1858 + $0x34] sm:$0xf]
        %v1873 = vld [vmem:[%s1858 + $0x38] sm:$0xf]
        %v1874 = vld [vmem:[%s1858 + $0x3c] sm:$0xf]
        %v1875 = vld [vmem:[%s1858 + $0x40] sm:$0xf]
        %v1876 = vld [vmem:[%s1858 + $0x44] sm:$0xf]
        %v1877 = vld [vmem:[%s1858 + $0x48] sm:$0xf]
        %v1878 = vld [vmem:[%s1858 + $0x4c] sm:$0xf]
        %v1879 = vld [vmem:[%s1858 + $0x50] sm:$0xf]
        %v1880 = vld [vmem:[%s1858 + $0x54] sm:$0xf]
        %v1881 = vld [vmem:[%s1858 + $0x58] sm:$0xf]
        %v1882 = vld [vmem:[%s1858 + $0x5c] sm:$0xf]
        %v1883 = vld [vmem:[%s1858 + $0x60] sm:$0xf]
        %v1884 = vld [vmem:[%s1858 + $0x64] sm:$0xf]
        %v1885 = vld [vmem:[%s1858 + $0x68] sm:$0xf]
        %v1886 = vld [vmem:[%s1858 + $0x6c] sm:$0xf]
        %v1887 = vld [vmem:[%s1858 + $0x70] sm:$0xf]
        %v1888 = vld [vmem:[%s1858 + $0x74] sm:$0xf]
        %v1889 = vld [vmem:[%s1858 + $0x78] sm:$0xf]
        %v1890 = vld [vmem:[%s1858 + $0x7c] sm:$0xf]
        %v1891 = vld [vmem:[%s1858 + $0x80] sm:$0xf]
        %v1892 = vld [vmem:[%s1858 + $0x84] sm:$0xf]
        %v1893 = vld [vmem:[%s1858 + $0x88] sm:$0xf]
        %v1894 = vld [vmem:[%s1858 + $0x8c] sm:$0xf]
        %v1895 = vld [vmem:[%s1858 + $0x90] sm:$0xf]
        %v1896 = vld [vmem:[%s1858 + $0x94] sm:$0xf]
        %v1897 = vld [vmem:[%s1858 + $0x98] sm:$0xf]
        %v1898 = vld [vmem:[%s1858 + $0x9c] sm:$0xf]
        %v1899 = vld [vmem:[%s1858 + $0xa0] sm:$0xf]
        %v1900 = vld [vmem:[%s1858 + $0xa4] sm:$0xf]
        %v1901 = vld [vmem:[%s1858 + $0xa8] sm:$0xf]
        %v1902 = vld [vmem:[%s1858 + $0xac] sm:$0xf]
        %v1903 = vld [vmem:[%s1858 + $0xb0] sm:$0xf]
        %v1904 = vld [vmem:[%s1858 + $0xb4] sm:$0xf]
        %v1905 = vld [vmem:[%s1858 + $0xb8] sm:$0xf]
        %v1906 = vld [vmem:[%s1858 + $0xbc] sm:$0xf]
        %v1907 = vld [vmem:[%s1858 + $0xc0] sm:$0xf]
        %v1908 = vld [vmem:[%s1858 + $0xc4] sm:$0xf]
        %v1909 = vld [vmem:[%s1858 + $0xc8] sm:$0xf]
        %v1910 = vld [vmem:[%s1858 + $0xcc] sm:$0xf]
        %v1911 = vld [vmem:[%s1858 + $0xd0] sm:$0xf]
        %v1912 = vld [vmem:[%s1858 + $0xd4] sm:$0xf]
        %v1913 = vld [vmem:[%s1858 + $0xd8] sm:$0xf]
        %v1914 = vld [vmem:[%s1858 + $0xdc] sm:$0xf]
        %v1915 = vld [vmem:[%s1858 + $0xe0] sm:$0xf]
        %v1916 = vld [vmem:[%s1858 + $0xe4] sm:$0xf]
        %v1917 = vld [vmem:[%s1858 + $0xe8] sm:$0xf]
        %v1918 = vld [vmem:[%s1858 + $0xec] sm:$0xf]
        %v1919 = vld [vmem:[%s1858 + $0xf0] sm:$0xf]
        %v1920 = vld [vmem:[%s1858 + $0xf4] sm:$0xf]
        %v1921 = vld [vmem:[%s1858 + $0xf8] sm:$0xf]
        %v1922 = vld [vmem:[%s1858 + $0xfc] sm:$0xf]
        %s1923 = scalar_lea.vmem %s1, 4
        %v1924 = vld [vmem:[%s1923] sm:$0x3]
        %v1989 = vunpack.c.l.b16 %v1859
        %v1990 = vunpack.c.l.b16 %v1860
        %v1991 = vunpack.c.l.b16 %v1861
        %v1992 = vunpack.c.l.b16 %v1862
        %v1993 = vunpack.c.l.b16 %v1863
        %v1994 = vunpack.c.l.b16 %v1864
        %v1995 = vunpack.c.l.b16 %v1865
        %v1996 = vunpack.c.l.b16 %v1866
        %v1997 = vunpack.c.l.b16 %v1867
        %v1998 = vunpack.c.l.b16 %v1868
        %v1999 = vunpack.c.l.b16 %v1869
        %v2000 = vunpack.c.l.b16 %v1870
        %v2001 = vunpack.c.l.b16 %v1871
        %v2002 = vunpack.c.l.b16 %v1872
        %v2003 = vunpack.c.l.b16 %v1873
        %v2004 = vunpack.c.l.b16 %v1874
        %v2005 = vunpack.c.l.b16 %v1875
        %v2006 = vunpack.c.l.b16 %v1876
        %v2007 = vunpack.c.l.b16 %v1877
        %v2008 = vunpack.c.l.b16 %v1878
        %v2009 = vunpack.c.l.b16 %v1879
        %v2010 = vunpack.c.l.b16 %v1880
        %v2011 = vunpack.c.l.b16 %v1881
        %v2012 = vunpack.c.l.b16 %v1882
        %v2013 = vunpack.c.l.b16 %v1883
        %v2014 = vunpack.c.l.b16 %v1884
        %v2015 = vunpack.c.l.b16 %v1885
        %v2016 = vunpack.c.l.b16 %v1886
        %v2017 = vunpack.c.l.b16 %v1887
        %v2018 = vunpack.c.l.b16 %v1888
        %v2019 = vunpack.c.l.b16 %v1889
        %v2020 = vunpack.c.l.b16 %v1890
        %v2021 = vunpack.c.l.b16 %v1891
        %v2022 = vunpack.c.l.b16 %v1892
        %v2023 = vunpack.c.l.b16 %v1893
        %v2024 = vunpack.c.l.b16 %v1894
        %v2025 = vunpack.c.l.b16 %v1895
        %v2026 = vunpack.c.l.b16 %v1896
        %v2027 = vunpack.c.l.b16 %v1897
        %v2028 = vunpack.c.l.b16 %v1898
        %v2029 = vunpack.c.l.b16 %v1899
        %v2030 = vunpack.c.l.b16 %v1900
        %v2031 = vunpack.c.l.b16 %v1901
        %v2032 = vunpack.c.l.b16 %v1902
        %v2033 = vunpack.c.l.b16 %v1903
        %v2034 = vunpack.c.l.b16 %v1904
        %v2035 = vunpack.c.l.b16 %v1905
        %v2036 = vunpack.c.l.b16 %v1906
        %v2037 = vunpack.c.l.b16 %v1907
        %v2038 = vunpack.c.l.b16 %v1908
        %v2039 = vunpack.c.l.b16 %v1909
        %v2040 = vunpack.c.l.b16 %v1910
        %v2041 = vunpack.c.l.b16 %v1911
        %v2042 = vunpack.c.l.b16 %v1912
        %v2043 = vunpack.c.l.b16 %v1913
        %v2044 = vunpack.c.l.b16 %v1914
        %v2045 = vunpack.c.l.b16 %v1915
        %v2046 = vunpack.c.l.b16 %v1916
        %v2047 = vunpack.c.l.b16 %v1917
        %v2048 = vunpack.c.l.b16 %v1918
        %v2049 = vunpack.c.l.b16 %v1919
        %v2050 = vunpack.c.l.b16 %v1920
        %v2051 = vunpack.c.l.b16 %v1921
        %v2052 = vunpack.c.l.b16 %v1922
        %v2053 = vpack.c.b16 %v1990, %v1989
        %v2054 = vpack.c.b16 %v1992, %v1991
        %v2055 = vpack.c.b16 %v1994, %v1993
        %v2056 = vpack.c.b16 %v1996, %v1995
        %v2057 = vpack.c.b16 %v1998, %v1997
        %v2058 = vpack.c.b16 %v2000, %v1999
        %v2059 = vpack.c.b16 %v2002, %v2001
        %v2060 = vpack.c.b16 %v2004, %v2003
        %v2061 = vpack.c.b16 %v2006, %v2005
        %v2062 = vpack.c.b16 %v2008, %v2007
        %v2063 = vpack.c.b16 %v2010, %v2009
        %v2064 = vpack.c.b16 %v2012, %v2011
        %v2065 = vpack.c.b16 %v2014, %v2013
        %v2066 = vpack.c.b16 %v2016, %v2015
        %v2067 = vpack.c.b16 %v2018, %v2017
        %v2068 = vpack.c.b16 %v2020, %v2019
        %v2069 = vpack.c.b16 %v2022, %v2021
        %v2070 = vpack.c.b16 %v2024, %v2023
        %v2071 = vpack.c.b16 %v2026, %v2025
        %v2072 = vpack.c.b16 %v2028, %v2027
        %v2073 = vpack.c.b16 %v2030, %v2029
        %v2074 = vpack.c.b16 %v2032, %v2031
        %v2075 = vpack.c.b16 %v2034, %v2033
        %v2076 = vpack.c.b16 %v2036, %v2035
        %v2077 = vpack.c.b16 %v2038, %v2037
        %v2078 = vpack.c.b16 %v2040, %v2039
        %v2079 = vpack.c.b16 %v2042, %v2041
        %v2080 = vpack.c.b16 %v2044, %v2043
        %v2081 = vpack.c.b16 %v2046, %v2045
        %v2082 = vpack.c.b16 %v2048, %v2047
        %v2083 = vpack.c.b16 %v2050, %v2049
        %v2084 = vpack.c.b16 %v2052, %v2051
        %v2086 = vsel %vm920, %v2053, 0
        %v2089 = vsel %vm920, %v2054, 0
        %v2092 = vsel %vm920, %v2055, 0
        %v2095 = vsel %vm920, %v2056, 0
        %v2098 = vsel %vm920, %v2057, 0
        %v2101 = vsel %vm920, %v2058, 0
        %v2104 = vsel %vm920, %v2059, 0
        %v2107 = vsel %vm920, %v2060, 0
        %v2110 = vsel %vm920, %v2061, 0
        %v2113 = vsel %vm920, %v2062, 0
        %v2116 = vsel %vm920, %v2063, 0
        %v2119 = vsel %vm920, %v2064, 0
        %v2122 = vsel %vm920, %v2065, 0
        %v2125 = vsel %vm920, %v2066, 0
        %v2128 = vsel %vm920, %v2067, 0
        %v2131 = vsel %vm920, %v2068, 0
        %v2134 = vsel %vm920, %v2069, 0
        %v2137 = vsel %vm920, %v2070, 0
        %v2140 = vsel %vm920, %v2071, 0
        %v2143 = vsel %vm920, %v2072, 0
        %v2146 = vsel %vm920, %v2073, 0
        %v2149 = vsel %vm920, %v2074, 0
        %v2152 = vsel %vm920, %v2075, 0
        %v2155 = vsel %vm920, %v2076, 0
        %v2158 = vsel %vm920, %v2077, 0
        %v2161 = vsel %vm920, %v2078, 0
        %v2164 = vsel %vm920, %v2079, 0
        %v2167 = vsel %vm920, %v2080, 0
        %v2170 = vsel %vm920, %v2081, 0
        %v2173 = vsel %vm920, %v2082, 0
        %v2176 = vsel %vm920, %v2083, 0
        %v2179 = vsel %vm920, %v2084, 0
        %v2182 = vsel %vm1017, %v1924, 0
        %2184 = vmatprep.subr.bf16.mxu0 0
        %2185 = vmatpush1.bf16.msra.mxu0 0
        %2186 = vmatprep.subr.bf16.mxu0 0
        %2187 = vmatpush1.bf16.msra.mxu0 0
        %2188 = vmatprep.subr.bf16.mxu0 0
        %2189 = vmatpush1.bf16.msra.mxu0 0
        %2190 = vmatprep.subr.bf16.mxu0 0
        %2191 = vmatpush1.bf16.msra.mxu0 0
        %2192 = vmatprep.subr.bf16.mxu0 0
        %2193 = vmatpush1.bf16.msra.mxu0 0
        %2194 = vmatprep.subr.bf16.mxu0 0
        %2195 = vmatpush1.bf16.msra.mxu0 0
        %2196 = vmatprep.subr.bf16.mxu0 0
        %2197 = vmatpush1.bf16.msra.mxu0 0
        %2198 = vmatprep.subr.bf16.mxu0 0
        %2199 = vmatpush1.bf16.msra.mxu0 %v2182
        %2200 = vmatprep.subr.bf16.mxu0 0
        %2201 = vmatpush2.bf16.msra.mxu0 0
        %2202 = vmatprep.subr.bf16.mxu0 0
        %2203 = vmatpush2.bf16.msra.mxu0 0
        %2204 = vmatprep.subr.bf16.mxu0 0
        %2205 = vmatpush2.bf16.msra.mxu0 0
        %2206 = vmatprep.subr.bf16.mxu0 0
        %2207 = vmatpush2.bf16.msra.mxu0 0
        %2208 = vmatprep.subr.bf16.mxu0 0
        %2209 = vmatpush2.bf16.msra.mxu0 0
        %2210 = vmatprep.subr.bf16.mxu0 0
        %2211 = vmatpush2.bf16.msra.mxu0 0
        %2212 = vmatprep.subr.bf16.mxu0 0
        %2213 = vmatpush2.bf16.msra.mxu0 0
        %2214 = vmatprep.subr.bf16.mxu0 0
        %2215 = vmatpush2.bf16.msra.mxu0 0
        %2216 = vmatprep.mubr.bf16.mxu0 0
        %2217 = vmatmul.mubr.bf16.gmra.mxu0 %v2086
        %v2218 = vpop.f32.mrf.mxu0
        %v2219 = vadd.f32 0.0, %v2218
        %v2220 = vpop.f32.mrf.mxu0
        %v2221 = vpop.f32.mrf.mxu0
        %v2222 = vadd.f32 0.0, %v2221
        %v2223 = vpop.f32.mrf.mxu0
        %2224 = vmatprep.mubr.bf16.mxu0 0
        %2225 = vmatmul.mubr.bf16.gmra.mxu0 %v2089
        %v2226 = vpop.f32.mrf.mxu0
        %v2227 = vadd.f32 0.0, %v2226
        %v2228 = vpop.f32.mrf.mxu0
        %v2229 = vpop.f32.mrf.mxu0
        %v2230 = vadd.f32 0.0, %v2229
        %v2231 = vpop.f32.mrf.mxu0
        %2232 = vmatprep.mubr.bf16.mxu0 0
        %2233 = vmatmul.mubr.bf16.gmra.mxu0 %v2092
        %v2234 = vpop.f32.mrf.mxu0
        %v2235 = vadd.f32 0.0, %v2234
        %v2236 = vpop.f32.mrf.mxu0
        %v2237 = vpop.f32.mrf.mxu0
        %v2238 = vadd.f32 0.0, %v2237
        %v2239 = vpop.f32.mrf.mxu0
        %2240 = vmatprep.mubr.bf16.mxu0 0
        %2241 = vmatmul.mubr.bf16.gmra.mxu0 %v2095
        %v2242 = vpop.f32.mrf.mxu0
        %v2243 = vadd.f32 0.0, %v2242
        %v2244 = vpop.f32.mrf.mxu0
        %v2245 = vpop.f32.mrf.mxu0
        %v2246 = vadd.f32 0.0, %v2245
        %v2247 = vpop.f32.mrf.mxu0
        %2248 = vmatprep.mubr.bf16.mxu0 0
        %2249 = vmatmul.mubr.bf16.gmra.mxu0 %v2098
        %v2250 = vpop.f32.mrf.mxu0
        %v2251 = vadd.f32 0.0, %v2250
        %v2252 = vpop.f32.mrf.mxu0
        %v2253 = vpop.f32.mrf.mxu0
        %v2254 = vadd.f32 0.0, %v2253
        %v2255 = vpop.f32.mrf.mxu0
        %2256 = vmatprep.mubr.bf16.mxu0 0
        %2257 = vmatmul.mubr.bf16.gmra.mxu0 %v2101
        %v2258 = vpop.f32.mrf.mxu0
        %v2259 = vadd.f32 0.0, %v2258
        %v2260 = vpop.f32.mrf.mxu0
        %v2261 = vpop.f32.mrf.mxu0
        %v2262 = vadd.f32 0.0, %v2261
        %v2263 = vpop.f32.mrf.mxu0
        %2264 = vmatprep.mubr.bf16.mxu0 0
        %2265 = vmatmul.mubr.bf16.gmra.mxu0 %v2104
        %v2266 = vpop.f32.mrf.mxu0
        %v2267 = vadd.f32 0.0, %v2266
        %v2268 = vpop.f32.mrf.mxu0
        %v2269 = vpop.f32.mrf.mxu0
        %v2270 = vadd.f32 0.0, %v2269
        %v2271 = vpop.f32.mrf.mxu0
        %2272 = vmatprep.mubr.bf16.mxu0 0
        %2273 = vmatmul.mubr.bf16.gmra.mxu0 %v2107
        %v2274 = vpop.f32.mrf.mxu0
        %v2275 = vadd.f32 0.0, %v2274
        %v2276 = vpop.f32.mrf.mxu0
        %v2277 = vpop.f32.mrf.mxu0
        %v2278 = vadd.f32 0.0, %v2277
        %v2279 = vpop.f32.mrf.mxu0
        %2280 = vmatprep.mubr.bf16.mxu0 0
        %2281 = vmatmul.mubr.bf16.gmra.mxu0 %v2110
        %v2282 = vpop.f32.mrf.mxu0
        %v2283 = vadd.f32 0.0, %v2282
        %v2284 = vpop.f32.mrf.mxu0
        %v2285 = vpop.f32.mrf.mxu0
        %v2286 = vadd.f32 0.0, %v2285
        %v2287 = vpop.f32.mrf.mxu0
        %2288 = vmatprep.mubr.bf16.mxu0 0
        %2289 = vmatmul.mubr.bf16.gmra.mxu0 %v2113
        %v2290 = vpop.f32.mrf.mxu0
        %v2291 = vadd.f32 0.0, %v2290
        %v2292 = vpop.f32.mrf.mxu0
        %v2293 = vpop.f32.mrf.mxu0
        %v2294 = vadd.f32 0.0, %v2293
        %v2295 = vpop.f32.mrf.mxu0
        %2296 = vmatprep.mubr.bf16.mxu0 0
        %2297 = vmatmul.mubr.bf16.gmra.mxu0 %v2116
        %v2298 = vpop.f32.mrf.mxu0
        %v2299 = vadd.f32 0.0, %v2298
        %v2300 = vpop.f32.mrf.mxu0
        %v2301 = vpop.f32.mrf.mxu0
        %v2302 = vadd.f32 0.0, %v2301
        %v2303 = vpop.f32.mrf.mxu0
        %2304 = vmatprep.mubr.bf16.mxu0 0
        %2305 = vmatmul.mubr.bf16.gmra.mxu0 %v2119
        %v2306 = vpop.f32.mrf.mxu0
        %v2307 = vadd.f32 0.0, %v2306
        %v2308 = vpop.f32.mrf.mxu0
        %v2309 = vpop.f32.mrf.mxu0
        %v2310 = vadd.f32 0.0, %v2309
        %v2311 = vpop.f32.mrf.mxu0
        %2312 = vmatprep.mubr.bf16.mxu0 0
        %2313 = vmatmul.mubr.bf16.gmra.mxu0 %v2122
        %v2314 = vpop.f32.mrf.mxu0
        %v2315 = vadd.f32 0.0, %v2314
        %v2316 = vpop.f32.mrf.mxu0
        %v2317 = vpop.f32.mrf.mxu0
        %v2318 = vadd.f32 0.0, %v2317
        %v2319 = vpop.f32.mrf.mxu0
        %2320 = vmatprep.mubr.bf16.mxu0 0
        %2321 = vmatmul.mubr.bf16.gmra.mxu0 %v2125
        %v2322 = vpop.f32.mrf.mxu0
        %v2323 = vadd.f32 0.0, %v2322
        %v2324 = vpop.f32.mrf.mxu0
        %v2325 = vpop.f32.mrf.mxu0
        %v2326 = vadd.f32 0.0, %v2325
        %v2327 = vpop.f32.mrf.mxu0
        %2328 = vmatprep.mubr.bf16.mxu0 0
        %2329 = vmatmul.mubr.bf16.gmra.mxu0 %v2128
        %v2330 = vpop.f32.mrf.mxu0
        %v2331 = vadd.f32 0.0, %v2330
        %v2332 = vpop.f32.mrf.mxu0
        %v2333 = vpop.f32.mrf.mxu0
        %v2334 = vadd.f32 0.0, %v2333
        %v2335 = vpop.f32.mrf.mxu0
        %2336 = vmatprep.mubr.bf16.mxu0 0
        %2337 = vmatmul.mubr.bf16.gmra.mxu0 %v2131
        %v2338 = vpop.f32.mrf.mxu0
        %v2339 = vadd.f32 0.0, %v2338
        %v2340 = vpop.f32.mrf.mxu0
        %v2341 = vpop.f32.mrf.mxu0
        %v2342 = vadd.f32 0.0, %v2341
        %v2343 = vpop.f32.mrf.mxu0
        %2344 = vmatprep.mubr.bf16.mxu0 0
        %2345 = vmatmul.mubr.bf16.gmra.mxu0 %v2134
        %v2346 = vpop.f32.mrf.mxu0
        %v2347 = vadd.f32 0.0, %v2346
        %v2348 = vpop.f32.mrf.mxu0
        %v2349 = vpop.f32.mrf.mxu0
        %v2350 = vadd.f32 0.0, %v2349
        %v2351 = vpop.f32.mrf.mxu0
        %2352 = vmatprep.mubr.bf16.mxu0 0
        %2353 = vmatmul.mubr.bf16.gmra.mxu0 %v2137
        %v2354 = vpop.f32.mrf.mxu0
        %v2355 = vadd.f32 0.0, %v2354
        %v2356 = vpop.f32.mrf.mxu0
        %v2357 = vpop.f32.mrf.mxu0
        %v2358 = vadd.f32 0.0, %v2357
        %v2359 = vpop.f32.mrf.mxu0
        %2360 = vmatprep.mubr.bf16.mxu0 0
        %2361 = vmatmul.mubr.bf16.gmra.mxu0 %v2140
        %v2362 = vpop.f32.mrf.mxu0
        %v2363 = vadd.f32 0.0, %v2362
        %v2364 = vpop.f32.mrf.mxu0
        %v2365 = vpop.f32.mrf.mxu0
        %v2366 = vadd.f32 0.0, %v2365
        %v2367 = vpop.f32.mrf.mxu0
        %2368 = vmatprep.mubr.bf16.mxu0 0
        %2369 = vmatmul.mubr.bf16.gmra.mxu0 %v2143
        %v2370 = vpop.f32.mrf.mxu0
        %v2371 = vadd.f32 0.0, %v2370
        %v2372 = vpop.f32.mrf.mxu0
        %v2373 = vpop.f32.mrf.mxu0
        %v2374 = vadd.f32 0.0, %v2373
        %v2375 = vpop.f32.mrf.mxu0
        %2376 = vmatprep.mubr.bf16.mxu0 0
        %2377 = vmatmul.mubr.bf16.gmra.mxu0 %v2146
        %v2378 = vpop.f32.mrf.mxu0
        %v2379 = vadd.f32 0.0, %v2378
        %v2380 = vpop.f32.mrf.mxu0
        %v2381 = vpop.f32.mrf.mxu0
        %v2382 = vadd.f32 0.0, %v2381
        %v2383 = vpop.f32.mrf.mxu0
        %2384 = vmatprep.mubr.bf16.mxu0 0
        %2385 = vmatmul.mubr.bf16.gmra.mxu0 %v2149
        %v2386 = vpop.f32.mrf.mxu0
        %v2387 = vadd.f32 0.0, %v2386
        %v2388 = vpop.f32.mrf.mxu0
        %v2389 = vpop.f32.mrf.mxu0
        %v2390 = vadd.f32 0.0, %v2389
        %v2391 = vpop.f32.mrf.mxu0
        %2392 = vmatprep.mubr.bf16.mxu0 0
        %2393 = vmatmul.mubr.bf16.gmra.mxu0 %v2152
        %v2394 = vpop.f32.mrf.mxu0
        %v2395 = vadd.f32 0.0, %v2394
        %v2396 = vpop.f32.mrf.mxu0
        %v2397 = vpop.f32.mrf.mxu0
        %v2398 = vadd.f32 0.0, %v2397
        %v2399 = vpop.f32.mrf.mxu0
        %2400 = vmatprep.mubr.bf16.mxu0 0
        %2401 = vmatmul.mubr.bf16.gmra.mxu0 %v2155
        %v2402 = vpop.f32.mrf.mxu0
        %v2403 = vadd.f32 0.0, %v2402
        %v2404 = vpop.f32.mrf.mxu0
        %v2405 = vpop.f32.mrf.mxu0
        %v2406 = vadd.f32 0.0, %v2405
        %v2407 = vpop.f32.mrf.mxu0
        %2408 = vmatprep.mubr.bf16.mxu0 0
        %2409 = vmatmul.mubr.bf16.gmra.mxu0 %v2158
        %v2410 = vpop.f32.mrf.mxu0
        %v2411 = vadd.f32 0.0, %v2410
        %v2412 = vpop.f32.mrf.mxu0
        %v2413 = vpop.f32.mrf.mxu0
        %v2414 = vadd.f32 0.0, %v2413
        %v2415 = vpop.f32.mrf.mxu0
        %2416 = vmatprep.mubr.bf16.mxu0 0
        %2417 = vmatmul.mubr.bf16.gmra.mxu0 %v2161
        %v2418 = vpop.f32.mrf.mxu0
        %v2419 = vadd.f32 0.0, %v2418
        %v2420 = vpop.f32.mrf.mxu0
        %v2421 = vpop.f32.mrf.mxu0
        %v2422 = vadd.f32 0.0, %v2421
        %v2423 = vpop.f32.mrf.mxu0
        %2424 = vmatprep.mubr.bf16.mxu0 0
        %2425 = vmatmul.mubr.bf16.gmra.mxu0 %v2164
        %v2426 = vpop.f32.mrf.mxu0
        %v2427 = vadd.f32 0.0, %v2426
        %v2428 = vpop.f32.mrf.mxu0
        %v2429 = vpop.f32.mrf.mxu0
        %v2430 = vadd.f32 0.0, %v2429
        %v2431 = vpop.f32.mrf.mxu0
        %2432 = vmatprep.mubr.bf16.mxu0 0
        %2433 = vmatmul.mubr.bf16.gmra.mxu0 %v2167
        %v2434 = vpop.f32.mrf.mxu0
        %v2435 = vadd.f32 0.0, %v2434
        %v2436 = vpop.f32.mrf.mxu0
        %v2437 = vpop.f32.mrf.mxu0
        %v2438 = vadd.f32 0.0, %v2437
        %v2439 = vpop.f32.mrf.mxu0
        %2440 = vmatprep.mubr.bf16.mxu0 0
        %2441 = vmatmul.mubr.bf16.gmra.mxu0 %v2170
        %v2442 = vpop.f32.mrf.mxu0
        %v2443 = vadd.f32 0.0, %v2442
        %v2444 = vpop.f32.mrf.mxu0
        %v2445 = vpop.f32.mrf.mxu0
        %v2446 = vadd.f32 0.0, %v2445
        %v2447 = vpop.f32.mrf.mxu0
        %2448 = vmatprep.mubr.bf16.mxu0 0
        %2449 = vmatmul.mubr.bf16.gmra.mxu0 %v2173
        %v2450 = vpop.f32.mrf.mxu0
        %v2451 = vadd.f32 0.0, %v2450
        %v2452 = vpop.f32.mrf.mxu0
        %v2453 = vpop.f32.mrf.mxu0
        %v2454 = vadd.f32 0.0, %v2453
        %v2455 = vpop.f32.mrf.mxu0
        %2456 = vmatprep.mubr.bf16.mxu0 0
        %2457 = vmatmul.mubr.bf16.gmra.mxu0 %v2176
        %v2458 = vpop.f32.mrf.mxu0
        %v2459 = vadd.f32 0.0, %v2458
        %v2460 = vpop.f32.mrf.mxu0
        %v2461 = vpop.f32.mrf.mxu0
        %v2462 = vadd.f32 0.0, %v2461
        %v2463 = vpop.f32.mrf.mxu0
        %2464 = vmatprep.mubr.bf16.mxu0 0
        %2465 = vmatmul.mubr.bf16.gmra.mxu0 %v2179
        %v2466 = vpop.f32.mrf.mxu0
        %v2467 = vadd.f32 0.0, %v2466
        %v2468 = vpop.f32.mrf.mxu0
        %v2469 = vpop.f32.mrf.mxu0
        %v2470 = vadd.f32 0.0, %v2469
        %v2471 = vpop.f32.mrf.mxu0
        %2472 = vdwg.mxu0
        %v2473 = vadd.f32 %v1604, %v2219
        %v2474 = vadd.f32 %v1607, %v2222
        %v2475 = vadd.f32 %v1612, %v2227
        %v2476 = vadd.f32 %v1615, %v2230
        %v2477 = vadd.f32 %v1620, %v2235
        %v2478 = vadd.f32 %v1623, %v2238
        %v2479 = vadd.f32 %v1628, %v2243
        %v2480 = vadd.f32 %v1631, %v2246
        %v2481 = vadd.f32 %v1636, %v2251
        %v2482 = vadd.f32 %v1639, %v2254
        %v2483 = vadd.f32 %v1644, %v2259
        %v2484 = vadd.f32 %v1647, %v2262
        %v2485 = vadd.f32 %v1652, %v2267
        %v2486 = vadd.f32 %v1655, %v2270
        %v2487 = vadd.f32 %v1660, %v2275
        %v2488 = vadd.f32 %v1663, %v2278
        %v2489 = vadd.f32 %v1668, %v2283
        %v2490 = vadd.f32 %v1671, %v2286
        %v2491 = vadd.f32 %v1676, %v2291
        %v2492 = vadd.f32 %v1679, %v2294
        %v2493 = vadd.f32 %v1684, %v2299
        %v2494 = vadd.f32 %v1687, %v2302
        %v2495 = vadd.f32 %v1692, %v2307
        %v2496 = vadd.f32 %v1695, %v2310
        %v2497 = vadd.f32 %v1700, %v2315
        %v2498 = vadd.f32 %v1703, %v2318
        %v2499 = vadd.f32 %v1708, %v2323
        %v2500 = vadd.f32 %v1711, %v2326
        %v2501 = vadd.f32 %v1716, %v2331
        %v2502 = vadd.f32 %v1719, %v2334
        %v2503 = vadd.f32 %v1724, %v2339
        %v2504 = vadd.f32 %v1727, %v2342
        %v2505 = vadd.f32 %v1732, %v2347
        %v2506 = vadd.f32 %v1735, %v2350
        %v2507 = vadd.f32 %v1740, %v2355
        %v2508 = vadd.f32 %v1743, %v2358
        %v2509 = vadd.f32 %v1748, %v2363
        %v2510 = vadd.f32 %v1751, %v2366
        %v2511 = vadd.f32 %v1756, %v2371
        %v2512 = vadd.f32 %v1759, %v2374
        %v2513 = vadd.f32 %v1764, %v2379
        %v2514 = vadd.f32 %v1767, %v2382
        %v2515 = vadd.f32 %v1772, %v2387
        %v2516 = vadd.f32 %v1775, %v2390
        %v2517 = vadd.f32 %v1780, %v2395
        %v2518 = vadd.f32 %v1783, %v2398
        %v2519 = vadd.f32 %v1788, %v2403
        %v2520 = vadd.f32 %v1791, %v2406
        %v2521 = vadd.f32 %v1796, %v2411
        %v2522 = vadd.f32 %v1799, %v2414
        %v2523 = vadd.f32 %v1804, %v2419
        %v2524 = vadd.f32 %v1807, %v2422
        %v2525 = vadd.f32 %v1812, %v2427
        %v2526 = vadd.f32 %v1815, %v2430
        %v2527 = vadd.f32 %v1820, %v2435
        %v2528 = vadd.f32 %v1823, %v2438
        %v2529 = vadd.f32 %v1828, %v2443
        %v2530 = vadd.f32 %v1831, %v2446
        %v2531 = vadd.f32 %v1836, %v2451
        %v2532 = vadd.f32 %v1839, %v2454
        %v2533 = vadd.f32 %v1844, %v2459
        %v2534 = vadd.f32 %v1847, %v2462
        %v2535 = vadd.f32 %v1852, %v2467
        %v2536 = vadd.f32 %v1855, %v2470
        %v2537 = vld [vmem:[%s2] sm:$0x1]
        %v2539 = vlaneseq
        %v2540 = vshrl.u32 %v2539, 7
        %v2541 = vsub.s32 0, %v2540
        %v2542 = vrot.slane %v2537, %v2541
        %v2544 = vadd.f32 %v2473, %v2542
        %v2545 = vadd.f32 %v2474, %v2542
        %v2546 = vadd.f32 %v2475, %v2542
        %v2547 = vadd.f32 %v2476, %v2542
        %v2548 = vadd.f32 %v2477, %v2542
        %v2549 = vadd.f32 %v2478, %v2542
        %v2550 = vadd.f32 %v2479, %v2542
        %v2551 = vadd.f32 %v2480, %v2542
        %v2552 = vadd.f32 %v2481, %v2542
        %v2553 = vadd.f32 %v2482, %v2542
        %v2554 = vadd.f32 %v2483, %v2542
        %v2555 = vadd.f32 %v2484, %v2542
        %v2556 = vadd.f32 %v2485, %v2542
        %v2557 = vadd.f32 %v2486, %v2542
        %v2558 = vadd.f32 %v2487, %v2542
        %v2559 = vadd.f32 %v2488, %v2542
        %v2560 = vadd.f32 %v2489, %v2542
        %v2561 = vadd.f32 %v2490, %v2542
        %v2562 = vadd.f32 %v2491, %v2542
        %v2563 = vadd.f32 %v2492, %v2542
        %v2564 = vadd.f32 %v2493, %v2542
        %v2565 = vadd.f32 %v2494, %v2542
        %v2566 = vadd.f32 %v2495, %v2542
        %v2567 = vadd.f32 %v2496, %v2542
        %v2568 = vadd.f32 %v2497, %v2542
        %v2569 = vadd.f32 %v2498, %v2542
        %v2570 = vadd.f32 %v2499, %v2542
        %v2571 = vadd.f32 %v2500, %v2542
        %v2572 = vadd.f32 %v2501, %v2542
        %v2573 = vadd.f32 %v2502, %v2542
        %v2574 = vadd.f32 %v2503, %v2542
        %v2575 = vadd.f32 %v2504, %v2542
        %v2576 = vadd.f32 %v2505, %v2542
        %v2577 = vadd.f32 %v2506, %v2542
        %v2578 = vadd.f32 %v2507, %v2542
        %v2579 = vadd.f32 %v2508, %v2542
        %v2580 = vadd.f32 %v2509, %v2542
        %v2581 = vadd.f32 %v2510, %v2542
        %v2582 = vadd.f32 %v2511, %v2542
        %v2583 = vadd.f32 %v2512, %v2542
        %v2584 = vadd.f32 %v2513, %v2542
        %v2585 = vadd.f32 %v2514, %v2542
        %v2586 = vadd.f32 %v2515, %v2542
        %v2587 = vadd.f32 %v2516, %v2542
        %v2588 = vadd.f32 %v2517, %v2542
        %v2589 = vadd.f32 %v2518, %v2542
        %v2590 = vadd.f32 %v2519, %v2542
        %v2591 = vadd.f32 %v2520, %v2542
        %v2592 = vadd.f32 %v2521, %v2542
        %v2593 = vadd.f32 %v2522, %v2542
        %v2594 = vadd.f32 %v2523, %v2542
        %v2595 = vadd.f32 %v2524, %v2542
        %v2596 = vadd.f32 %v2525, %v2542
        %v2597 = vadd.f32 %v2526, %v2542
        %v2598 = vadd.f32 %v2527, %v2542
        %v2599 = vadd.f32 %v2528, %v2542
        %v2600 = vadd.f32 %v2529, %v2542
        %v2601 = vadd.f32 %v2530, %v2542
        %v2602 = vadd.f32 %v2531, %v2542
        %v2603 = vadd.f32 %v2532, %v2542
        %v2604 = vadd.f32 %v2533, %v2542
        %v2605 = vadd.f32 %v2534, %v2542
        %v2606 = vadd.f32 %v2535, %v2542
        %v2607 = vadd.f32 %v2536, %v2542
        %v2608 = vmax.f32 %v2544, 0.0
        %v2609 = vmax.f32 %v2545, 0.0
        %v2610 = vmax.f32 %v2546, 0.0
        %v2611 = vmax.f32 %v2547, 0.0
        %v2612 = vmax.f32 %v2548, 0.0
        %v2613 = vmax.f32 %v2549, 0.0
        %v2614 = vmax.f32 %v2550, 0.0
        %v2615 = vmax.f32 %v2551, 0.0
        %v2616 = vmax.f32 %v2552, 0.0
        %v2617 = vmax.f32 %v2553, 0.0
        %v2618 = vmax.f32 %v2554, 0.0
        %v2619 = vmax.f32 %v2555, 0.0
        %v2620 = vmax.f32 %v2556, 0.0
        %v2621 = vmax.f32 %v2557, 0.0
        %v2622 = vmax.f32 %v2558, 0.0
        %v2623 = vmax.f32 %v2559, 0.0
        %v2624 = vmax.f32 %v2560, 0.0
        %v2625 = vmax.f32 %v2561, 0.0
        %v2626 = vmax.f32 %v2562, 0.0
        %v2627 = vmax.f32 %v2563, 0.0
        %v2628 = vmax.f32 %v2564, 0.0
        %v2629 = vmax.f32 %v2565, 0.0
        %v2630 = vmax.f32 %v2566, 0.0
        %v2631 = vmax.f32 %v2567, 0.0
        %v2632 = vmax.f32 %v2568, 0.0
        %v2633 = vmax.f32 %v2569, 0.0
        %v2634 = vmax.f32 %v2570, 0.0
        %v2635 = vmax.f32 %v2571, 0.0
        %v2636 = vmax.f32 %v2572, 0.0
        %v2637 = vmax.f32 %v2573, 0.0
        %v2638 = vmax.f32 %v2574, 0.0
        %v2639 = vmax.f32 %v2575, 0.0
        %v2640 = vmax.f32 %v2576, 0.0
        %v2641 = vmax.f32 %v2577, 0.0
        %v2642 = vmax.f32 %v2578, 0.0
        %v2643 = vmax.f32 %v2579, 0.0
        %v2644 = vmax.f32 %v2580, 0.0
        %v2645 = vmax.f32 %v2581, 0.0
        %v2646 = vmax.f32 %v2582, 0.0
        %v2647 = vmax.f32 %v2583, 0.0
        %v2648 = vmax.f32 %v2584, 0.0
        %v2649 = vmax.f32 %v2585, 0.0
        %v2650 = vmax.f32 %v2586, 0.0
        %v2651 = vmax.f32 %v2587, 0.0
        %v2652 = vmax.f32 %v2588, 0.0
        %v2653 = vmax.f32 %v2589, 0.0
        %v2654 = vmax.f32 %v2590, 0.0
        %v2655 = vmax.f32 %v2591, 0.0
        %v2656 = vmax.f32 %v2592, 0.0
        %v2657 = vmax.f32 %v2593, 0.0
        %v2658 = vmax.f32 %v2594, 0.0
        %v2659 = vmax.f32 %v2595, 0.0
        %v2660 = vmax.f32 %v2596, 0.0
        %v2661 = vmax.f32 %v2597, 0.0
        %v2662 = vmax.f32 %v2598, 0.0
        %v2663 = vmax.f32 %v2599, 0.0
        %v2664 = vmax.f32 %v2600, 0.0
        %v2665 = vmax.f32 %v2601, 0.0
        %v2666 = vmax.f32 %v2602, 0.0
        %v2667 = vmax.f32 %v2603, 0.0
        %v2668 = vmax.f32 %v2604, 0.0
        %v2669 = vmax.f32 %v2605, 0.0
        %v2670 = vmax.f32 %v2606, 0.0
        %v2671 = vmax.f32 %v2607, 0.0
        %v2672 = vpack.c.bf16 %v2609, %v2608
        %v2673 = vpack.c.bf16 %v2611, %v2610
        %v2674 = vpack.c.bf16 %v2613, %v2612
        %v2675 = vpack.c.bf16 %v2615, %v2614
        %v2676 = vpack.c.bf16 %v2617, %v2616
        %v2677 = vpack.c.bf16 %v2619, %v2618
        %v2678 = vpack.c.bf16 %v2621, %v2620
        %v2679 = vpack.c.bf16 %v2623, %v2622
        %v2680 = vpack.c.bf16 %v2625, %v2624
        %v2681 = vpack.c.bf16 %v2627, %v2626
        %v2682 = vpack.c.bf16 %v2629, %v2628
        %v2683 = vpack.c.bf16 %v2631, %v2630
        %v2684 = vpack.c.bf16 %v2633, %v2632
        %v2685 = vpack.c.bf16 %v2635, %v2634
        %v2686 = vpack.c.bf16 %v2637, %v2636
        %v2687 = vpack.c.bf16 %v2639, %v2638
        %v2688 = vpack.c.bf16 %v2641, %v2640
        %v2689 = vpack.c.bf16 %v2643, %v2642
        %v2690 = vpack.c.bf16 %v2645, %v2644
        %v2691 = vpack.c.bf16 %v2647, %v2646
        %v2692 = vpack.c.bf16 %v2649, %v2648
        %v2693 = vpack.c.bf16 %v2651, %v2650
        %v2694 = vpack.c.bf16 %v2653, %v2652
        %v2695 = vpack.c.bf16 %v2655, %v2654
        %v2696 = vpack.c.bf16 %v2657, %v2656
        %v2697 = vpack.c.bf16 %v2659, %v2658
        %v2698 = vpack.c.bf16 %v2661, %v2660
        %v2699 = vpack.c.bf16 %v2663, %v2662
        %v2700 = vpack.c.bf16 %v2665, %v2664
        %v2701 = vpack.c.bf16 %v2667, %v2666
        %v2702 = vpack.c.bf16 %v2669, %v2668
        %v2703 = vpack.c.bf16 %v2671, %v2670
        %v2736 = vunpack.c.l.b16 %v2672
        %v2737 = vunpack.c.h.b16 %v2672
        %v2738 = vunpack.c.l.b16 %v2673
        %v2739 = vunpack.c.h.b16 %v2673
        %v2740 = vunpack.c.l.b16 %v2674
        %v2741 = vunpack.c.h.b16 %v2674
        %v2742 = vunpack.c.l.b16 %v2675
        %v2743 = vunpack.c.h.b16 %v2675
        %v2744 = vunpack.c.l.b16 %v2676
        %v2745 = vunpack.c.h.b16 %v2676
        %v2746 = vunpack.c.l.b16 %v2677
        %v2747 = vunpack.c.h.b16 %v2677
        %v2748 = vunpack.c.l.b16 %v2678
        %v2749 = vunpack.c.h.b16 %v2678
        %v2750 = vunpack.c.l.b16 %v2679
        %v2751 = vunpack.c.h.b16 %v2679
        %v2752 = vunpack.c.l.b16 %v2680
        %v2753 = vunpack.c.h.b16 %v2680
        %v2754 = vunpack.c.l.b16 %v2681
        %v2755 = vunpack.c.h.b16 %v2681
        %v2756 = vunpack.c.l.b16 %v2682
        %v2757 = vunpack.c.h.b16 %v2682
        %v2758 = vunpack.c.l.b16 %v2683
        %v2759 = vunpack.c.h.b16 %v2683
        %v2760 = vunpack.c.l.b16 %v2684
        %v2761 = vunpack.c.h.b16 %v2684
        %v2762 = vunpack.c.l.b16 %v2685
        %v2763 = vunpack.c.h.b16 %v2685
        %v2764 = vunpack.c.l.b16 %v2686
        %v2765 = vunpack.c.h.b16 %v2686
        %v2766 = vunpack.c.l.b16 %v2687
        %v2767 = vunpack.c.h.b16 %v2687
        %v2768 = vunpack.c.l.b16 %v2688
        %v2769 = vunpack.c.h.b16 %v2688
        %v2770 = vunpack.c.l.b16 %v2689
        %v2771 = vunpack.c.h.b16 %v2689
        %v2772 = vunpack.c.l.b16 %v2690
        %v2773 = vunpack.c.h.b16 %v2690
        %v2774 = vunpack.c.l.b16 %v2691
        %v2775 = vunpack.c.h.b16 %v2691
        %v2776 = vunpack.c.l.b16 %v2692
        %v2777 = vunpack.c.h.b16 %v2692
        %v2778 = vunpack.c.l.b16 %v2693
        %v2779 = vunpack.c.h.b16 %v2693
        %v2780 = vunpack.c.l.b16 %v2694
        %v2781 = vunpack.c.h.b16 %v2694
        %v2782 = vunpack.c.l.b16 %v2695
        %v2783 = vunpack.c.h.b16 %v2695
        %v2784 = vunpack.c.l.b16 %v2696
        %v2785 = vunpack.c.h.b16 %v2696
        %v2786 = vunpack.c.l.b16 %v2697
        %v2787 = vunpack.c.h.b16 %v2697
        %v2788 = vunpack.c.l.b16 %v2698
        %v2789 = vunpack.c.h.b16 %v2698
        %v2790 = vunpack.c.l.b16 %v2699
        %v2791 = vunpack.c.h.b16 %v2699
        %v2792 = vunpack.c.l.b16 %v2700
        %v2793 = vunpack.c.h.b16 %v2700
        %v2794 = vunpack.c.l.b16 %v2701
        %v2795 = vunpack.c.h.b16 %v2701
        %v2796 = vunpack.c.l.b16 %v2702
        %v2797 = vunpack.c.h.b16 %v2702
        %v2798 = vunpack.c.l.b16 %v2703
        %v2799 = vunpack.c.h.b16 %v2703
        %v2800 = vpack.c.b16 %v2736, %v2736
        %v2801 = vpack.c.b16 %v2737, %v2737
        %v2802 = vpack.c.b16 %v2738, %v2738
        %v2803 = vpack.c.b16 %v2739, %v2739
        %v2804 = vpack.c.b16 %v2740, %v2740
        %v2805 = vpack.c.b16 %v2741, %v2741
        %v2806 = vpack.c.b16 %v2742, %v2742
        %v2807 = vpack.c.b16 %v2743, %v2743
        %v2808 = vpack.c.b16 %v2744, %v2744
        %v2809 = vpack.c.b16 %v2745, %v2745
        %v2810 = vpack.c.b16 %v2746, %v2746
        %v2811 = vpack.c.b16 %v2747, %v2747
        %v2812 = vpack.c.b16 %v2748, %v2748
        %v2813 = vpack.c.b16 %v2749, %v2749
        %v2814 = vpack.c.b16 %v2750, %v2750
        %v2815 = vpack.c.b16 %v2751, %v2751
        %v2816 = vpack.c.b16 %v2752, %v2752
        %v2817 = vpack.c.b16 %v2753, %v2753
        %v2818 = vpack.c.b16 %v2754, %v2754
        %v2819 = vpack.c.b16 %v2755, %v2755
        %v2820 = vpack.c.b16 %v2756, %v2756
        %v2821 = vpack.c.b16 %v2757, %v2757
        %v2822 = vpack.c.b16 %v2758, %v2758
        %v2823 = vpack.c.b16 %v2759, %v2759
        %v2824 = vpack.c.b16 %v2760, %v2760
        %v2825 = vpack.c.b16 %v2761, %v2761
        %v2826 = vpack.c.b16 %v2762, %v2762
        %v2827 = vpack.c.b16 %v2763, %v2763
        %v2828 = vpack.c.b16 %v2764, %v2764
        %v2829 = vpack.c.b16 %v2765, %v2765
        %v2830 = vpack.c.b16 %v2766, %v2766
        %v2831 = vpack.c.b16 %v2767, %v2767
        %v2832 = vpack.c.b16 %v2768, %v2768
        %v2833 = vpack.c.b16 %v2769, %v2769
        %v2834 = vpack.c.b16 %v2770, %v2770
        %v2835 = vpack.c.b16 %v2771, %v2771
        %v2836 = vpack.c.b16 %v2772, %v2772
        %v2837 = vpack.c.b16 %v2773, %v2773
        %v2838 = vpack.c.b16 %v2774, %v2774
        %v2839 = vpack.c.b16 %v2775, %v2775
        %v2840 = vpack.c.b16 %v2776, %v2776
        %v2841 = vpack.c.b16 %v2777, %v2777
        %v2842 = vpack.c.b16 %v2778, %v2778
        %v2843 = vpack.c.b16 %v2779, %v2779
        %v2844 = vpack.c.b16 %v2780, %v2780
        %v2845 = vpack.c.b16 %v2781, %v2781
        %v2846 = vpack.c.b16 %v2782, %v2782
        %v2847 = vpack.c.b16 %v2783, %v2783
        %v2848 = vpack.c.b16 %v2784, %v2784
        %v2849 = vpack.c.b16 %v2785, %v2785
        %v2850 = vpack.c.b16 %v2786, %v2786
        %v2851 = vpack.c.b16 %v2787, %v2787
        %v2852 = vpack.c.b16 %v2788, %v2788
        %v2853 = vpack.c.b16 %v2789, %v2789
        %v2854 = vpack.c.b16 %v2790, %v2790
        %v2855 = vpack.c.b16 %v2791, %v2791
        %v2856 = vpack.c.b16 %v2792, %v2792
        %v2857 = vpack.c.b16 %v2793, %v2793
        %v2858 = vpack.c.b16 %v2794, %v2794
        %v2859 = vpack.c.b16 %v2795, %v2795
        %v2860 = vpack.c.b16 %v2796, %v2796
        %v2861 = vpack.c.b16 %v2797, %v2797
        %v2862 = vpack.c.b16 %v2798, %v2798
        %v2863 = vpack.c.b16 %v2799, %v2799
        %2928 = vst.msk [vmem:[%s478] sm:$0xf] %vm482, %v2800
        %2929 = vst.msk [vmem:[%s478 + $0x4] sm:$0xf] %vm482, %v2801
        %2930 = vst.msk [vmem:[%s478 + $0x8] sm:$0xf] %vm482, %v2802
        %2931 = vst.msk [vmem:[%s478 + $0xc] sm:$0xf] %vm482, %v2803
        %2932 = vst.msk [vmem:[%s478 + $0x10] sm:$0xf] %vm482, %v2804
        %2933 = vst.msk [vmem:[%s478 + $0x14] sm:$0xf] %vm482, %v2805
        %2934 = vst.msk [vmem:[%s478 + $0x18] sm:$0xf] %vm482, %v2806
        %2935 = vst.msk [vmem:[%s478 + $0x1c] sm:$0xf] %vm482, %v2807
        %2936 = vst.msk [vmem:[%s478 + $0x20] sm:$0xf] %vm482, %v2808
        %2937 = vst.msk [vmem:[%s478 + $0x24] sm:$0xf] %vm482, %v2809
        %2938 = vst.msk [vmem:[%s478 + $0x28] sm:$0xf] %vm482, %v2810
        %2939 = vst.msk [vmem:[%s478 + $0x2c] sm:$0xf] %vm482, %v2811
        %2940 = vst.msk [vmem:[%s478 + $0x30] sm:$0xf] %vm482, %v2812
        %2941 = vst.msk [vmem:[%s478 + $0x34] sm:$0xf] %vm482, %v2813
        %2942 = vst.msk [vmem:[%s478 + $0x38] sm:$0xf] %vm482, %v2814
        %2943 = vst.msk [vmem:[%s478 + $0x3c] sm:$0xf] %vm482, %v2815
        %2944 = vst.msk [vmem:[%s478 + $0x40] sm:$0xf] %vm482, %v2816
        %2945 = vst.msk [vmem:[%s478 + $0x44] sm:$0xf] %vm482, %v2817
        %2946 = vst.msk [vmem:[%s478 + $0x48] sm:$0xf] %vm482, %v2818
        %2947 = vst.msk [vmem:[%s478 + $0x4c] sm:$0xf] %vm482, %v2819
        %2948 = vst.msk [vmem:[%s478 + $0x50] sm:$0xf] %vm482, %v2820
        %2949 = vst.msk [vmem:[%s478 + $0x54] sm:$0xf] %vm482, %v2821
        %2950 = vst.msk [vmem:[%s478 + $0x58] sm:$0xf] %vm482, %v2822
        %2951 = vst.msk [vmem:[%s478 + $0x5c] sm:$0xf] %vm482, %v2823
        %2952 = vst.msk [vmem:[%s478 + $0x60] sm:$0xf] %vm482, %v2824
        %2953 = vst.msk [vmem:[%s478 + $0x64] sm:$0xf] %vm482, %v2825
        %2954 = vst.msk [vmem:[%s478 + $0x68] sm:$0xf] %vm482, %v2826
        %2955 = vst.msk [vmem:[%s478 + $0x6c] sm:$0xf] %vm482, %v2827
        %2956 = vst.msk [vmem:[%s478 + $0x70] sm:$0xf] %vm482, %v2828
        %2957 = vst.msk [vmem:[%s478 + $0x74] sm:$0xf] %vm482, %v2829
        %2958 = vst.msk [vmem:[%s478 + $0x78] sm:$0xf] %vm482, %v2830
        %2959 = vst.msk [vmem:[%s478 + $0x7c] sm:$0xf] %vm482, %v2831
        %2960 = vst.msk [vmem:[%s478 + $0x80] sm:$0xf] %vm482, %v2832
        %2961 = vst.msk [vmem:[%s478 + $0x84] sm:$0xf] %vm482, %v2833
        %2962 = vst.msk [vmem:[%s478 + $0x88] sm:$0xf] %vm482, %v2834
        %2963 = vst.msk [vmem:[%s478 + $0x8c] sm:$0xf] %vm482, %v2835
        %2964 = vst.msk [vmem:[%s478 + $0x90] sm:$0xf] %vm482, %v2836
        %2965 = vst.msk [vmem:[%s478 + $0x94] sm:$0xf] %vm482, %v2837
        %2966 = vst.msk [vmem:[%s478 + $0x98] sm:$0xf] %vm482, %v2838
        %2967 = vst.msk [vmem:[%s478 + $0x9c] sm:$0xf] %vm482, %v2839
        %2968 = vst.msk [vmem:[%s478 + $0xa0] sm:$0xf] %vm482, %v2840
        %2969 = vst.msk [vmem:[%s478 + $0xa4] sm:$0xf] %vm482, %v2841
        %2970 = vst.msk [vmem:[%s478 + $0xa8] sm:$0xf] %vm482, %v2842
        %2971 = vst.msk [vmem:[%s478 + $0xac] sm:$0xf] %vm482, %v2843
        %2972 = vst.msk [vmem:[%s478 + $0xb0] sm:$0xf] %vm482, %v2844
        %2973 = vst.msk [vmem:[%s478 + $0xb4] sm:$0xf] %vm482, %v2845
        %2974 = vst.msk [vmem:[%s478 + $0xb8] sm:$0xf] %vm482, %v2846
        %2975 = vst.msk [vmem:[%s478 + $0xbc] sm:$0xf] %vm482, %v2847
        %2976 = vst.msk [vmem:[%s478 + $0xc0] sm:$0xf] %vm482, %v2848
        %2977 = vst.msk [vmem:[%s478 + $0xc4] sm:$0xf] %vm482, %v2849
        %2978 = vst.msk [vmem:[%s478 + $0xc8] sm:$0xf] %vm482, %v2850
        %2979 = vst.msk [vmem:[%s478 + $0xcc] sm:$0xf] %vm482, %v2851
        %2980 = vst.msk [vmem:[%s478 + $0xd0] sm:$0xf] %vm482, %v2852
        %2981 = vst.msk [vmem:[%s478 + $0xd4] sm:$0xf] %vm482, %v2853
        %2982 = vst.msk [vmem:[%s478 + $0xd8] sm:$0xf] %vm482, %v2854
        %2983 = vst.msk [vmem:[%s478 + $0xdc] sm:$0xf] %vm482, %v2855
        %2984 = vst.msk [vmem:[%s478 + $0xe0] sm:$0xf] %vm482, %v2856
        %2985 = vst.msk [vmem:[%s478 + $0xe4] sm:$0xf] %vm482, %v2857
        %2986 = vst.msk [vmem:[%s478 + $0xe8] sm:$0xf] %vm482, %v2858
        %2987 = vst.msk [vmem:[%s478 + $0xec] sm:$0xf] %vm482, %v2859
        %2988 = vst.msk [vmem:[%s478 + $0xf0] sm:$0xf] %vm482, %v2860
        %2989 = vst.msk [vmem:[%s478 + $0xf4] sm:$0xf] %vm482, %v2861
        %2990 = vst.msk [vmem:[%s478 + $0xf8] sm:$0xf] %vm482, %v2862
        %2991 = vst.msk [vmem:[%s478 + $0xfc] sm:$0xf] %vm482, %v2863
        %s2992 = sand.u32 %s106, 1
        %s2993 = sand.u32 %s106, 1
        %s2994 = smul.addr %s2993, 256
        %s2995 = scalar_lea.vmem [#allocation4], %s2994
        // Predicated region
        $region74: #{bottleneck_forward.4} parent=68 // pred_check
          %p2996 = pneg %p116
        $region75: #{bottleneck_forward.4} parent=68 // pred_check_branch
          %2998 = sbr.rel (%p2996) target = $region77
        $region76: #{bottleneck_forward.4} parent=68 // pred_region
          %s2999 = smul.u32 8, %s19
          %s3000 = smul.addr %s18, 256
          %s3001 = sadd.s32 %s2999, %s3000
          %s3002 = smul.addr %s3001, 4
          %s3003 = scalar_lea.vmem %s3, %s3002
          // Predicated region
          $region78: #{bottleneck_forward.4} parent=76 // pred_check
            _
          $region79: #{bottleneck_forward.4} parent=76 // pred_check_branch
            %3005 = sbr.rel (0) target = $region81
          $region80: #{bottleneck_forward.4} parent=76 // pred_region
            // Predicated region
            $region82: #{bottleneck_forward.4} parent=80 // pred_check
              _
            $region83: #{bottleneck_forward.4} parent=80 // pred_check_branch
              %3007 = sbr.rel target = $region85
            $region84: #{bottleneck_forward.4} parent=80 // pred_region
              // Predicated region
              $region97: #{bottleneck_forward.4} parent=84 // pred_check
                _
              $region98: #{bottleneck_forward.4} parent=84 // pred_check_branch
                %3149 = sbr.rel (0) target = $region100
              $region99: #{bottleneck_forward.4} parent=84 // pred_region
                loop: start=0, step=1, limit=1
                $region101: #{bottleneck_forward.4} parent=99 // loop_pre_header
                  _
                $region102: #{bottleneck_forward.4} parent=99 // loop_header
                  %s3151 = sphi 0, %s3155
                  %p3152 = scmp.ge.s32.totalorder %s3151, 1
                  %s3156 = sphi %s2995, %s2995
                  %s3157 = sphi %s3003, %s3003
                $region103: #{bottleneck_forward.4} parent=99 // loop_header_branch
                  %3154 = sbr.rel (%p3152) target = $region107
                $region104: #{bottleneck_forward.4} parent=99 // loop_body
                  _
                $region105: #{bottleneck_forward.4} parent=99 // loop_footer
                  %s3155 = sadd.s32 1, %s3151
                $region106: #{bottleneck_forward.4} parent=99 // loop_footer_branch
                  %3150 = sbr.rel target = $region102
                $region107: #{bottleneck_forward.4} parent=99 // loop_exit
                  _
                %s3159 = ssub.s32 16, 1
                loop: start=0, step=1, limit=1
                $region108: #{bottleneck_forward.4} parent=99 // loop_pre_header
                  _
                $region109: #{bottleneck_forward.4} parent=99 // loop_header
                  %s3161 = sphi 0, %s3165
                  %p3162 = scmp.ge.s32.totalorder %s3161, 1
                  %s3166 = sphi %s2995, %s2995
                  %s3167 = sphi %s3003, %s3003
                $region110: #{bottleneck_forward.4} parent=99 // loop_header_branch
                  %3164 = sbr.rel (%p3162) target = $region114
                $region111: #{bottleneck_forward.4} parent=99 // loop_body
                  %v3168 = vld [vmem:[%s3166] sm:%s3159]
                  %3169 = vst [vmem:[%s3167] sm:%s3159] %v3168
                  %v3170 = vld [vmem:[%s3166 + $0x4] sm:%s3159]
                  %3171 = vst [vmem:[%s3167 + $0x4] sm:%s3159] %v3170
                  %v3172 = vld [vmem:[%s3166 + $0x8] sm:%s3159]
                  %3173 = vst [vmem:[%s3167 + $0x8] sm:%s3159] %v3172
                  %v3174 = vld [vmem:[%s3166 + $0xc] sm:%s3159]
                  %3175 = vst [vmem:[%s3167 + $0xc] sm:%s3159] %v3174
                  %v3176 = vld [vmem:[%s3166 + $0x10] sm:%s3159]
                  %3177 = vst [vmem:[%s3167 + $0x10] sm:%s3159] %v3176
                  %v3178 = vld [vmem:[%s3166 + $0x14] sm:%s3159]
                  %3179 = vst [vmem:[%s3167 + $0x14] sm:%s3159] %v3178
                  %v3180 = vld [vmem:[%s3166 + $0x18] sm:%s3159]
                  %3181 = vst [vmem:[%s3167 + $0x18] sm:%s3159] %v3180
                  %v3182 = vld [vmem:[%s3166 + $0x1c] sm:%s3159]
                  %3183 = vst [vmem:[%s3167 + $0x1c] sm:%s3159] %v3182
                  %v3184 = vld [vmem:[%s3166 + $0x20] sm:%s3159]
                  %3185 = vst [vmem:[%s3167 + $0x80] sm:%s3159] %v3184
                  %v3186 = vld [vmem:[%s3166 + $0x24] sm:%s3159]
                  %3187 = vst [vmem:[%s3167 + $0x84] sm:%s3159] %v3186
                  %v3188 = vld [vmem:[%s3166 + $0x28] sm:%s3159]
                  %3189 = vst [vmem:[%s3167 + $0x88] sm:%s3159] %v3188
                  %v3190 = vld [vmem:[%s3166 + $0x2c] sm:%s3159]
                  %3191 = vst [vmem:[%s3167 + $0x8c] sm:%s3159] %v3190
                  %v3192 = vld [vmem:[%s3166 + $0x30] sm:%s3159]
                  %3193 = vst [vmem:[%s3167 + $0x90] sm:%s3159] %v3192
                  %v3194 = vld [vmem:[%s3166 + $0x34] sm:%s3159]
                  %3195 = vst [vmem:[%s3167 + $0x94] sm:%s3159] %v3194
                  %v3196 = vld [vmem:[%s3166 + $0x38] sm:%s3159]
                  %3197 = vst [vmem:[%s3167 + $0x98] sm:%s3159] %v3196
                  %v3198 = vld [vmem:[%s3166 + $0x3c] sm:%s3159]
                  %3199 = vst [vmem:[%s3167 + $0x9c] sm:%s3159] %v3198
                  %v3200 = vld [vmem:[%s3166 + $0x40] sm:%s3159]
                  %3201 = vst [vmem:[%s3167 + $0x100] sm:%s3159] %v3200
                  %v3202 = vld [vmem:[%s3166 + $0x44] sm:%s3159]
                  %3203 = vst [vmem:[%s3167 + $0x104] sm:%s3159] %v3202
                  %v3204 = vld [vmem:[%s3166 + $0x48] sm:%s3159]
                  %3205 = vst [vmem:[%s3167 + $0x108] sm:%s3159] %v3204
                  %v3206 = vld [vmem:[%s3166 + $0x4c] sm:%s3159]
                  %3207 = vst [vmem:[%s3167 + $0x10c] sm:%s3159] %v3206
                  %v3208 = vld [vmem:[%s3166 + $0x50] sm:%s3159]
                  %3209 = vst [vmem:[%s3167 + $0x110] sm:%s3159] %v3208
                  %v3210 = vld [vmem:[%s3166 + $0x54] sm:%s3159]
                  %3211 = vst [vmem:[%s3167 + $0x114] sm:%s3159] %v3210
                  %v3212 = vld [vmem:[%s3166 + $0x58] sm:%s3159]
                  %3213 = vst [vmem:[%s3167 + $0x118] sm:%s3159] %v3212
                  %v3214 = vld [vmem:[%s3166 + $0x5c] sm:%s3159]
                  %3215 = vst [vmem:[%s3167 + $0x11c] sm:%s3159] %v3214
                  %v3216 = vld [vmem:[%s3166 + $0x60] sm:%s3159]
                  %3217 = vst [vmem:[%s3167 + $0x180] sm:%s3159] %v3216
                  %v3218 = vld [vmem:[%s3166 + $0x64] sm:%s3159]
                  %3219 = vst [vmem:[%s3167 + $0x184] sm:%s3159] %v3218
                  %v3220 = vld [vmem:[%s3166 + $0x68] sm:%s3159]
                  %3221 = vst [vmem:[%s3167 + $0x188] sm:%s3159] %v3220
                  %v3222 = vld [vmem:[%s3166 + $0x6c] sm:%s3159]
                  %3223 = vst [vmem:[%s3167 + $0x18c] sm:%s3159] %v3222
                  %v3224 = vld [vmem:[%s3166 + $0x70] sm:%s3159]
                  %3225 = vst [vmem:[%s3167 + $0x190] sm:%s3159] %v3224
                  %v3226 = vld [vmem:[%s3166 + $0x74] sm:%s3159]
                  %3227 = vst [vmem:[%s3167 + $0x194] sm:%s3159] %v3226
                  %v3228 = vld [vmem:[%s3166 + $0x78] sm:%s3159]
                  %3229 = vst [vmem:[%s3167 + $0x198] sm:%s3159] %v3228
                  %v3230 = vld [vmem:[%s3166 + $0x7c] sm:%s3159]
                  %3231 = vst [vmem:[%s3167 + $0x19c] sm:%s3159] %v3230
                  %v3232 = vld [vmem:[%s3166 + $0x80] sm:%s3159]
                  %3233 = vst [vmem:[%s3167 + $0x200] sm:%s3159] %v3232
                  %v3234 = vld [vmem:[%s3166 + $0x84] sm:%s3159]
                  %3235 = vst [vmem:[%s3167 + $0x204] sm:%s3159] %v3234
                  %v3236 = vld [vmem:[%s3166 + $0x88] sm:%s3159]
                  %3237 = vst [vmem:[%s3167 + $0x208] sm:%s3159] %v3236
                  %v3238 = vld [vmem:[%s3166 + $0x8c] sm:%s3159]
                  %3239 = vst [vmem:[%s3167 + $0x20c] sm:%s3159] %v3238
                  %v3240 = vld [vmem:[%s3166 + $0x90] sm:%s3159]
                  %3241 = vst [vmem:[%s3167 + $0x210] sm:%s3159] %v3240
                  %v3242 = vld [vmem:[%s3166 + $0x94] sm:%s3159]
                  %3243 = vst [vmem:[%s3167 + $0x214] sm:%s3159] %v3242
                  %v3244 = vld [vmem:[%s3166 + $0x98] sm:%s3159]
                  %3245 = vst [vmem:[%s3167 + $0x218] sm:%s3159] %v3244
                  %v3246 = vld [vmem:[%s3166 + $0x9c] sm:%s3159]
                  %3247 = vst [vmem:[%s3167 + $0x21c] sm:%s3159] %v3246
                  %v3248 = vld [vmem:[%s3166 + $0xa0] sm:%s3159]
                  %3249 = vst [vmem:[%s3167 + $0x280] sm:%s3159] %v3248
                  %v3250 = vld [vmem:[%s3166 + $0xa4] sm:%s3159]
                  %3251 = vst [vmem:[%s3167 + $0x284] sm:%s3159] %v3250
                  %v3252 = vld [vmem:[%s3166 + $0xa8] sm:%s3159]
                  %3253 = vst [vmem:[%s3167 + $0x288] sm:%s3159] %v3252
                  %v3254 = vld [vmem:[%s3166 + $0xac] sm:%s3159]
                  %3255 = vst [vmem:[%s3167 + $0x28c] sm:%s3159] %v3254
                  %v3256 = vld [vmem:[%s3166 + $0xb0] sm:%s3159]
                  %3257 = vst [vmem:[%s3167 + $0x290] sm:%s3159] %v3256
                  %v3258 = vld [vmem:[%s3166 + $0xb4] sm:%s3159]
                  %3259 = vst [vmem:[%s3167 + $0x294] sm:%s3159] %v3258
                  %v3260 = vld [vmem:[%s3166 + $0xb8] sm:%s3159]
                  %3261 = vst [vmem:[%s3167 + $0x298] sm:%s3159] %v3260
                  %v3262 = vld [vmem:[%s3166 + $0xbc] sm:%s3159]
                  %3263 = vst [vmem:[%s3167 + $0x29c] sm:%s3159] %v3262
                  %v3264 = vld [vmem:[%s3166 + $0xc0] sm:%s3159]
                  %3265 = vst [vmem:[%s3167 + $0x300] sm:%s3159] %v3264
                  %v3266 = vld [vmem:[%s3166 + $0xc4] sm:%s3159]
                  %3267 = vst [vmem:[%s3167 + $0x304] sm:%s3159] %v3266
                  %v3268 = vld [vmem:[%s3166 + $0xc8] sm:%s3159]
                  %3269 = vst [vmem:[%s3167 + $0x308] sm:%s3159] %v3268
                  %v3270 = vld [vmem:[%s3166 + $0xcc] sm:%s3159]
                  %3271 = vst [vmem:[%s3167 + $0x30c] sm:%s3159] %v3270
                  %v3272 = vld [vmem:[%s3166 + $0xd0] sm:%s3159]
                  %3273 = vst [vmem:[%s3167 + $0x310] sm:%s3159] %v3272
                  %v3274 = vld [vmem:[%s3166 + $0xd4] sm:%s3159]
                  %3275 = vst [vmem:[%s3167 + $0x314] sm:%s3159] %v3274
                  %v3276 = vld [vmem:[%s3166 + $0xd8] sm:%s3159]
                  %3277 = vst [vmem:[%s3167 + $0x318] sm:%s3159] %v3276
                  %v3278 = vld [vmem:[%s3166 + $0xdc] sm:%s3159]
                  %3279 = vst [vmem:[%s3167 + $0x31c] sm:%s3159] %v3278
                  %v3280 = vld [vmem:[%s3166 + $0xe0] sm:%s3159]
                  %3281 = vst [vmem:[%s3167 + $0x380] sm:%s3159] %v3280
                  %v3282 = vld [vmem:[%s3166 + $0xe4] sm:%s3159]
                  %3283 = vst [vmem:[%s3167 + $0x384] sm:%s3159] %v3282
                  %v3284 = vld [vmem:[%s3166 + $0xe8] sm:%s3159]
                  %3285 = vst [vmem:[%s3167 + $0x388] sm:%s3159] %v3284
                  %v3286 = vld [vmem:[%s3166 + $0xec] sm:%s3159]
                  %3287 = vst [vmem:[%s3167 + $0x38c] sm:%s3159] %v3286
                  %v3288 = vld [vmem:[%s3166 + $0xf0] sm:%s3159]
                  %3289 = vst [vmem:[%s3167 + $0x390] sm:%s3159] %v3288
                  %v3290 = vld [vmem:[%s3166 + $0xf4] sm:%s3159]
                  %3291 = vst [vmem:[%s3167 + $0x394] sm:%s3159] %v3290
                  %v3292 = vld [vmem:[%s3166 + $0xf8] sm:%s3159]
                  %3293 = vst [vmem:[%s3167 + $0x398] sm:%s3159] %v3292
                  %v3294 = vld [vmem:[%s3166 + $0xfc] sm:%s3159]
                  %3295 = vst [vmem:[%s3167 + $0x39c] sm:%s3159] %v3294
                $region112: #{bottleneck_forward.4} parent=99 // loop_footer
                  %s3165 = sadd.s32 1, %s3161
                $region113: #{bottleneck_forward.4} parent=99 // loop_footer_branch
                  %3160 = sbr.rel target = $region109
                $region114: #{bottleneck_forward.4} parent=99 // loop_exit
                  _
              $region100: #{bottleneck_forward.4} parent=84 // pred_fallthru
                _
            $region85: #{bottleneck_forward.4} parent=80 // pred_fallthru
              _
            // Predicated region
            $region86: #{bottleneck_forward.4} parent=80 // pred_check
              _
            $region87: #{bottleneck_forward.4} parent=80 // pred_check_branch
              %3009 = sbr.rel (0) target = $region89
            $region88: #{bottleneck_forward.4} parent=80 // pred_region
              %s3011 = ssub.s32 16, 1
              loop: start=0, step=1, limit=1
              $region90: #{bottleneck_forward.4} parent=88 // loop_pre_header
                _
              $region91: #{bottleneck_forward.4} parent=88 // loop_header
                %s3013 = sphi 0, %s3017
                %p3014 = scmp.ge.s32.totalorder %s3013, 1
                %s3018 = sphi %s2995, %s2995
                %s3019 = sphi %s3003, %s3003
              $region92: #{bottleneck_forward.4} parent=88 // loop_header_branch
                %3016 = sbr.rel (%p3014) target = $region96
              $region93: #{bottleneck_forward.4} parent=88 // loop_body
                %v3020 = vld [vmem:[%s3018] sm:%s3011]
                %3021 = vst [vmem:[%s3019] sm:%s3011] %v3020
                %v3022 = vld [vmem:[%s3018 + $0x4] sm:%s3011]
                %3023 = vst [vmem:[%s3019 + $0x4] sm:%s3011] %v3022
                %v3024 = vld [vmem:[%s3018 + $0x8] sm:%s3011]
                %3025 = vst [vmem:[%s3019 + $0x8] sm:%s3011] %v3024
                %v3026 = vld [vmem:[%s3018 + $0xc] sm:%s3011]
                %3027 = vst [vmem:[%s3019 + $0xc] sm:%s3011] %v3026
                %v3028 = vld [vmem:[%s3018 + $0x10] sm:%s3011]
                %3029 = vst [vmem:[%s3019 + $0x10] sm:%s3011] %v3028
                %v3030 = vld [vmem:[%s3018 + $0x14] sm:%s3011]
                %3031 = vst [vmem:[%s3019 + $0x14] sm:%s3011] %v3030
                %v3032 = vld [vmem:[%s3018 + $0x18] sm:%s3011]
                %3033 = vst [vmem:[%s3019 + $0x18] sm:%s3011] %v3032
                %v3034 = vld [vmem:[%s3018 + $0x1c] sm:%s3011]
                %3035 = vst [vmem:[%s3019 + $0x1c] sm:%s3011] %v3034
                %v3036 = vld [vmem:[%s3018 + $0x20] sm:%s3011]
                %3037 = vst [vmem:[%s3019 + $0x80] sm:%s3011] %v3036
                %v3038 = vld [vmem:[%s3018 + $0x24] sm:%s3011]
                %3039 = vst [vmem:[%s3019 + $0x84] sm:%s3011] %v3038
                %v3040 = vld [vmem:[%s3018 + $0x28] sm:%s3011]
                %3041 = vst [vmem:[%s3019 + $0x88] sm:%s3011] %v3040
                %v3042 = vld [vmem:[%s3018 + $0x2c] sm:%s3011]
                %3043 = vst [vmem:[%s3019 + $0x8c] sm:%s3011] %v3042
                %v3044 = vld [vmem:[%s3018 + $0x30] sm:%s3011]
                %3045 = vst [vmem:[%s3019 + $0x90] sm:%s3011] %v3044
                %v3046 = vld [vmem:[%s3018 + $0x34] sm:%s3011]
                %3047 = vst [vmem:[%s3019 + $0x94] sm:%s3011] %v3046
                %v3048 = vld [vmem:[%s3018 + $0x38] sm:%s3011]
                %3049 = vst [vmem:[%s3019 + $0x98] sm:%s3011] %v3048
                %v3050 = vld [vmem:[%s3018 + $0x3c] sm:%s3011]
                %3051 = vst [vmem:[%s3019 + $0x9c] sm:%s3011] %v3050
                %v3052 = vld [vmem:[%s3018 + $0x40] sm:%s3011]
                %3053 = vst [vmem:[%s3019 + $0x100] sm:%s3011] %v3052
                %v3054 = vld [vmem:[%s3018 + $0x44] sm:%s3011]
                %3055 = vst [vmem:[%s3019 + $0x104] sm:%s3011] %v3054
                %v3056 = vld [vmem:[%s3018 + $0x48] sm:%s3011]
                %3057 = vst [vmem:[%s3019 + $0x108] sm:%s3011] %v3056
                %v3058 = vld [vmem:[%s3018 + $0x4c] sm:%s3011]
                %3059 = vst [vmem:[%s3019 + $0x10c] sm:%s3011] %v3058
                %v3060 = vld [vmem:[%s3018 + $0x50] sm:%s3011]
                %3061 = vst [vmem:[%s3019 + $0x110] sm:%s3011] %v3060
                %v3062 = vld [vmem:[%s3018 + $0x54] sm:%s3011]
                %3063 = vst [vmem:[%s3019 + $0x114] sm:%s3011] %v3062
                %v3064 = vld [vmem:[%s3018 + $0x58] sm:%s3011]
                %3065 = vst [vmem:[%s3019 + $0x118] sm:%s3011] %v3064
                %v3066 = vld [vmem:[%s3018 + $0x5c] sm:%s3011]
                %3067 = vst [vmem:[%s3019 + $0x11c] sm:%s3011] %v3066
                %v3068 = vld [vmem:[%s3018 + $0x60] sm:%s3011]
                %3069 = vst [vmem:[%s3019 + $0x180] sm:%s3011] %v3068
                %v3070 = vld [vmem:[%s3018 + $0x64] sm:%s3011]
                %3071 = vst [vmem:[%s3019 + $0x184] sm:%s3011] %v3070
                %v3072 = vld [vmem:[%s3018 + $0x68] sm:%s3011]
                %3073 = vst [vmem:[%s3019 + $0x188] sm:%s3011] %v3072
                %v3074 = vld [vmem:[%s3018 + $0x6c] sm:%s3011]
                %3075 = vst [vmem:[%s3019 + $0x18c] sm:%s3011] %v3074
                %v3076 = vld [vmem:[%s3018 + $0x70] sm:%s3011]
                %3077 = vst [vmem:[%s3019 + $0x190] sm:%s3011] %v3076
                %v3078 = vld [vmem:[%s3018 + $0x74] sm:%s3011]
                %3079 = vst [vmem:[%s3019 + $0x194] sm:%s3011] %v3078
                %v3080 = vld [vmem:[%s3018 + $0x78] sm:%s3011]
                %3081 = vst [vmem:[%s3019 + $0x198] sm:%s3011] %v3080
                %v3082 = vld [vmem:[%s3018 + $0x7c] sm:%s3011]
                %3083 = vst [vmem:[%s3019 + $0x19c] sm:%s3011] %v3082
                %v3084 = vld [vmem:[%s3018 + $0x80] sm:%s3011]
                %3085 = vst [vmem:[%s3019 + $0x200] sm:%s3011] %v3084
                %v3086 = vld [vmem:[%s3018 + $0x84] sm:%s3011]
                %3087 = vst [vmem:[%s3019 + $0x204] sm:%s3011] %v3086
                %v3088 = vld [vmem:[%s3018 + $0x88] sm:%s3011]
                %3089 = vst [vmem:[%s3019 + $0x208] sm:%s3011] %v3088
                %v3090 = vld [vmem:[%s3018 + $0x8c] sm:%s3011]
                %3091 = vst [vmem:[%s3019 + $0x20c] sm:%s3011] %v3090
                %v3092 = vld [vmem:[%s3018 + $0x90] sm:%s3011]
                %3093 = vst [vmem:[%s3019 + $0x210] sm:%s3011] %v3092
                %v3094 = vld [vmem:[%s3018 + $0x94] sm:%s3011]
                %3095 = vst [vmem:[%s3019 + $0x214] sm:%s3011] %v3094
                %v3096 = vld [vmem:[%s3018 + $0x98] sm:%s3011]
                %3097 = vst [vmem:[%s3019 + $0x218] sm:%s3011] %v3096
                %v3098 = vld [vmem:[%s3018 + $0x9c] sm:%s3011]
                %3099 = vst [vmem:[%s3019 + $0x21c] sm:%s3011] %v3098
                %v3100 = vld [vmem:[%s3018 + $0xa0] sm:%s3011]
                %3101 = vst [vmem:[%s3019 + $0x280] sm:%s3011] %v3100
                %v3102 = vld [vmem:[%s3018 + $0xa4] sm:%s3011]
                %3103 = vst [vmem:[%s3019 + $0x284] sm:%s3011] %v3102
                %v3104 = vld [vmem:[%s3018 + $0xa8] sm:%s3011]
                %3105 = vst [vmem:[%s3019 + $0x288] sm:%s3011] %v3104
                %v3106 = vld [vmem:[%s3018 + $0xac] sm:%s3011]
                %3107 = vst [vmem:[%s3019 + $0x28c] sm:%s3011] %v3106
                %v3108 = vld [vmem:[%s3018 + $0xb0] sm:%s3011]
                %3109 = vst [vmem:[%s3019 + $0x290] sm:%s3011] %v3108
                %v3110 = vld [vmem:[%s3018 + $0xb4] sm:%s3011]
                %3111 = vst [vmem:[%s3019 + $0x294] sm:%s3011] %v3110
                %v3112 = vld [vmem:[%s3018 + $0xb8] sm:%s3011]
                %3113 = vst [vmem:[%s3019 + $0x298] sm:%s3011] %v3112
                %v3114 = vld [vmem:[%s3018 + $0xbc] sm:%s3011]
                %3115 = vst [vmem:[%s3019 + $0x29c] sm:%s3011] %v3114
                %v3116 = vld [vmem:[%s3018 + $0xc0] sm:%s3011]
                %3117 = vst [vmem:[%s3019 + $0x300] sm:%s3011] %v3116
                %v3118 = vld [vmem:[%s3018 + $0xc4] sm:%s3011]
                %3119 = vst [vmem:[%s3019 + $0x304] sm:%s3011] %v3118
                %v3120 = vld [vmem:[%s3018 + $0xc8] sm:%s3011]
                %3121 = vst [vmem:[%s3019 + $0x308] sm:%s3011] %v3120
                %v3122 = vld [vmem:[%s3018 + $0xcc] sm:%s3011]
                %3123 = vst [vmem:[%s3019 + $0x30c] sm:%s3011] %v3122
                %v3124 = vld [vmem:[%s3018 + $0xd0] sm:%s3011]
                %3125 = vst [vmem:[%s3019 + $0x310] sm:%s3011] %v3124
                %v3126 = vld [vmem:[%s3018 + $0xd4] sm:%s3011]
                %3127 = vst [vmem:[%s3019 + $0x314] sm:%s3011] %v3126
                %v3128 = vld [vmem:[%s3018 + $0xd8] sm:%s3011]
                %3129 = vst [vmem:[%s3019 + $0x318] sm:%s3011] %v3128
                %v3130 = vld [vmem:[%s3018 + $0xdc] sm:%s3011]
                %3131 = vst [vmem:[%s3019 + $0x31c] sm:%s3011] %v3130
                %v3132 = vld [vmem:[%s3018 + $0xe0] sm:%s3011]
                %3133 = vst [vmem:[%s3019 + $0x380] sm:%s3011] %v3132
                %v3134 = vld [vmem:[%s3018 + $0xe4] sm:%s3011]
                %3135 = vst [vmem:[%s3019 + $0x384] sm:%s3011] %v3134
                %v3136 = vld [vmem:[%s3018 + $0xe8] sm:%s3011]
                %3137 = vst [vmem:[%s3019 + $0x388] sm:%s3011] %v3136
                %v3138 = vld [vmem:[%s3018 + $0xec] sm:%s3011]
                %3139 = vst [vmem:[%s3019 + $0x38c] sm:%s3011] %v3138
                %v3140 = vld [vmem:[%s3018 + $0xf0] sm:%s3011]
                %3141 = vst [vmem:[%s3019 + $0x390] sm:%s3011] %v3140
                %v3142 = vld [vmem:[%s3018 + $0xf4] sm:%s3011]
                %3143 = vst [vmem:[%s3019 + $0x394] sm:%s3011] %v3142
                %v3144 = vld [vmem:[%s3018 + $0xf8] sm:%s3011]
                %3145 = vst [vmem:[%s3019 + $0x398] sm:%s3011] %v3144
                %v3146 = vld [vmem:[%s3018 + $0xfc] sm:%s3011]
                %3147 = vst [vmem:[%s3019 + $0x39c] sm:%s3011] %v3146
              $region94: #{bottleneck_forward.4} parent=88 // loop_footer
                %s3017 = sadd.s32 1, %s3013
              $region95: #{bottleneck_forward.4} parent=88 // loop_footer_branch
                %3012 = sbr.rel target = $region91
              $region96: #{bottleneck_forward.4} parent=88 // loop_exit
                _
            $region89: #{bottleneck_forward.4} parent=80 // pred_fallthru
              _
          $region81: #{bottleneck_forward.4} parent=76 // pred_fallthru
            _
          %3296 = vnop
        $region77: #{bottleneck_forward.4} parent=68 // pred_fallthru
          _
      $region69: #{bottleneck_forward.4} parent=5 // pred_fallthru
        _
      %p3297 = scmp.le.s32.totalorder 2, %s9
      // Predicated region
      $region115: #{bottleneck_forward.4} parent=5 // pred_check
        %p3298 = pneg %p3297
      $region116: #{bottleneck_forward.4} parent=5 // pred_check_branch
        %3300 = sbr.rel (%p3298) target = $region118
      $region117: #{bottleneck_forward.4} parent=5 // pred_region
        %s3301 = ssub.s32 %s9, 2
        // Predicated region
        $region119: #{bottleneck_forward.4} parent=117 // pred_check
          %p3302 = pneg %p122
        $region120: #{bottleneck_forward.4} parent=117 // pred_check_branch
          %3304 = sbr.rel (%p3302) target = $region122
        $region121: #{bottleneck_forward.4} parent=117 // pred_region
          %s3305 = sand.u32 %s107, 1
          %s3306 = sand.u32 %s107, 1
          %s3307 = smul.addr %s3306, 256
          %s3308 = scalar_lea.vmem [#allocation4], %s3307
        $region122: #{bottleneck_forward.4} parent=117 // pred_fallthru
          _
      $region118: #{bottleneck_forward.4} parent=5 // pred_fallthru
        _
    $region6: #{bottleneck_forward.4} parent=1 // loop_footer
      %s13 = sadd.s32 1, %s9
    $region7: #{bottleneck_forward.4} parent=1 // loop_footer_branch
      %8 = sbr.rel target = $region3
    $region8: #{bottleneck_forward.4} parent=1 // loop_exit
      _

// kernel: bottleneck_forward.5
$region0: #{bottleneck_forward.5}
  #allocation0 [shape = 'u32[]', space=smem, size = 0x4, offset = 0x4, fixed_abs, tag = 'smem constant byte address 0x4 - core index']
  #allocation1 [shape = 'u32[144,128]{1,0:T(1,128)}', space=vmem, size = 0x12000, scoped, tag = 'internal scratch']
  %s0 = inlined_call_operand.vmem [shape: bf16[4096,4], index: 0, kind: input, shape index: {}]
  %s1 = inlined_call_operand.vmem [shape: bf16[4,16], index: 1, kind: input, shape index: {}]
  %s2 = inlined_call_operand.vmem [shape: f32[1,16], index: 2, kind: input, shape index: {}]
  %s3 = inlined_call_operand.vmem [shape: bf16[4096,16], index: 3, kind: input, shape index: {}]
  %s4 = inlined_call_operand.vmem [shape: f32[4096,16], index: 4, kind: output, shape index: {}]
  %s5 = sld [smem:[#allocation0]]
  $region49: #{bottleneck_forward.5} parent=0
    _
  %s7 = ssub.s32 1, %s5
  %s8 = scalar_select 0, %s7, %s5
  loop: start=0, step=1, limit=10
  $region2: #{bottleneck_forward.5} parent=0 // loop_pre_header
    _
  $region3: #{bottleneck_forward.5} parent=0 // loop_header
    %s10 = sphi 0, %s14
    %p11 = scmp.ge.s32.totalorder %s10, 10
    %s20 = sphi 0, %s22
    %s23 = sphi 0, %s20
    %s24 = sphi 0, %s23
    %s40 = sphi 0, %s24
    %s44 = sphi 0, %s44
    %s46 = sphi 0, %s44
    %s47 = sphi 0, %s46
    %s61 = sphi 0, %s47
    %s65 = sphi 0, %s65
    %s67 = sphi 0, %s65
    %s68 = sphi 0, %s67
    %s82 = sphi 0, %s68
    %s88 = sphi 0, %s90
    %s91 = sphi 0, %s88
    %s92 = sphi 0, %s91
    %s108 = sphi 0, %s92
    %s114 = sphi 0, %s116
    %s117 = sphi 0, %s114
    %s118 = sphi 0, %s117
    %s134 = sphi 0, %s118
  $region4: #{bottleneck_forward.5} parent=0 // loop_header_branch
    %13 = sbr.rel (%p11) target = $region8
  $region5: #{bottleneck_forward.5} parent=0 // loop_body
    %s15 = ssub.s32 %s10, 1
    %s16 = ssub.s32 %s10, 2
    %s17 = sadd.s32 %s10, 1
    %s18 = ssub.s32 %s10, %s17
    %p19 = scmp.eq.s32.totalorder %s18, 0
    %s21 = sadd.s32 %s20, 1
    %s22 = scalar_select %p19, %s20, %s21
    %p25 = pneg %p19
    %p26 = scmp.eq.s32.totalorder %s10, 7
    %p27 = por %p25, %p26
    %p28 = scmp.ne.s32.totalorder %s20, %s23
    %p29 = scmp.eq.s32.totalorder %s10, 0
    %p30 = por %p28, %p29
    %p31 = scmp.ne.s32.totalorder %s20, %s23
    %p32 = scmp.eq.s32.totalorder %s15, 7
    %p33 = por %p31, %p32
    %p34 = scmp.ne.s32.totalorder %s23, %s24
    %p35 = scmp.eq.s32.totalorder %s15, 0
    %p36 = por %p34, %p35
    %p37 = scmp.ne.s32.totalorder %s23, %s24
    %p38 = scmp.eq.s32.totalorder %s16, 7
    %p39 = por %p37, %p38
    %p41 = scmp.ne.s32.totalorder %s24, %s40
    %p42 = scmp.eq.s32.totalorder %s16, 0
    %p43 = por %p41, %p42
    %s45 = sadd.s32 %s44, 1
    %p48 = scmp.eq.s32.totalorder %s10, 7
    %p49 = scmp.ne.s32.totalorder %s44, %s46
    %p50 = scmp.eq.s32.totalorder %s10, 0
    %p51 = por %p49, %p50
    %p52 = scmp.ne.s32.totalorder %s44, %s46
    %p53 = scmp.eq.s32.totalorder %s15, 7
    %p54 = por %p52, %p53
    %p55 = scmp.ne.s32.totalorder %s46, %s47
    %p56 = scmp.eq.s32.totalorder %s15, 0
    %p57 = por %p55, %p56
    %p58 = scmp.ne.s32.totalorder %s46, %s47
    %p59 = scmp.eq.s32.totalorder %s16, 7
    %p60 = por %p58, %p59
    %p62 = scmp.ne.s32.totalorder %s47, %s61
    %p63 = scmp.eq.s32.totalorder %s16, 0
    %p64 = por %p62, %p63
    %s66 = sadd.s32 %s65, 1
    %p69 = scmp.eq.s32.totalorder %s10, 7
    %p70 = scmp.ne.s32.totalorder %s65, %s67
    %p71 = scmp.eq.s32.totalorder %s10, 0
    %p72 = por %p70, %p71
    %p73 = scmp.ne.s32.totalorder %s65, %s67
    %p74 = scmp.eq.s32.totalorder %s15, 7
    %p75 = por %p73, %p74
    %p76 = scmp.ne.s32.totalorder %s67, %s68
    %p77 = scmp.eq.s32.totalorder %s15, 0
    %p78 = por %p76, %p77
    %p79 = scmp.ne.s32.totalorder %s67, %s68
    %p80 = scmp.eq.s32.totalorder %s16, 7
    %p81 = por %p79, %p80
    %p83 = scmp.ne.s32.totalorder %s68, %s82
    %p84 = scmp.eq.s32.totalorder %s16, 0
    %p85 = por %p83, %p84
    %s86 = ssub.s32 %s10, %s17
    %p87 = scmp.eq.s32.totalorder %s86, 0
    %s89 = sadd.s32 %s88, 1
    %s90 = scalar_select %p87, %s88, %s89
    %p93 = pneg %p87
    %p94 = scmp.eq.s32.totalorder %s10, 7
    %p95 = por %p93, %p94
    %p96 = scmp.ne.s32.totalorder %s88, %s91
    %p97 = scmp.eq.s32.totalorder %s10, 0
    %p98 = por %p96, %p97
    %p99 = scmp.ne.s32.totalorder %s88, %s91
    %p100 = scmp.eq.s32.totalorder %s15, 7
    %p101 = por %p99, %p100
    %p102 = scmp.ne.s32.totalorder %s91, %s92
    %p103 = scmp.eq.s32.totalorder %s15, 0
    %p104 = por %p102, %p103
    %p105 = scmp.ne.s32.totalorder %s91, %s92
    %p106 = scmp.eq.s32.totalorder %s16, 7
    %p107 = por %p105, %p106
    %p109 = scmp.ne.s32.totalorder %s92, %s108
    %p110 = scmp.eq.s32.totalorder %s16, 0
    %p111 = por %p109, %p110
    %s112 = ssub.s32 %s10, %s17
    %p113 = scmp.eq.s32.totalorder %s112, 0
    %s115 = sadd.s32 %s114, 1
    %s116 = scalar_select %p113, %s114, %s115
    %p119 = pneg %p113
    %p120 = scmp.eq.s32.totalorder %s10, 7
    %p121 = por %p119, %p120
    %p122 = scmp.ne.s32.totalorder %s114, %s117
    %p123 = scmp.eq.s32.totalorder %s10, 0
    %p124 = por %p122, %p123
    %p125 = scmp.ne.s32.totalorder %s114, %s117
    %p126 = scmp.eq.s32.totalorder %s15, 7
    %p127 = por %p125, %p126
    %p128 = scmp.ne.s32.totalorder %s117, %s118
    %p129 = scmp.eq.s32.totalorder %s15, 0
    %p130 = por %p128, %p129
    %p131 = scmp.ne.s32.totalorder %s117, %s118
    %p132 = scmp.eq.s32.totalorder %s16, 7
    %p133 = por %p131, %p132
    %p135 = scmp.ne.s32.totalorder %s118, %s134
    %p136 = scmp.eq.s32.totalorder %s16, 0
    %p137 = por %p135, %p136
    %p138 = scmp.le.s32.totalorder 1, %s10
    %p139 = scmp.lt.s32.totalorder %s10, 9
    %p140 = pnand %p138, %p139
    %p141 = pneg %p140
    // Predicated region
    $region9: #{bottleneck_forward.5} parent=5 // pred_check
      _
    $region10: #{bottleneck_forward.5} parent=5 // pred_check_branch
      %143 = sbr.rel (%p140) target = $region12
    $region11: #{bottleneck_forward.5} parent=5 // pred_region
      %s144 = ssub.s32 %s10, 1
      // Predicated region
      $region13: #{bottleneck_forward.5} parent=11 // pred_check
        %p145 = pneg %p57
      $region14: #{bottleneck_forward.5} parent=11 // pred_check_branch
        %147 = sbr.rel (%p145) target = $region16
      $region15: #{bottleneck_forward.5} parent=11 // pred_region
        _
      $region16: #{bottleneck_forward.5} parent=11 // pred_fallthru
        _
      // Predicated region
      $region17: #{bottleneck_forward.5} parent=11 // pred_check
        %p148 = pneg %p78
      $region18: #{bottleneck_forward.5} parent=11 // pred_check_branch
        %150 = sbr.rel (%p148) target = $region20
      $region19: #{bottleneck_forward.5} parent=11 // pred_region
        _
      $region20: #{bottleneck_forward.5} parent=11 // pred_fallthru
        _
    $region12: #{bottleneck_forward.5} parent=5 // pred_fallthru
      _
    %p151 = scmp.lt.s32.totalorder %s10, 8
    // Predicated region
    $region21: #{bottleneck_forward.5} parent=5 // pred_check
      %p152 = pneg %p151
    $region22: #{bottleneck_forward.5} parent=5 // pred_check_branch
      %154 = sbr.rel (%p152) target = $region24
    $region23: #{bottleneck_forward.5} parent=5 // pred_region
      // Predicated region
      $region25: #{bottleneck_forward.5} parent=23 // pred_check
        %p155 = pneg %p30
      $region26: #{bottleneck_forward.5} parent=23 // pred_check_branch
        %157 = sbr.rel (%p155) target = $region28
      $region27: #{bottleneck_forward.5} parent=23 // pred_region
        %s158 = smul.u32 64, %s10
        %p159 = scmp.lt.s32.totalorder %s158, 511
        %s160 = scalar_select %p159, %s158, 511
        %s161 = smul.addr %s160, 4
        %s162 = scalar_lea.vmem %s0, %s161
        %s163 = smul.u32 64, %s10
      $region28: #{bottleneck_forward.5} parent=23 // pred_fallthru
        _
      // Predicated region
      $region29: #{bottleneck_forward.5} parent=23 // pred_check
        %p164 = pneg %p98
      $region30: #{bottleneck_forward.5} parent=23 // pred_check_branch
        %166 = sbr.rel (%p164) target = $region32
      $region31: #{bottleneck_forward.5} parent=23 // pred_region
        %s167 = smul.u32 64, %s10
        %p168 = scmp.lt.s32.totalorder %s167, 511
        %s169 = scalar_select %p168, %s167, 511
        %s170 = smul.addr %s169, 4
        %s171 = scalar_lea.vmem %s3, %s170
        %s172 = smul.u32 64, %s10
      $region32: #{bottleneck_forward.5} parent=23 // pred_fallthru
        _
    $region24: #{bottleneck_forward.5} parent=5 // pred_fallthru
      _
    %p173 = scmp.le.s32.totalorder 1, %s10
    %p174 = scmp.lt.s32.totalorder %s10, 9
    %p175 = pnand %p173, %p174
    %p176 = pneg %p175
    // Predicated region
    $region33: #{bottleneck_forward.5} parent=5 // pred_check
      _
    $region34: #{bottleneck_forward.5} parent=5 // pred_check_branch
      %178 = sbr.rel (%p175) target = $region36
    $region35: #{bottleneck_forward.5} parent=5 // pred_region
      %s179 = ssub.s32 %s10, 1
      %s180 = smul.u32 64, %s15
      %p181 = scmp.lt.s32.totalorder %s180, 511
      %s182 = scalar_select %p181, %s180, 511
      %s183 = smul.addr %s182, 4
      %s184 = scalar_lea.vmem %s0, %s183
      %p185 = pneg %p36
      %p186 = pneg %p33
      %p187 = pneg %p57
      %p188 = pneg %p54
      %p189 = pneg %p78
      %p190 = pneg %p75
      %s191 = smul.u32 64, %s15
      %p192 = scmp.lt.s32.totalorder %s191, 511
      %s193 = scalar_select %p192, %s191, 511
      %s194 = smul.addr %s193, 4
      %s195 = scalar_lea.vmem %s3, %s194
      %p196 = pneg %p104
      %p197 = pneg %p101
      %p198 = pneg %p130
      %p199 = pneg %p127
      %s200 = smul.u32 64, %s15
      %p201 = scmp.lt.s32.totalorder %s200, 511
      %s202 = scalar_select %p201, %s200, 511
      %s203 = smul.addr %s202, 8
      %s204 = scalar_lea.vmem %s4, %s203
      %s205 = smul.u32 64, %s15
      %p206 = scmp.lt.s32.totalorder %s205, 511
      %s207 = scalar_select %p206, %s205, 511
      %s208 = smul.addr %s207, 4
      %s209 = scalar_lea.vmem %s0, %s208
      %s210 = smul.u32 64, %s15
      %s211 = smul.u32 64, %s15
      %p212 = scmp.lt.s32.totalorder %s211, 511
      %s213 = scalar_select %p212, %s211, 511
      %s214 = smul.addr %s213, 4
      %s215 = scalar_lea.vmem %s3, %s214
      %s216 = smul.u32 64, %s15
      %s217 = smul.u32 64, %s15
      %p218 = scmp.lt.s32.totalorder %s217, 511
      %s219 = scalar_select %p218, %s217, 511
      %s220 = smul.addr %s219, 8
      %s221 = scalar_lea.vmem %s4, %s220
      %s222 = smul.u32 64, %s15
      %v224 = vld [vmem:[%s209] sm:$0xf]
      %v225 = vld [vmem:[%s209 + $0x4] sm:$0xf]
      %v226 = vld [vmem:[%s209 + $0x8] sm:$0xf]
      %v227 = vld [vmem:[%s209 + $0xc] sm:$0xf]
      %v228 = vld [vmem:[%s209 + $0x10] sm:$0xf]
      %v229 = vld [vmem:[%s209 + $0x14] sm:$0xf]
      %v230 = vld [vmem:[%s209 + $0x18] sm:$0xf]
      %v231 = vld [vmem:[%s209 + $0x1c] sm:$0xf]
      %v232 = vld [vmem:[%s209 + $0x20] sm:$0xf]
      %v233 = vld [vmem:[%s209 + $0x24] sm:$0xf]
      %v234 = vld [vmem:[%s209 + $0x28] sm:$0xf]
      %v235 = vld [vmem:[%s209 + $0x2c] sm:$0xf]
      %v236 = vld [vmem:[%s209 + $0x30] sm:$0xf]
      %v237 = vld [vmem:[%s209 + $0x34] sm:$0xf]
      %v238 = vld [vmem:[%s209 + $0x38] sm:$0xf]
      %v239 = vld [vmem:[%s209 + $0x3c] sm:$0xf]
      %v240 = vld [vmem:[%s209 + $0x40] sm:$0xf]
      %v241 = vld [vmem:[%s209 + $0x44] sm:$0xf]
      %v242 = vld [vmem:[%s209 + $0x48] sm:$0xf]
      %v243 = vld [vmem:[%s209 + $0x4c] sm:$0xf]
      %v244 = vld [vmem:[%s209 + $0x50] sm:$0xf]
      %v245 = vld [vmem:[%s209 + $0x54] sm:$0xf]
      %v246 = vld [vmem:[%s209 + $0x58] sm:$0xf]
      %v247 = vld [vmem:[%s209 + $0x5c] sm:$0xf]
      %v248 = vld [vmem:[%s209 + $0x60] sm:$0xf]
      %v249 = vld [vmem:[%s209 + $0x64] sm:$0xf]
      %v250 = vld [vmem:[%s209 + $0x68] sm:$0xf]
      %v251 = vld [vmem:[%s209 + $0x6c] sm:$0xf]
      %v252 = vld [vmem:[%s209 + $0x70] sm:$0xf]
      %v253 = vld [vmem:[%s209 + $0x74] sm:$0xf]
      %v254 = vld [vmem:[%s209 + $0x78] sm:$0xf]
      %v255 = vld [vmem:[%s209 + $0x7c] sm:$0xf]
      %v256 = vld [vmem:[%s209 + $0x80] sm:$0xf]
      %v257 = vld [vmem:[%s209 + $0x84] sm:$0xf]
      %v258 = vld [vmem:[%s209 + $0x88] sm:$0xf]
      %v259 = vld [vmem:[%s209 + $0x8c] sm:$0xf]
      %v260 = vld [vmem:[%s209 + $0x90] sm:$0xf]
      %v261 = vld [vmem:[%s209 + $0x94] sm:$0xf]
      %v262 = vld [vmem:[%s209 + $0x98] sm:$0xf]
      %v263 = vld [vmem:[%s209 + $0x9c] sm:$0xf]
      %v264 = vld [vmem:[%s209 + $0xa0] sm:$0xf]
      %v265 = vld [vmem:[%s209 + $0xa4] sm:$0xf]
      %v266 = vld [vmem:[%s209 + $0xa8] sm:$0xf]
      %v267 = vld [vmem:[%s209 + $0xac] sm:$0xf]
      %v268 = vld [vmem:[%s209 + $0xb0] sm:$0xf]
      %v269 = vld [vmem:[%s209 + $0xb4] sm:$0xf]
      %v270 = vld [vmem:[%s209 + $0xb8] sm:$0xf]
      %v271 = vld [vmem:[%s209 + $0xbc] sm:$0xf]
      %v272 = vld [vmem:[%s209 + $0xc0] sm:$0xf]
      %v273 = vld [vmem:[%s209 + $0xc4] sm:$0xf]
      %v274 = vld [vmem:[%s209 + $0xc8] sm:$0xf]
      %v275 = vld [vmem:[%s209 + $0xcc] sm:$0xf]
      %v276 = vld [vmem:[%s209 + $0xd0] sm:$0xf]
      %v277 = vld [vmem:[%s209 + $0xd4] sm:$0xf]
      %v278 = vld [vmem:[%s209 + $0xd8] sm:$0xf]
      %v279 = vld [vmem:[%s209 + $0xdc] sm:$0xf]
      %v280 = vld [vmem:[%s209 + $0xe0] sm:$0xf]
      %v281 = vld [vmem:[%s209 + $0xe4] sm:$0xf]
      %v282 = vld [vmem:[%s209 + $0xe8] sm:$0xf]
      %v283 = vld [vmem:[%s209 + $0xec] sm:$0xf]
      %v284 = vld [vmem:[%s209 + $0xf0] sm:$0xf]
      %v285 = vld [vmem:[%s209 + $0xf4] sm:$0xf]
      %v286 = vld [vmem:[%s209 + $0xf8] sm:$0xf]
      %v287 = vld [vmem:[%s209 + $0xfc] sm:$0xf]
      %v288 = vld [vmem:[%s1] sm:$0x3]
      %v289 = vld [vmem:[%s2] sm:$0x1]
      %v291 = vlaneseq
      %v292 = vshrl.u32 %v291, 7
      %v293 = vsub.s32 0, %v292
      %v294 = vrot.slane %v289, %v293
      %v360 = vunpack.c.l.b16 %v224
      %v361 = vunpack.c.l.b16 %v225
      %v362 = vunpack.c.l.b16 %v226
      %v363 = vunpack.c.l.b16 %v227
      %v364 = vunpack.c.l.b16 %v228
      %v365 = vunpack.c.l.b16 %v229
      %v366 = vunpack.c.l.b16 %v230
      %v367 = vunpack.c.l.b16 %v231
      %v368 = vunpack.c.l.b16 %v232
      %v369 = vunpack.c.l.b16 %v233
      %v370 = vunpack.c.l.b16 %v234
      %v371 = vunpack.c.l.b16 %v235
      %v372 = vunpack.c.l.b16 %v236
      %v373 = vunpack.c.l.b16 %v237
      %v374 = vunpack.c.l.b16 %v238
      %v375 = vunpack.c.l.b16 %v239
      %v376 = vunpack.c.l.b16 %v240
      %v377 = vunpack.c.l.b16 %v241
      %v378 = vunpack.c.l.b16 %v242
      %v379 = vunpack.c.l.b16 %v243
      %v380 = vunpack.c.l.b16 %v244
      %v381 = vunpack.c.l.b16 %v245
      %v382 = vunpack.c.l.b16 %v246
      %v383 = vunpack.c.l.b16 %v247
      %v384 = vunpack.c.l.b16 %v248
      %v385 = vunpack.c.l.b16 %v249
      %v386 = vunpack.c.l.b16 %v250
      %v387 = vunpack.c.l.b16 %v251
      %v388 = vunpack.c.l.b16 %v252
      %v389 = vunpack.c.l.b16 %v253
      %v390 = vunpack.c.l.b16 %v254
      %v391 = vunpack.c.l.b16 %v255
      %v392 = vunpack.c.l.b16 %v256
      %v393 = vunpack.c.l.b16 %v257
      %v394 = vunpack.c.l.b16 %v258
      %v395 = vunpack.c.l.b16 %v259
      %v396 = vunpack.c.l.b16 %v260
      %v397 = vunpack.c.l.b16 %v261
      %v398 = vunpack.c.l.b16 %v262
      %v399 = vunpack.c.l.b16 %v263
      %v400 = vunpack.c.l.b16 %v264
      %v401 = vunpack.c.l.b16 %v265
      %v402 = vunpack.c.l.b16 %v266
      %v403 = vunpack.c.l.b16 %v267
      %v404 = vunpack.c.l.b16 %v268
      %v405 = vunpack.c.l.b16 %v269
      %v406 = vunpack.c.l.b16 %v270
      %v407 = vunpack.c.l.b16 %v271
      %v408 = vunpack.c.l.b16 %v272
      %v409 = vunpack.c.l.b16 %v273
      %v410 = vunpack.c.l.b16 %v274
      %v411 = vunpack.c.l.b16 %v275
      %v412 = vunpack.c.l.b16 %v276
      %v413 = vunpack.c.l.b16 %v277
      %v414 = vunpack.c.l.b16 %v278
      %v415 = vunpack.c.l.b16 %v279
      %v416 = vunpack.c.l.b16 %v280
      %v417 = vunpack.c.l.b16 %v281
      %v418 = vunpack.c.l.b16 %v282
      %v419 = vunpack.c.l.b16 %v283
      %v420 = vunpack.c.l.b16 %v284
      %v421 = vunpack.c.l.b16 %v285
      %v422 = vunpack.c.l.b16 %v286
      %v423 = vunpack.c.l.b16 %v287
      %v424 = vpack.c.b16 %v361, %v360
      %v425 = vpack.c.b16 %v363, %v362
      %v426 = vpack.c.b16 %v365, %v364
      %v427 = vpack.c.b16 %v367, %v366
      %v428 = vpack.c.b16 %v369, %v368
      %v429 = vpack.c.b16 %v371, %v370
      %v430 = vpack.c.b16 %v373, %v372
      %v431 = vpack.c.b16 %v375, %v374
      %v432 = vpack.c.b16 %v377, %v376
      %v433 = vpack.c.b16 %v379, %v378
      %v434 = vpack.c.b16 %v381, %v380
      %v435 = vpack.c.b16 %v383, %v382
      %v436 = vpack.c.b16 %v385, %v384
      %v437 = vpack.c.b16 %v387, %v386
      %v438 = vpack.c.b16 %v389, %v388
      %v439 = vpack.c.b16 %v391, %v390
      %v440 = vpack.c.b16 %v393, %v392
      %v441 = vpack.c.b16 %v395, %v394
      %v442 = vpack.c.b16 %v397, %v396
      %v443 = vpack.c.b16 %v399, %v398
      %v444 = vpack.c.b16 %v401, %v400
      %v445 = vpack.c.b16 %v403, %v402
      %v446 = vpack.c.b16 %v405, %v404
      %v447 = vpack.c.b16 %v407, %v406
      %v448 = vpack.c.b16 %v409, %v408
      %v449 = vpack.c.b16 %v411, %v410
      %v450 = vpack.c.b16 %v413, %v412
      %v451 = vpack.c.b16 %v415, %v414
      %v452 = vpack.c.b16 %v417, %v416
      %v453 = vpack.c.b16 %v419, %v418
      %v454 = vpack.c.b16 %v421, %v420
      %v455 = vpack.c.b16 %v423, %v422
      %vm456 = vcmask 31744
      %v458 = vsel %vm456, %v424, 0
      %v461 = vsel %vm456, %v425, 0
      %v464 = vsel %vm456, %v426, 0
      %v467 = vsel %vm456, %v427, 0
      %v470 = vsel %vm456, %v428, 0
      %v473 = vsel %vm456, %v429, 0
      %v476 = vsel %vm456, %v430, 0
      %v479 = vsel %vm456, %v431, 0
      %v482 = vsel %vm456, %v432, 0
      %v485 = vsel %vm456, %v433, 0
      %v488 = vsel %vm456, %v434, 0
      %v491 = vsel %vm456, %v435, 0
      %v494 = vsel %vm456, %v436, 0
      %v497 = vsel %vm456, %v437, 0
      %v500 = vsel %vm456, %v438, 0
      %v503 = vsel %vm456, %v439, 0
      %v506 = vsel %vm456, %v440, 0
      %v509 = vsel %vm456, %v441, 0
      %v512 = vsel %vm456, %v442, 0
      %v515 = vsel %vm456, %v443, 0
      %v518 = vsel %vm456, %v444, 0
      %v521 = vsel %vm456, %v445, 0
      %v524 = vsel %vm456, %v446, 0
      %v527 = vsel %vm456, %v447, 0
      %v530 = vsel %vm456, %v448, 0
      %v533 = vsel %vm456, %v449, 0
      %v536 = vsel %vm456, %v450, 0
      %v539 = vsel %vm456, %v451, 0
      %v542 = vsel %vm456, %v452, 0
      %v545 = vsel %vm456, %v453, 0
      %v548 = vsel %vm456, %v454, 0
      %v551 = vsel %vm456, %v455, 0
      %vm553 = vcmask 1041408
      %v555 = vsel %vm553, %v288, 0
      %557 = vmatprep.subr.bf16.mxu0 0
      %558 = vmatpush1.bf16.msra.mxu0 0
      %559 = vmatprep.subr.bf16.mxu0 0
      %560 = vmatpush1.bf16.msra.mxu0 0
      %561 = vmatprep.subr.bf16.mxu0 0
      %562 = vmatpush1.bf16.msra.mxu0 0
      %563 = vmatprep.subr.bf16.mxu0 0
      %564 = vmatpush1.bf16.msra.mxu0 0
      %565 = vmatprep.subr.bf16.mxu0 0
      %566 = vmatpush1.bf16.msra.mxu0 0
      %567 = vmatprep.subr.bf16.mxu0 0
      %568 = vmatpush1.bf16.msra.mxu0 0
      %569 = vmatprep.subr.bf16.mxu0 0
      %570 = vmatpush1.bf16.msra.mxu0 0
      %571 = vmatprep.subr.bf16.mxu0 0
      %572 = vmatpush1.bf16.msra.mxu0 %v555
      %573 = vmatprep.subr.bf16.mxu0 0
      %574 = vmatpush2.bf16.msra.mxu0 0
      %575 = vmatprep.subr.bf16.mxu0 0
      %576 = vmatpush2.bf16.msra.mxu0 0
      %577 = vmatprep.subr.bf16.mxu0 0
      %578 = vmatpush2.bf16.msra.mxu0 0
      %579 = vmatprep.subr.bf16.mxu0 0
      %580 = vmatpush2.bf16.msra.mxu0 0
      %581 = vmatprep.subr.bf16.mxu0 0
      %582 = vmatpush2.bf16.msra.mxu0 0
      %583 = vmatprep.subr.bf16.mxu0 0
      %584 = vmatpush2.bf16.msra.mxu0 0
      %585 = vmatprep.subr.bf16.mxu0 0
      %586 = vmatpush2.bf16.msra.mxu0 0
      %587 = vmatprep.subr.bf16.mxu0 0
      %588 = vmatpush2.bf16.msra.mxu0 0
      %589 = vmatprep.mubr.bf16.mxu0 0
      %590 = vmatmul.mubr.bf16.gmra.mxu0 %v458
      %v591 = vpop.f32.mrf.mxu0
      %v592 = vadd.f32 %v294, %v591
      %v593 = vpop.f32.mrf.mxu0
      %v594 = vpop.f32.mrf.mxu0
      %v595 = vadd.f32 %v294, %v594
      %v596 = vpop.f32.mrf.mxu0
      %597 = vmatprep.mubr.bf16.mxu0 0
      %598 = vmatmul.mubr.bf16.gmra.mxu0 %v461
      %v599 = vpop.f32.mrf.mxu0
      %v600 = vadd.f32 %v294, %v599
      %v601 = vpop.f32.mrf.mxu0
      %v602 = vpop.f32.mrf.mxu0
      %v603 = vadd.f32 %v294, %v602
      %v604 = vpop.f32.mrf.mxu0
      %605 = vmatprep.mubr.bf16.mxu0 0
      %606 = vmatmul.mubr.bf16.gmra.mxu0 %v464
      %v607 = vpop.f32.mrf.mxu0
      %v608 = vadd.f32 %v294, %v607
      %v609 = vpop.f32.mrf.mxu0
      %v610 = vpop.f32.mrf.mxu0
      %v611 = vadd.f32 %v294, %v610
      %v612 = vpop.f32.mrf.mxu0
      %613 = vmatprep.mubr.bf16.mxu0 0
      %614 = vmatmul.mubr.bf16.gmra.mxu0 %v467
      %v615 = vpop.f32.mrf.mxu0
      %v616 = vadd.f32 %v294, %v615
      %v617 = vpop.f32.mrf.mxu0
      %v618 = vpop.f32.mrf.mxu0
      %v619 = vadd.f32 %v294, %v618
      %v620 = vpop.f32.mrf.mxu0
      %621 = vmatprep.mubr.bf16.mxu0 0
      %622 = vmatmul.mubr.bf16.gmra.mxu0 %v470
      %v623 = vpop.f32.mrf.mxu0
      %v624 = vadd.f32 %v294, %v623
      %v625 = vpop.f32.mrf.mxu0
      %v626 = vpop.f32.mrf.mxu0
      %v627 = vadd.f32 %v294, %v626
      %v628 = vpop.f32.mrf.mxu0
      %629 = vmatprep.mubr.bf16.mxu0 0
      %630 = vmatmul.mubr.bf16.gmra.mxu0 %v473
      %v631 = vpop.f32.mrf.mxu0
      %v632 = vadd.f32 %v294, %v631
      %v633 = vpop.f32.mrf.mxu0
      %v634 = vpop.f32.mrf.mxu0
      %v635 = vadd.f32 %v294, %v634
      %v636 = vpop.f32.mrf.mxu0
      %637 = vmatprep.mubr.bf16.mxu0 0
      %638 = vmatmul.mubr.bf16.gmra.mxu0 %v476
      %v639 = vpop.f32.mrf.mxu0
      %v640 = vadd.f32 %v294, %v639
      %v641 = vpop.f32.mrf.mxu0
      %v642 = vpop.f32.mrf.mxu0
      %v643 = vadd.f32 %v294, %v642
      %v644 = vpop.f32.mrf.mxu0
      %645 = vmatprep.mubr.bf16.mxu0 0
      %646 = vmatmul.mubr.bf16.gmra.mxu0 %v479
      %v647 = vpop.f32.mrf.mxu0
      %v648 = vadd.f32 %v294, %v647
      %v649 = vpop.f32.mrf.mxu0
      %v650 = vpop.f32.mrf.mxu0
      %v651 = vadd.f32 %v294, %v650
      %v652 = vpop.f32.mrf.mxu0
      %653 = vmatprep.mubr.bf16.mxu0 0
      %654 = vmatmul.mubr.bf16.gmra.mxu0 %v482
      %v655 = vpop.f32.mrf.mxu0
      %v656 = vadd.f32 %v294, %v655
      %v657 = vpop.f32.mrf.mxu0
      %v658 = vpop.f32.mrf.mxu0
      %v659 = vadd.f32 %v294, %v658
      %v660 = vpop.f32.mrf.mxu0
      %661 = vmatprep.mubr.bf16.mxu0 0
      %662 = vmatmul.mubr.bf16.gmra.mxu0 %v485
      %v663 = vpop.f32.mrf.mxu0
      %v664 = vadd.f32 %v294, %v663
      %v665 = vpop.f32.mrf.mxu0
      %v666 = vpop.f32.mrf.mxu0
      %v667 = vadd.f32 %v294, %v666
      %v668 = vpop.f32.mrf.mxu0
      %669 = vmatprep.mubr.bf16.mxu0 0
      %670 = vmatmul.mubr.bf16.gmra.mxu0 %v488
      %v671 = vpop.f32.mrf.mxu0
      %v672 = vadd.f32 %v294, %v671
      %v673 = vpop.f32.mrf.mxu0
      %v674 = vpop.f32.mrf.mxu0
      %v675 = vadd.f32 %v294, %v674
      %v676 = vpop.f32.mrf.mxu0
      %677 = vmatprep.mubr.bf16.mxu0 0
      %678 = vmatmul.mubr.bf16.gmra.mxu0 %v491
      %v679 = vpop.f32.mrf.mxu0
      %v680 = vadd.f32 %v294, %v679
      %v681 = vpop.f32.mrf.mxu0
      %v682 = vpop.f32.mrf.mxu0
      %v683 = vadd.f32 %v294, %v682
      %v684 = vpop.f32.mrf.mxu0
      %685 = vmatprep.mubr.bf16.mxu0 0
      %686 = vmatmul.mubr.bf16.gmra.mxu0 %v494
      %v687 = vpop.f32.mrf.mxu0
      %v688 = vadd.f32 %v294, %v687
      %v689 = vpop.f32.mrf.mxu0
      %v690 = vpop.f32.mrf.mxu0
      %v691 = vadd.f32 %v294, %v690
      %v692 = vpop.f32.mrf.mxu0
      %693 = vmatprep.mubr.bf16.mxu0 0
      %694 = vmatmul.mubr.bf16.gmra.mxu0 %v497
      %v695 = vpop.f32.mrf.mxu0
      %v696 = vadd.f32 %v294, %v695
      %v697 = vpop.f32.mrf.mxu0
      %v698 = vpop.f32.mrf.mxu0
      %v699 = vadd.f32 %v294, %v698
      %v700 = vpop.f32.mrf.mxu0
      %701 = vmatprep.mubr.bf16.mxu0 0
      %702 = vmatmul.mubr.bf16.gmra.mxu0 %v500
      %v703 = vpop.f32.mrf.mxu0
      %v704 = vadd.f32 %v294, %v703
      %v705 = vpop.f32.mrf.mxu0
      %v706 = vpop.f32.mrf.mxu0
      %v707 = vadd.f32 %v294, %v706
      %v708 = vpop.f32.mrf.mxu0
      %709 = vmatprep.mubr.bf16.mxu0 0
      %710 = vmatmul.mubr.bf16.gmra.mxu0 %v503
      %v711 = vpop.f32.mrf.mxu0
      %v712 = vadd.f32 %v294, %v711
      %v713 = vpop.f32.mrf.mxu0
      %v714 = vpop.f32.mrf.mxu0
      %v715 = vadd.f32 %v294, %v714
      %v716 = vpop.f32.mrf.mxu0
      %717 = vmatprep.mubr.bf16.mxu0 0
      %718 = vmatmul.mubr.bf16.gmra.mxu0 %v506
      %v719 = vpop.f32.mrf.mxu0
      %v720 = vadd.f32 %v294, %v719
      %v721 = vpop.f32.mrf.mxu0
      %v722 = vpop.f32.mrf.mxu0
      %v723 = vadd.f32 %v294, %v722
      %v724 = vpop.f32.mrf.mxu0
      %725 = vmatprep.mubr.bf16.mxu0 0
      %726 = vmatmul.mubr.bf16.gmra.mxu0 %v509
      %v727 = vpop.f32.mrf.mxu0
      %v728 = vadd.f32 %v294, %v727
      %v729 = vpop.f32.mrf.mxu0
      %v730 = vpop.f32.mrf.mxu0
      %v731 = vadd.f32 %v294, %v730
      %v732 = vpop.f32.mrf.mxu0
      %733 = vmatprep.mubr.bf16.mxu0 0
      %734 = vmatmul.mubr.bf16.gmra.mxu0 %v512
      %v735 = vpop.f32.mrf.mxu0
      %v736 = vadd.f32 %v294, %v735
      %v737 = vpop.f32.mrf.mxu0
      %v738 = vpop.f32.mrf.mxu0
      %v739 = vadd.f32 %v294, %v738
      %v740 = vpop.f32.mrf.mxu0
      %741 = vmatprep.mubr.bf16.mxu0 0
      %742 = vmatmul.mubr.bf16.gmra.mxu0 %v515
      %v743 = vpop.f32.mrf.mxu0
      %v744 = vadd.f32 %v294, %v743
      %v745 = vpop.f32.mrf.mxu0
      %v746 = vpop.f32.mrf.mxu0
      %v747 = vadd.f32 %v294, %v746
      %v748 = vpop.f32.mrf.mxu0
      %749 = vmatprep.mubr.bf16.mxu0 0
      %750 = vmatmul.mubr.bf16.gmra.mxu0 %v518
      %v751 = vpop.f32.mrf.mxu0
      %v752 = vadd.f32 %v294, %v751
      %v753 = vpop.f32.mrf.mxu0
      %v754 = vpop.f32.mrf.mxu0
      %v755 = vadd.f32 %v294, %v754
      %v756 = vpop.f32.mrf.mxu0
      %757 = vmatprep.mubr.bf16.mxu0 0
      %758 = vmatmul.mubr.bf16.gmra.mxu0 %v521
      %v759 = vpop.f32.mrf.mxu0
      %v760 = vadd.f32 %v294, %v759
      %v761 = vpop.f32.mrf.mxu0
      %v762 = vpop.f32.mrf.mxu0
      %v763 = vadd.f32 %v294, %v762
      %v764 = vpop.f32.mrf.mxu0
      %765 = vmatprep.mubr.bf16.mxu0 0
      %766 = vmatmul.mubr.bf16.gmra.mxu0 %v524
      %v767 = vpop.f32.mrf.mxu0
      %v768 = vadd.f32 %v294, %v767
      %v769 = vpop.f32.mrf.mxu0
      %v770 = vpop.f32.mrf.mxu0
      %v771 = vadd.f32 %v294, %v770
      %v772 = vpop.f32.mrf.mxu0
      %773 = vmatprep.mubr.bf16.mxu0 0
      %774 = vmatmul.mubr.bf16.gmra.mxu0 %v527
      %v775 = vpop.f32.mrf.mxu0
      %v776 = vadd.f32 %v294, %v775
      %v777 = vpop.f32.mrf.mxu0
      %v778 = vpop.f32.mrf.mxu0
      %v779 = vadd.f32 %v294, %v778
      %v780 = vpop.f32.mrf.mxu0
      %781 = vmatprep.mubr.bf16.mxu0 0
      %782 = vmatmul.mubr.bf16.gmra.mxu0 %v530
      %v783 = vpop.f32.mrf.mxu0
      %v784 = vadd.f32 %v294, %v783
      %v785 = vpop.f32.mrf.mxu0
      %v786 = vpop.f32.mrf.mxu0
      %v787 = vadd.f32 %v294, %v786
      %v788 = vpop.f32.mrf.mxu0
      %789 = vmatprep.mubr.bf16.mxu0 0
      %790 = vmatmul.mubr.bf16.gmra.mxu0 %v533
      %v791 = vpop.f32.mrf.mxu0
      %v792 = vadd.f32 %v294, %v791
      %v793 = vpop.f32.mrf.mxu0
      %v794 = vpop.f32.mrf.mxu0
      %v795 = vadd.f32 %v294, %v794
      %v796 = vpop.f32.mrf.mxu0
      %797 = vmatprep.mubr.bf16.mxu0 0
      %798 = vmatmul.mubr.bf16.gmra.mxu0 %v536
      %v799 = vpop.f32.mrf.mxu0
      %v800 = vadd.f32 %v294, %v799
      %v801 = vpop.f32.mrf.mxu0
      %v802 = vpop.f32.mrf.mxu0
      %v803 = vadd.f32 %v294, %v802
      %v804 = vpop.f32.mrf.mxu0
      %805 = vmatprep.mubr.bf16.mxu0 0
      %806 = vmatmul.mubr.bf16.gmra.mxu0 %v539
      %v807 = vpop.f32.mrf.mxu0
      %v808 = vadd.f32 %v294, %v807
      %v809 = vpop.f32.mrf.mxu0
      %v810 = vpop.f32.mrf.mxu0
      %v811 = vadd.f32 %v294, %v810
      %v812 = vpop.f32.mrf.mxu0
      %813 = vmatprep.mubr.bf16.mxu0 0
      %814 = vmatmul.mubr.bf16.gmra.mxu0 %v542
      %v815 = vpop.f32.mrf.mxu0
      %v816 = vadd.f32 %v294, %v815
      %v817 = vpop.f32.mrf.mxu0
      %v818 = vpop.f32.mrf.mxu0
      %v819 = vadd.f32 %v294, %v818
      %v820 = vpop.f32.mrf.mxu0
      %821 = vmatprep.mubr.bf16.mxu0 0
      %822 = vmatmul.mubr.bf16.gmra.mxu0 %v545
      %v823 = vpop.f32.mrf.mxu0
      %v824 = vadd.f32 %v294, %v823
      %v825 = vpop.f32.mrf.mxu0
      %v826 = vpop.f32.mrf.mxu0
      %v827 = vadd.f32 %v294, %v826
      %v828 = vpop.f32.mrf.mxu0
      %829 = vmatprep.mubr.bf16.mxu0 0
      %830 = vmatmul.mubr.bf16.gmra.mxu0 %v548
      %v831 = vpop.f32.mrf.mxu0
      %v832 = vadd.f32 %v294, %v831
      %v833 = vpop.f32.mrf.mxu0
      %v834 = vpop.f32.mrf.mxu0
      %v835 = vadd.f32 %v294, %v834
      %v836 = vpop.f32.mrf.mxu0
      %837 = vmatprep.mubr.bf16.mxu0 0
      %838 = vmatmul.mubr.bf16.gmra.mxu0 %v551
      %v839 = vpop.f32.mrf.mxu0
      %v840 = vadd.f32 %v294, %v839
      %v841 = vpop.f32.mrf.mxu0
      %v842 = vpop.f32.mrf.mxu0
      %v843 = vadd.f32 %v294, %v842
      %v844 = vpop.f32.mrf.mxu0
      %845 = vdwg.mxu0
      %v846 = vld [vmem:[%s215] sm:$0xf]
      %v847 = vld [vmem:[%s215 + $0x4] sm:$0xf]
      %v848 = vld [vmem:[%s215 + $0x8] sm:$0xf]
      %v849 = vld [vmem:[%s215 + $0xc] sm:$0xf]
      %v850 = vld [vmem:[%s215 + $0x10] sm:$0xf]
      %v851 = vld [vmem:[%s215 + $0x14] sm:$0xf]
      %v852 = vld [vmem:[%s215 + $0x18] sm:$0xf]
      %v853 = vld [vmem:[%s215 + $0x1c] sm:$0xf]
      %v854 = vld [vmem:[%s215 + $0x20] sm:$0xf]
      %v855 = vld [vmem:[%s215 + $0x24] sm:$0xf]
      %v856 = vld [vmem:[%s215 + $0x28] sm:$0xf]
      %v857 = vld [vmem:[%s215 + $0x2c] sm:$0xf]
      %v858 = vld [vmem:[%s215 + $0x30] sm:$0xf]
      %v859 = vld [vmem:[%s215 + $0x34] sm:$0xf]
      %v860 = vld [vmem:[%s215 + $0x38] sm:$0xf]
      %v861 = vld [vmem:[%s215 + $0x3c] sm:$0xf]
      %v862 = vld [vmem:[%s215 + $0x40] sm:$0xf]
      %v863 = vld [vmem:[%s215 + $0x44] sm:$0xf]
      %v864 = vld [vmem:[%s215 + $0x48] sm:$0xf]
      %v865 = vld [vmem:[%s215 + $0x4c] sm:$0xf]
      %v866 = vld [vmem:[%s215 + $0x50] sm:$0xf]
      %v867 = vld [vmem:[%s215 + $0x54] sm:$0xf]
      %v868 = vld [vmem:[%s215 + $0x58] sm:$0xf]
      %v869 = vld [vmem:[%s215 + $0x5c] sm:$0xf]
      %v870 = vld [vmem:[%s215 + $0x60] sm:$0xf]
      %v871 = vld [vmem:[%s215 + $0x64] sm:$0xf]
      %v872 = vld [vmem:[%s215 + $0x68] sm:$0xf]
      %v873 = vld [vmem:[%s215 + $0x6c] sm:$0xf]
      %v874 = vld [vmem:[%s215 + $0x70] sm:$0xf]
      %v875 = vld [vmem:[%s215 + $0x74] sm:$0xf]
      %v876 = vld [vmem:[%s215 + $0x78] sm:$0xf]
      %v877 = vld [vmem:[%s215 + $0x7c] sm:$0xf]
      %v878 = vld [vmem:[%s215 + $0x80] sm:$0xf]
      %v879 = vld [vmem:[%s215 + $0x84] sm:$0xf]
      %v880 = vld [vmem:[%s215 + $0x88] sm:$0xf]
      %v881 = vld [vmem:[%s215 + $0x8c] sm:$0xf]
      %v882 = vld [vmem:[%s215 + $0x90] sm:$0xf]
      %v883 = vld [vmem:[%s215 + $0x94] sm:$0xf]
      %v884 = vld [vmem:[%s215 + $0x98] sm:$0xf]
      %v885 = vld [vmem:[%s215 + $0x9c] sm:$0xf]
      %v886 = vld [vmem:[%s215 + $0xa0] sm:$0xf]
      %v887 = vld [vmem:[%s215 + $0xa4] sm:$0xf]
      %v888 = vld [vmem:[%s215 + $0xa8] sm:$0xf]
      %v889 = vld [vmem:[%s215 + $0xac] sm:$0xf]
      %v890 = vld [vmem:[%s215 + $0xb0] sm:$0xf]
      %v891 = vld [vmem:[%s215 + $0xb4] sm:$0xf]
      %v892 = vld [vmem:[%s215 + $0xb8] sm:$0xf]
      %v893 = vld [vmem:[%s215 + $0xbc] sm:$0xf]
      %v894 = vld [vmem:[%s215 + $0xc0] sm:$0xf]
      %v895 = vld [vmem:[%s215 + $0xc4] sm:$0xf]
      %v896 = vld [vmem:[%s215 + $0xc8] sm:$0xf]
      %v897 = vld [vmem:[%s215 + $0xcc] sm:$0xf]
      %v898 = vld [vmem:[%s215 + $0xd0] sm:$0xf]
      %v899 = vld [vmem:[%s215 + $0xd4] sm:$0xf]
      %v900 = vld [vmem:[%s215 + $0xd8] sm:$0xf]
      %v901 = vld [vmem:[%s215 + $0xdc] sm:$0xf]
      %v902 = vld [vmem:[%s215 + $0xe0] sm:$0xf]
      %v903 = vld [vmem:[%s215 + $0xe4] sm:$0xf]
      %v904 = vld [vmem:[%s215 + $0xe8] sm:$0xf]
      %v905 = vld [vmem:[%s215 + $0xec] sm:$0xf]
      %v906 = vld [vmem:[%s215 + $0xf0] sm:$0xf]
      %v907 = vld [vmem:[%s215 + $0xf4] sm:$0xf]
      %v908 = vld [vmem:[%s215 + $0xf8] sm:$0xf]
      %v909 = vld [vmem:[%s215 + $0xfc] sm:$0xf]
      %v910 = vunpack.c.l.bf16 %v846
      %v911 = vunpack.c.l.bf16 %v847
      %v912 = vunpack.c.l.bf16 %v848
      %v913 = vunpack.c.l.bf16 %v849
      %v914 = vunpack.c.l.bf16 %v850
      %v915 = vunpack.c.l.bf16 %v851
      %v916 = vunpack.c.l.bf16 %v852
      %v917 = vunpack.c.l.bf16 %v853
      %v918 = vunpack.c.l.bf16 %v854
      %v919 = vunpack.c.l.bf16 %v855
      %v920 = vunpack.c.l.bf16 %v856
      %v921 = vunpack.c.l.bf16 %v857
      %v922 = vunpack.c.l.bf16 %v858
      %v923 = vunpack.c.l.bf16 %v859
      %v924 = vunpack.c.l.bf16 %v860
      %v925 = vunpack.c.l.bf16 %v861
      %v926 = vunpack.c.l.bf16 %v862
      %v927 = vunpack.c.l.bf16 %v863
      %v928 = vunpack.c.l.bf16 %v864
      %v929 = vunpack.c.l.bf16 %v865
      %v930 = vunpack.c.l.bf16 %v866
      %v931 = vunpack.c.l.bf16 %v867
      %v932 = vunpack.c.l.bf16 %v868
      %v933 = vunpack.c.l.bf16 %v869
      %v934 = vunpack.c.l.bf16 %v870
      %v935 = vunpack.c.l.bf16 %v871
      %v936 = vunpack.c.l.bf16 %v872
      %v937 = vunpack.c.l.bf16 %v873
      %v938 = vunpack.c.l.bf16 %v874
      %v939 = vunpack.c.l.bf16 %v875
      %v940 = vunpack.c.l.bf16 %v876
      %v941 = vunpack.c.l.bf16 %v877
      %v942 = vunpack.c.l.bf16 %v878
      %v943 = vunpack.c.l.bf16 %v879
      %v944 = vunpack.c.l.bf16 %v880
      %v945 = vunpack.c.l.bf16 %v881
      %v946 = vunpack.c.l.bf16 %v882
      %v947 = vunpack.c.l.bf16 %v883
      %v948 = vunpack.c.l.bf16 %v884
      %v949 = vunpack.c.l.bf16 %v885
      %v950 = vunpack.c.l.bf16 %v886
      %v951 = vunpack.c.l.bf16 %v887
      %v952 = vunpack.c.l.bf16 %v888
      %v953 = vunpack.c.l.bf16 %v889
      %v954 = vunpack.c.l.bf16 %v890
      %v955 = vunpack.c.l.bf16 %v891
      %v956 = vunpack.c.l.bf16 %v892
      %v957 = vunpack.c.l.bf16 %v893
      %v958 = vunpack.c.l.bf16 %v894
      %v959 = vunpack.c.l.bf16 %v895
      %v960 = vunpack.c.l.bf16 %v896
      %v961 = vunpack.c.l.bf16 %v897
      %v962 = vunpack.c.l.bf16 %v898
      %v963 = vunpack.c.l.bf16 %v899
      %v964 = vunpack.c.l.bf16 %v900
      %v965 = vunpack.c.l.bf16 %v901
      %v966 = vunpack.c.l.bf16 %v902
      %v967 = vunpack.c.l.bf16 %v903
      %v968 = vunpack.c.l.bf16 %v904
      %v969 = vunpack.c.l.bf16 %v905
      %v970 = vunpack.c.l.bf16 %v906
      %v971 = vunpack.c.l.bf16 %v907
      %v972 = vunpack.c.l.bf16 %v908
      %v973 = vunpack.c.l.bf16 %v909
      %v974 = vadd.f32 %v592, %v910
      %v975 = vadd.f32 %v595, %v911
      %v976 = vadd.f32 %v600, %v912
      %v977 = vadd.f32 %v603, %v913
      %v978 = vadd.f32 %v608, %v914
      %v979 = vadd.f32 %v611, %v915
      %v980 = vadd.f32 %v616, %v916
      %v981 = vadd.f32 %v619, %v917
      %v982 = vadd.f32 %v624, %v918
      %v983 = vadd.f32 %v627, %v919
      %v984 = vadd.f32 %v632, %v920
      %v985 = vadd.f32 %v635, %v921
      %v986 = vadd.f32 %v640, %v922
      %v987 = vadd.f32 %v643, %v923
      %v988 = vadd.f32 %v648, %v924
      %v989 = vadd.f32 %v651, %v925
      %v990 = vadd.f32 %v656, %v926
      %v991 = vadd.f32 %v659, %v927
      %v992 = vadd.f32 %v664, %v928
      %v993 = vadd.f32 %v667, %v929
      %v994 = vadd.f32 %v672, %v930
      %v995 = vadd.f32 %v675, %v931
      %v996 = vadd.f32 %v680, %v932
      %v997 = vadd.f32 %v683, %v933
      %v998 = vadd.f32 %v688, %v934
      %v999 = vadd.f32 %v691, %v935
      %v1000 = vadd.f32 %v696, %v936
      %v1001 = vadd.f32 %v699, %v937
      %v1002 = vadd.f32 %v704, %v938
      %v1003 = vadd.f32 %v707, %v939
      %v1004 = vadd.f32 %v712, %v940
      %v1005 = vadd.f32 %v715, %v941
      %v1006 = vadd.f32 %v720, %v942
      %v1007 = vadd.f32 %v723, %v943
      %v1008 = vadd.f32 %v728, %v944
      %v1009 = vadd.f32 %v731, %v945
      %v1010 = vadd.f32 %v736, %v946
      %v1011 = vadd.f32 %v739, %v947
      %v1012 = vadd.f32 %v744, %v948
      %v1013 = vadd.f32 %v747, %v949
      %v1014 = vadd.f32 %v752, %v950
      %v1015 = vadd.f32 %v755, %v951
      %v1016 = vadd.f32 %v760, %v952
      %v1017 = vadd.f32 %v763, %v953
      %v1018 = vadd.f32 %v768, %v954
      %v1019 = vadd.f32 %v771, %v955
      %v1020 = vadd.f32 %v776, %v956
      %v1021 = vadd.f32 %v779, %v957
      %v1022 = vadd.f32 %v784, %v958
      %v1023 = vadd.f32 %v787, %v959
      %v1024 = vadd.f32 %v792, %v960
      %v1025 = vadd.f32 %v795, %v961
      %v1026 = vadd.f32 %v800, %v962
      %v1027 = vadd.f32 %v803, %v963
      %v1028 = vadd.f32 %v808, %v964
      %v1029 = vadd.f32 %v811, %v965
      %v1030 = vadd.f32 %v816, %v966
      %v1031 = vadd.f32 %v819, %v967
      %v1032 = vadd.f32 %v824, %v968
      %v1033 = vadd.f32 %v827, %v969
      %v1034 = vadd.f32 %v832, %v970
      %v1035 = vadd.f32 %v835, %v971
      %v1036 = vadd.f32 %v840, %v972
      %v1037 = vadd.f32 %v843, %v973
      %v1038 = vmax.f32 %v974, 0.0
      %v1039 = vmax.f32 %v975, 0.0
      %v1040 = vmax.f32 %v976, 0.0
      %v1041 = vmax.f32 %v977, 0.0
      %v1042 = vmax.f32 %v978, 0.0
      %v1043 = vmax.f32 %v979, 0.0
      %v1044 = vmax.f32 %v980, 0.0
      %v1045 = vmax.f32 %v981, 0.0
      %v1046 = vmax.f32 %v982, 0.0
      %v1047 = vmax.f32 %v983, 0.0
      %v1048 = vmax.f32 %v984, 0.0
      %v1049 = vmax.f32 %v985, 0.0
      %v1050 = vmax.f32 %v986, 0.0
      %v1051 = vmax.f32 %v987, 0.0
      %v1052 = vmax.f32 %v988, 0.0
      %v1053 = vmax.f32 %v989, 0.0
      %v1054 = vmax.f32 %v990, 0.0
      %v1055 = vmax.f32 %v991, 0.0
      %v1056 = vmax.f32 %v992, 0.0
      %v1057 = vmax.f32 %v993, 0.0
      %v1058 = vmax.f32 %v994, 0.0
      %v1059 = vmax.f32 %v995, 0.0
      %v1060 = vmax.f32 %v996, 0.0
      %v1061 = vmax.f32 %v997, 0.0
      %v1062 = vmax.f32 %v998, 0.0
      %v1063 = vmax.f32 %v999, 0.0
      %v1064 = vmax.f32 %v1000, 0.0
      %v1065 = vmax.f32 %v1001, 0.0
      %v1066 = vmax.f32 %v1002, 0.0
      %v1067 = vmax.f32 %v1003, 0.0
      %v1068 = vmax.f32 %v1004, 0.0
      %v1069 = vmax.f32 %v1005, 0.0
      %v1070 = vmax.f32 %v1006, 0.0
      %v1071 = vmax.f32 %v1007, 0.0
      %v1072 = vmax.f32 %v1008, 0.0
      %v1073 = vmax.f32 %v1009, 0.0
      %v1074 = vmax.f32 %v1010, 0.0
      %v1075 = vmax.f32 %v1011, 0.0
      %v1076 = vmax.f32 %v1012, 0.0
      %v1077 = vmax.f32 %v1013, 0.0
      %v1078 = vmax.f32 %v1014, 0.0
      %v1079 = vmax.f32 %v1015, 0.0
      %v1080 = vmax.f32 %v1016, 0.0
      %v1081 = vmax.f32 %v1017, 0.0
      %v1082 = vmax.f32 %v1018, 0.0
      %v1083 = vmax.f32 %v1019, 0.0
      %v1084 = vmax.f32 %v1020, 0.0
      %v1085 = vmax.f32 %v1021, 0.0
      %v1086 = vmax.f32 %v1022, 0.0
      %v1087 = vmax.f32 %v1023, 0.0
      %v1088 = vmax.f32 %v1024, 0.0
      %v1089 = vmax.f32 %v1025, 0.0
      %v1090 = vmax.f32 %v1026, 0.0
      %v1091 = vmax.f32 %v1027, 0.0
      %v1092 = vmax.f32 %v1028, 0.0
      %v1093 = vmax.f32 %v1029, 0.0
      %v1094 = vmax.f32 %v1030, 0.0
      %v1095 = vmax.f32 %v1031, 0.0
      %v1096 = vmax.f32 %v1032, 0.0
      %v1097 = vmax.f32 %v1033, 0.0
      %v1098 = vmax.f32 %v1034, 0.0
      %v1099 = vmax.f32 %v1035, 0.0
      %v1100 = vmax.f32 %v1036, 0.0
      %v1101 = vmax.f32 %v1037, 0.0
      %vm1102 = vcmask 130048
      %1103 = vst.msk [vmem:[%s221] sm:$0xff] %vm1102, %v1038
      %1104 = vst.msk [vmem:[%s221 + $0x8] sm:$0xff] %vm1102, %v1039
      %1105 = vst.msk [vmem:[%s221 + $0x10] sm:$0xff] %vm1102, %v1040
      %1106 = vst.msk [vmem:[%s221 + $0x18] sm:$0xff] %vm1102, %v1041
      %1107 = vst.msk [vmem:[%s221 + $0x20] sm:$0xff] %vm1102, %v1042
      %1108 = vst.msk [vmem:[%s221 + $0x28] sm:$0xff] %vm1102, %v1043
      %1109 = vst.msk [vmem:[%s221 + $0x30] sm:$0xff] %vm1102, %v1044
      %1110 = vst.msk [vmem:[%s221 + $0x38] sm:$0xff] %vm1102, %v1045
      %1111 = vst.msk [vmem:[%s221 + $0x40] sm:$0xff] %vm1102, %v1046
      %1112 = vst.msk [vmem:[%s221 + $0x48] sm:$0xff] %vm1102, %v1047
      %1113 = vst.msk [vmem:[%s221 + $0x50] sm:$0xff] %vm1102, %v1048
      %1114 = vst.msk [vmem:[%s221 + $0x58] sm:$0xff] %vm1102, %v1049
      %1115 = vst.msk [vmem:[%s221 + $0x60] sm:$0xff] %vm1102, %v1050
      %1116 = vst.msk [vmem:[%s221 + $0x68] sm:$0xff] %vm1102, %v1051
      %1117 = vst.msk [vmem:[%s221 + $0x70] sm:$0xff] %vm1102, %v1052
      %1118 = vst.msk [vmem:[%s221 + $0x78] sm:$0xff] %vm1102, %v1053
      %1119 = vst.msk [vmem:[%s221 + $0x80] sm:$0xff] %vm1102, %v1054
      %1120 = vst.msk [vmem:[%s221 + $0x88] sm:$0xff] %vm1102, %v1055
      %1121 = vst.msk [vmem:[%s221 + $0x90] sm:$0xff] %vm1102, %v1056
      %1122 = vst.msk [vmem:[%s221 + $0x98] sm:$0xff] %vm1102, %v1057
      %1123 = vst.msk [vmem:[%s221 + $0xa0] sm:$0xff] %vm1102, %v1058
      %1124 = vst.msk [vmem:[%s221 + $0xa8] sm:$0xff] %vm1102, %v1059
      %1125 = vst.msk [vmem:[%s221 + $0xb0] sm:$0xff] %vm1102, %v1060
      %1126 = vst.msk [vmem:[%s221 + $0xb8] sm:$0xff] %vm1102, %v1061
      %1127 = vst.msk [vmem:[%s221 + $0xc0] sm:$0xff] %vm1102, %v1062
      %1128 = vst.msk [vmem:[%s221 + $0xc8] sm:$0xff] %vm1102, %v1063
      %1129 = vst.msk [vmem:[%s221 + $0xd0] sm:$0xff] %vm1102, %v1064
      %1130 = vst.msk [vmem:[%s221 + $0xd8] sm:$0xff] %vm1102, %v1065
      %1131 = vst.msk [vmem:[%s221 + $0xe0] sm:$0xff] %vm1102, %v1066
      %1132 = vst.msk [vmem:[%s221 + $0xe8] sm:$0xff] %vm1102, %v1067
      %1133 = vst.msk [vmem:[%s221 + $0xf0] sm:$0xff] %vm1102, %v1068
      %1134 = vst.msk [vmem:[%s221 + $0xf8] sm:$0xff] %vm1102, %v1069
      %1135 = vst.msk [vmem:[%s221 + $0x100] sm:$0xff] %vm1102, %v1070
      %1136 = vst.msk [vmem:[%s221 + $0x108] sm:$0xff] %vm1102, %v1071
      %1137 = vst.msk [vmem:[%s221 + $0x110] sm:$0xff] %vm1102, %v1072
      %1138 = vst.msk [vmem:[%s221 + $0x118] sm:$0xff] %vm1102, %v1073
      %1139 = vst.msk [vmem:[%s221 + $0x120] sm:$0xff] %vm1102, %v1074
      %1140 = vst.msk [vmem:[%s221 + $0x128] sm:$0xff] %vm1102, %v1075
      %1141 = vst.msk [vmem:[%s221 + $0x130] sm:$0xff] %vm1102, %v1076
      %1142 = vst.msk [vmem:[%s221 + $0x138] sm:$0xff] %vm1102, %v1077
      %1143 = vst.msk [vmem:[%s221 + $0x140] sm:$0xff] %vm1102, %v1078
      %1144 = vst.msk [vmem:[%s221 + $0x148] sm:$0xff] %vm1102, %v1079
      %1145 = vst.msk [vmem:[%s221 + $0x150] sm:$0xff] %vm1102, %v1080
      %1146 = vst.msk [vmem:[%s221 + $0x158] sm:$0xff] %vm1102, %v1081
      %1147 = vst.msk [vmem:[%s221 + $0x160] sm:$0xff] %vm1102, %v1082
      %1148 = vst.msk [vmem:[%s221 + $0x168] sm:$0xff] %vm1102, %v1083
      %1149 = vst.msk [vmem:[%s221 + $0x170] sm:$0xff] %vm1102, %v1084
      %1150 = vst.msk [vmem:[%s221 + $0x178] sm:$0xff] %vm1102, %v1085
      %1151 = vst.msk [vmem:[%s221 + $0x180] sm:$0xff] %vm1102, %v1086
      %1152 = vst.msk [vmem:[%s221 + $0x188] sm:$0xff] %vm1102, %v1087
      %1153 = vst.msk [vmem:[%s221 + $0x190] sm:$0xff] %vm1102, %v1088
      %1154 = vst.msk [vmem:[%s221 + $0x198] sm:$0xff] %vm1102, %v1089
      %1155 = vst.msk [vmem:[%s221 + $0x1a0] sm:$0xff] %vm1102, %v1090
      %1156 = vst.msk [vmem:[%s221 + $0x1a8] sm:$0xff] %vm1102, %v1091
      %1157 = vst.msk [vmem:[%s221 + $0x1b0] sm:$0xff] %vm1102, %v1092
      %1158 = vst.msk [vmem:[%s221 + $0x1b8] sm:$0xff] %vm1102, %v1093
      %1159 = vst.msk [vmem:[%s221 + $0x1c0] sm:$0xff] %vm1102, %v1094
      %1160 = vst.msk [vmem:[%s221 + $0x1c8] sm:$0xff] %vm1102, %v1095
      %1161 = vst.msk [vmem:[%s221 + $0x1d0] sm:$0xff] %vm1102, %v1096
      %1162 = vst.msk [vmem:[%s221 + $0x1d8] sm:$0xff] %vm1102, %v1097
      %1163 = vst.msk [vmem:[%s221 + $0x1e0] sm:$0xff] %vm1102, %v1098
      %1164 = vst.msk [vmem:[%s221 + $0x1e8] sm:$0xff] %vm1102, %v1099
      %1165 = vst.msk [vmem:[%s221 + $0x1f0] sm:$0xff] %vm1102, %v1100
      %1166 = vst.msk [vmem:[%s221 + $0x1f8] sm:$0xff] %vm1102, %v1101
      %s1167 = smul.u32 64, %s15
      %p1168 = scmp.lt.s32.totalorder %s1167, 511
      %s1169 = scalar_select %p1168, %s1167, 511
      %s1170 = smul.addr %s1169, 8
      %s1171 = scalar_lea.vmem %s4, %s1170
      // Predicated region
      $region37: #{bottleneck_forward.5} parent=35 // pred_check
        %p1172 = pneg %p127
      $region38: #{bottleneck_forward.5} parent=35 // pred_check_branch
        %1174 = sbr.rel (%p1172) target = $region40
      $region39: #{bottleneck_forward.5} parent=35 // pred_region
        %s1175 = smul.u32 64, %s15
      $region40: #{bottleneck_forward.5} parent=35 // pred_fallthru
        _
    $region36: #{bottleneck_forward.5} parent=5 // pred_fallthru
      _
    %p1176 = scmp.le.s32.totalorder 2, %s10
    // Predicated region
    $region41: #{bottleneck_forward.5} parent=5 // pred_check
      %p1177 = pneg %p1176
    $region42: #{bottleneck_forward.5} parent=5 // pred_check_branch
      %1179 = sbr.rel (%p1177) target = $region44
    $region43: #{bottleneck_forward.5} parent=5 // pred_region
      %s1180 = ssub.s32 %s10, 2
      // Predicated region
      $region45: #{bottleneck_forward.5} parent=43 // pred_check
        %p1181 = pneg %p133
      $region46: #{bottleneck_forward.5} parent=43 // pred_check_branch
        %1183 = sbr.rel (%p1181) target = $region48
      $region47: #{bottleneck_forward.5} parent=43 // pred_region
        %s1184 = smul.u32 64, %s16
        %p1185 = scmp.lt.s32.totalorder %s1184, 511
        %s1186 = scalar_select %p1185, %s1184, 511
        %s1187 = smul.addr %s1186, 8
        %s1188 = scalar_lea.vmem %s4, %s1187
      $region48: #{bottleneck_forward.5} parent=43 // pred_fallthru
        _
    $region44: #{bottleneck_forward.5} parent=5 // pred_fallthru
      _
  $region6: #{bottleneck_forward.5} parent=0 // loop_footer
    %s14 = sadd.s32 1, %s10
  $region7: #{bottleneck_forward.5} parent=0 // loop_footer_branch
    %9 = sbr.rel target = $region3
  $region8: #{bottleneck_forward.5} parent=0 // loop_exit
    _

// kernel: bottleneck_forward.3
$region0: #{bottleneck_forward.3}
  #allocation0 [shape = 'u32[]', space=smem, size = 0x4, offset = 0x4, fixed_abs, tag = 'smem constant byte address 0x4 - core index']
  #allocation1 [shape = 'u32[144,128]{1,0:T(1,128)}', space=vmem, size = 0x12000, scoped, tag = 'internal scratch']
  #allocation2 [shape = 'f32[2,18,18,4]{3,2,1,0:T(8,128)}', space=vmem, size = 0x6c000, scoped, tag = 'scratch operand']
  %s0 = inlined_call_operand.vmem [shape: bf16[16,16,16,16], index: 0, kind: input, shape index: {}]
  %s1 = inlined_call_operand.vmem [shape: bf16[16,4], index: 1, kind: input, shape index: {}]
  %s2 = inlined_call_operand.vmem [shape: f32[1,4], index: 2, kind: input, shape index: {}]
  %s3 = inlined_call_operand.vmem [shape: bf16[9,4,4], index: 3, kind: input, shape index: {}]
  %s4 = inlined_call_operand.vmem [shape: f32[1,4], index: 4, kind: input, shape index: {}]
  %s5 = inlined_call_operand.vmem [shape: bf16[16,16,16,4], index: 5, kind: output, shape index: {}]
  %s6 = sld [smem:[#allocation0]]
  $region53: #{bottleneck_forward.3} parent=0
    _
  %s8 = ssub.s32 1, %s6
  %s9 = scalar_select 0, %s8, %s6
  loop: start=0, step=1, limit=10
  $region2: #{bottleneck_forward.3} parent=0 // loop_pre_header
    _
  $region3: #{bottleneck_forward.3} parent=0 // loop_header
    %s11 = sphi 0, %s15
    %p12 = scmp.ge.s32.totalorder %s11, 10
    %s21 = sphi 0, %s23
    %s24 = sphi 0, %s21
    %s25 = sphi 0, %s24
    %s41 = sphi 0, %s25
    %s45 = sphi 0, %s45
    %s47 = sphi 0, %s45
    %s48 = sphi 0, %s47
    %s62 = sphi 0, %s48
    %s66 = sphi 0, %s66
    %s68 = sphi 0, %s66
    %s69 = sphi 0, %s68
    %s83 = sphi 0, %s69
    %s87 = sphi 0, %s87
    %s89 = sphi 0, %s87
    %s90 = sphi 0, %s89
    %s104 = sphi 0, %s90
    %s108 = sphi 0, %s108
    %s110 = sphi 0, %s108
    %s111 = sphi 0, %s110
    %s125 = sphi 0, %s111
    %s131 = sphi 0, %s133
    %s134 = sphi 0, %s131
    %s135 = sphi 0, %s134
    %s151 = sphi 0, %s135
  $region4: #{bottleneck_forward.3} parent=0 // loop_header_branch
    %14 = sbr.rel (%p12) target = $region8
  $region5: #{bottleneck_forward.3} parent=0 // loop_body
    %s16 = ssub.s32 %s11, 1
    %s17 = ssub.s32 %s11, 2
    %s18 = sadd.s32 %s11, 1
    %s19 = ssub.s32 %s11, %s18
    %p20 = scmp.eq.s32.totalorder %s19, 0
    %s22 = sadd.s32 %s21, 1
    %s23 = scalar_select %p20, %s21, %s22
    %p26 = pneg %p20
    %p27 = scmp.eq.s32.totalorder %s11, 7
    %p28 = por %p26, %p27
    %p29 = scmp.ne.s32.totalorder %s21, %s24
    %p30 = scmp.eq.s32.totalorder %s11, 0
    %p31 = por %p29, %p30
    %p32 = scmp.ne.s32.totalorder %s21, %s24
    %p33 = scmp.eq.s32.totalorder %s16, 7
    %p34 = por %p32, %p33
    %p35 = scmp.ne.s32.totalorder %s24, %s25
    %p36 = scmp.eq.s32.totalorder %s16, 0
    %p37 = por %p35, %p36
    %p38 = scmp.ne.s32.totalorder %s24, %s25
    %p39 = scmp.eq.s32.totalorder %s17, 7
    %p40 = por %p38, %p39
    %p42 = scmp.ne.s32.totalorder %s25, %s41
    %p43 = scmp.eq.s32.totalorder %s17, 0
    %p44 = por %p42, %p43
    %s46 = sadd.s32 %s45, 1
    %p49 = scmp.eq.s32.totalorder %s11, 7
    %p50 = scmp.ne.s32.totalorder %s45, %s47
    %p51 = scmp.eq.s32.totalorder %s11, 0
    %p52 = por %p50, %p51
    %p53 = scmp.ne.s32.totalorder %s45, %s47
    %p54 = scmp.eq.s32.totalorder %s16, 7
    %p55 = por %p53, %p54
    %p56 = scmp.ne.s32.totalorder %s47, %s48
    %p57 = scmp.eq.s32.totalorder %s16, 0
    %p58 = por %p56, %p57
    %p59 = scmp.ne.s32.totalorder %s47, %s48
    %p60 = scmp.eq.s32.totalorder %s17, 7
    %p61 = por %p59, %p60
    %p63 = scmp.ne.s32.totalorder %s48, %s62
    %p64 = scmp.eq.s32.totalorder %s17, 0
    %p65 = por %p63, %p64
    %s67 = sadd.s32 %s66, 1
    %p70 = scmp.eq.s32.totalorder %s11, 7
    %p71 = scmp.ne.s32.totalorder %s66, %s68
    %p72 = scmp.eq.s32.totalorder %s11, 0
    %p73 = por %p71, %p72
    %p74 = scmp.ne.s32.totalorder %s66, %s68
    %p75 = scmp.eq.s32.totalorder %s16, 7
    %p76 = por %p74, %p75
    %p77 = scmp.ne.s32.totalorder %s68, %s69
    %p78 = scmp.eq.s32.totalorder %s16, 0
    %p79 = por %p77, %p78
    %p80 = scmp.ne.s32.totalorder %s68, %s69
    %p81 = scmp.eq.s32.totalorder %s17, 7
    %p82 = por %p80, %p81
    %p84 = scmp.ne.s32.totalorder %s69, %s83
    %p85 = scmp.eq.s32.totalorder %s17, 0
    %p86 = por %p84, %p85
    %s88 = sadd.s32 %s87, 1
    %p91 = scmp.eq.s32.totalorder %s11, 7
    %p92 = scmp.ne.s32.totalorder %s87, %s89
    %p93 = scmp.eq.s32.totalorder %s11, 0
    %p94 = por %p92, %p93
    %p95 = scmp.ne.s32.totalorder %s87, %s89
    %p96 = scmp.eq.s32.totalorder %s16, 7
    %p97 = por %p95, %p96
    %p98 = scmp.ne.s32.totalorder %s89, %s90
    %p99 = scmp.eq.s32.totalorder %s16, 0
    %p100 = por %p98, %p99
    %p101 = scmp.ne.s32.totalorder %s89, %s90
    %p102 = scmp.eq.s32.totalorder %s17, 7
    %p103 = por %p101, %p102
    %p105 = scmp.ne.s32.totalorder %s90, %s104
    %p106 = scmp.eq.s32.totalorder %s17, 0
    %p107 = por %p105, %p106
    %s109 = sadd.s32 %s108, 1
    %p112 = scmp.eq.s32.totalorder %s11, 7
    %p113 = scmp.ne.s32.totalorder %s108, %s110
    %p114 = scmp.eq.s32.totalorder %s11, 0
    %p115 = por %p113, %p114
    %p116 = scmp.ne.s32.totalorder %s108, %s110
    %p117 = scmp.eq.s32.totalorder %s16, 7
    %p118 = por %p116, %p117
    %p119 = scmp.ne.s32.totalorder %s110, %s111
    %p120 = scmp.eq.s32.totalorder %s16, 0
    %p121 = por %p119, %p120
    %p122 = scmp.ne.s32.totalorder %s110, %s111
    %p123 = scmp.eq.s32.totalorder %s17, 7
    %p124 = por %p122, %p123
    %p126 = scmp.ne.s32.totalorder %s111, %s125
    %p127 = scmp.eq.s32.totalorder %s17, 0
    %p128 = por %p126, %p127
    %s129 = ssub.s32 %s11, %s18
    %p130 = scmp.eq.s32.totalorder %s129, 0
    %s132 = sadd.s32 %s131, 1
    %s133 = scalar_select %p130, %s131, %s132
    %p136 = pneg %p130
    %p137 = scmp.eq.s32.totalorder %s11, 7
    %p138 = por %p136, %p137
    %p139 = scmp.ne.s32.totalorder %s131, %s134
    %p140 = scmp.eq.s32.totalorder %s11, 0
    %p141 = por %p139, %p140
    %p142 = scmp.ne.s32.totalorder %s131, %s134
    %p143 = scmp.eq.s32.totalorder %s16, 7
    %p144 = por %p142, %p143
    %p145 = scmp.ne.s32.totalorder %s134, %s135
    %p146 = scmp.eq.s32.totalorder %s16, 0
    %p147 = por %p145, %p146
    %p148 = scmp.ne.s32.totalorder %s134, %s135
    %p149 = scmp.eq.s32.totalorder %s17, 7
    %p150 = por %p148, %p149
    %p152 = scmp.ne.s32.totalorder %s135, %s151
    %p153 = scmp.eq.s32.totalorder %s17, 0
    %p154 = por %p152, %p153
    %p155 = scmp.le.s32.totalorder 1, %s11
    %p156 = scmp.lt.s32.totalorder %s11, 9
    %p157 = pnand %p155, %p156
    %p158 = pneg %p157
    // Predicated region
    $region9: #{bottleneck_forward.3} parent=5 // pred_check
      _
    $region10: #{bottleneck_forward.3} parent=5 // pred_check_branch
      %160 = sbr.rel (%p157) target = $region12
    $region11: #{bottleneck_forward.3} parent=5 // pred_region
      %s161 = ssub.s32 %s11, 1
      // Predicated region
      $region13: #{bottleneck_forward.3} parent=11 // pred_check
        %p162 = pneg %p58
      $region14: #{bottleneck_forward.3} parent=11 // pred_check_branch
        %164 = sbr.rel (%p162) target = $region16
      $region15: #{bottleneck_forward.3} parent=11 // pred_region
        _
      $region16: #{bottleneck_forward.3} parent=11 // pred_fallthru
        _
      // Predicated region
      $region17: #{bottleneck_forward.3} parent=11 // pred_check
        %p165 = pneg %p79
      $region18: #{bottleneck_forward.3} parent=11 // pred_check_branch
        %167 = sbr.rel (%p165) target = $region20
      $region19: #{bottleneck_forward.3} parent=11 // pred_region
        _
      $region20: #{bottleneck_forward.3} parent=11 // pred_fallthru
        _
      // Predicated region
      $region21: #{bottleneck_forward.3} parent=11 // pred_check
        %p168 = pneg %p100
      $region22: #{bottleneck_forward.3} parent=11 // pred_check_branch
        %170 = sbr.rel (%p168) target = $region24
      $region23: #{bottleneck_forward.3} parent=11 // pred_region
        _
      $region24: #{bottleneck_forward.3} parent=11 // pred_fallthru
        _
      // Predicated region
      $region25: #{bottleneck_forward.3} parent=11 // pred_check
        %p171 = pneg %p121
      $region26: #{bottleneck_forward.3} parent=11 // pred_check_branch
        %173 = sbr.rel (%p171) target = $region28
      $region27: #{bottleneck_forward.3} parent=11 // pred_region
        _
      $region28: #{bottleneck_forward.3} parent=11 // pred_fallthru
        _
    $region12: #{bottleneck_forward.3} parent=5 // pred_fallthru
      _
    %p174 = scmp.lt.s32.totalorder %s11, 8
    // Predicated region
    $region29: #{bottleneck_forward.3} parent=5 // pred_check
      %p175 = pneg %p174
    $region30: #{bottleneck_forward.3} parent=5 // pred_check_branch
      %177 = sbr.rel (%p175) target = $region32
    $region31: #{bottleneck_forward.3} parent=5 // pred_region
      // Predicated region
      $region33: #{bottleneck_forward.3} parent=31 // pred_check
        %p178 = pneg %p31
      $region34: #{bottleneck_forward.3} parent=31 // pred_check_branch
        %180 = sbr.rel (%p178) target = $region36
      $region35: #{bottleneck_forward.3} parent=31 // pred_region
        %s181 = smul.u32 2, %s11
        %p182 = scmp.lt.s32.totalorder %s181, 15
        %s183 = scalar_select %p182, %s181, 15
        %s184 = smul.addr %s183, 32
        %s185 = smul.addr %s184, 4
        %s186 = scalar_lea.vmem %s0, %s185
        %s187 = smul.u32 2, %s11
      $region36: #{bottleneck_forward.3} parent=31 // pred_fallthru
        _
    $region32: #{bottleneck_forward.3} parent=5 // pred_fallthru
      _
    %p188 = scmp.le.s32.totalorder 1, %s11
    %p189 = scmp.lt.s32.totalorder %s11, 9
    %p190 = pnand %p188, %p189
    %p191 = pneg %p190
    // Predicated region
    $region37: #{bottleneck_forward.3} parent=5 // pred_check
      _
    $region38: #{bottleneck_forward.3} parent=5 // pred_check_branch
      %193 = sbr.rel (%p190) target = $region40
    $region39: #{bottleneck_forward.3} parent=5 // pred_region
      %s194 = ssub.s32 %s11, 1
      %s195 = smul.u32 2, %s16
      %p196 = scmp.lt.s32.totalorder %s195, 15
      %s197 = scalar_select %p196, %s195, 15
      %s198 = smul.addr %s197, 32
      %s199 = smul.addr %s198, 4
      %s200 = scalar_lea.vmem %s0, %s199
      %p201 = pneg %p37
      %p202 = pneg %p34
      %p203 = pneg %p58
      %p204 = pneg %p55
      %p205 = pneg %p79
      %p206 = pneg %p76
      %p207 = pneg %p100
      %p208 = pneg %p97
      %p209 = pneg %p121
      %p210 = pneg %p118
      %p211 = pneg %p147
      %p212 = pneg %p144
      %s213 = smul.u32 2, %s16
      %p214 = scmp.lt.s32.totalorder %s213, 15
      %s215 = scalar_select %p214, %s213, 15
      %s216 = smul.addr %s215, 32
      %s217 = smul.addr %s216, 4
      %s218 = scalar_lea.vmem %s5, %s217
      %s219 = smul.u32 2, %s16
      %p220 = scmp.lt.s32.totalorder %s219, 15
      %s221 = scalar_select %p220, %s219, 15
      %s222 = smul.addr %s221, 32
      %s223 = smul.addr %s222, 4
      %s224 = scalar_lea.vmem %s0, %s223
      %s225 = smul.u32 2, %s16
      %s226 = smul.u32 2, %s16
      %p227 = scmp.lt.s32.totalorder %s226, 15
      %s228 = scalar_select %p227, %s226, 15
      %s229 = smul.addr %s228, 32
      %s230 = smul.addr %s229, 4
      %s231 = scalar_lea.vmem %s5, %s230
      %s232 = smul.u32 2, %s16
      %v234 = vld [vmem:[%s224] sm:$0xf]
      %v235 = vld [vmem:[%s224 + $0x4] sm:$0xf]
      %v236 = vld [vmem:[%s224 + $0x8] sm:$0xf]
      %v237 = vld [vmem:[%s224 + $0xc] sm:$0xf]
      %v238 = vld [vmem:[%s224 + $0x10] sm:$0xf]
      %v239 = vld [vmem:[%s224 + $0x14] sm:$0xf]
      %v240 = vld [vmem:[%s224 + $0x18] sm:$0xf]
      %v241 = vld [vmem:[%s224 + $0x1c] sm:$0xf]
      %v242 = vld [vmem:[%s224 + $0x20] sm:$0xf]
      %v243 = vld [vmem:[%s224 + $0x24] sm:$0xf]
      %v244 = vld [vmem:[%s224 + $0x28] sm:$0xf]
      %v245 = vld [vmem:[%s224 + $0x2c] sm:$0xf]
      %v246 = vld [vmem:[%s224 + $0x30] sm:$0xf]
      %v247 = vld [vmem:[%s224 + $0x34] sm:$0xf]
      %v248 = vld [vmem:[%s224 + $0x38] sm:$0xf]
      %v249 = vld [vmem:[%s224 + $0x3c] sm:$0xf]
      %v250 = vld [vmem:[%s224 + $0x40] sm:$0xf]
      %v251 = vld [vmem:[%s224 + $0x44] sm:$0xf]
      %v252 = vld [vmem:[%s224 + $0x48] sm:$0xf]
      %v253 = vld [vmem:[%s224 + $0x4c] sm:$0xf]
      %v254 = vld [vmem:[%s224 + $0x50] sm:$0xf]
      %v255 = vld [vmem:[%s224 + $0x54] sm:$0xf]
      %v256 = vld [vmem:[%s224 + $0x58] sm:$0xf]
      %v257 = vld [vmem:[%s224 + $0x5c] sm:$0xf]
      %v258 = vld [vmem:[%s224 + $0x60] sm:$0xf]
      %v259 = vld [vmem:[%s224 + $0x64] sm:$0xf]
      %v260 = vld [vmem:[%s224 + $0x68] sm:$0xf]
      %v261 = vld [vmem:[%s224 + $0x6c] sm:$0xf]
      %v262 = vld [vmem:[%s224 + $0x70] sm:$0xf]
      %v263 = vld [vmem:[%s224 + $0x74] sm:$0xf]
      %v264 = vld [vmem:[%s224 + $0x78] sm:$0xf]
      %v265 = vld [vmem:[%s224 + $0x7c] sm:$0xf]
      %v266 = vld [vmem:[%s224 + $0x80] sm:$0xf]
      %v267 = vld [vmem:[%s224 + $0x84] sm:$0xf]
      %v268 = vld [vmem:[%s224 + $0x88] sm:$0xf]
      %v269 = vld [vmem:[%s224 + $0x8c] sm:$0xf]
      %v270 = vld [vmem:[%s224 + $0x90] sm:$0xf]
      %v271 = vld [vmem:[%s224 + $0x94] sm:$0xf]
      %v272 = vld [vmem:[%s224 + $0x98] sm:$0xf]
      %v273 = vld [vmem:[%s224 + $0x9c] sm:$0xf]
      %v274 = vld [vmem:[%s224 + $0xa0] sm:$0xf]
      %v275 = vld [vmem:[%s224 + $0xa4] sm:$0xf]
      %v276 = vld [vmem:[%s224 + $0xa8] sm:$0xf]
      %v277 = vld [vmem:[%s224 + $0xac] sm:$0xf]
      %v278 = vld [vmem:[%s224 + $0xb0] sm:$0xf]
      %v279 = vld [vmem:[%s224 + $0xb4] sm:$0xf]
      %v280 = vld [vmem:[%s224 + $0xb8] sm:$0xf]
      %v281 = vld [vmem:[%s224 + $0xbc] sm:$0xf]
      %v282 = vld [vmem:[%s224 + $0xc0] sm:$0xf]
      %v283 = vld [vmem:[%s224 + $0xc4] sm:$0xf]
      %v284 = vld [vmem:[%s224 + $0xc8] sm:$0xf]
      %v285 = vld [vmem:[%s224 + $0xcc] sm:$0xf]
      %v286 = vld [vmem:[%s224 + $0xd0] sm:$0xf]
      %v287 = vld [vmem:[%s224 + $0xd4] sm:$0xf]
      %v288 = vld [vmem:[%s224 + $0xd8] sm:$0xf]
      %v289 = vld [vmem:[%s224 + $0xdc] sm:$0xf]
      %v290 = vld [vmem:[%s224 + $0xe0] sm:$0xf]
      %v291 = vld [vmem:[%s224 + $0xe4] sm:$0xf]
      %v292 = vld [vmem:[%s224 + $0xe8] sm:$0xf]
      %v293 = vld [vmem:[%s224 + $0xec] sm:$0xf]
      %v294 = vld [vmem:[%s224 + $0xf0] sm:$0xf]
      %v295 = vld [vmem:[%s224 + $0xf4] sm:$0xf]
      %v296 = vld [vmem:[%s224 + $0xf8] sm:$0xf]
      %v297 = vld [vmem:[%s224 + $0xfc] sm:$0xf]
      %v298 = vld [vmem:[%s1] sm:$0xf]
      %v299 = vld [vmem:[%s1 + $0x4] sm:$0xf]
      %v300 = vld [vmem:[%s2] sm:$0x1]
      %v302 = vlaneseq
      %v303 = vshrl.u32 %v302, 7
      %v304 = vsub.s32 0, %v303
      %v305 = vrot.slane %v300, %v304
      %v371 = vunpack.c.l.b16 %v234
      %v372 = vunpack.c.l.b16 %v235
      %v373 = vunpack.c.l.b16 %v236
      %v374 = vunpack.c.l.b16 %v237
      %v375 = vunpack.c.l.b16 %v238
      %v376 = vunpack.c.l.b16 %v239
      %v377 = vunpack.c.l.b16 %v240
      %v378 = vunpack.c.l.b16 %v241
      %v379 = vunpack.c.l.b16 %v242
      %v380 = vunpack.c.l.b16 %v243
      %v381 = vunpack.c.l.b16 %v244
      %v382 = vunpack.c.l.b16 %v245
      %v383 = vunpack.c.l.b16 %v246
      %v384 = vunpack.c.l.b16 %v247
      %v385 = vunpack.c.l.b16 %v248
      %v386 = vunpack.c.l.b16 %v249
      %v387 = vunpack.c.l.b16 %v250
      %v388 = vunpack.c.l.b16 %v251
      %v389 = vunpack.c.l.b16 %v252
      %v390 = vunpack.c.l.b16 %v253
      %v391 = vunpack.c.l.b16 %v254
      %v392 = vunpack.c.l.b16 %v255
      %v393 = vunpack.c.l.b16 %v256
      %v394 = vunpack.c.l.b16 %v257
      %v395 = vunpack.c.l.b16 %v258
      %v396 = vunpack.c.l.b16 %v259
      %v397 = vunpack.c.l.b16 %v260
      %v398 = vunpack.c.l.b16 %v261
      %v399 = vunpack.c.l.b16 %v262
      %v400 = vunpack.c.l.b16 %v263
      %v401 = vunpack.c.l.b16 %v264
      %v402 = vunpack.c.l.b16 %v265
      %v403 = vunpack.c.l.b16 %v266
      %v404 = vunpack.c.l.b16 %v267
      %v405 = vunpack.c.l.b16 %v268
      %v406 = vunpack.c.l.b16 %v269
      %v407 = vunpack.c.l.b16 %v270
      %v408 = vunpack.c.l.b16 %v271
      %v409 = vunpack.c.l.b16 %v272
      %v410 = vunpack.c.l.b16 %v273
      %v411 = vunpack.c.l.b16 %v274
      %v412 = vunpack.c.l.b16 %v275
      %v413 = vunpack.c.l.b16 %v276
      %v414 = vunpack.c.l.b16 %v277
      %v415 = vunpack.c.l.b16 %v278
      %v416 = vunpack.c.l.b16 %v279
      %v417 = vunpack.c.l.b16 %v280
      %v418 = vunpack.c.l.b16 %v281
      %v419 = vunpack.c.l.b16 %v282
      %v420 = vunpack.c.l.b16 %v283
      %v421 = vunpack.c.l.b16 %v284
      %v422 = vunpack.c.l.b16 %v285
      %v423 = vunpack.c.l.b16 %v286
      %v424 = vunpack.c.l.b16 %v287
      %v425 = vunpack.c.l.b16 %v288
      %v426 = vunpack.c.l.b16 %v289
      %v427 = vunpack.c.l.b16 %v290
      %v428 = vunpack.c.l.b16 %v291
      %v429 = vunpack.c.l.b16 %v292
      %v430 = vunpack.c.l.b16 %v293
      %v431 = vunpack.c.l.b16 %v294
      %v432 = vunpack.c.l.b16 %v295
      %v433 = vunpack.c.l.b16 %v296
      %v434 = vunpack.c.l.b16 %v297
      %v435 = vpack.c.b16 %v372, %v371
      %v436 = vpack.c.b16 %v374, %v373
      %v437 = vpack.c.b16 %v376, %v375
      %v438 = vpack.c.b16 %v378, %v377
      %v439 = vpack.c.b16 %v380, %v379
      %v440 = vpack.c.b16 %v382, %v381
      %v441 = vpack.c.b16 %v384, %v383
      %v442 = vpack.c.b16 %v386, %v385
      %v443 = vpack.c.b16 %v388, %v387
      %v444 = vpack.c.b16 %v390, %v389
      %v445 = vpack.c.b16 %v392, %v391
      %v446 = vpack.c.b16 %v394, %v393
      %v447 = vpack.c.b16 %v396, %v395
      %v448 = vpack.c.b16 %v398, %v397
      %v449 = vpack.c.b16 %v400, %v399
      %v450 = vpack.c.b16 %v402, %v401
      %v451 = vpack.c.b16 %v404, %v403
      %v452 = vpack.c.b16 %v406, %v405
      %v453 = vpack.c.b16 %v408, %v407
      %v454 = vpack.c.b16 %v410, %v409
      %v455 = vpack.c.b16 %v412, %v411
      %v456 = vpack.c.b16 %v414, %v413
      %v457 = vpack.c.b16 %v416, %v415
      %v458 = vpack.c.b16 %v418, %v417
      %v459 = vpack.c.b16 %v420, %v419
      %v460 = vpack.c.b16 %v422, %v421
      %v461 = vpack.c.b16 %v424, %v423
      %v462 = vpack.c.b16 %v426, %v425
      %v463 = vpack.c.b16 %v428, %v427
      %v464 = vpack.c.b16 %v430, %v429
      %v465 = vpack.c.b16 %v432, %v431
      %v466 = vpack.c.b16 %v434, %v433
      %v469 = vunpack.c.l.b16 %v298
      %v470 = vunpack.c.l.b16 %v299
      %v471 = vpack.c.b16 %v470, %v469
      %vm473 = vcmask 130048
      %v475 = vsel %vm473, %v435, 0
      %v478 = vsel %vm473, %v436, 0
      %v481 = vsel %vm473, %v437, 0
      %v484 = vsel %vm473, %v438, 0
      %v487 = vsel %vm473, %v439, 0
      %v490 = vsel %vm473, %v440, 0
      %v493 = vsel %vm473, %v441, 0
      %v496 = vsel %vm473, %v442, 0
      %v499 = vsel %vm473, %v443, 0
      %v502 = vsel %vm473, %v444, 0
      %v505 = vsel %vm473, %v445, 0
      %v508 = vsel %vm473, %v446, 0
      %v511 = vsel %vm473, %v447, 0
      %v514 = vsel %vm473, %v448, 0
      %v517 = vsel %vm473, %v449, 0
      %v520 = vsel %vm473, %v450, 0
      %v523 = vsel %vm473, %v451, 0
      %v526 = vsel %vm473, %v452, 0
      %v529 = vsel %vm473, %v453, 0
      %v532 = vsel %vm473, %v454, 0
      %v535 = vsel %vm473, %v455, 0
      %v538 = vsel %vm473, %v456, 0
      %v541 = vsel %vm473, %v457, 0
      %v544 = vsel %vm473, %v458, 0
      %v547 = vsel %vm473, %v459, 0
      %v550 = vsel %vm473, %v460, 0
      %v553 = vsel %vm473, %v461, 0
      %v556 = vsel %vm473, %v462, 0
      %v559 = vsel %vm473, %v463, 0
      %v562 = vsel %vm473, %v464, 0
      %v565 = vsel %vm473, %v465, 0
      %v568 = vsel %vm473, %v466, 0
      %570 = vmatprep.subr.bf16.mxu0 0
      %571 = vmatpush1.bf16.msra.mxu0 0
      %572 = vmatprep.subr.bf16.mxu0 0
      %573 = vmatpush1.bf16.msra.mxu0 0
      %574 = vmatprep.subr.bf16.mxu0 0
      %575 = vmatpush1.bf16.msra.mxu0 0
      %576 = vmatprep.subr.bf16.mxu0 0
      %577 = vmatpush1.bf16.msra.mxu0 0
      %578 = vmatprep.subr.bf16.mxu0 0
      %579 = vmatpush1.bf16.msra.mxu0 0
      %580 = vmatprep.subr.bf16.mxu0 0
      %581 = vmatpush1.bf16.msra.mxu0 0
      %582 = vmatprep.subr.bf16.mxu0 0
      %583 = vmatpush1.bf16.msra.mxu0 0
      %584 = vmatprep.subr.bf16.mxu0 0
      %585 = vmatpush1.bf16.msra.mxu0 %v471
      %586 = vmatprep.subr.bf16.mxu0 0
      %587 = vmatpush2.bf16.msra.mxu0 0
      %588 = vmatprep.subr.bf16.mxu0 0
      %589 = vmatpush2.bf16.msra.mxu0 0
      %590 = vmatprep.subr.bf16.mxu0 0
      %591 = vmatpush2.bf16.msra.mxu0 0
      %592 = vmatprep.subr.bf16.mxu0 0
      %593 = vmatpush2.bf16.msra.mxu0 0
      %594 = vmatprep.subr.bf16.mxu0 0
      %595 = vmatpush2.bf16.msra.mxu0 0
      %596 = vmatprep.subr.bf16.mxu0 0
      %597 = vmatpush2.bf16.msra.mxu0 0
      %598 = vmatprep.subr.bf16.mxu0 0
      %599 = vmatpush2.bf16.msra.mxu0 0
      %600 = vmatprep.subr.bf16.mxu0 0
      %601 = vmatpush2.bf16.msra.mxu0 0
      %602 = vmatprep.mubr.bf16.mxu0 0
      %603 = vmatmul.mubr.bf16.gmra.mxu0 %v475
      %v604 = vpop.f32.mrf.mxu0
      %v605 = vadd.f32 %v305, %v604
      %v606 = vpop.f32.mrf.mxu0
      %v607 = vpop.f32.mrf.mxu0
      %v608 = vadd.f32 %v305, %v607
      %v609 = vpop.f32.mrf.mxu0
      %610 = vmatprep.mubr.bf16.mxu0 0
      %611 = vmatmul.mubr.bf16.gmra.mxu0 %v478
      %v612 = vpop.f32.mrf.mxu0
      %v613 = vadd.f32 %v305, %v612
      %v614 = vpop.f32.mrf.mxu0
      %v615 = vpop.f32.mrf.mxu0
      %v616 = vadd.f32 %v305, %v615
      %v617 = vpop.f32.mrf.mxu0
      %618 = vmatprep.mubr.bf16.mxu0 0
      %619 = vmatmul.mubr.bf16.gmra.mxu0 %v481
      %v620 = vpop.f32.mrf.mxu0
      %v621 = vadd.f32 %v305, %v620
      %v622 = vpop.f32.mrf.mxu0
      %v623 = vpop.f32.mrf.mxu0
      %v624 = vadd.f32 %v305, %v623
      %v625 = vpop.f32.mrf.mxu0
      %626 = vmatprep.mubr.bf16.mxu0 0
      %627 = vmatmul.mubr.bf16.gmra.mxu0 %v484
      %v628 = vpop.f32.mrf.mxu0
      %v629 = vadd.f32 %v305, %v628
      %v630 = vpop.f32.mrf.mxu0
      %v631 = vpop.f32.mrf.mxu0
      %v632 = vadd.f32 %v305, %v631
      %v633 = vpop.f32.mrf.mxu0
      %634 = vmatprep.mubr.bf16.mxu0 0
      %635 = vmatmul.mubr.bf16.gmra.mxu0 %v487
      %v636 = vpop.f32.mrf.mxu0
      %v637 = vadd.f32 %v305, %v636
      %v638 = vpop.f32.mrf.mxu0
      %v639 = vpop.f32.mrf.mxu0
      %v640 = vadd.f32 %v305, %v639
      %v641 = vpop.f32.mrf.mxu0
      %642 = vmatprep.mubr.bf16.mxu0 0
      %643 = vmatmul.mubr.bf16.gmra.mxu0 %v490
      %v644 = vpop.f32.mrf.mxu0
      %v645 = vadd.f32 %v305, %v644
      %v646 = vpop.f32.mrf.mxu0
      %v647 = vpop.f32.mrf.mxu0
      %v648 = vadd.f32 %v305, %v647
      %v649 = vpop.f32.mrf.mxu0
      %650 = vmatprep.mubr.bf16.mxu0 0
      %651 = vmatmul.mubr.bf16.gmra.mxu0 %v493
      %v652 = vpop.f32.mrf.mxu0
      %v653 = vadd.f32 %v305, %v652
      %v654 = vpop.f32.mrf.mxu0
      %v655 = vpop.f32.mrf.mxu0
      %v656 = vadd.f32 %v305, %v655
      %v657 = vpop.f32.mrf.mxu0
      %658 = vmatprep.mubr.bf16.mxu0 0
      %659 = vmatmul.mubr.bf16.gmra.mxu0 %v496
      %v660 = vpop.f32.mrf.mxu0
      %v661 = vadd.f32 %v305, %v660
      %v662 = vpop.f32.mrf.mxu0
      %v663 = vpop.f32.mrf.mxu0
      %v664 = vadd.f32 %v305, %v663
      %v665 = vpop.f32.mrf.mxu0
      %666 = vmatprep.mubr.bf16.mxu0 0
      %667 = vmatmul.mubr.bf16.gmra.mxu0 %v499
      %v668 = vpop.f32.mrf.mxu0
      %v669 = vadd.f32 %v305, %v668
      %v670 = vpop.f32.mrf.mxu0
      %v671 = vpop.f32.mrf.mxu0
      %v672 = vadd.f32 %v305, %v671
      %v673 = vpop.f32.mrf.mxu0
      %674 = vmatprep.mubr.bf16.mxu0 0
      %675 = vmatmul.mubr.bf16.gmra.mxu0 %v502
      %v676 = vpop.f32.mrf.mxu0
      %v677 = vadd.f32 %v305, %v676
      %v678 = vpop.f32.mrf.mxu0
      %v679 = vpop.f32.mrf.mxu0
      %v680 = vadd.f32 %v305, %v679
      %v681 = vpop.f32.mrf.mxu0
      %682 = vmatprep.mubr.bf16.mxu0 0
      %683 = vmatmul.mubr.bf16.gmra.mxu0 %v505
      %v684 = vpop.f32.mrf.mxu0
      %v685 = vadd.f32 %v305, %v684
      %v686 = vpop.f32.mrf.mxu0
      %v687 = vpop.f32.mrf.mxu0
      %v688 = vadd.f32 %v305, %v687
      %v689 = vpop.f32.mrf.mxu0
      %690 = vmatprep.mubr.bf16.mxu0 0
      %691 = vmatmul.mubr.bf16.gmra.mxu0 %v508
      %v692 = vpop.f32.mrf.mxu0
      %v693 = vadd.f32 %v305, %v692
      %v694 = vpop.f32.mrf.mxu0
      %v695 = vpop.f32.mrf.mxu0
      %v696 = vadd.f32 %v305, %v695
      %v697 = vpop.f32.mrf.mxu0
      %698 = vmatprep.mubr.bf16.mxu0 0
      %699 = vmatmul.mubr.bf16.gmra.mxu0 %v511
      %v700 = vpop.f32.mrf.mxu0
      %v701 = vadd.f32 %v305, %v700
      %v702 = vpop.f32.mrf.mxu0
      %v703 = vpop.f32.mrf.mxu0
      %v704 = vadd.f32 %v305, %v703
      %v705 = vpop.f32.mrf.mxu0
      %706 = vmatprep.mubr.bf16.mxu0 0
      %707 = vmatmul.mubr.bf16.gmra.mxu0 %v514
      %v708 = vpop.f32.mrf.mxu0
      %v709 = vadd.f32 %v305, %v708
      %v710 = vpop.f32.mrf.mxu0
      %v711 = vpop.f32.mrf.mxu0
      %v712 = vadd.f32 %v305, %v711
      %v713 = vpop.f32.mrf.mxu0
      %714 = vmatprep.mubr.bf16.mxu0 0
      %715 = vmatmul.mubr.bf16.gmra.mxu0 %v517
      %v716 = vpop.f32.mrf.mxu0
      %v717 = vadd.f32 %v305, %v716
      %v718 = vpop.f32.mrf.mxu0
      %v719 = vpop.f32.mrf.mxu0
      %v720 = vadd.f32 %v305, %v719
      %v721 = vpop.f32.mrf.mxu0
      %722 = vmatprep.mubr.bf16.mxu0 0
      %723 = vmatmul.mubr.bf16.gmra.mxu0 %v520
      %v724 = vpop.f32.mrf.mxu0
      %v725 = vadd.f32 %v305, %v724
      %v726 = vpop.f32.mrf.mxu0
      %v727 = vpop.f32.mrf.mxu0
      %v728 = vadd.f32 %v305, %v727
      %v729 = vpop.f32.mrf.mxu0
      %730 = vmatprep.mubr.bf16.mxu0 0
      %731 = vmatmul.mubr.bf16.gmra.mxu0 %v523
      %v732 = vpop.f32.mrf.mxu0
      %v733 = vadd.f32 %v305, %v732
      %v734 = vpop.f32.mrf.mxu0
      %v735 = vpop.f32.mrf.mxu0
      %v736 = vadd.f32 %v305, %v735
      %v737 = vpop.f32.mrf.mxu0
      %738 = vmatprep.mubr.bf16.mxu0 0
      %739 = vmatmul.mubr.bf16.gmra.mxu0 %v526
      %v740 = vpop.f32.mrf.mxu0
      %v741 = vadd.f32 %v305, %v740
      %v742 = vpop.f32.mrf.mxu0
      %v743 = vpop.f32.mrf.mxu0
      %v744 = vadd.f32 %v305, %v743
      %v745 = vpop.f32.mrf.mxu0
      %746 = vmatprep.mubr.bf16.mxu0 0
      %747 = vmatmul.mubr.bf16.gmra.mxu0 %v529
      %v748 = vpop.f32.mrf.mxu0
      %v749 = vadd.f32 %v305, %v748
      %v750 = vpop.f32.mrf.mxu0
      %v751 = vpop.f32.mrf.mxu0
      %v752 = vadd.f32 %v305, %v751
      %v753 = vpop.f32.mrf.mxu0
      %754 = vmatprep.mubr.bf16.mxu0 0
      %755 = vmatmul.mubr.bf16.gmra.mxu0 %v532
      %v756 = vpop.f32.mrf.mxu0
      %v757 = vadd.f32 %v305, %v756
      %v758 = vpop.f32.mrf.mxu0
      %v759 = vpop.f32.mrf.mxu0
      %v760 = vadd.f32 %v305, %v759
      %v761 = vpop.f32.mrf.mxu0
      %762 = vmatprep.mubr.bf16.mxu0 0
      %763 = vmatmul.mubr.bf16.gmra.mxu0 %v535
      %v764 = vpop.f32.mrf.mxu0
      %v765 = vadd.f32 %v305, %v764
      %v766 = vpop.f32.mrf.mxu0
      %v767 = vpop.f32.mrf.mxu0
      %v768 = vadd.f32 %v305, %v767
      %v769 = vpop.f32.mrf.mxu0
      %770 = vmatprep.mubr.bf16.mxu0 0
      %771 = vmatmul.mubr.bf16.gmra.mxu0 %v538
      %v772 = vpop.f32.mrf.mxu0
      %v773 = vadd.f32 %v305, %v772
      %v774 = vpop.f32.mrf.mxu0
      %v775 = vpop.f32.mrf.mxu0
      %v776 = vadd.f32 %v305, %v775
      %v777 = vpop.f32.mrf.mxu0
      %778 = vmatprep.mubr.bf16.mxu0 0
      %779 = vmatmul.mubr.bf16.gmra.mxu0 %v541
      %v780 = vpop.f32.mrf.mxu0
      %v781 = vadd.f32 %v305, %v780
      %v782 = vpop.f32.mrf.mxu0
      %v783 = vpop.f32.mrf.mxu0
      %v784 = vadd.f32 %v305, %v783
      %v785 = vpop.f32.mrf.mxu0
      %786 = vmatprep.mubr.bf16.mxu0 0
      %787 = vmatmul.mubr.bf16.gmra.mxu0 %v544
      %v788 = vpop.f32.mrf.mxu0
      %v789 = vadd.f32 %v305, %v788
      %v790 = vpop.f32.mrf.mxu0
      %v791 = vpop.f32.mrf.mxu0
      %v792 = vadd.f32 %v305, %v791
      %v793 = vpop.f32.mrf.mxu0
      %794 = vmatprep.mubr.bf16.mxu0 0
      %795 = vmatmul.mubr.bf16.gmra.mxu0 %v547
      %v796 = vpop.f32.mrf.mxu0
      %v797 = vadd.f32 %v305, %v796
      %v798 = vpop.f32.mrf.mxu0
      %v799 = vpop.f32.mrf.mxu0
      %v800 = vadd.f32 %v305, %v799
      %v801 = vpop.f32.mrf.mxu0
      %802 = vmatprep.mubr.bf16.mxu0 0
      %803 = vmatmul.mubr.bf16.gmra.mxu0 %v550
      %v804 = vpop.f32.mrf.mxu0
      %v805 = vadd.f32 %v305, %v804
      %v806 = vpop.f32.mrf.mxu0
      %v807 = vpop.f32.mrf.mxu0
      %v808 = vadd.f32 %v305, %v807
      %v809 = vpop.f32.mrf.mxu0
      %810 = vmatprep.mubr.bf16.mxu0 0
      %811 = vmatmul.mubr.bf16.gmra.mxu0 %v553
      %v812 = vpop.f32.mrf.mxu0
      %v813 = vadd.f32 %v305, %v812
      %v814 = vpop.f32.mrf.mxu0
      %v815 = vpop.f32.mrf.mxu0
      %v816 = vadd.f32 %v305, %v815
      %v817 = vpop.f32.mrf.mxu0
      %818 = vmatprep.mubr.bf16.mxu0 0
      %819 = vmatmul.mubr.bf16.gmra.mxu0 %v556
      %v820 = vpop.f32.mrf.mxu0
      %v821 = vadd.f32 %v305, %v820
      %v822 = vpop.f32.mrf.mxu0
      %v823 = vpop.f32.mrf.mxu0
      %v824 = vadd.f32 %v305, %v823
      %v825 = vpop.f32.mrf.mxu0
      %826 = vmatprep.mubr.bf16.mxu0 0
      %827 = vmatmul.mubr.bf16.gmra.mxu0 %v559
      %v828 = vpop.f32.mrf.mxu0
      %v829 = vadd.f32 %v305, %v828
      %v830 = vpop.f32.mrf.mxu0
      %v831 = vpop.f32.mrf.mxu0
      %v832 = vadd.f32 %v305, %v831
      %v833 = vpop.f32.mrf.mxu0
      %834 = vmatprep.mubr.bf16.mxu0 0
      %835 = vmatmul.mubr.bf16.gmra.mxu0 %v562
      %v836 = vpop.f32.mrf.mxu0
      %v837 = vadd.f32 %v305, %v836
      %v838 = vpop.f32.mrf.mxu0
      %v839 = vpop.f32.mrf.mxu0
      %v840 = vadd.f32 %v305, %v839
      %v841 = vpop.f32.mrf.mxu0
      %842 = vmatprep.mubr.bf16.mxu0 0
      %843 = vmatmul.mubr.bf16.gmra.mxu0 %v565
      %v844 = vpop.f32.mrf.mxu0
      %v845 = vadd.f32 %v305, %v844
      %v846 = vpop.f32.mrf.mxu0
      %v847 = vpop.f32.mrf.mxu0
      %v848 = vadd.f32 %v305, %v847
      %v849 = vpop.f32.mrf.mxu0
      %850 = vmatprep.mubr.bf16.mxu0 0
      %851 = vmatmul.mubr.bf16.gmra.mxu0 %v568
      %v852 = vpop.f32.mrf.mxu0
      %v853 = vadd.f32 %v305, %v852
      %v854 = vpop.f32.mrf.mxu0
      %v855 = vpop.f32.mrf.mxu0
      %v856 = vadd.f32 %v305, %v855
      %v857 = vpop.f32.mrf.mxu0
      %858 = vdwg.mxu0
      %v859 = vmax.f32 %v605, 0.0
      %v860 = vmax.f32 %v608, 0.0
      %v861 = vmax.f32 %v613, 0.0
      %v862 = vmax.f32 %v616, 0.0
      %v863 = vmax.f32 %v621, 0.0
      %v864 = vmax.f32 %v624, 0.0
      %v865 = vmax.f32 %v629, 0.0
      %v866 = vmax.f32 %v632, 0.0
      %v867 = vmax.f32 %v637, 0.0
      %v868 = vmax.f32 %v640, 0.0
      %v869 = vmax.f32 %v645, 0.0
      %v870 = vmax.f32 %v648, 0.0
      %v871 = vmax.f32 %v653, 0.0
      %v872 = vmax.f32 %v656, 0.0
      %v873 = vmax.f32 %v661, 0.0
      %v874 = vmax.f32 %v664, 0.0
      %v875 = vmax.f32 %v669, 0.0
      %v876 = vmax.f32 %v672, 0.0
      %v877 = vmax.f32 %v677, 0.0
      %v878 = vmax.f32 %v680, 0.0
      %v879 = vmax.f32 %v685, 0.0
      %v880 = vmax.f32 %v688, 0.0
      %v881 = vmax.f32 %v693, 0.0
      %v882 = vmax.f32 %v696, 0.0
      %v883 = vmax.f32 %v701, 0.0
      %v884 = vmax.f32 %v704, 0.0
      %v885 = vmax.f32 %v709, 0.0
      %v886 = vmax.f32 %v712, 0.0
      %v887 = vmax.f32 %v717, 0.0
      %v888 = vmax.f32 %v720, 0.0
      %v889 = vmax.f32 %v725, 0.0
      %v890 = vmax.f32 %v728, 0.0
      %v891 = vmax.f32 %v733, 0.0
      %v892 = vmax.f32 %v736, 0.0
      %v893 = vmax.f32 %v741, 0.0
      %v894 = vmax.f32 %v744, 0.0
      %v895 = vmax.f32 %v749, 0.0
      %v896 = vmax.f32 %v752, 0.0
      %v897 = vmax.f32 %v757, 0.0
      %v898 = vmax.f32 %v760, 0.0
      %v899 = vmax.f32 %v765, 0.0
      %v900 = vmax.f32 %v768, 0.0
      %v901 = vmax.f32 %v773, 0.0
      %v902 = vmax.f32 %v776, 0.0
      %v903 = vmax.f32 %v781, 0.0
      %v904 = vmax.f32 %v784, 0.0
      %v905 = vmax.f32 %v789, 0.0
      %v906 = vmax.f32 %v792, 0.0
      %v907 = vmax.f32 %v797, 0.0
      %v908 = vmax.f32 %v800, 0.0
      %v909 = vmax.f32 %v805, 0.0
      %v910 = vmax.f32 %v808, 0.0
      %v911 = vmax.f32 %v813, 0.0
      %v912 = vmax.f32 %v816, 0.0
      %v913 = vmax.f32 %v821, 0.0
      %v914 = vmax.f32 %v824, 0.0
      %v915 = vmax.f32 %v829, 0.0
      %v916 = vmax.f32 %v832, 0.0
      %v917 = vmax.f32 %v837, 0.0
      %v918 = vmax.f32 %v840, 0.0
      %v919 = vmax.f32 %v845, 0.0
      %v920 = vmax.f32 %v848, 0.0
      %v921 = vmax.f32 %v853, 0.0
      %v922 = vmax.f32 %v856, 0.0
      %vm923 = vcmask 31744
      %924 = vst.msk [vmem:[#allocation2] sm:$0xff] %vm923, 0.0
      %925 = vst.msk [vmem:[#allocation2 + $0x8] sm:$0xff] %vm923, 0.0
      %vm926 = vcmask 25600
      %927 = vst.msk [vmem:[#allocation2 + $0x10] sm:$0x3] %vm926, 0.0
      %928 = vst.msk [vmem:[#allocation2 + $0x18] sm:$0xff] %vm923, 0.0
      %929 = vst.msk [vmem:[#allocation2 + $0x20] sm:$0xff] %vm923, 0.0
      %930 = vst.msk [vmem:[#allocation2 + $0x28] sm:$0x3] %vm926, 0.0
      %931 = vst.msk [vmem:[#allocation2 + $0x30] sm:$0xff] %vm923, 0.0
      %932 = vst.msk [vmem:[#allocation2 + $0x38] sm:$0xff] %vm923, 0.0
      %933 = vst.msk [vmem:[#allocation2 + $0x40] sm:$0x3] %vm926, 0.0
      %934 = vst.msk [vmem:[#allocation2 + $0x48] sm:$0xff] %vm923, 0.0
      %935 = vst.msk [vmem:[#allocation2 + $0x50] sm:$0xff] %vm923, 0.0
      %936 = vst.msk [vmem:[#allocation2 + $0x58] sm:$0x3] %vm926, 0.0
      %937 = vst.msk [vmem:[#allocation2 + $0x60] sm:$0xff] %vm923, 0.0
      %938 = vst.msk [vmem:[#allocation2 + $0x68] sm:$0xff] %vm923, 0.0
      %939 = vst.msk [vmem:[#allocation2 + $0x70] sm:$0x3] %vm926, 0.0
      %940 = vst.msk [vmem:[#allocation2 + $0x78] sm:$0xff] %vm923, 0.0
      %941 = vst.msk [vmem:[#allocation2 + $0x80] sm:$0xff] %vm923, 0.0
      %942 = vst.msk [vmem:[#allocation2 + $0x88] sm:$0x3] %vm926, 0.0
      %943 = vst.msk [vmem:[#allocation2 + $0x90] sm:$0xff] %vm923, 0.0
      %944 = vst.msk [vmem:[#allocation2 + $0x98] sm:$0xff] %vm923, 0.0
      %945 = vst.msk [vmem:[#allocation2 + $0xa0] sm:$0x3] %vm926, 0.0
      %946 = vst.msk [vmem:[#allocation2 + $0xa8] sm:$0xff] %vm923, 0.0
      %947 = vst.msk [vmem:[#allocation2 + $0xb0] sm:$0xff] %vm923, 0.0
      %948 = vst.msk [vmem:[#allocation2 + $0xb8] sm:$0x3] %vm926, 0.0
      %949 = vst.msk [vmem:[#allocation2 + $0xc0] sm:$0xff] %vm923, 0.0
      %950 = vst.msk [vmem:[#allocation2 + $0xc8] sm:$0xff] %vm923, 0.0
      %951 = vst.msk [vmem:[#allocation2 + $0xd0] sm:$0x3] %vm926, 0.0
      %952 = vst.msk [vmem:[#allocation2 + $0xd8] sm:$0xff] %vm923, 0.0
      %953 = vst.msk [vmem:[#allocation2 + $0xe0] sm:$0xff] %vm923, 0.0
      %954 = vst.msk [vmem:[#allocation2 + $0xe8] sm:$0x3] %vm926, 0.0
      %955 = vst.msk [vmem:[#allocation2 + $0xf0] sm:$0xff] %vm923, 0.0
      %956 = vst.msk [vmem:[#allocation2 + $0xf8] sm:$0xff] %vm923, 0.0
      %957 = vst.msk [vmem:[#allocation2 + $0x100] sm:$0x3] %vm926, 0.0
      %958 = vst.msk [vmem:[#allocation2 + $0x108] sm:$0xff] %vm923, 0.0
      %959 = vst.msk [vmem:[#allocation2 + $0x110] sm:$0xff] %vm923, 0.0
      %960 = vst.msk [vmem:[#allocation2 + $0x118] sm:$0x3] %vm926, 0.0
      %961 = vst.msk [vmem:[#allocation2 + $0x120] sm:$0xff] %vm923, 0.0
      %962 = vst.msk [vmem:[#allocation2 + $0x128] sm:$0xff] %vm923, 0.0
      %963 = vst.msk [vmem:[#allocation2 + $0x130] sm:$0x3] %vm926, 0.0
      %964 = vst.msk [vmem:[#allocation2 + $0x138] sm:$0xff] %vm923, 0.0
      %965 = vst.msk [vmem:[#allocation2 + $0x140] sm:$0xff] %vm923, 0.0
      %966 = vst.msk [vmem:[#allocation2 + $0x148] sm:$0x3] %vm926, 0.0
      %967 = vst.msk [vmem:[#allocation2 + $0x150] sm:$0xff] %vm923, 0.0
      %968 = vst.msk [vmem:[#allocation2 + $0x158] sm:$0xff] %vm923, 0.0
      %969 = vst.msk [vmem:[#allocation2 + $0x160] sm:$0x3] %vm926, 0.0
      %970 = vst.msk [vmem:[#allocation2 + $0x168] sm:$0xff] %vm923, 0.0
      %971 = vst.msk [vmem:[#allocation2 + $0x170] sm:$0xff] %vm923, 0.0
      %972 = vst.msk [vmem:[#allocation2 + $0x178] sm:$0x3] %vm926, 0.0
      %973 = vst.msk [vmem:[#allocation2 + $0x180] sm:$0xff] %vm923, 0.0
      %974 = vst.msk [vmem:[#allocation2 + $0x188] sm:$0xff] %vm923, 0.0
      %975 = vst.msk [vmem:[#allocation2 + $0x190] sm:$0x3] %vm926, 0.0
      %976 = vst.msk [vmem:[#allocation2 + $0x198] sm:$0xff] %vm923, 0.0
      %977 = vst.msk [vmem:[#allocation2 + $0x1a0] sm:$0xff] %vm923, 0.0
      %978 = vst.msk [vmem:[#allocation2 + $0x1a8] sm:$0x3] %vm926, 0.0
      %979 = vst.msk [vmem:[#allocation2 + $0x1b0] sm:$0xff] %vm923, 0.0
      %980 = vst.msk [vmem:[#allocation2 + $0x1b8] sm:$0xff] %vm923, 0.0
      %981 = vst.msk [vmem:[#allocation2 + $0x1c0] sm:$0x3] %vm926, 0.0
      %982 = vst.msk [vmem:[#allocation2 + $0x1c8] sm:$0xff] %vm923, 0.0
      %983 = vst.msk [vmem:[#allocation2 + $0x1d0] sm:$0xff] %vm923, 0.0
      %984 = vst.msk [vmem:[#allocation2 + $0x1d8] sm:$0x3] %vm926, 0.0
      %985 = vst.msk [vmem:[#allocation2 + $0x1e0] sm:$0xff] %vm923, 0.0
      %986 = vst.msk [vmem:[#allocation2 + $0x1e8] sm:$0xff] %vm923, 0.0
      %987 = vst.msk [vmem:[#allocation2 + $0x1f0] sm:$0x3] %vm926, 0.0
      %988 = vst.msk [vmem:[#allocation2 + $0x1f8] sm:$0xff] %vm923, 0.0
      %989 = vst.msk [vmem:[#allocation2 + $0x200] sm:$0xff] %vm923, 0.0
      %990 = vst.msk [vmem:[#allocation2 + $0x208] sm:$0x3] %vm926, 0.0
      %991 = vst.msk [vmem:[#allocation2 + $0x210] sm:$0xff] %vm923, 0.0
      %992 = vst.msk [vmem:[#allocation2 + $0x218] sm:$0xff] %vm923, 0.0
      %993 = vst.msk [vmem:[#allocation2 + $0x220] sm:$0x3] %vm926, 0.0
      %994 = vst.msk [vmem:[#allocation2 + $0x228] sm:$0xff] %vm923, 0.0
      %995 = vst.msk [vmem:[#allocation2 + $0x230] sm:$0xff] %vm923, 0.0
      %996 = vst.msk [vmem:[#allocation2 + $0x238] sm:$0x3] %vm926, 0.0
      %997 = vst.msk [vmem:[#allocation2 + $0x240] sm:$0xff] %vm923, 0.0
      %998 = vst.msk [vmem:[#allocation2 + $0x248] sm:$0xff] %vm923, 0.0
      %999 = vst.msk [vmem:[#allocation2 + $0x250] sm:$0x3] %vm926, 0.0
      %1000 = vst.msk [vmem:[#allocation2 + $0x258] sm:$0xff] %vm923, 0.0
      %1001 = vst.msk [vmem:[#allocation2 + $0x260] sm:$0xff] %vm923, 0.0
      %1002 = vst.msk [vmem:[#allocation2 + $0x268] sm:$0x3] %vm926, 0.0
      %1003 = vst.msk [vmem:[#allocation2 + $0x270] sm:$0xff] %vm923, 0.0
      %1004 = vst.msk [vmem:[#allocation2 + $0x278] sm:$0xff] %vm923, 0.0
      %1005 = vst.msk [vmem:[#allocation2 + $0x280] sm:$0x3] %vm926, 0.0
      %1006 = vst.msk [vmem:[#allocation2 + $0x288] sm:$0xff] %vm923, 0.0
      %1007 = vst.msk [vmem:[#allocation2 + $0x290] sm:$0xff] %vm923, 0.0
      %1008 = vst.msk [vmem:[#allocation2 + $0x298] sm:$0x3] %vm926, 0.0
      %1009 = vst.msk [vmem:[#allocation2 + $0x2a0] sm:$0xff] %vm923, 0.0
      %1010 = vst.msk [vmem:[#allocation2 + $0x2a8] sm:$0xff] %vm923, 0.0
      %1011 = vst.msk [vmem:[#allocation2 + $0x2b0] sm:$0x3] %vm926, 0.0
      %1012 = vst.msk [vmem:[#allocation2 + $0x2b8] sm:$0xff] %vm923, 0.0
      %1013 = vst.msk [vmem:[#allocation2 + $0x2c0] sm:$0xff] %vm923, 0.0
      %1014 = vst.msk [vmem:[#allocation2 + $0x2c8] sm:$0x3] %vm926, 0.0
      %1015 = vst.msk [vmem:[#allocation2 + $0x2d0] sm:$0xff] %vm923, 0.0
      %1016 = vst.msk [vmem:[#allocation2 + $0x2d8] sm:$0xff] %vm923, 0.0
      %1017 = vst.msk [vmem:[#allocation2 + $0x2e0] sm:$0x3] %vm926, 0.0
      %1018 = vst.msk [vmem:[#allocation2 + $0x2e8] sm:$0xff] %vm923, 0.0
      %1019 = vst.msk [vmem:[#allocation2 + $0x2f0] sm:$0xff] %vm923, 0.0
      %1020 = vst.msk [vmem:[#allocation2 + $0x2f8] sm:$0x3] %vm926, 0.0
      %1021 = vst.msk [vmem:[#allocation2 + $0x300] sm:$0xff] %vm923, 0.0
      %1022 = vst.msk [vmem:[#allocation2 + $0x308] sm:$0xff] %vm923, 0.0
      %1023 = vst.msk [vmem:[#allocation2 + $0x310] sm:$0x3] %vm926, 0.0
      %1024 = vst.msk [vmem:[#allocation2 + $0x318] sm:$0xff] %vm923, 0.0
      %1025 = vst.msk [vmem:[#allocation2 + $0x320] sm:$0xff] %vm923, 0.0
      %1026 = vst.msk [vmem:[#allocation2 + $0x328] sm:$0x3] %vm926, 0.0
      %1027 = vst.msk [vmem:[#allocation2 + $0x330] sm:$0xff] %vm923, 0.0
      %1028 = vst.msk [vmem:[#allocation2 + $0x338] sm:$0xff] %vm923, 0.0
      %1029 = vst.msk [vmem:[#allocation2 + $0x340] sm:$0x3] %vm926, 0.0
      %1030 = vst.msk [vmem:[#allocation2 + $0x348] sm:$0xff] %vm923, 0.0
      %1031 = vst.msk [vmem:[#allocation2 + $0x350] sm:$0xff] %vm923, 0.0
      %1032 = vst.msk [vmem:[#allocation2 + $0x358] sm:$0x3] %vm926, 0.0
      %s1033 = scalar_lea.vmem [#allocation2], 24
      %1034 = vst.msk [vmem:[%s1033 + $0x1] sm:$0xff] %vm923, %v859
      %1035 = vst.msk [vmem:[%s1033 + $0x9] sm:$0xff] %vm923, %v860
      %1036 = vst.msk [vmem:[%s1033 + $0x19] sm:$0xff] %vm923, %v861
      %1037 = vst.msk [vmem:[%s1033 + $0x21] sm:$0xff] %vm923, %v862
      %1038 = vst.msk [vmem:[%s1033 + $0x31] sm:$0xff] %vm923, %v863
      %1039 = vst.msk [vmem:[%s1033 + $0x39] sm:$0xff] %vm923, %v864
      %1040 = vst.msk [vmem:[%s1033 + $0x49] sm:$0xff] %vm923, %v865
      %1041 = vst.msk [vmem:[%s1033 + $0x51] sm:$0xff] %vm923, %v866
      %1042 = vst.msk [vmem:[%s1033 + $0x61] sm:$0xff] %vm923, %v867
      %1043 = vst.msk [vmem:[%s1033 + $0x69] sm:$0xff] %vm923, %v868
      %1044 = vst.msk [vmem:[%s1033 + $0x79] sm:$0xff] %vm923, %v869
      %1045 = vst.msk [vmem:[%s1033 + $0x81] sm:$0xff] %vm923, %v870
      %1046 = vst.msk [vmem:[%s1033 + $0x91] sm:$0xff] %vm923, %v871
      %1047 = vst.msk [vmem:[%s1033 + $0x99] sm:$0xff] %vm923, %v872
      %1048 = vst.msk [vmem:[%s1033 + $0xa9] sm:$0xff] %vm923, %v873
      %1049 = vst.msk [vmem:[%s1033 + $0xb1] sm:$0xff] %vm923, %v874
      %1050 = vst.msk [vmem:[%s1033 + $0xc1] sm:$0xff] %vm923, %v875
      %1051 = vst.msk [vmem:[%s1033 + $0xc9] sm:$0xff] %vm923, %v876
      %1052 = vst.msk [vmem:[%s1033 + $0xd9] sm:$0xff] %vm923, %v877
      %1053 = vst.msk [vmem:[%s1033 + $0xe1] sm:$0xff] %vm923, %v878
      %1054 = vst.msk [vmem:[%s1033 + $0xf1] sm:$0xff] %vm923, %v879
      %1055 = vst.msk [vmem:[%s1033 + $0xf9] sm:$0xff] %vm923, %v880
      %1056 = vst.msk [vmem:[%s1033 + $0x109] sm:$0xff] %vm923, %v881
      %1057 = vst.msk [vmem:[%s1033 + $0x111] sm:$0xff] %vm923, %v882
      %1058 = vst.msk [vmem:[%s1033 + $0x121] sm:$0xff] %vm923, %v883
      %1059 = vst.msk [vmem:[%s1033 + $0x129] sm:$0xff] %vm923, %v884
      %1060 = vst.msk [vmem:[%s1033 + $0x139] sm:$0xff] %vm923, %v885
      %1061 = vst.msk [vmem:[%s1033 + $0x141] sm:$0xff] %vm923, %v886
      %1062 = vst.msk [vmem:[%s1033 + $0x151] sm:$0xff] %vm923, %v887
      %1063 = vst.msk [vmem:[%s1033 + $0x159] sm:$0xff] %vm923, %v888
      %1064 = vst.msk [vmem:[%s1033 + $0x169] sm:$0xff] %vm923, %v889
      %1065 = vst.msk [vmem:[%s1033 + $0x171] sm:$0xff] %vm923, %v890
      %1066 = vst.msk [vmem:[%s1033 + $0x1b1] sm:$0xff] %vm923, %v891
      %1067 = vst.msk [vmem:[%s1033 + $0x1b9] sm:$0xff] %vm923, %v892
      %1068 = vst.msk [vmem:[%s1033 + $0x1c9] sm:$0xff] %vm923, %v893
      %1069 = vst.msk [vmem:[%s1033 + $0x1d1] sm:$0xff] %vm923, %v894
      %1070 = vst.msk [vmem:[%s1033 + $0x1e1] sm:$0xff] %vm923, %v895
      %1071 = vst.msk [vmem:[%s1033 + $0x1e9] sm:$0xff] %vm923, %v896
      %1072 = vst.msk [vmem:[%s1033 + $0x1f9] sm:$0xff] %vm923, %v897
      %1073 = vst.msk [vmem:[%s1033 + $0x201] sm:$0xff] %vm923, %v898
      %1074 = vst.msk [vmem:[%s1033 + $0x211] sm:$0xff] %vm923, %v899
      %1075 = vst.msk [vmem:[%s1033 + $0x219] sm:$0xff] %vm923, %v900
      %1076 = vst.msk [vmem:[%s1033 + $0x229] sm:$0xff] %vm923, %v901
      %1077 = vst.msk [vmem:[%s1033 + $0x231] sm:$0xff] %vm923, %v902
      %1078 = vst.msk [vmem:[%s1033 + $0x241] sm:$0xff] %vm923, %v903
      %1079 = vst.msk [vmem:[%s1033 + $0x249] sm:$0xff] %vm923, %v904
      %1080 = vst.msk [vmem:[%s1033 + $0x259] sm:$0xff] %vm923, %v905
      %1081 = vst.msk [vmem:[%s1033 + $0x261] sm:$0xff] %vm923, %v906
      %1082 = vst.msk [vmem:[%s1033 + $0x271] sm:$0xff] %vm923, %v907
      %1083 = vst.msk [vmem:[%s1033 + $0x279] sm:$0xff] %vm923, %v908
      %1084 = vst.msk [vmem:[%s1033 + $0x289] sm:$0xff] %vm923, %v909
      %1085 = vst.msk [vmem:[%s1033 + $0x291] sm:$0xff] %vm923, %v910
      %1086 = vst.msk [vmem:[%s1033 + $0x2a1] sm:$0xff] %vm923, %v911
      %1087 = vst.msk [vmem:[%s1033 + $0x2a9] sm:$0xff] %vm923, %v912
      %1088 = vst.msk [vmem:[%s1033 + $0x2b9] sm:$0xff] %vm923, %v913
      %1089 = vst.msk [vmem:[%s1033 + $0x2c1] sm:$0xff] %vm923, %v914
      %1090 = vst.msk [vmem:[%s1033 + $0x2d1] sm:$0xff] %vm923, %v915
      %1091 = vst.msk [vmem:[%s1033 + $0x2d9] sm:$0xff] %vm923, %v916
      %1092 = vst.msk [vmem:[%s1033 + $0x2e9] sm:$0xff] %vm923, %v917
      %1093 = vst.msk [vmem:[%s1033 + $0x2f1] sm:$0xff] %vm923, %v918
      %1094 = vst.msk [vmem:[%s1033 + $0x301] sm:$0xff] %vm923, %v919
      %1095 = vst.msk [vmem:[%s1033 + $0x309] sm:$0xff] %vm923, %v920
      %1096 = vst.msk [vmem:[%s1033 + $0x319] sm:$0xff] %vm923, %v921
      %1097 = vst.msk [vmem:[%s1033 + $0x321] sm:$0xff] %vm923, %v922
      %v1098 = vld [vmem:[#allocation2] sm:$0xff]
      %v1099 = vld [vmem:[#allocation2 + $0x8] sm:$0xff]
      %v1100 = vld [vmem:[#allocation2 + $0x18] sm:$0xff]
      %v1101 = vld [vmem:[#allocation2 + $0x20] sm:$0xff]
      %v1102 = vld [vmem:[#allocation2 + $0x30] sm:$0xff]
      %v1103 = vld [vmem:[#allocation2 + $0x38] sm:$0xff]
      %v1104 = vld [vmem:[#allocation2 + $0x48] sm:$0xff]
      %v1105 = vld [vmem:[#allocation2 + $0x50] sm:$0xff]
      %v1106 = vld [vmem:[#allocation2 + $0x60] sm:$0xff]
      %v1107 = vld [vmem:[#allocation2 + $0x68] sm:$0xff]
      %v1108 = vld [vmem:[#allocation2 + $0x78] sm:$0xff]
      %v1109 = vld [vmem:[#allocation2 + $0x80] sm:$0xff]
      %v1110 = vld [vmem:[#allocation2 + $0x90] sm:$0xff]
      %v1111 = vld [vmem:[#allocation2 + $0x98] sm:$0xff]
      %v1112 = vld [vmem:[#allocation2 + $0xa8] sm:$0xff]
      %v1113 = vld [vmem:[#allocation2 + $0xb0] sm:$0xff]
      %v1114 = vld [vmem:[#allocation2 + $0xc0] sm:$0xff]
      %v1115 = vld [vmem:[#allocation2 + $0xc8] sm:$0xff]
      %v1116 = vld [vmem:[#allocation2 + $0xd8] sm:$0xff]
      %v1117 = vld [vmem:[#allocation2 + $0xe0] sm:$0xff]
      %v1118 = vld [vmem:[#allocation2 + $0xf0] sm:$0xff]
      %v1119 = vld [vmem:[#allocation2 + $0xf8] sm:$0xff]
      %v1120 = vld [vmem:[#allocation2 + $0x108] sm:$0xff]
      %v1121 = vld [vmem:[#allocation2 + $0x110] sm:$0xff]
      %v1122 = vld [vmem:[#allocation2 + $0x120] sm:$0xff]
      %v1123 = vld [vmem:[#allocation2 + $0x128] sm:$0xff]
      %v1124 = vld [vmem:[#allocation2 + $0x138] sm:$0xff]
      %v1125 = vld [vmem:[#allocation2 + $0x140] sm:$0xff]
      %v1126 = vld [vmem:[#allocation2 + $0x150] sm:$0xff]
      %v1127 = vld [vmem:[#allocation2 + $0x158] sm:$0xff]
      %v1128 = vld [vmem:[#allocation2 + $0x168] sm:$0xff]
      %v1129 = vld [vmem:[#allocation2 + $0x170] sm:$0xff]
      %v1130 = vld [vmem:[#allocation2 + $0x1b0] sm:$0xff]
      %v1131 = vld [vmem:[#allocation2 + $0x1b8] sm:$0xff]
      %v1132 = vld [vmem:[#allocation2 + $0x1c8] sm:$0xff]
      %v1133 = vld [vmem:[#allocation2 + $0x1d0] sm:$0xff]
      %v1134 = vld [vmem:[#allocation2 + $0x1e0] sm:$0xff]
      %v1135 = vld [vmem:[#allocation2 + $0x1e8] sm:$0xff]
      %v1136 = vld [vmem:[#allocation2 + $0x1f8] sm:$0xff]
      %v1137 = vld [vmem:[#allocation2 + $0x200] sm:$0xff]
      %v1138 = vld [vmem:[#allocation2 + $0x210] sm:$0xff]
      %v1139 = vld [vmem:[#allocation2 + $0x218] sm:$0xff]
      %v1140 = vld [vmem:[#allocation2 + $0x228] sm:$0xff]
      %v1141 = vld [vmem:[#allocation2 + $0x230] sm:$0xff]
      %v1142 = vld [vmem:[#allocation2 + $0x240] sm:$0xff]
      %v1143 = vld [vmem:[#allocation2 + $0x248] sm:$0xff]
      %v1144 = vld [vmem:[#allocation2 + $0x258] sm:$0xff]
      %v1145 = vld [vmem:[#allocation2 + $0x260] sm:$0xff]
      %v1146 = vld [vmem:[#allocation2 + $0x270] sm:$0xff]
      %v1147 = vld [vmem:[#allocation2 + $0x278] sm:$0xff]
      %v1148 = vld [vmem:[#allocation2 + $0x288] sm:$0xff]
      %v1149 = vld [vmem:[#allocation2 + $0x290] sm:$0xff]
      %v1150 = vld [vmem:[#allocation2 + $0x2a0] sm:$0xff]
      %v1151 = vld [vmem:[#allocation2 + $0x2a8] sm:$0xff]
      %v1152 = vld [vmem:[#allocation2 + $0x2b8] sm:$0xff]
      %v1153 = vld [vmem:[#allocation2 + $0x2c0] sm:$0xff]
      %v1154 = vld [vmem:[#allocation2 + $0x2d0] sm:$0xff]
      %v1155 = vld [vmem:[#allocation2 + $0x2d8] sm:$0xff]
      %v1156 = vld [vmem:[#allocation2 + $0x2e8] sm:$0xff]
      %v1157 = vld [vmem:[#allocation2 + $0x2f0] sm:$0xff]
      %v1158 = vld [vmem:[#allocation2 + $0x300] sm:$0xff]
      %v1159 = vld [vmem:[#allocation2 + $0x308] sm:$0xff]
      %v1160 = vld [vmem:[#allocation2 + $0x318] sm:$0xff]
      %v1161 = vld [vmem:[#allocation2 + $0x320] sm:$0xff]
      %v1162 = vpack.c.bf16 %v1099, %v1098
      %v1163 = vpack.c.bf16 %v1101, %v1100
      %v1164 = vpack.c.bf16 %v1103, %v1102
      %v1165 = vpack.c.bf16 %v1105, %v1104
      %v1166 = vpack.c.bf16 %v1107, %v1106
      %v1167 = vpack.c.bf16 %v1109, %v1108
      %v1168 = vpack.c.bf16 %v1111, %v1110
      %v1169 = vpack.c.bf16 %v1113, %v1112
      %v1170 = vpack.c.bf16 %v1115, %v1114
      %v1171 = vpack.c.bf16 %v1117, %v1116
      %v1172 = vpack.c.bf16 %v1119, %v1118
      %v1173 = vpack.c.bf16 %v1121, %v1120
      %v1174 = vpack.c.bf16 %v1123, %v1122
      %v1175 = vpack.c.bf16 %v1125, %v1124
      %v1176 = vpack.c.bf16 %v1127, %v1126
      %v1177 = vpack.c.bf16 %v1129, %v1128
      %v1178 = vpack.c.bf16 %v1131, %v1130
      %v1179 = vpack.c.bf16 %v1133, %v1132
      %v1180 = vpack.c.bf16 %v1135, %v1134
      %v1181 = vpack.c.bf16 %v1137, %v1136
      %v1182 = vpack.c.bf16 %v1139, %v1138
      %v1183 = vpack.c.bf16 %v1141, %v1140
      %v1184 = vpack.c.bf16 %v1143, %v1142
      %v1185 = vpack.c.bf16 %v1145, %v1144
      %v1186 = vpack.c.bf16 %v1147, %v1146
      %v1187 = vpack.c.bf16 %v1149, %v1148
      %v1188 = vpack.c.bf16 %v1151, %v1150
      %v1189 = vpack.c.bf16 %v1153, %v1152
      %v1190 = vpack.c.bf16 %v1155, %v1154
      %v1191 = vpack.c.bf16 %v1157, %v1156
      %v1192 = vpack.c.bf16 %v1159, %v1158
      %v1193 = vpack.c.bf16 %v1161, %v1160
      %v1194 = vld [vmem:[%s3] sm:$0x3]
      %v1195 = vld [vmem:[#allocation2 + $0x1] sm:$0xff]
      %v1196 = vld [vmem:[#allocation2 + $0x9] sm:$0xff]
      %v1197 = vld [vmem:[#allocation2 + $0x19] sm:$0xff]
      %v1198 = vld [vmem:[#allocation2 + $0x21] sm:$0xff]
      %v1199 = vld [vmem:[#allocation2 + $0x31] sm:$0xff]
      %v1200 = vld [vmem:[#allocation2 + $0x39] sm:$0xff]
      %v1201 = vld [vmem:[#allocation2 + $0x49] sm:$0xff]
      %v1202 = vld [vmem:[#allocation2 + $0x51] sm:$0xff]
      %v1203 = vld [vmem:[#allocation2 + $0x61] sm:$0xff]
      %v1204 = vld [vmem:[#allocation2 + $0x69] sm:$0xff]
      %v1205 = vld [vmem:[#allocation2 + $0x79] sm:$0xff]
      %v1206 = vld [vmem:[#allocation2 + $0x81] sm:$0xff]
      %v1207 = vld [vmem:[#allocation2 + $0x91] sm:$0xff]
      %v1208 = vld [vmem:[#allocation2 + $0x99] sm:$0xff]
      %v1209 = vld [vmem:[#allocation2 + $0xa9] sm:$0xff]
      %v1210 = vld [vmem:[#allocation2 + $0xb1] sm:$0xff]
      %v1211 = vld [vmem:[#allocation2 + $0xc1] sm:$0xff]
      %v1212 = vld [vmem:[#allocation2 + $0xc9] sm:$0xff]
      %v1213 = vld [vmem:[#allocation2 + $0xd9] sm:$0xff]
      %v1214 = vld [vmem:[#allocation2 + $0xe1] sm:$0xff]
      %v1215 = vld [vmem:[#allocation2 + $0xf1] sm:$0xff]
      %v1216 = vld [vmem:[#allocation2 + $0xf9] sm:$0xff]
      %v1217 = vld [vmem:[#allocation2 + $0x109] sm:$0xff]
      %v1218 = vld [vmem:[#allocation2 + $0x111] sm:$0xff]
      %v1219 = vld [vmem:[#allocation2 + $0x121] sm:$0xff]
      %v1220 = vld [vmem:[#allocation2 + $0x129] sm:$0xff]
      %v1221 = vld [vmem:[#allocation2 + $0x139] sm:$0xff]
      %v1222 = vld [vmem:[#allocation2 + $0x141] sm:$0xff]
      %v1223 = vld [vmem:[#allocation2 + $0x151] sm:$0xff]
      %v1224 = vld [vmem:[#allocation2 + $0x159] sm:$0xff]
      %v1225 = vld [vmem:[#allocation2 + $0x169] sm:$0xff]
      %v1226 = vld [vmem:[#allocation2 + $0x171] sm:$0xff]
      %v1227 = vld [vmem:[#allocation2 + $0x1b1] sm:$0xff]
      %v1228 = vld [vmem:[#allocation2 + $0x1b9] sm:$0xff]
      %v1229 = vld [vmem:[#allocation2 + $0x1c9] sm:$0xff]
      %v1230 = vld [vmem:[#allocation2 + $0x1d1] sm:$0xff]
      %v1231 = vld [vmem:[#allocation2 + $0x1e1] sm:$0xff]
      %v1232 = vld [vmem:[#allocation2 + $0x1e9] sm:$0xff]
      %v1233 = vld [vmem:[#allocation2 + $0x1f9] sm:$0xff]
      %v1234 = vld [vmem:[#allocation2 + $0x201] sm:$0xff]
      %v1235 = vld [vmem:[#allocation2 + $0x211] sm:$0xff]
      %v1236 = vld [vmem:[#allocation2 + $0x219] sm:$0xff]
      %v1237 = vld [vmem:[#allocation2 + $0x229] sm:$0xff]
      %v1238 = vld [vmem:[#allocation2 + $0x231] sm:$0xff]
      %v1239 = vld [vmem:[#allocation2 + $0x241] sm:$0xff]
      %v1240 = vld [vmem:[#allocation2 + $0x249] sm:$0xff]
      %v1241 = vld [vmem:[#allocation2 + $0x259] sm:$0xff]
      %v1242 = vld [vmem:[#allocation2 + $0x261] sm:$0xff]
      %v1243 = vld [vmem:[#allocation2 + $0x271] sm:$0xff]
      %v1244 = vld [vmem:[#allocation2 + $0x279] sm:$0xff]
      %v1245 = vld [vmem:[#allocation2 + $0x289] sm:$0xff]
      %v1246 = vld [vmem:[#allocation2 + $0x291] sm:$0xff]
      %v1247 = vld [vmem:[#allocation2 + $0x2a1] sm:$0xff]
      %v1248 = vld [vmem:[#allocation2 + $0x2a9] sm:$0xff]
      %v1249 = vld [vmem:[#allocation2 + $0x2b9] sm:$0xff]
      %v1250 = vld [vmem:[#allocation2 + $0x2c1] sm:$0xff]
      %v1251 = vld [vmem:[#allocation2 + $0x2d1] sm:$0xff]
      %v1252 = vld [vmem:[#allocation2 + $0x2d9] sm:$0xff]
      %v1253 = vld [vmem:[#allocation2 + $0x2e9] sm:$0xff]
      %v1254 = vld [vmem:[#allocation2 + $0x2f1] sm:$0xff]
      %v1255 = vld [vmem:[#allocation2 + $0x301] sm:$0xff]
      %v1256 = vld [vmem:[#allocation2 + $0x309] sm:$0xff]
      %v1257 = vld [vmem:[#allocation2 + $0x319] sm:$0xff]
      %v1258 = vld [vmem:[#allocation2 + $0x321] sm:$0xff]
      %v1259 = vpack.c.bf16 %v1196, %v1195
      %v1260 = vpack.c.bf16 %v1198, %v1197
      %v1261 = vpack.c.bf16 %v1200, %v1199
      %v1262 = vpack.c.bf16 %v1202, %v1201
      %v1263 = vpack.c.bf16 %v1204, %v1203
      %v1264 = vpack.c.bf16 %v1206, %v1205
      %v1265 = vpack.c.bf16 %v1208, %v1207
      %v1266 = vpack.c.bf16 %v1210, %v1209
      %v1267 = vpack.c.bf16 %v1212, %v1211
      %v1268 = vpack.c.bf16 %v1214, %v1213
      %v1269 = vpack.c.bf16 %v1216, %v1215
      %v1270 = vpack.c.bf16 %v1218, %v1217
      %v1271 = vpack.c.bf16 %v1220, %v1219
      %v1272 = vpack.c.bf16 %v1222, %v1221
      %v1273 = vpack.c.bf16 %v1224, %v1223
      %v1274 = vpack.c.bf16 %v1226, %v1225
      %v1275 = vpack.c.bf16 %v1228, %v1227
      %v1276 = vpack.c.bf16 %v1230, %v1229
      %v1277 = vpack.c.bf16 %v1232, %v1231
      %v1278 = vpack.c.bf16 %v1234, %v1233
      %v1279 = vpack.c.bf16 %v1236, %v1235
      %v1280 = vpack.c.bf16 %v1238, %v1237
      %v1281 = vpack.c.bf16 %v1240, %v1239
      %v1282 = vpack.c.bf16 %v1242, %v1241
      %v1283 = vpack.c.bf16 %v1244, %v1243
      %v1284 = vpack.c.bf16 %v1246, %v1245
      %v1285 = vpack.c.bf16 %v1248, %v1247
      %v1286 = vpack.c.bf16 %v1250, %v1249
      %v1287 = vpack.c.bf16 %v1252, %v1251
      %v1288 = vpack.c.bf16 %v1254, %v1253
      %v1289 = vpack.c.bf16 %v1256, %v1255
      %v1290 = vpack.c.bf16 %v1258, %v1257
      %s1291 = scalar_lea.vmem %s3, 2
      %v1292 = vld [vmem:[%s1291] sm:$0x3]
      %v1294 = vsel %vm923, %v1259, 0
      %v1297 = vsel %vm923, %v1260, 0
      %v1300 = vsel %vm923, %v1261, 0
      %v1303 = vsel %vm923, %v1262, 0
      %v1306 = vsel %vm923, %v1263, 0
      %v1309 = vsel %vm923, %v1264, 0
      %v1312 = vsel %vm923, %v1265, 0
      %v1315 = vsel %vm923, %v1266, 0
      %v1318 = vsel %vm923, %v1267, 0
      %v1321 = vsel %vm923, %v1268, 0
      %v1324 = vsel %vm923, %v1269, 0
      %v1327 = vsel %vm923, %v1270, 0
      %v1330 = vsel %vm923, %v1271, 0
      %v1333 = vsel %vm923, %v1272, 0
      %v1336 = vsel %vm923, %v1273, 0
      %v1339 = vsel %vm923, %v1274, 0
      %v1342 = vsel %vm923, %v1275, 0
      %v1345 = vsel %vm923, %v1276, 0
      %v1348 = vsel %vm923, %v1277, 0
      %v1351 = vsel %vm923, %v1278, 0
      %v1354 = vsel %vm923, %v1279, 0
      %v1357 = vsel %vm923, %v1280, 0
      %v1360 = vsel %vm923, %v1281, 0
      %v1363 = vsel %vm923, %v1282, 0
      %v1366 = vsel %vm923, %v1283, 0
      %v1369 = vsel %vm923, %v1284, 0
      %v1372 = vsel %vm923, %v1285, 0
      %v1375 = vsel %vm923, %v1286, 0
      %v1378 = vsel %vm923, %v1287, 0
      %v1381 = vsel %vm923, %v1288, 0
      %v1384 = vsel %vm923, %v1289, 0
      %v1387 = vsel %vm923, %v1290, 0
      %vm1389 = vcmask 1041408
      %v1391 = vsel %vm1389, %v1292, 0
      %1393 = vmatprep.subr.bf16.mxu0 0
      %1394 = vmatpush1.bf16.msra.mxu0 0
      %1395 = vmatprep.subr.bf16.mxu0 0
      %1396 = vmatpush1.bf16.msra.mxu0 0
      %1397 = vmatprep.subr.bf16.mxu0 0
      %1398 = vmatpush1.bf16.msra.mxu0 0
      %1399 = vmatprep.subr.bf16.mxu0 0
      %1400 = vmatpush1.bf16.msra.mxu0 0
      %1401 = vmatprep.subr.bf16.mxu0 0
      %1402 = vmatpush1.bf16.msra.mxu0 0
      %1403 = vmatprep.subr.bf16.mxu0 0
      %1404 = vmatpush1.bf16.msra.mxu0 0
      %1405 = vmatprep.subr.bf16.mxu0 0
      %1406 = vmatpush1.bf16.msra.mxu0 0
      %1407 = vmatprep.subr.bf16.mxu0 0
      %1408 = vmatpush1.bf16.msra.mxu0 %v1391
      %1409 = vmatprep.subr.bf16.mxu0 0
      %1410 = vmatpush2.bf16.msra.mxu0 0
      %1411 = vmatprep.subr.bf16.mxu0 0
      %1412 = vmatpush2.bf16.msra.mxu0 0
      %1413 = vmatprep.subr.bf16.mxu0 0
      %1414 = vmatpush2.bf16.msra.mxu0 0
      %1415 = vmatprep.subr.bf16.mxu0 0
      %1416 = vmatpush2.bf16.msra.mxu0 0
      %1417 = vmatprep.subr.bf16.mxu0 0
      %1418 = vmatpush2.bf16.msra.mxu0 0
      %1419 = vmatprep.subr.bf16.mxu0 0
      %1420 = vmatpush2.bf16.msra.mxu0 0
      %1421 = vmatprep.subr.bf16.mxu0 0
      %1422 = vmatpush2.bf16.msra.mxu0 0
      %1423 = vmatprep.subr.bf16.mxu0 0
      %1424 = vmatpush2.bf16.msra.mxu0 0
      %1425 = vmatprep.mubr.bf16.mxu0 0
      %1426 = vmatmul.mubr.bf16.gmra.mxu0 %v1294
      %v1427 = vpop.f32.mrf.mxu0
      %v1428 = vadd.f32 0.0, %v1427
      %v1429 = vpop.f32.mrf.mxu0
      %v1430 = vpop.f32.mrf.mxu0
      %v1431 = vadd.f32 0.0, %v1430
      %v1432 = vpop.f32.mrf.mxu0
      %1433 = vmatprep.mubr.bf16.mxu0 0
      %1434 = vmatmul.mubr.bf16.gmra.mxu0 %v1297
      %v1435 = vpop.f32.mrf.mxu0
      %v1436 = vadd.f32 0.0, %v1435
      %v1437 = vpop.f32.mrf.mxu0
      %v1438 = vpop.f32.mrf.mxu0
      %v1439 = vadd.f32 0.0, %v1438
      %v1440 = vpop.f32.mrf.mxu0
      %1441 = vmatprep.mubr.bf16.mxu0 0
      %1442 = vmatmul.mubr.bf16.gmra.mxu0 %v1300
      %v1443 = vpop.f32.mrf.mxu0
      %v1444 = vadd.f32 0.0, %v1443
      %v1445 = vpop.f32.mrf.mxu0
      %v1446 = vpop.f32.mrf.mxu0
      %v1447 = vadd.f32 0.0, %v1446
      %v1448 = vpop.f32.mrf.mxu0
      %1449 = vmatprep.mubr.bf16.mxu0 0
      %1450 = vmatmul.mubr.bf16.gmra.mxu0 %v1303
      %v1451 = vpop.f32.mrf.mxu0
      %v1452 = vadd.f32 0.0, %v1451
      %v1453 = vpop.f32.mrf.mxu0
      %v1454 = vpop.f32.mrf.mxu0
      %v1455 = vadd.f32 0.0, %v1454
      %v1456 = vpop.f32.mrf.mxu0
      %1457 = vmatprep.mubr.bf16.mxu0 0
      %1458 = vmatmul.mubr.bf16.gmra.mxu0 %v1306
      %v1459 = vpop.f32.mrf.mxu0
      %v1460 = vadd.f32 0.0, %v1459
      %v1461 = vpop.f32.mrf.mxu0
      %v1462 = vpop.f32.mrf.mxu0
      %v1463 = vadd.f32 0.0, %v1462
      %v1464 = vpop.f32.mrf.mxu0
      %1465 = vmatprep.mubr.bf16.mxu0 0
      %1466 = vmatmul.mubr.bf16.gmra.mxu0 %v1309
      %v1467 = vpop.f32.mrf.mxu0
      %v1468 = vadd.f32 0.0, %v1467
      %v1469 = vpop.f32.mrf.mxu0
      %v1470 = vpop.f32.mrf.mxu0
      %v1471 = vadd.f32 0.0, %v1470
      %v1472 = vpop.f32.mrf.mxu0
      %1473 = vmatprep.mubr.bf16.mxu0 0
      %1474 = vmatmul.mubr.bf16.gmra.mxu0 %v1312
      %v1475 = vpop.f32.mrf.mxu0
      %v1476 = vadd.f32 0.0, %v1475
      %v1477 = vpop.f32.mrf.mxu0
      %v1478 = vpop.f32.mrf.mxu0
      %v1479 = vadd.f32 0.0, %v1478
      %v1480 = vpop.f32.mrf.mxu0
      %1481 = vmatprep.mubr.bf16.mxu0 0
      %1482 = vmatmul.mubr.bf16.gmra.mxu0 %v1315
      %v1483 = vpop.f32.mrf.mxu0
      %v1484 = vadd.f32 0.0, %v1483
      %v1485 = vpop.f32.mrf.mxu0
      %v1486 = vpop.f32.mrf.mxu0
      %v1487 = vadd.f32 0.0, %v1486
      %v1488 = vpop.f32.mrf.mxu0
      %1489 = vmatprep.mubr.bf16.mxu0 0
      %1490 = vmatmul.mubr.bf16.gmra.mxu0 %v1318
      %v1491 = vpop.f32.mrf.mxu0
      %v1492 = vadd.f32 0.0, %v1491
      %v1493 = vpop.f32.mrf.mxu0
      %v1494 = vpop.f32.mrf.mxu0
      %v1495 = vadd.f32 0.0, %v1494
      %v1496 = vpop.f32.mrf.mxu0
      %1497 = vmatprep.mubr.bf16.mxu0 0
      %1498 = vmatmul.mubr.bf16.gmra.mxu0 %v1321
      %v1499 = vpop.f32.mrf.mxu0
      %v1500 = vadd.f32 0.0, %v1499
      %v1501 = vpop.f32.mrf.mxu0
      %v1502 = vpop.f32.mrf.mxu0
      %v1503 = vadd.f32 0.0, %v1502
      %v1504 = vpop.f32.mrf.mxu0
      %1505 = vmatprep.mubr.bf16.mxu0 0
      %1506 = vmatmul.mubr.bf16.gmra.mxu0 %v1324
      %v1507 = vpop.f32.mrf.mxu0
      %v1508 = vadd.f32 0.0, %v1507
      %v1509 = vpop.f32.mrf.mxu0
      %v1510 = vpop.f32.mrf.mxu0
      %v1511 = vadd.f32 0.0, %v1510
      %v1512 = vpop.f32.mrf.mxu0
      %1513 = vmatprep.mubr.bf16.mxu0 0
      %1514 = vmatmul.mubr.bf16.gmra.mxu0 %v1327
      %v1515 = vpop.f32.mrf.mxu0
      %v1516 = vadd.f32 0.0, %v1515
      %v1517 = vpop.f32.mrf.mxu0
      %v1518 = vpop.f32.mrf.mxu0
      %v1519 = vadd.f32 0.0, %v1518
      %v1520 = vpop.f32.mrf.mxu0
      %1521 = vmatprep.mubr.bf16.mxu0 0
      %1522 = vmatmul.mubr.bf16.gmra.mxu0 %v1330
      %v1523 = vpop.f32.mrf.mxu0
      %v1524 = vadd.f32 0.0, %v1523
      %v1525 = vpop.f32.mrf.mxu0
      %v1526 = vpop.f32.mrf.mxu0
      %v1527 = vadd.f32 0.0, %v1526
      %v1528 = vpop.f32.mrf.mxu0
      %1529 = vmatprep.mubr.bf16.mxu0 0
      %1530 = vmatmul.mubr.bf16.gmra.mxu0 %v1333
      %v1531 = vpop.f32.mrf.mxu0
      %v1532 = vadd.f32 0.0, %v1531
      %v1533 = vpop.f32.mrf.mxu0
      %v1534 = vpop.f32.mrf.mxu0
      %v1535 = vadd.f32 0.0, %v1534
      %v1536 = vpop.f32.mrf.mxu0
      %1537 = vmatprep.mubr.bf16.mxu0 0
      %1538 = vmatmul.mubr.bf16.gmra.mxu0 %v1336
      %v1539 = vpop.f32.mrf.mxu0
      %v1540 = vadd.f32 0.0, %v1539
      %v1541 = vpop.f32.mrf.mxu0
      %v1542 = vpop.f32.mrf.mxu0
      %v1543 = vadd.f32 0.0, %v1542
      %v1544 = vpop.f32.mrf.mxu0
      %1545 = vmatprep.mubr.bf16.mxu0 0
      %1546 = vmatmul.mubr.bf16.gmra.mxu0 %v1339
      %v1547 = vpop.f32.mrf.mxu0
      %v1548 = vadd.f32 0.0, %v1547
      %v1549 = vpop.f32.mrf.mxu0
      %v1550 = vpop.f32.mrf.mxu0
      %v1551 = vadd.f32 0.0, %v1550
      %v1552 = vpop.f32.mrf.mxu0
      %1553 = vmatprep.mubr.bf16.mxu0 0
      %1554 = vmatmul.mubr.bf16.gmra.mxu0 %v1342
      %v1555 = vpop.f32.mrf.mxu0
      %v1556 = vadd.f32 0.0, %v1555
      %v1557 = vpop.f32.mrf.mxu0
      %v1558 = vpop.f32.mrf.mxu0
      %v1559 = vadd.f32 0.0, %v1558
      %v1560 = vpop.f32.mrf.mxu0
      %1561 = vmatprep.mubr.bf16.mxu0 0
      %1562 = vmatmul.mubr.bf16.gmra.mxu0 %v1345
      %v1563 = vpop.f32.mrf.mxu0
      %v1564 = vadd.f32 0.0, %v1563
      %v1565 = vpop.f32.mrf.mxu0
      %v1566 = vpop.f32.mrf.mxu0
      %v1567 = vadd.f32 0.0, %v1566
      %v1568 = vpop.f32.mrf.mxu0
      %1569 = vmatprep.mubr.bf16.mxu0 0
      %1570 = vmatmul.mubr.bf16.gmra.mxu0 %v1348
      %v1571 = vpop.f32.mrf.mxu0
      %v1572 = vadd.f32 0.0, %v1571
      %v1573 = vpop.f32.mrf.mxu0
      %v1574 = vpop.f32.mrf.mxu0
      %v1575 = vadd.f32 0.0, %v1574
      %v1576 = vpop.f32.mrf.mxu0
      %1577 = vmatprep.mubr.bf16.mxu0 0
      %1578 = vmatmul.mubr.bf16.gmra.mxu0 %v1351
      %v1579 = vpop.f32.mrf.mxu0
      %v1580 = vadd.f32 0.0, %v1579
      %v1581 = vpop.f32.mrf.mxu0
      %v1582 = vpop.f32.mrf.mxu0
      %v1583 = vadd.f32 0.0, %v1582
      %v1584 = vpop.f32.mrf.mxu0
      %1585 = vmatprep.mubr.bf16.mxu0 0
      %1586 = vmatmul.mubr.bf16.gmra.mxu0 %v1354
      %v1587 = vpop.f32.mrf.mxu0
      %v1588 = vadd.f32 0.0, %v1587
      %v1589 = vpop.f32.mrf.mxu0
      %v1590 = vpop.f32.mrf.mxu0
      %v1591 = vadd.f32 0.0, %v1590
      %v1592 = vpop.f32.mrf.mxu0
      %1593 = vmatprep.mubr.bf16.mxu0 0
      %1594 = vmatmul.mubr.bf16.gmra.mxu0 %v1357
      %v1595 = vpop.f32.mrf.mxu0
      %v1596 = vadd.f32 0.0, %v1595
      %v1597 = vpop.f32.mrf.mxu0
      %v1598 = vpop.f32.mrf.mxu0
      %v1599 = vadd.f32 0.0, %v1598
      %v1600 = vpop.f32.mrf.mxu0
      %1601 = vmatprep.mubr.bf16.mxu0 0
      %1602 = vmatmul.mubr.bf16.gmra.mxu0 %v1360
      %v1603 = vpop.f32.mrf.mxu0
      %v1604 = vadd.f32 0.0, %v1603
      %v1605 = vpop.f32.mrf.mxu0
      %v1606 = vpop.f32.mrf.mxu0
      %v1607 = vadd.f32 0.0, %v1606
      %v1608 = vpop.f32.mrf.mxu0
      %1609 = vmatprep.mubr.bf16.mxu0 0
      %1610 = vmatmul.mubr.bf16.gmra.mxu0 %v1363
      %v1611 = vpop.f32.mrf.mxu0
      %v1612 = vadd.f32 0.0, %v1611
      %v1613 = vpop.f32.mrf.mxu0
      %v1614 = vpop.f32.mrf.mxu0
      %v1615 = vadd.f32 0.0, %v1614
      %v1616 = vpop.f32.mrf.mxu0
      %1617 = vmatprep.mubr.bf16.mxu0 0
      %1618 = vmatmul.mubr.bf16.gmra.mxu0 %v1366
      %v1619 = vpop.f32.mrf.mxu0
      %v1620 = vadd.f32 0.0, %v1619
      %v1621 = vpop.f32.mrf.mxu0
      %v1622 = vpop.f32.mrf.mxu0
      %v1623 = vadd.f32 0.0, %v1622
      %v1624 = vpop.f32.mrf.mxu0
      %1625 = vmatprep.mubr.bf16.mxu0 0
      %1626 = vmatmul.mubr.bf16.gmra.mxu0 %v1369
      %v1627 = vpop.f32.mrf.mxu0
      %v1628 = vadd.f32 0.0, %v1627
      %v1629 = vpop.f32.mrf.mxu0
      %v1630 = vpop.f32.mrf.mxu0
      %v1631 = vadd.f32 0.0, %v1630
      %v1632 = vpop.f32.mrf.mxu0
      %1633 = vmatprep.mubr.bf16.mxu0 0
      %1634 = vmatmul.mubr.bf16.gmra.mxu0 %v1372
      %v1635 = vpop.f32.mrf.mxu0
      %v1636 = vadd.f32 0.0, %v1635
      %v1637 = vpop.f32.mrf.mxu0
      %v1638 = vpop.f32.mrf.mxu0
      %v1639 = vadd.f32 0.0, %v1638
      %v1640 = vpop.f32.mrf.mxu0
      %1641 = vmatprep.mubr.bf16.mxu0 0
      %1642 = vmatmul.mubr.bf16.gmra.mxu0 %v1375
      %v1643 = vpop.f32.mrf.mxu0
      %v1644 = vadd.f32 0.0, %v1643
      %v1645 = vpop.f32.mrf.mxu0
      %v1646 = vpop.f32.mrf.mxu0
      %v1647 = vadd.f32 0.0, %v1646
      %v1648 = vpop.f32.mrf.mxu0
      %1649 = vmatprep.mubr.bf16.mxu0 0
      %1650 = vmatmul.mubr.bf16.gmra.mxu0 %v1378
      %v1651 = vpop.f32.mrf.mxu0
      %v1652 = vadd.f32 0.0, %v1651
      %v1653 = vpop.f32.mrf.mxu0
      %v1654 = vpop.f32.mrf.mxu0
      %v1655 = vadd.f32 0.0, %v1654
      %v1656 = vpop.f32.mrf.mxu0
      %1657 = vmatprep.mubr.bf16.mxu0 0
      %1658 = vmatmul.mubr.bf16.gmra.mxu0 %v1381
      %v1659 = vpop.f32.mrf.mxu0
      %v1660 = vadd.f32 0.0, %v1659
      %v1661 = vpop.f32.mrf.mxu0
      %v1662 = vpop.f32.mrf.mxu0
      %v1663 = vadd.f32 0.0, %v1662
      %v1664 = vpop.f32.mrf.mxu0
      %1665 = vmatprep.mubr.bf16.mxu0 0
      %1666 = vmatmul.mubr.bf16.gmra.mxu0 %v1384
      %v1667 = vpop.f32.mrf.mxu0
      %v1668 = vadd.f32 0.0, %v1667
      %v1669 = vpop.f32.mrf.mxu0
      %v1670 = vpop.f32.mrf.mxu0
      %v1671 = vadd.f32 0.0, %v1670
      %v1672 = vpop.f32.mrf.mxu0
      %1673 = vmatprep.mubr.bf16.mxu0 0
      %1674 = vmatmul.mubr.bf16.gmra.mxu0 %v1387
      %v1675 = vpop.f32.mrf.mxu0
      %v1676 = vadd.f32 0.0, %v1675
      %v1677 = vpop.f32.mrf.mxu0
      %v1678 = vpop.f32.mrf.mxu0
      %v1679 = vadd.f32 0.0, %v1678
      %v1680 = vpop.f32.mrf.mxu0
      %1681 = vdwg.mxu0
      %v1683 = vsel %vm923, %v1162, 0
      %v1686 = vsel %vm923, %v1163, 0
      %v1689 = vsel %vm923, %v1164, 0
      %v1692 = vsel %vm923, %v1165, 0
      %v1695 = vsel %vm923, %v1166, 0
      %v1698 = vsel %vm923, %v1167, 0
      %v1701 = vsel %vm923, %v1168, 0
      %v1704 = vsel %vm923, %v1169, 0
      %v1707 = vsel %vm923, %v1170, 0
      %v1710 = vsel %vm923, %v1171, 0
      %v1713 = vsel %vm923, %v1172, 0
      %v1716 = vsel %vm923, %v1173, 0
      %v1719 = vsel %vm923, %v1174, 0
      %v1722 = vsel %vm923, %v1175, 0
      %v1725 = vsel %vm923, %v1176, 0
      %v1728 = vsel %vm923, %v1177, 0
      %v1731 = vsel %vm923, %v1178, 0
      %v1734 = vsel %vm923, %v1179, 0
      %v1737 = vsel %vm923, %v1180, 0
      %v1740 = vsel %vm923, %v1181, 0
      %v1743 = vsel %vm923, %v1182, 0
      %v1746 = vsel %vm923, %v1183, 0
      %v1749 = vsel %vm923, %v1184, 0
      %v1752 = vsel %vm923, %v1185, 0
      %v1755 = vsel %vm923, %v1186, 0
      %v1758 = vsel %vm923, %v1187, 0
      %v1761 = vsel %vm923, %v1188, 0
      %v1764 = vsel %vm923, %v1189, 0
      %v1767 = vsel %vm923, %v1190, 0
      %v1770 = vsel %vm923, %v1191, 0
      %v1773 = vsel %vm923, %v1192, 0
      %v1776 = vsel %vm923, %v1193, 0
      %v1779 = vsel %vm1389, %v1194, 0
      %1781 = vmatprep.subr.bf16.mxu0 0
      %1782 = vmatpush1.bf16.msra.mxu0 0
      %1783 = vmatprep.subr.bf16.mxu0 0
      %1784 = vmatpush1.bf16.msra.mxu0 0
      %1785 = vmatprep.subr.bf16.mxu0 0
      %1786 = vmatpush1.bf16.msra.mxu0 0
      %1787 = vmatprep.subr.bf16.mxu0 0
      %1788 = vmatpush1.bf16.msra.mxu0 0
      %1789 = vmatprep.subr.bf16.mxu0 0
      %1790 = vmatpush1.bf16.msra.mxu0 0
      %1791 = vmatprep.subr.bf16.mxu0 0
      %1792 = vmatpush1.bf16.msra.mxu0 0
      %1793 = vmatprep.subr.bf16.mxu0 0
      %1794 = vmatpush1.bf16.msra.mxu0 0
      %1795 = vmatprep.subr.bf16.mxu0 0
      %1796 = vmatpush1.bf16.msra.mxu0 %v1779
      %1797 = vmatprep.subr.bf16.mxu0 0
      %1798 = vmatpush2.bf16.msra.mxu0 0
      %1799 = vmatprep.subr.bf16.mxu0 0
      %1800 = vmatpush2.bf16.msra.mxu0 0
      %1801 = vmatprep.subr.bf16.mxu0 0
      %1802 = vmatpush2.bf16.msra.mxu0 0
      %1803 = vmatprep.subr.bf16.mxu0 0
      %1804 = vmatpush2.bf16.msra.mxu0 0
      %1805 = vmatprep.subr.bf16.mxu0 0
      %1806 = vmatpush2.bf16.msra.mxu0 0
      %1807 = vmatprep.subr.bf16.mxu0 0
      %1808 = vmatpush2.bf16.msra.mxu0 0
      %1809 = vmatprep.subr.bf16.mxu0 0
      %1810 = vmatpush2.bf16.msra.mxu0 0
      %1811 = vmatprep.subr.bf16.mxu0 0
      %1812 = vmatpush2.bf16.msra.mxu0 0
      %1813 = vmatprep.mubr.bf16.mxu0 0
      %1814 = vmatmul.mubr.bf16.gmra.mxu0 %v1683
      %v1815 = vpop.f32.mrf.mxu0
      %v1816 = vadd.f32 %v1428, %v1815
      %v1817 = vpop.f32.mrf.mxu0
      %v1818 = vpop.f32.mrf.mxu0
      %v1819 = vadd.f32 %v1431, %v1818
      %v1820 = vpop.f32.mrf.mxu0
      %1821 = vmatprep.mubr.bf16.mxu0 0
      %1822 = vmatmul.mubr.bf16.gmra.mxu0 %v1686
      %v1823 = vpop.f32.mrf.mxu0
      %v1824 = vadd.f32 %v1436, %v1823
      %v1825 = vpop.f32.mrf.mxu0
      %v1826 = vpop.f32.mrf.mxu0
      %v1827 = vadd.f32 %v1439, %v1826
      %v1828 = vpop.f32.mrf.mxu0
      %1829 = vmatprep.mubr.bf16.mxu0 0
      %1830 = vmatmul.mubr.bf16.gmra.mxu0 %v1689
      %v1831 = vpop.f32.mrf.mxu0
      %v1832 = vadd.f32 %v1444, %v1831
      %v1833 = vpop.f32.mrf.mxu0
      %v1834 = vpop.f32.mrf.mxu0
      %v1835 = vadd.f32 %v1447, %v1834
      %v1836 = vpop.f32.mrf.mxu0
      %1837 = vmatprep.mubr.bf16.mxu0 0
      %1838 = vmatmul.mubr.bf16.gmra.mxu0 %v1692
      %v1839 = vpop.f32.mrf.mxu0
      %v1840 = vadd.f32 %v1452, %v1839
      %v1841 = vpop.f32.mrf.mxu0
      %v1842 = vpop.f32.mrf.mxu0
      %v1843 = vadd.f32 %v1455, %v1842
      %v1844 = vpop.f32.mrf.mxu0
      %1845 = vmatprep.mubr.bf16.mxu0 0
      %1846 = vmatmul.mubr.bf16.gmra.mxu0 %v1695
      %v1847 = vpop.f32.mrf.mxu0
      %v1848 = vadd.f32 %v1460, %v1847
      %v1849 = vpop.f32.mrf.mxu0
      %v1850 = vpop.f32.mrf.mxu0
      %v1851 = vadd.f32 %v1463, %v1850
      %v1852 = vpop.f32.mrf.mxu0
      %1853 = vmatprep.mubr.bf16.mxu0 0
      %1854 = vmatmul.mubr.bf16.gmra.mxu0 %v1698
      %v1855 = vpop.f32.mrf.mxu0
      %v1856 = vadd.f32 %v1468, %v1855
      %v1857 = vpop.f32.mrf.mxu0
      %v1858 = vpop.f32.mrf.mxu0
      %v1859 = vadd.f32 %v1471, %v1858
      %v1860 = vpop.f32.mrf.mxu0
      %1861 = vmatprep.mubr.bf16.mxu0 0
      %1862 = vmatmul.mubr.bf16.gmra.mxu0 %v1701
      %v1863 = vpop.f32.mrf.mxu0
      %v1864 = vadd.f32 %v1476, %v1863
      %v1865 = vpop.f32.mrf.mxu0
      %v1866 = vpop.f32.mrf.mxu0
      %v1867 = vadd.f32 %v1479, %v1866
      %v1868 = vpop.f32.mrf.mxu0
      %1869 = vmatprep.mubr.bf16.mxu0 0
      %1870 = vmatmul.mubr.bf16.gmra.mxu0 %v1704
      %v1871 = vpop.f32.mrf.mxu0
      %v1872 = vadd.f32 %v1484, %v1871
      %v1873 = vpop.f32.mrf.mxu0
      %v1874 = vpop.f32.mrf.mxu0
      %v1875 = vadd.f32 %v1487, %v1874
      %v1876 = vpop.f32.mrf.mxu0
      %1877 = vmatprep.mubr.bf16.mxu0 0
      %1878 = vmatmul.mubr.bf16.gmra.mxu0 %v1707
      %v1879 = vpop.f32.mrf.mxu0
      %v1880 = vadd.f32 %v1492, %v1879
      %v1881 = vpop.f32.mrf.mxu0
      %v1882 = vpop.f32.mrf.mxu0
      %v1883 = vadd.f32 %v1495, %v1882
      %v1884 = vpop.f32.mrf.mxu0
      %1885 = vmatprep.mubr.bf16.mxu0 0
      %1886 = vmatmul.mubr.bf16.gmra.mxu0 %v1710
      %v1887 = vpop.f32.mrf.mxu0
      %v1888 = vadd.f32 %v1500, %v1887
      %v1889 = vpop.f32.mrf.mxu0
      %v1890 = vpop.f32.mrf.mxu0
      %v1891 = vadd.f32 %v1503, %v1890
      %v1892 = vpop.f32.mrf.mxu0
      %1893 = vmatprep.mubr.bf16.mxu0 0
      %1894 = vmatmul.mubr.bf16.gmra.mxu0 %v1713
      %v1895 = vpop.f32.mrf.mxu0
      %v1896 = vadd.f32 %v1508, %v1895
      %v1897 = vpop.f32.mrf.mxu0
      %v1898 = vpop.f32.mrf.mxu0
      %v1899 = vadd.f32 %v1511, %v1898
      %v1900 = vpop.f32.mrf.mxu0
      %1901 = vmatprep.mubr.bf16.mxu0 0
      %1902 = vmatmul.mubr.bf16.gmra.mxu0 %v1716
      %v1903 = vpop.f32.mrf.mxu0
      %v1904 = vadd.f32 %v1516, %v1903
      %v1905 = vpop.f32.mrf.mxu0
      %v1906 = vpop.f32.mrf.mxu0
      %v1907 = vadd.f32 %v1519, %v1906
      %v1908 = vpop.f32.mrf.mxu0
      %1909 = vmatprep.mubr.bf16.mxu0 0
      %1910 = vmatmul.mubr.bf16.gmra.mxu0 %v1719
      %v1911 = vpop.f32.mrf.mxu0
      %v1912 = vadd.f32 %v1524, %v1911
      %v1913 = vpop.f32.mrf.mxu0
      %v1914 = vpop.f32.mrf.mxu0
      %v1915 = vadd.f32 %v1527, %v1914
      %v1916 = vpop.f32.mrf.mxu0
      %1917 = vmatprep.mubr.bf16.mxu0 0
      %1918 = vmatmul.mubr.bf16.gmra.mxu0 %v1722
      %v1919 = vpop.f32.mrf.mxu0
      %v1920 = vadd.f32 %v1532, %v1919
      %v1921 = vpop.f32.mrf.mxu0
      %v1922 = vpop.f32.mrf.mxu0
      %v1923 = vadd.f32 %v1535, %v1922
      %v1924 = vpop.f32.mrf.mxu0
      %1925 = vmatprep.mubr.bf16.mxu0 0
      %1926 = vmatmul.mubr.bf16.gmra.mxu0 %v1725
      %v1927 = vpop.f32.mrf.mxu0
      %v1928 = vadd.f32 %v1540, %v1927
      %v1929 = vpop.f32.mrf.mxu0
      %v1930 = vpop.f32.mrf.mxu0
      %v1931 = vadd.f32 %v1543, %v1930
      %v1932 = vpop.f32.mrf.mxu0
      %1933 = vmatprep.mubr.bf16.mxu0 0
      %1934 = vmatmul.mubr.bf16.gmra.mxu0 %v1728
      %v1935 = vpop.f32.mrf.mxu0
      %v1936 = vadd.f32 %v1548, %v1935
      %v1937 = vpop.f32.mrf.mxu0
      %v1938 = vpop.f32.mrf.mxu0
      %v1939 = vadd.f32 %v1551, %v1938
      %v1940 = vpop.f32.mrf.mxu0
      %1941 = vmatprep.mubr.bf16.mxu0 0
      %1942 = vmatmul.mubr.bf16.gmra.mxu0 %v1731
      %v1943 = vpop.f32.mrf.mxu0
      %v1944 = vadd.f32 %v1556, %v1943
      %v1945 = vpop.f32.mrf.mxu0
      %v1946 = vpop.f32.mrf.mxu0
      %v1947 = vadd.f32 %v1559, %v1946
      %v1948 = vpop.f32.mrf.mxu0
      %1949 = vmatprep.mubr.bf16.mxu0 0
      %1950 = vmatmul.mubr.bf16.gmra.mxu0 %v1734
      %v1951 = vpop.f32.mrf.mxu0
      %v1952 = vadd.f32 %v1564, %v1951
      %v1953 = vpop.f32.mrf.mxu0
      %v1954 = vpop.f32.mrf.mxu0
      %v1955 = vadd.f32 %v1567, %v1954
      %v1956 = vpop.f32.mrf.mxu0
      %1957 = vmatprep.mubr.bf16.mxu0 0
      %1958 = vmatmul.mubr.bf16.gmra.mxu0 %v1737
      %v1959 = vpop.f32.mrf.mxu0
      %v1960 = vadd.f32 %v1572, %v1959
      %v1961 = vpop.f32.mrf.mxu0
      %v1962 = vpop.f32.mrf.mxu0
      %v1963 = vadd.f32 %v1575, %v1962
      %v1964 = vpop.f32.mrf.mxu0
      %1965 = vmatprep.mubr.bf16.mxu0 0
      %1966 = vmatmul.mubr.bf16.gmra.mxu0 %v1740
      %v1967 = vpop.f32.mrf.mxu0
      %v1968 = vadd.f32 %v1580, %v1967
      %v1969 = vpop.f32.mrf.mxu0
      %v1970 = vpop.f32.mrf.mxu0
      %v1971 = vadd.f32 %v1583, %v1970
      %v1972 = vpop.f32.mrf.mxu0
      %1973 = vmatprep.mubr.bf16.mxu0 0
      %1974 = vmatmul.mubr.bf16.gmra.mxu0 %v1743
      %v1975 = vpop.f32.mrf.mxu0
      %v1976 = vadd.f32 %v1588, %v1975
      %v1977 = vpop.f32.mrf.mxu0
      %v1978 = vpop.f32.mrf.mxu0
      %v1979 = vadd.f32 %v1591, %v1978
      %v1980 = vpop.f32.mrf.mxu0
      %1981 = vmatprep.mubr.bf16.mxu0 0
      %1982 = vmatmul.mubr.bf16.gmra.mxu0 %v1746
      %v1983 = vpop.f32.mrf.mxu0
      %v1984 = vadd.f32 %v1596, %v1983
      %v1985 = vpop.f32.mrf.mxu0
      %v1986 = vpop.f32.mrf.mxu0
      %v1987 = vadd.f32 %v1599, %v1986
      %v1988 = vpop.f32.mrf.mxu0
      %1989 = vmatprep.mubr.bf16.mxu0 0
      %1990 = vmatmul.mubr.bf16.gmra.mxu0 %v1749
      %v1991 = vpop.f32.mrf.mxu0
      %v1992 = vadd.f32 %v1604, %v1991
      %v1993 = vpop.f32.mrf.mxu0
      %v1994 = vpop.f32.mrf.mxu0
      %v1995 = vadd.f32 %v1607, %v1994
      %v1996 = vpop.f32.mrf.mxu0
      %1997 = vmatprep.mubr.bf16.mxu0 0
      %1998 = vmatmul.mubr.bf16.gmra.mxu0 %v1752
      %v1999 = vpop.f32.mrf.mxu0
      %v2000 = vadd.f32 %v1612, %v1999
      %v2001 = vpop.f32.mrf.mxu0
      %v2002 = vpop.f32.mrf.mxu0
      %v2003 = vadd.f32 %v1615, %v2002
      %v2004 = vpop.f32.mrf.mxu0
      %2005 = vmatprep.mubr.bf16.mxu0 0
      %2006 = vmatmul.mubr.bf16.gmra.mxu0 %v1755
      %v2007 = vpop.f32.mrf.mxu0
      %v2008 = vadd.f32 %v1620, %v2007
      %v2009 = vpop.f32.mrf.mxu0
      %v2010 = vpop.f32.mrf.mxu0
      %v2011 = vadd.f32 %v1623, %v2010
      %v2012 = vpop.f32.mrf.mxu0
      %2013 = vmatprep.mubr.bf16.mxu0 0
      %2014 = vmatmul.mubr.bf16.gmra.mxu0 %v1758
      %v2015 = vpop.f32.mrf.mxu0
      %v2016 = vadd.f32 %v1628, %v2015
      %v2017 = vpop.f32.mrf.mxu0
      %v2018 = vpop.f32.mrf.mxu0
      %v2019 = vadd.f32 %v1631, %v2018
      %v2020 = vpop.f32.mrf.mxu0
      %2021 = vmatprep.mubr.bf16.mxu0 0
      %2022 = vmatmul.mubr.bf16.gmra.mxu0 %v1761
      %v2023 = vpop.f32.mrf.mxu0
      %v2024 = vadd.f32 %v1636, %v2023
      %v2025 = vpop.f32.mrf.mxu0
      %v2026 = vpop.f32.mrf.mxu0
      %v2027 = vadd.f32 %v1639, %v2026
      %v2028 = vpop.f32.mrf.mxu0
      %2029 = vmatprep.mubr.bf16.mxu0 0
      %2030 = vmatmul.mubr.bf16.gmra.mxu0 %v1764
      %v2031 = vpop.f32.mrf.mxu0
      %v2032 = vadd.f32 %v1644, %v2031
      %v2033 = vpop.f32.mrf.mxu0
      %v2034 = vpop.f32.mrf.mxu0
      %v2035 = vadd.f32 %v1647, %v2034
      %v2036 = vpop.f32.mrf.mxu0
      %2037 = vmatprep.mubr.bf16.mxu0 0
      %2038 = vmatmul.mubr.bf16.gmra.mxu0 %v1767
      %v2039 = vpop.f32.mrf.mxu0
      %v2040 = vadd.f32 %v1652, %v2039
      %v2041 = vpop.f32.mrf.mxu0
      %v2042 = vpop.f32.mrf.mxu0
      %v2043 = vadd.f32 %v1655, %v2042
      %v2044 = vpop.f32.mrf.mxu0
      %2045 = vmatprep.mubr.bf16.mxu0 0
      %2046 = vmatmul.mubr.bf16.gmra.mxu0 %v1770
      %v2047 = vpop.f32.mrf.mxu0
      %v2048 = vadd.f32 %v1660, %v2047
      %v2049 = vpop.f32.mrf.mxu0
      %v2050 = vpop.f32.mrf.mxu0
      %v2051 = vadd.f32 %v1663, %v2050
      %v2052 = vpop.f32.mrf.mxu0
      %2053 = vmatprep.mubr.bf16.mxu0 0
      %2054 = vmatmul.mubr.bf16.gmra.mxu0 %v1773
      %v2055 = vpop.f32.mrf.mxu0
      %v2056 = vadd.f32 %v1668, %v2055
      %v2057 = vpop.f32.mrf.mxu0
      %v2058 = vpop.f32.mrf.mxu0
      %v2059 = vadd.f32 %v1671, %v2058
      %v2060 = vpop.f32.mrf.mxu0
      %2061 = vmatprep.mubr.bf16.mxu0 0
      %2062 = vmatmul.mubr.bf16.gmra.mxu0 %v1776
      %v2063 = vpop.f32.mrf.mxu0
      %v2064 = vadd.f32 %v1676, %v2063
      %v2065 = vpop.f32.mrf.mxu0
      %v2066 = vpop.f32.mrf.mxu0
      %v2067 = vadd.f32 %v1679, %v2066
      %v2068 = vpop.f32.mrf.mxu0
      %2069 = vdwg.mxu0
      %v2070 = vld [vmem:[#allocation2 + $0x2] sm:$0xff]
      %v2071 = vld [vmem:[#allocation2 + $0xa] sm:$0xff]
      %v2072 = vld [vmem:[#allocation2 + $0x1a] sm:$0xff]
      %v2073 = vld [vmem:[#allocation2 + $0x22] sm:$0xff]
      %v2074 = vld [vmem:[#allocation2 + $0x32] sm:$0xff]
      %v2075 = vld [vmem:[#allocation2 + $0x3a] sm:$0xff]
      %v2076 = vld [vmem:[#allocation2 + $0x4a] sm:$0xff]
      %v2077 = vld [vmem:[#allocation2 + $0x52] sm:$0xff]
      %v2078 = vld [vmem:[#allocation2 + $0x62] sm:$0xff]
      %v2079 = vld [vmem:[#allocation2 + $0x6a] sm:$0xff]
      %v2080 = vld [vmem:[#allocation2 + $0x7a] sm:$0xff]
      %v2081 = vld [vmem:[#allocation2 + $0x82] sm:$0xff]
      %v2082 = vld [vmem:[#allocation2 + $0x92] sm:$0xff]
      %v2083 = vld [vmem:[#allocation2 + $0x9a] sm:$0xff]
      %v2084 = vld [vmem:[#allocation2 + $0xaa] sm:$0xff]
      %v2085 = vld [vmem:[#allocation2 + $0xb2] sm:$0xff]
      %v2086 = vld [vmem:[#allocation2 + $0xc2] sm:$0xff]
      %v2087 = vld [vmem:[#allocation2 + $0xca] sm:$0xff]
      %v2088 = vld [vmem:[#allocation2 + $0xda] sm:$0xff]
      %v2089 = vld [vmem:[#allocation2 + $0xe2] sm:$0xff]
      %v2090 = vld [vmem:[#allocation2 + $0xf2] sm:$0xff]
      %v2091 = vld [vmem:[#allocation2 + $0xfa] sm:$0xff]
      %v2092 = vld [vmem:[#allocation2 + $0x10a] sm:$0xff]
      %v2093 = vld [vmem:[#allocation2 + $0x112] sm:$0xff]
      %v2094 = vld [vmem:[#allocation2 + $0x122] sm:$0xff]
      %v2095 = vld [vmem:[#allocation2 + $0x12a] sm:$0xff]
      %v2096 = vld [vmem:[#allocation2 + $0x13a] sm:$0xff]
      %v2097 = vld [vmem:[#allocation2 + $0x142] sm:$0xff]
      %v2098 = vld [vmem:[#allocation2 + $0x152] sm:$0xff]
      %v2099 = vld [vmem:[#allocation2 + $0x15a] sm:$0xff]
      %v2100 = vld [vmem:[#allocation2 + $0x16a] sm:$0xff]
      %v2101 = vld [vmem:[#allocation2 + $0x172] sm:$0xff]
      %v2102 = vld [vmem:[#allocation2 + $0x1b2] sm:$0xff]
      %v2103 = vld [vmem:[#allocation2 + $0x1ba] sm:$0xff]
      %v2104 = vld [vmem:[#allocation2 + $0x1ca] sm:$0xff]
      %v2105 = vld [vmem:[#allocation2 + $0x1d2] sm:$0xff]
      %v2106 = vld [vmem:[#allocation2 + $0x1e2] sm:$0xff]
      %v2107 = vld [vmem:[#allocation2 + $0x1ea] sm:$0xff]
      %v2108 = vld [vmem:[#allocation2 + $0x1fa] sm:$0xff]
      %v2109 = vld [vmem:[#allocation2 + $0x202] sm:$0xff]
      %v2110 = vld [vmem:[#allocation2 + $0x212] sm:$0xff]
      %v2111 = vld [vmem:[#allocation2 + $0x21a] sm:$0xff]
      %v2112 = vld [vmem:[#allocation2 + $0x22a] sm:$0xff]
      %v2113 = vld [vmem:[#allocation2 + $0x232] sm:$0xff]
      %v2114 = vld [vmem:[#allocation2 + $0x242] sm:$0xff]
      %v2115 = vld [vmem:[#allocation2 + $0x24a] sm:$0xff]
      %v2116 = vld [vmem:[#allocation2 + $0x25a] sm:$0xff]
      %v2117 = vld [vmem:[#allocation2 + $0x262] sm:$0xff]
      %v2118 = vld [vmem:[#allocation2 + $0x272] sm:$0xff]
      %v2119 = vld [vmem:[#allocation2 + $0x27a] sm:$0xff]
      %v2120 = vld [vmem:[#allocation2 + $0x28a] sm:$0xff]
      %v2121 = vld [vmem:[#allocation2 + $0x292] sm:$0xff]
      %v2122 = vld [vmem:[#allocation2 + $0x2a2] sm:$0xff]
      %v2123 = vld [vmem:[#allocation2 + $0x2aa] sm:$0xff]
      %v2124 = vld [vmem:[#allocation2 + $0x2ba] sm:$0xff]
      %v2125 = vld [vmem:[#allocation2 + $0x2c2] sm:$0xff]
      %v2126 = vld [vmem:[#allocation2 + $0x2d2] sm:$0xff]
      %v2127 = vld [vmem:[#allocation2 + $0x2da] sm:$0xff]
      %v2128 = vld [vmem:[#allocation2 + $0x2ea] sm:$0xff]
      %v2129 = vld [vmem:[#allocation2 + $0x2f2] sm:$0xff]
      %v2130 = vld [vmem:[#allocation2 + $0x302] sm:$0xff]
      %v2131 = vld [vmem:[#allocation2 + $0x30a] sm:$0xff]
      %v2132 = vld [vmem:[#allocation2 + $0x31a] sm:$0xff]
      %v2133 = vld [vmem:[#allocation2 + $0x322] sm:$0xff]
      %v2134 = vpack.c.bf16 %v2071, %v2070
      %v2135 = vpack.c.bf16 %v2073, %v2072
      %v2136 = vpack.c.bf16 %v2075, %v2074
      %v2137 = vpack.c.bf16 %v2077, %v2076
      %v2138 = vpack.c.bf16 %v2079, %v2078
      %v2139 = vpack.c.bf16 %v2081, %v2080
      %v2140 = vpack.c.bf16 %v2083, %v2082
      %v2141 = vpack.c.bf16 %v2085, %v2084
      %v2142 = vpack.c.bf16 %v2087, %v2086
      %v2143 = vpack.c.bf16 %v2089, %v2088
      %v2144 = vpack.c.bf16 %v2091, %v2090
      %v2145 = vpack.c.bf16 %v2093, %v2092
      %v2146 = vpack.c.bf16 %v2095, %v2094
      %v2147 = vpack.c.bf16 %v2097, %v2096
      %v2148 = vpack.c.bf16 %v2099, %v2098
      %v2149 = vpack.c.bf16 %v2101, %v2100
      %v2150 = vpack.c.bf16 %v2103, %v2102
      %v2151 = vpack.c.bf16 %v2105, %v2104
      %v2152 = vpack.c.bf16 %v2107, %v2106
      %v2153 = vpack.c.bf16 %v2109, %v2108
      %v2154 = vpack.c.bf16 %v2111, %v2110
      %v2155 = vpack.c.bf16 %v2113, %v2112
      %v2156 = vpack.c.bf16 %v2115, %v2114
      %v2157 = vpack.c.bf16 %v2117, %v2116
      %v2158 = vpack.c.bf16 %v2119, %v2118
      %v2159 = vpack.c.bf16 %v2121, %v2120
      %v2160 = vpack.c.bf16 %v2123, %v2122
      %v2161 = vpack.c.bf16 %v2125, %v2124
      %v2162 = vpack.c.bf16 %v2127, %v2126
      %v2163 = vpack.c.bf16 %v2129, %v2128
      %v2164 = vpack.c.bf16 %v2131, %v2130
      %v2165 = vpack.c.bf16 %v2133, %v2132
      %s2166 = scalar_lea.vmem %s3, 4
      %v2167 = vld [vmem:[%s2166] sm:$0x3]
      %v2169 = vsel %vm923, %v2134, 0
      %v2172 = vsel %vm923, %v2135, 0
      %v2175 = vsel %vm923, %v2136, 0
      %v2178 = vsel %vm923, %v2137, 0
      %v2181 = vsel %vm923, %v2138, 0
      %v2184 = vsel %vm923, %v2139, 0
      %v2187 = vsel %vm923, %v2140, 0
      %v2190 = vsel %vm923, %v2141, 0
      %v2193 = vsel %vm923, %v2142, 0
      %v2196 = vsel %vm923, %v2143, 0
      %v2199 = vsel %vm923, %v2144, 0
      %v2202 = vsel %vm923, %v2145, 0
      %v2205 = vsel %vm923, %v2146, 0
      %v2208 = vsel %vm923, %v2147, 0
      %v2211 = vsel %vm923, %v2148, 0
      %v2214 = vsel %vm923, %v2149, 0
      %v2217 = vsel %vm923, %v2150, 0
      %v2220 = vsel %vm923, %v2151, 0
      %v2223 = vsel %vm923, %v2152, 0
      %v2226 = vsel %vm923, %v2153, 0
      %v2229 = vsel %vm923, %v2154, 0
      %v2232 = vsel %vm923, %v2155, 0
      %v2235 = vsel %vm923, %v2156, 0
      %v2238 = vsel %vm923, %v2157, 0
      %v2241 = vsel %vm923, %v2158, 0
      %v2244 = vsel %vm923, %v2159, 0
      %v2247 = vsel %vm923, %v2160, 0
      %v2250 = vsel %vm923, %v2161, 0
      %v2253 = vsel %vm923, %v2162, 0
      %v2256 = vsel %vm923, %v2163, 0
      %v2259 = vsel %vm923, %v2164, 0
      %v2262 = vsel %vm923, %v2165, 0
      %v2265 = vsel %vm1389, %v2167, 0
      %2267 = vmatprep.subr.bf16.mxu0 0
      %2268 = vmatpush1.bf16.msra.mxu0 0
      %2269 = vmatprep.subr.bf16.mxu0 0
      %2270 = vmatpush1.bf16.msra.mxu0 0
      %2271 = vmatprep.subr.bf16.mxu0 0
      %2272 = vmatpush1.bf16.msra.mxu0 0
      %2273 = vmatprep.subr.bf16.mxu0 0
      %2274 = vmatpush1.bf16.msra.mxu0 0
      %2275 = vmatprep.subr.bf16.mxu0 0
      %2276 = vmatpush1.bf16.msra.mxu0 0
      %2277 = vmatprep.subr.bf16.mxu0 0
      %2278 = vmatpush1.bf16.msra.mxu0 0
      %2279 = vmatprep.subr.bf16.mxu0 0
      %2280 = vmatpush1.bf16.msra.mxu0 0
      %2281 = vmatprep.subr.bf16.mxu0 0
      %2282 = vmatpush1.bf16.msra.mxu0 %v2265
      %2283 = vmatprep.subr.bf16.mxu0 0
      %2284 = vmatpush2.bf16.msra.mxu0 0
      %2285 = vmatprep.subr.bf16.mxu0 0
      %2286 = vmatpush2.bf16.msra.mxu0 0
      %2287 = vmatprep.subr.bf16.mxu0 0
      %2288 = vmatpush2.bf16.msra.mxu0 0
      %2289 = vmatprep.subr.bf16.mxu0 0
      %2290 = vmatpush2.bf16.msra.mxu0 0
      %2291 = vmatprep.subr.bf16.mxu0 0
      %2292 = vmatpush2.bf16.msra.mxu0 0
      %2293 = vmatprep.subr.bf16.mxu0 0
      %2294 = vmatpush2.bf16.msra.mxu0 0
      %2295 = vmatprep.subr.bf16.mxu0 0
      %2296 = vmatpush2.bf16.msra.mxu0 0
      %2297 = vmatprep.subr.bf16.mxu0 0
      %2298 = vmatpush2.bf16.msra.mxu0 0
      %2299 = vmatprep.mubr.bf16.mxu0 0
      %2300 = vmatmul.mubr.bf16.gmra.mxu0 %v2169
      %v2301 = vpop.f32.mrf.mxu0
      %v2302 = vadd.f32 0.0, %v2301
      %v2303 = vpop.f32.mrf.mxu0
      %v2304 = vpop.f32.mrf.mxu0
      %v2305 = vadd.f32 0.0, %v2304
      %v2306 = vpop.f32.mrf.mxu0
      %2307 = vmatprep.mubr.bf16.mxu0 0
      %2308 = vmatmul.mubr.bf16.gmra.mxu0 %v2172
      %v2309 = vpop.f32.mrf.mxu0
      %v2310 = vadd.f32 0.0, %v2309
      %v2311 = vpop.f32.mrf.mxu0
      %v2312 = vpop.f32.mrf.mxu0
      %v2313 = vadd.f32 0.0, %v2312
      %v2314 = vpop.f32.mrf.mxu0
      %2315 = vmatprep.mubr.bf16.mxu0 0
      %2316 = vmatmul.mubr.bf16.gmra.mxu0 %v2175
      %v2317 = vpop.f32.mrf.mxu0
      %v2318 = vadd.f32 0.0, %v2317
      %v2319 = vpop.f32.mrf.mxu0
      %v2320 = vpop.f32.mrf.mxu0
      %v2321 = vadd.f32 0.0, %v2320
      %v2322 = vpop.f32.mrf.mxu0
      %2323 = vmatprep.mubr.bf16.mxu0 0
      %2324 = vmatmul.mubr.bf16.gmra.mxu0 %v2178
      %v2325 = vpop.f32.mrf.mxu0
      %v2326 = vadd.f32 0.0, %v2325
      %v2327 = vpop.f32.mrf.mxu0
      %v2328 = vpop.f32.mrf.mxu0
      %v2329 = vadd.f32 0.0, %v2328
      %v2330 = vpop.f32.mrf.mxu0
      %2331 = vmatprep.mubr.bf16.mxu0 0
      %2332 = vmatmul.mubr.bf16.gmra.mxu0 %v2181
      %v2333 = vpop.f32.mrf.mxu0
      %v2334 = vadd.f32 0.0, %v2333
      %v2335 = vpop.f32.mrf.mxu0
      %v2336 = vpop.f32.mrf.mxu0
      %v2337 = vadd.f32 0.0, %v2336
      %v2338 = vpop.f32.mrf.mxu0
      %2339 = vmatprep.mubr.bf16.mxu0 0
      %2340 = vmatmul.mubr.bf16.gmra.mxu0 %v2184
      %v2341 = vpop.f32.mrf.mxu0
      %v2342 = vadd.f32 0.0, %v2341
      %v2343 = vpop.f32.mrf.mxu0
      %v2344 = vpop.f32.mrf.mxu0
      %v2345 = vadd.f32 0.0, %v2344
      %v2346 = vpop.f32.mrf.mxu0
      %2347 = vmatprep.mubr.bf16.mxu0 0
      %2348 = vmatmul.mubr.bf16.gmra.mxu0 %v2187
      %v2349 = vpop.f32.mrf.mxu0
      %v2350 = vadd.f32 0.0, %v2349
      %v2351 = vpop.f32.mrf.mxu0
      %v2352 = vpop.f32.mrf.mxu0
      %v2353 = vadd.f32 0.0, %v2352
      %v2354 = vpop.f32.mrf.mxu0
      %2355 = vmatprep.mubr.bf16.mxu0 0
      %2356 = vmatmul.mubr.bf16.gmra.mxu0 %v2190
      %v2357 = vpop.f32.mrf.mxu0
      %v2358 = vadd.f32 0.0, %v2357
      %v2359 = vpop.f32.mrf.mxu0
      %v2360 = vpop.f32.mrf.mxu0
      %v2361 = vadd.f32 0.0, %v2360
      %v2362 = vpop.f32.mrf.mxu0
      %2363 = vmatprep.mubr.bf16.mxu0 0
      %2364 = vmatmul.mubr.bf16.gmra.mxu0 %v2193
      %v2365 = vpop.f32.mrf.mxu0
      %v2366 = vadd.f32 0.0, %v2365
      %v2367 = vpop.f32.mrf.mxu0
      %v2368 = vpop.f32.mrf.mxu0
      %v2369 = vadd.f32 0.0, %v2368
      %v2370 = vpop.f32.mrf.mxu0
      %2371 = vmatprep.mubr.bf16.mxu0 0
      %2372 = vmatmul.mubr.bf16.gmra.mxu0 %v2196
      %v2373 = vpop.f32.mrf.mxu0
      %v2374 = vadd.f32 0.0, %v2373
      %v2375 = vpop.f32.mrf.mxu0
      %v2376 = vpop.f32.mrf.mxu0
      %v2377 = vadd.f32 0.0, %v2376
      %v2378 = vpop.f32.mrf.mxu0
      %2379 = vmatprep.mubr.bf16.mxu0 0
      %2380 = vmatmul.mubr.bf16.gmra.mxu0 %v2199
      %v2381 = vpop.f32.mrf.mxu0
      %v2382 = vadd.f32 0.0, %v2381
      %v2383 = vpop.f32.mrf.mxu0
      %v2384 = vpop.f32.mrf.mxu0
      %v2385 = vadd.f32 0.0, %v2384
      %v2386 = vpop.f32.mrf.mxu0
      %2387 = vmatprep.mubr.bf16.mxu0 0
      %2388 = vmatmul.mubr.bf16.gmra.mxu0 %v2202
      %v2389 = vpop.f32.mrf.mxu0
      %v2390 = vadd.f32 0.0, %v2389
      %v2391 = vpop.f32.mrf.mxu0
      %v2392 = vpop.f32.mrf.mxu0
      %v2393 = vadd.f32 0.0, %v2392
      %v2394 = vpop.f32.mrf.mxu0
      %2395 = vmatprep.mubr.bf16.mxu0 0
      %2396 = vmatmul.mubr.bf16.gmra.mxu0 %v2205
      %v2397 = vpop.f32.mrf.mxu0
      %v2398 = vadd.f32 0.0, %v2397
      %v2399 = vpop.f32.mrf.mxu0
      %v2400 = vpop.f32.mrf.mxu0
      %v2401 = vadd.f32 0.0, %v2400
      %v2402 = vpop.f32.mrf.mxu0
      %2403 = vmatprep.mubr.bf16.mxu0 0
      %2404 = vmatmul.mubr.bf16.gmra.mxu0 %v2208
      %v2405 = vpop.f32.mrf.mxu0
      %v2406 = vadd.f32 0.0, %v2405
      %v2407 = vpop.f32.mrf.mxu0
      %v2408 = vpop.f32.mrf.mxu0
      %v2409 = vadd.f32 0.0, %v2408
      %v2410 = vpop.f32.mrf.mxu0
      %2411 = vmatprep.mubr.bf16.mxu0 0
      %2412 = vmatmul.mubr.bf16.gmra.mxu0 %v2211
      %v2413 = vpop.f32.mrf.mxu0
      %v2414 = vadd.f32 0.0, %v2413
      %v2415 = vpop.f32.mrf.mxu0
      %v2416 = vpop.f32.mrf.mxu0
      %v2417 = vadd.f32 0.0, %v2416
      %v2418 = vpop.f32.mrf.mxu0
      %2419 = vmatprep.mubr.bf16.mxu0 0
      %2420 = vmatmul.mubr.bf16.gmra.mxu0 %v2214
      %v2421 = vpop.f32.mrf.mxu0
      %v2422 = vadd.f32 0.0, %v2421
      %v2423 = vpop.f32.mrf.mxu0
      %v2424 = vpop.f32.mrf.mxu0
      %v2425 = vadd.f32 0.0, %v2424
      %v2426 = vpop.f32.mrf.mxu0
      %2427 = vmatprep.mubr.bf16.mxu0 0
      %2428 = vmatmul.mubr.bf16.gmra.mxu0 %v2217
      %v2429 = vpop.f32.mrf.mxu0
      %v2430 = vadd.f32 0.0, %v2429
      %v2431 = vpop.f32.mrf.mxu0
      %v2432 = vpop.f32.mrf.mxu0
      %v2433 = vadd.f32 0.0, %v2432
      %v2434 = vpop.f32.mrf.mxu0
      %2435 = vmatprep.mubr.bf16.mxu0 0
      %2436 = vmatmul.mubr.bf16.gmra.mxu0 %v2220
      %v2437 = vpop.f32.mrf.mxu0
      %v2438 = vadd.f32 0.0, %v2437
      %v2439 = vpop.f32.mrf.mxu0
      %v2440 = vpop.f32.mrf.mxu0
      %v2441 = vadd.f32 0.0, %v2440
      %v2442 = vpop.f32.mrf.mxu0
      %2443 = vmatprep.mubr.bf16.mxu0 0
      %2444 = vmatmul.mubr.bf16.gmra.mxu0 %v2223
      %v2445 = vpop.f32.mrf.mxu0
      %v2446 = vadd.f32 0.0, %v2445
      %v2447 = vpop.f32.mrf.mxu0
      %v2448 = vpop.f32.mrf.mxu0
      %v2449 = vadd.f32 0.0, %v2448
      %v2450 = vpop.f32.mrf.mxu0
      %2451 = vmatprep.mubr.bf16.mxu0 0
      %2452 = vmatmul.mubr.bf16.gmra.mxu0 %v2226
      %v2453 = vpop.f32.mrf.mxu0
      %v2454 = vadd.f32 0.0, %v2453
      %v2455 = vpop.f32.mrf.mxu0
      %v2456 = vpop.f32.mrf.mxu0
      %v2457 = vadd.f32 0.0, %v2456
      %v2458 = vpop.f32.mrf.mxu0
      %2459 = vmatprep.mubr.bf16.mxu0 0
      %2460 = vmatmul.mubr.bf16.gmra.mxu0 %v2229
      %v2461 = vpop.f32.mrf.mxu0
      %v2462 = vadd.f32 0.0, %v2461
      %v2463 = vpop.f32.mrf.mxu0
      %v2464 = vpop.f32.mrf.mxu0
      %v2465 = vadd.f32 0.0, %v2464
      %v2466 = vpop.f32.mrf.mxu0
      %2467 = vmatprep.mubr.bf16.mxu0 0
      %2468 = vmatmul.mubr.bf16.gmra.mxu0 %v2232
      %v2469 = vpop.f32.mrf.mxu0
      %v2470 = vadd.f32 0.0, %v2469
      %v2471 = vpop.f32.mrf.mxu0
      %v2472 = vpop.f32.mrf.mxu0
      %v2473 = vadd.f32 0.0, %v2472
      %v2474 = vpop.f32.mrf.mxu0
      %2475 = vmatprep.mubr.bf16.mxu0 0
      %2476 = vmatmul.mubr.bf16.gmra.mxu0 %v2235
      %v2477 = vpop.f32.mrf.mxu0
      %v2478 = vadd.f32 0.0, %v2477
      %v2479 = vpop.f32.mrf.mxu0
      %v2480 = vpop.f32.mrf.mxu0
      %v2481 = vadd.f32 0.0, %v2480
      %v2482 = vpop.f32.mrf.mxu0
      %2483 = vmatprep.mubr.bf16.mxu0 0
      %2484 = vmatmul.mubr.bf16.gmra.mxu0 %v2238
      %v2485 = vpop.f32.mrf.mxu0
      %v2486 = vadd.f32 0.0, %v2485
      %v2487 = vpop.f32.mrf.mxu0
      %v2488 = vpop.f32.mrf.mxu0
      %v2489 = vadd.f32 0.0, %v2488
      %v2490 = vpop.f32.mrf.mxu0
      %2491 = vmatprep.mubr.bf16.mxu0 0
      %2492 = vmatmul.mubr.bf16.gmra.mxu0 %v2241
      %v2493 = vpop.f32.mrf.mxu0
      %v2494 = vadd.f32 0.0, %v2493
      %v2495 = vpop.f32.mrf.mxu0
      %v2496 = vpop.f32.mrf.mxu0
      %v2497 = vadd.f32 0.0, %v2496
      %v2498 = vpop.f32.mrf.mxu0
      %2499 = vmatprep.mubr.bf16.mxu0 0
      %2500 = vmatmul.mubr.bf16.gmra.mxu0 %v2244
      %v2501 = vpop.f32.mrf.mxu0
      %v2502 = vadd.f32 0.0, %v2501
      %v2503 = vpop.f32.mrf.mxu0
      %v2504 = vpop.f32.mrf.mxu0
      %v2505 = vadd.f32 0.0, %v2504
      %v2506 = vpop.f32.mrf.mxu0
      %2507 = vmatprep.mubr.bf16.mxu0 0
      %2508 = vmatmul.mubr.bf16.gmra.mxu0 %v2247
      %v2509 = vpop.f32.mrf.mxu0
      %v2510 = vadd.f32 0.0, %v2509
      %v2511 = vpop.f32.mrf.mxu0
      %v2512 = vpop.f32.mrf.mxu0
      %v2513 = vadd.f32 0.0, %v2512
      %v2514 = vpop.f32.mrf.mxu0
      %2515 = vmatprep.mubr.bf16.mxu0 0
      %2516 = vmatmul.mubr.bf16.gmra.mxu0 %v2250
      %v2517 = vpop.f32.mrf.mxu0
      %v2518 = vadd.f32 0.0, %v2517
      %v2519 = vpop.f32.mrf.mxu0
      %v2520 = vpop.f32.mrf.mxu0
      %v2521 = vadd.f32 0.0, %v2520
      %v2522 = vpop.f32.mrf.mxu0
      %2523 = vmatprep.mubr.bf16.mxu0 0
      %2524 = vmatmul.mubr.bf16.gmra.mxu0 %v2253
      %v2525 = vpop.f32.mrf.mxu0
      %v2526 = vadd.f32 0.0, %v2525
      %v2527 = vpop.f32.mrf.mxu0
      %v2528 = vpop.f32.mrf.mxu0
      %v2529 = vadd.f32 0.0, %v2528
      %v2530 = vpop.f32.mrf.mxu0
      %2531 = vmatprep.mubr.bf16.mxu0 0
      %2532 = vmatmul.mubr.bf16.gmra.mxu0 %v2256
      %v2533 = vpop.f32.mrf.mxu0
      %v2534 = vadd.f32 0.0, %v2533
      %v2535 = vpop.f32.mrf.mxu0
      %v2536 = vpop.f32.mrf.mxu0
      %v2537 = vadd.f32 0.0, %v2536
      %v2538 = vpop.f32.mrf.mxu0
      %2539 = vmatprep.mubr.bf16.mxu0 0
      %2540 = vmatmul.mubr.bf16.gmra.mxu0 %v2259
      %v2541 = vpop.f32.mrf.mxu0
      %v2542 = vadd.f32 0.0, %v2541
      %v2543 = vpop.f32.mrf.mxu0
      %v2544 = vpop.f32.mrf.mxu0
      %v2545 = vadd.f32 0.0, %v2544
      %v2546 = vpop.f32.mrf.mxu0
      %2547 = vmatprep.mubr.bf16.mxu0 0
      %2548 = vmatmul.mubr.bf16.gmra.mxu0 %v2262
      %v2549 = vpop.f32.mrf.mxu0
      %v2550 = vadd.f32 0.0, %v2549
      %v2551 = vpop.f32.mrf.mxu0
      %v2552 = vpop.f32.mrf.mxu0
      %v2553 = vadd.f32 0.0, %v2552
      %v2554 = vpop.f32.mrf.mxu0
      %2555 = vdwg.mxu0
      %v2556 = vadd.f32 %v1816, %v2302
      %v2557 = vadd.f32 %v1819, %v2305
      %v2558 = vadd.f32 %v1824, %v2310
      %v2559 = vadd.f32 %v1827, %v2313
      %v2560 = vadd.f32 %v1832, %v2318
      %v2561 = vadd.f32 %v1835, %v2321
      %v2562 = vadd.f32 %v1840, %v2326
      %v2563 = vadd.f32 %v1843, %v2329
      %v2564 = vadd.f32 %v1848, %v2334
      %v2565 = vadd.f32 %v1851, %v2337
      %v2566 = vadd.f32 %v1856, %v2342
      %v2567 = vadd.f32 %v1859, %v2345
      %v2568 = vadd.f32 %v1864, %v2350
      %v2569 = vadd.f32 %v1867, %v2353
      %v2570 = vadd.f32 %v1872, %v2358
      %v2571 = vadd.f32 %v1875, %v2361
      %v2572 = vadd.f32 %v1880, %v2366
      %v2573 = vadd.f32 %v1883, %v2369
      %v2574 = vadd.f32 %v1888, %v2374
      %v2575 = vadd.f32 %v1891, %v2377
      %v2576 = vadd.f32 %v1896, %v2382
      %v2577 = vadd.f32 %v1899, %v2385
      %v2578 = vadd.f32 %v1904, %v2390
      %v2579 = vadd.f32 %v1907, %v2393
      %v2580 = vadd.f32 %v1912, %v2398
      %v2581 = vadd.f32 %v1915, %v2401
      %v2582 = vadd.f32 %v1920, %v2406
      %v2583 = vadd.f32 %v1923, %v2409
      %v2584 = vadd.f32 %v1928, %v2414
      %v2585 = vadd.f32 %v1931, %v2417
      %v2586 = vadd.f32 %v1936, %v2422
      %v2587 = vadd.f32 %v1939, %v2425
      %v2588 = vadd.f32 %v1944, %v2430
      %v2589 = vadd.f32 %v1947, %v2433
      %v2590 = vadd.f32 %v1952, %v2438
      %v2591 = vadd.f32 %v1955, %v2441
      %v2592 = vadd.f32 %v1960, %v2446
      %v2593 = vadd.f32 %v1963, %v2449
      %v2594 = vadd.f32 %v1968, %v2454
      %v2595 = vadd.f32 %v1971, %v2457
      %v2596 = vadd.f32 %v1976, %v2462
      %v2597 = vadd.f32 %v1979, %v2465
      %v2598 = vadd.f32 %v1984, %v2470
      %v2599 = vadd.f32 %v1987, %v2473
      %v2600 = vadd.f32 %v1992, %v2478
      %v2601 = vadd.f32 %v1995, %v2481
      %v2602 = vadd.f32 %v2000, %v2486
      %v2603 = vadd.f32 %v2003, %v2489
      %v2604 = vadd.f32 %v2008, %v2494
      %v2605 = vadd.f32 %v2011, %v2497
      %v2606 = vadd.f32 %v2016, %v2502
      %v2607 = vadd.f32 %v2019, %v2505
      %v2608 = vadd.f32 %v2024, %v2510
      %v2609 = vadd.f32 %v2027, %v2513
      %v2610 = vadd.f32 %v2032, %v2518
      %v2611 = vadd.f32 %v2035, %v2521
      %v2612 = vadd.f32 %v2040, %v2526
      %v2613 = vadd.f32 %v2043, %v2529
      %v2614 = vadd.f32 %v2048, %v2534
      %v2615 = vadd.f32 %v2051, %v2537
      %v2616 = vadd.f32 %v2056, %v2542
      %v2617 = vadd.f32 %v2059, %v2545
      %v2618 = vadd.f32 %v2064, %v2550
      %v2619 = vadd.f32 %v2067, %v2553
      %v2620 = vld [vmem:[%s1033] sm:$0xff]
      %v2621 = vld [vmem:[%s1033 + $0x8] sm:$0xff]
      %v2622 = vld [vmem:[%s1033 + $0x18] sm:$0xff]
      %v2623 = vld [vmem:[%s1033 + $0x20] sm:$0xff]
      %v2624 = vld [vmem:[%s1033 + $0x30] sm:$0xff]
      %v2625 = vld [vmem:[%s1033 + $0x38] sm:$0xff]
      %v2626 = vld [vmem:[%s1033 + $0x48] sm:$0xff]
      %v2627 = vld [vmem:[%s1033 + $0x50] sm:$0xff]
      %v2628 = vld [vmem:[%s1033 + $0x60] sm:$0xff]
      %v2629 = vld [vmem:[%s1033 + $0x68] sm:$0xff]
      %v2630 = vld [vmem:[%s1033 + $0x78] sm:$0xff]
      %v2631 = vld [vmem:[%s1033 + $0x80] sm:$0xff]
      %v2632 = vld [vmem:[%s1033 + $0x90] sm:$0xff]
      %v2633 = vld [vmem:[%s1033 + $0x98] sm:$0xff]
      %v2634 = vld [vmem:[%s1033 + $0xa8] sm:$0xff]
      %v2635 = vld [vmem:[%s1033 + $0xb0] sm:$0xff]
      %v2636 = vld [vmem:[%s1033 + $0xc0] sm:$0xff]
      %v2637 = vld [vmem:[%s1033 + $0xc8] sm:$0xff]
      %v2638 = vld [vmem:[%s1033 + $0xd8] sm:$0xff]
      %v2639 = vld [vmem:[%s1033 + $0xe0] sm:$0xff]
      %v2640 = vld [vmem:[%s1033 + $0xf0] sm:$0xff]
      %v2641 = vld [vmem:[%s1033 + $0xf8] sm:$0xff]
      %v2642 = vld [vmem:[%s1033 + $0x108] sm:$0xff]
      %v2643 = vld [vmem:[%s1033 + $0x110] sm:$0xff]
      %v2644 = vld [vmem:[%s1033 + $0x120] sm:$0xff]
      %v2645 = vld [vmem:[%s1033 + $0x128] sm:$0xff]
      %v2646 = vld [vmem:[%s1033 + $0x138] sm:$0xff]
      %v2647 = vld [vmem:[%s1033 + $0x140] sm:$0xff]
      %v2648 = vld [vmem:[%s1033 + $0x150] sm:$0xff]
      %v2649 = vld [vmem:[%s1033 + $0x158] sm:$0xff]
      %v2650 = vld [vmem:[%s1033 + $0x168] sm:$0xff]
      %v2651 = vld [vmem:[%s1033 + $0x170] sm:$0xff]
      %v2652 = vld [vmem:[%s1033 + $0x1b0] sm:$0xff]
      %v2653 = vld [vmem:[%s1033 + $0x1b8] sm:$0xff]
      %v2654 = vld [vmem:[%s1033 + $0x1c8] sm:$0xff]
      %v2655 = vld [vmem:[%s1033 + $0x1d0] sm:$0xff]
      %v2656 = vld [vmem:[%s1033 + $0x1e0] sm:$0xff]
      %v2657 = vld [vmem:[%s1033 + $0x1e8] sm:$0xff]
      %v2658 = vld [vmem:[%s1033 + $0x1f8] sm:$0xff]
      %v2659 = vld [vmem:[%s1033 + $0x200] sm:$0xff]
      %v2660 = vld [vmem:[%s1033 + $0x210] sm:$0xff]
      %v2661 = vld [vmem:[%s1033 + $0x218] sm:$0xff]
      %v2662 = vld [vmem:[%s1033 + $0x228] sm:$0xff]
      %v2663 = vld [vmem:[%s1033 + $0x230] sm:$0xff]
      %v2664 = vld [vmem:[%s1033 + $0x240] sm:$0xff]
      %v2665 = vld [vmem:[%s1033 + $0x248] sm:$0xff]
      %v2666 = vld [vmem:[%s1033 + $0x258] sm:$0xff]
      %v2667 = vld [vmem:[%s1033 + $0x260] sm:$0xff]
      %v2668 = vld [vmem:[%s1033 + $0x270] sm:$0xff]
      %v2669 = vld [vmem:[%s1033 + $0x278] sm:$0xff]
      %v2670 = vld [vmem:[%s1033 + $0x288] sm:$0xff]
      %v2671 = vld [vmem:[%s1033 + $0x290] sm:$0xff]
      %v2672 = vld [vmem:[%s1033 + $0x2a0] sm:$0xff]
      %v2673 = vld [vmem:[%s1033 + $0x2a8] sm:$0xff]
      %v2674 = vld [vmem:[%s1033 + $0x2b8] sm:$0xff]
      %v2675 = vld [vmem:[%s1033 + $0x2c0] sm:$0xff]
      %v2676 = vld [vmem:[%s1033 + $0x2d0] sm:$0xff]
      %v2677 = vld [vmem:[%s1033 + $0x2d8] sm:$0xff]
      %v2678 = vld [vmem:[%s1033 + $0x2e8] sm:$0xff]
      %v2679 = vld [vmem:[%s1033 + $0x2f0] sm:$0xff]
      %v2680 = vld [vmem:[%s1033 + $0x300] sm:$0xff]
      %v2681 = vld [vmem:[%s1033 + $0x308] sm:$0xff]
      %v2682 = vld [vmem:[%s1033 + $0x318] sm:$0xff]
      %v2683 = vld [vmem:[%s1033 + $0x320] sm:$0xff]
      %v2684 = vpack.c.bf16 %v2621, %v2620
      %v2685 = vpack.c.bf16 %v2623, %v2622
      %v2686 = vpack.c.bf16 %v2625, %v2624
      %v2687 = vpack.c.bf16 %v2627, %v2626
      %v2688 = vpack.c.bf16 %v2629, %v2628
      %v2689 = vpack.c.bf16 %v2631, %v2630
      %v2690 = vpack.c.bf16 %v2633, %v2632
      %v2691 = vpack.c.bf16 %v2635, %v2634
      %v2692 = vpack.c.bf16 %v2637, %v2636
      %v2693 = vpack.c.bf16 %v2639, %v2638
      %v2694 = vpack.c.bf16 %v2641, %v2640
      %v2695 = vpack.c.bf16 %v2643, %v2642
      %v2696 = vpack.c.bf16 %v2645, %v2644
      %v2697 = vpack.c.bf16 %v2647, %v2646
      %v2698 = vpack.c.bf16 %v2649, %v2648
      %v2699 = vpack.c.bf16 %v2651, %v2650
      %v2700 = vpack.c.bf16 %v2653, %v2652
      %v2701 = vpack.c.bf16 %v2655, %v2654
      %v2702 = vpack.c.bf16 %v2657, %v2656
      %v2703 = vpack.c.bf16 %v2659, %v2658
      %v2704 = vpack.c.bf16 %v2661, %v2660
      %v2705 = vpack.c.bf16 %v2663, %v2662
      %v2706 = vpack.c.bf16 %v2665, %v2664
      %v2707 = vpack.c.bf16 %v2667, %v2666
      %v2708 = vpack.c.bf16 %v2669, %v2668
      %v2709 = vpack.c.bf16 %v2671, %v2670
      %v2710 = vpack.c.bf16 %v2673, %v2672
      %v2711 = vpack.c.bf16 %v2675, %v2674
      %v2712 = vpack.c.bf16 %v2677, %v2676
      %v2713 = vpack.c.bf16 %v2679, %v2678
      %v2714 = vpack.c.bf16 %v2681, %v2680
      %v2715 = vpack.c.bf16 %v2683, %v2682
      %s2716 = scalar_lea.vmem %s3, 6
      %v2717 = vld [vmem:[%s2716] sm:$0x3]
      %v2719 = vsel %vm923, %v2684, 0
      %v2722 = vsel %vm923, %v2685, 0
      %v2725 = vsel %vm923, %v2686, 0
      %v2728 = vsel %vm923, %v2687, 0
      %v2731 = vsel %vm923, %v2688, 0
      %v2734 = vsel %vm923, %v2689, 0
      %v2737 = vsel %vm923, %v2690, 0
      %v2740 = vsel %vm923, %v2691, 0
      %v2743 = vsel %vm923, %v2692, 0
      %v2746 = vsel %vm923, %v2693, 0
      %v2749 = vsel %vm923, %v2694, 0
      %v2752 = vsel %vm923, %v2695, 0
      %v2755 = vsel %vm923, %v2696, 0
      %v2758 = vsel %vm923, %v2697, 0
      %v2761 = vsel %vm923, %v2698, 0
      %v2764 = vsel %vm923, %v2699, 0
      %v2767 = vsel %vm923, %v2700, 0
      %v2770 = vsel %vm923, %v2701, 0
      %v2773 = vsel %vm923, %v2702, 0
      %v2776 = vsel %vm923, %v2703, 0
      %v2779 = vsel %vm923, %v2704, 0
      %v2782 = vsel %vm923, %v2705, 0
      %v2785 = vsel %vm923, %v2706, 0
      %v2788 = vsel %vm923, %v2707, 0
      %v2791 = vsel %vm923, %v2708, 0
      %v2794 = vsel %vm923, %v2709, 0
      %v2797 = vsel %vm923, %v2710, 0
      %v2800 = vsel %vm923, %v2711, 0
      %v2803 = vsel %vm923, %v2712, 0
      %v2806 = vsel %vm923, %v2713, 0
      %v2809 = vsel %vm923, %v2714, 0
      %v2812 = vsel %vm923, %v2715, 0
      %v2815 = vsel %vm1389, %v2717, 0
      %2817 = vmatprep.subr.bf16.mxu0 0
      %2818 = vmatpush1.bf16.msra.mxu0 0
      %2819 = vmatprep.subr.bf16.mxu0 0
      %2820 = vmatpush1.bf16.msra.mxu0 0
      %2821 = vmatprep.subr.bf16.mxu0 0
      %2822 = vmatpush1.bf16.msra.mxu0 0
      %2823 = vmatprep.subr.bf16.mxu0 0
      %2824 = vmatpush1.bf16.msra.mxu0 0
      %2825 = vmatprep.subr.bf16.mxu0 0
      %2826 = vmatpush1.bf16.msra.mxu0 0
      %2827 = vmatprep.subr.bf16.mxu0 0
      %2828 = vmatpush1.bf16.msra.mxu0 0
      %2829 = vmatprep.subr.bf16.mxu0 0
      %2830 = vmatpush1.bf16.msra.mxu0 0
      %2831 = vmatprep.subr.bf16.mxu0 0
      %2832 = vmatpush1.bf16.msra.mxu0 %v2815
      %2833 = vmatprep.subr.bf16.mxu0 0
      %2834 = vmatpush2.bf16.msra.mxu0 0
      %2835 = vmatprep.subr.bf16.mxu0 0
      %2836 = vmatpush2.bf16.msra.mxu0 0
      %2837 = vmatprep.subr.bf16.mxu0 0
      %2838 = vmatpush2.bf16.msra.mxu0 0
      %2839 = vmatprep.subr.bf16.mxu0 0
      %2840 = vmatpush2.bf16.msra.mxu0 0
      %2841 = vmatprep.subr.bf16.mxu0 0
      %2842 = vmatpush2.bf16.msra.mxu0 0
      %2843 = vmatprep.subr.bf16.mxu0 0
      %2844 = vmatpush2.bf16.msra.mxu0 0
      %2845 = vmatprep.subr.bf16.mxu0 0
      %2846 = vmatpush2.bf16.msra.mxu0 0
      %2847 = vmatprep.subr.bf16.mxu0 0
      %2848 = vmatpush2.bf16.msra.mxu0 0
      %2849 = vmatprep.mubr.bf16.mxu0 0
      %2850 = vmatmul.mubr.bf16.gmra.mxu0 %v2719
      %v2851 = vpop.f32.mrf.mxu0
      %v2852 = vadd.f32 0.0, %v2851
      %v2853 = vpop.f32.mrf.mxu0
      %v2854 = vpop.f32.mrf.mxu0
      %v2855 = vadd.f32 0.0, %v2854
      %v2856 = vpop.f32.mrf.mxu0
      %2857 = vmatprep.mubr.bf16.mxu0 0
      %2858 = vmatmul.mubr.bf16.gmra.mxu0 %v2722
      %v2859 = vpop.f32.mrf.mxu0
      %v2860 = vadd.f32 0.0, %v2859
      %v2861 = vpop.f32.mrf.mxu0
      %v2862 = vpop.f32.mrf.mxu0
      %v2863 = vadd.f32 0.0, %v2862
      %v2864 = vpop.f32.mrf.mxu0
      %2865 = vmatprep.mubr.bf16.mxu0 0
      %2866 = vmatmul.mubr.bf16.gmra.mxu0 %v2725
      %v2867 = vpop.f32.mrf.mxu0
      %v2868 = vadd.f32 0.0, %v2867
      %v2869 = vpop.f32.mrf.mxu0
      %v2870 = vpop.f32.mrf.mxu0
      %v2871 = vadd.f32 0.0, %v2870
      %v2872 = vpop.f32.mrf.mxu0
      %2873 = vmatprep.mubr.bf16.mxu0 0
      %2874 = vmatmul.mubr.bf16.gmra.mxu0 %v2728
      %v2875 = vpop.f32.mrf.mxu0
      %v2876 = vadd.f32 0.0, %v2875
      %v2877 = vpop.f32.mrf.mxu0
      %v2878 = vpop.f32.mrf.mxu0
      %v2879 = vadd.f32 0.0, %v2878
      %v2880 = vpop.f32.mrf.mxu0
      %2881 = vmatprep.mubr.bf16.mxu0 0
      %2882 = vmatmul.mubr.bf16.gmra.mxu0 %v2731
      %v2883 = vpop.f32.mrf.mxu0
      %v2884 = vadd.f32 0.0, %v2883
      %v2885 = vpop.f32.mrf.mxu0
      %v2886 = vpop.f32.mrf.mxu0
      %v2887 = vadd.f32 0.0, %v2886
      %v2888 = vpop.f32.mrf.mxu0
      %2889 = vmatprep.mubr.bf16.mxu0 0
      %2890 = vmatmul.mubr.bf16.gmra.mxu0 %v2734
      %v2891 = vpop.f32.mrf.mxu0
      %v2892 = vadd.f32 0.0, %v2891
      %v2893 = vpop.f32.mrf.mxu0
      %v2894 = vpop.f32.mrf.mxu0
      %v2895 = vadd.f32 0.0, %v2894
      %v2896 = vpop.f32.mrf.mxu0
      %2897 = vmatprep.mubr.bf16.mxu0 0
      %2898 = vmatmul.mubr.bf16.gmra.mxu0 %v2737
      %v2899 = vpop.f32.mrf.mxu0
      %v2900 = vadd.f32 0.0, %v2899
      %v2901 = vpop.f32.mrf.mxu0
      %v2902 = vpop.f32.mrf.mxu0
      %v2903 = vadd.f32 0.0, %v2902
      %v2904 = vpop.f32.mrf.mxu0
      %2905 = vmatprep.mubr.bf16.mxu0 0
      %2906 = vmatmul.mubr.bf16.gmra.mxu0 %v2740
      %v2907 = vpop.f32.mrf.mxu0
      %v2908 = vadd.f32 0.0, %v2907
      %v2909 = vpop.f32.mrf.mxu0
      %v2910 = vpop.f32.mrf.mxu0
      %v2911 = vadd.f32 0.0, %v2910
      %v2912 = vpop.f32.mrf.mxu0
      %2913 = vmatprep.mubr.bf16.mxu0 0
      %2914 = vmatmul.mubr.bf16.gmra.mxu0 %v2743
      %v2915 = vpop.f32.mrf.mxu0
      %v2916 = vadd.f32 0.0, %v2915
      %v2917 = vpop.f32.mrf.mxu0
      %v2918 = vpop.f32.mrf.mxu0
      %v2919 = vadd.f32 0.0, %v2918
      %v2920 = vpop.f32.mrf.mxu0
      %2921 = vmatprep.mubr.bf16.mxu0 0
      %2922 = vmatmul.mubr.bf16.gmra.mxu0 %v2746
      %v2923 = vpop.f32.mrf.mxu0
      %v2924 = vadd.f32 0.0, %v2923
      %v2925 = vpop.f32.mrf.mxu0
      %v2926 = vpop.f32.mrf.mxu0
      %v2927 = vadd.f32 0.0, %v2926
      %v2928 = vpop.f32.mrf.mxu0
      %2929 = vmatprep.mubr.bf16.mxu0 0
      %2930 = vmatmul.mubr.bf16.gmra.mxu0 %v2749
      %v2931 = vpop.f32.mrf.mxu0
      %v2932 = vadd.f32 0.0, %v2931
      %v2933 = vpop.f32.mrf.mxu0
      %v2934 = vpop.f32.mrf.mxu0
      %v2935 = vadd.f32 0.0, %v2934
      %v2936 = vpop.f32.mrf.mxu0
      %2937 = vmatprep.mubr.bf16.mxu0 0
      %2938 = vmatmul.mubr.bf16.gmra.mxu0 %v2752
      %v2939 = vpop.f32.mrf.mxu0
      %v2940 = vadd.f32 0.0, %v2939
      %v2941 = vpop.f32.mrf.mxu0
      %v2942 = vpop.f32.mrf.mxu0
      %v2943 = vadd.f32 0.0, %v2942
      %v2944 = vpop.f32.mrf.mxu0
      %2945 = vmatprep.mubr.bf16.mxu0 0
      %2946 = vmatmul.mubr.bf16.gmra.mxu0 %v2755
      %v2947 = vpop.f32.mrf.mxu0
      %v2948 = vadd.f32 0.0, %v2947
      %v2949 = vpop.f32.mrf.mxu0
      %v2950 = vpop.f32.mrf.mxu0
      %v2951 = vadd.f32 0.0, %v2950
      %v2952 = vpop.f32.mrf.mxu0
      %2953 = vmatprep.mubr.bf16.mxu0 0
      %2954 = vmatmul.mubr.bf16.gmra.mxu0 %v2758
      %v2955 = vpop.f32.mrf.mxu0
      %v2956 = vadd.f32 0.0, %v2955
      %v2957 = vpop.f32.mrf.mxu0
      %v2958 = vpop.f32.mrf.mxu0
      %v2959 = vadd.f32 0.0, %v2958
      %v2960 = vpop.f32.mrf.mxu0
      %2961 = vmatprep.mubr.bf16.mxu0 0
      %2962 = vmatmul.mubr.bf16.gmra.mxu0 %v2761
      %v2963 = vpop.f32.mrf.mxu0
      %v2964 = vadd.f32 0.0, %v2963
      %v2965 = vpop.f32.mrf.mxu0
      %v2966 = vpop.f32.mrf.mxu0
      %v2967 = vadd.f32 0.0, %v2966
      %v2968 = vpop.f32.mrf.mxu0
      %2969 = vmatprep.mubr.bf16.mxu0 0
      %2970 = vmatmul.mubr.bf16.gmra.mxu0 %v2764
      %v2971 = vpop.f32.mrf.mxu0
      %v2972 = vadd.f32 0.0, %v2971
      %v2973 = vpop.f32.mrf.mxu0
      %v2974 = vpop.f32.mrf.mxu0
      %v2975 = vadd.f32 0.0, %v2974
      %v2976 = vpop.f32.mrf.mxu0
      %2977 = vmatprep.mubr.bf16.mxu0 0
      %2978 = vmatmul.mubr.bf16.gmra.mxu0 %v2767
      %v2979 = vpop.f32.mrf.mxu0
      %v2980 = vadd.f32 0.0, %v2979
      %v2981 = vpop.f32.mrf.mxu0
      %v2982 = vpop.f32.mrf.mxu0
      %v2983 = vadd.f32 0.0, %v2982
      %v2984 = vpop.f32.mrf.mxu0
      %2985 = vmatprep.mubr.bf16.mxu0 0
      %2986 = vmatmul.mubr.bf16.gmra.mxu0 %v2770
      %v2987 = vpop.f32.mrf.mxu0
      %v2988 = vadd.f32 0.0, %v2987
      %v2989 = vpop.f32.mrf.mxu0
      %v2990 = vpop.f32.mrf.mxu0
      %v2991 = vadd.f32 0.0, %v2990
      %v2992 = vpop.f32.mrf.mxu0
      %2993 = vmatprep.mubr.bf16.mxu0 0
      %2994 = vmatmul.mubr.bf16.gmra.mxu0 %v2773
      %v2995 = vpop.f32.mrf.mxu0
      %v2996 = vadd.f32 0.0, %v2995
      %v2997 = vpop.f32.mrf.mxu0
      %v2998 = vpop.f32.mrf.mxu0
      %v2999 = vadd.f32 0.0, %v2998
      %v3000 = vpop.f32.mrf.mxu0
      %3001 = vmatprep.mubr.bf16.mxu0 0
      %3002 = vmatmul.mubr.bf16.gmra.mxu0 %v2776
      %v3003 = vpop.f32.mrf.mxu0
      %v3004 = vadd.f32 0.0, %v3003
      %v3005 = vpop.f32.mrf.mxu0
      %v3006 = vpop.f32.mrf.mxu0
      %v3007 = vadd.f32 0.0, %v3006
      %v3008 = vpop.f32.mrf.mxu0
      %3009 = vmatprep.mubr.bf16.mxu0 0
      %3010 = vmatmul.mubr.bf16.gmra.mxu0 %v2779
      %v3011 = vpop.f32.mrf.mxu0
      %v3012 = vadd.f32 0.0, %v3011
      %v3013 = vpop.f32.mrf.mxu0
      %v3014 = vpop.f32.mrf.mxu0
      %v3015 = vadd.f32 0.0, %v3014
      %v3016 = vpop.f32.mrf.mxu0
      %3017 = vmatprep.mubr.bf16.mxu0 0
      %3018 = vmatmul.mubr.bf16.gmra.mxu0 %v2782
      %v3019 = vpop.f32.mrf.mxu0
      %v3020 = vadd.f32 0.0, %v3019
      %v3021 = vpop.f32.mrf.mxu0
      %v3022 = vpop.f32.mrf.mxu0
      %v3023 = vadd.f32 0.0, %v3022
      %v3024 = vpop.f32.mrf.mxu0
      %3025 = vmatprep.mubr.bf16.mxu0 0
      %3026 = vmatmul.mubr.bf16.gmra.mxu0 %v2785
      %v3027 = vpop.f32.mrf.mxu0
      %v3028 = vadd.f32 0.0, %v3027
      %v3029 = vpop.f32.mrf.mxu0
      %v3030 = vpop.f32.mrf.mxu0
      %v3031 = vadd.f32 0.0, %v3030
      %v3032 = vpop.f32.mrf.mxu0
      %3033 = vmatprep.mubr.bf16.mxu0 0
      %3034 = vmatmul.mubr.bf16.gmra.mxu0 %v2788
      %v3035 = vpop.f32.mrf.mxu0
      %v3036 = vadd.f32 0.0, %v3035
      %v3037 = vpop.f32.mrf.mxu0
      %v3038 = vpop.f32.mrf.mxu0
      %v3039 = vadd.f32 0.0, %v3038
      %v3040 = vpop.f32.mrf.mxu0
      %3041 = vmatprep.mubr.bf16.mxu0 0
      %3042 = vmatmul.mubr.bf16.gmra.mxu0 %v2791
      %v3043 = vpop.f32.mrf.mxu0
      %v3044 = vadd.f32 0.0, %v3043
      %v3045 = vpop.f32.mrf.mxu0
      %v3046 = vpop.f32.mrf.mxu0
      %v3047 = vadd.f32 0.0, %v3046
      %v3048 = vpop.f32.mrf.mxu0
      %3049 = vmatprep.mubr.bf16.mxu0 0
      %3050 = vmatmul.mubr.bf16.gmra.mxu0 %v2794
      %v3051 = vpop.f32.mrf.mxu0
      %v3052 = vadd.f32 0.0, %v3051
      %v3053 = vpop.f32.mrf.mxu0
      %v3054 = vpop.f32.mrf.mxu0
      %v3055 = vadd.f32 0.0, %v3054
      %v3056 = vpop.f32.mrf.mxu0
      %3057 = vmatprep.mubr.bf16.mxu0 0
      %3058 = vmatmul.mubr.bf16.gmra.mxu0 %v2797
      %v3059 = vpop.f32.mrf.mxu0
      %v3060 = vadd.f32 0.0, %v3059
      %v3061 = vpop.f32.mrf.mxu0
      %v3062 = vpop.f32.mrf.mxu0
      %v3063 = vadd.f32 0.0, %v3062
      %v3064 = vpop.f32.mrf.mxu0
      %3065 = vmatprep.mubr.bf16.mxu0 0
      %3066 = vmatmul.mubr.bf16.gmra.mxu0 %v2800
      %v3067 = vpop.f32.mrf.mxu0
      %v3068 = vadd.f32 0.0, %v3067
      %v3069 = vpop.f32.mrf.mxu0
      %v3070 = vpop.f32.mrf.mxu0
      %v3071 = vadd.f32 0.0, %v3070
      %v3072 = vpop.f32.mrf.mxu0
      %3073 = vmatprep.mubr.bf16.mxu0 0
      %3074 = vmatmul.mubr.bf16.gmra.mxu0 %v2803
      %v3075 = vpop.f32.mrf.mxu0
      %v3076 = vadd.f32 0.0, %v3075
      %v3077 = vpop.f32.mrf.mxu0
      %v3078 = vpop.f32.mrf.mxu0
      %v3079 = vadd.f32 0.0, %v3078
      %v3080 = vpop.f32.mrf.mxu0
      %3081 = vmatprep.mubr.bf16.mxu0 0
      %3082 = vmatmul.mubr.bf16.gmra.mxu0 %v2806
      %v3083 = vpop.f32.mrf.mxu0
      %v3084 = vadd.f32 0.0, %v3083
      %v3085 = vpop.f32.mrf.mxu0
      %v3086 = vpop.f32.mrf.mxu0
      %v3087 = vadd.f32 0.0, %v3086
      %v3088 = vpop.f32.mrf.mxu0
      %3089 = vmatprep.mubr.bf16.mxu0 0
      %3090 = vmatmul.mubr.bf16.gmra.mxu0 %v2809
      %v3091 = vpop.f32.mrf.mxu0
      %v3092 = vadd.f32 0.0, %v3091
      %v3093 = vpop.f32.mrf.mxu0
      %v3094 = vpop.f32.mrf.mxu0
      %v3095 = vadd.f32 0.0, %v3094
      %v3096 = vpop.f32.mrf.mxu0
      %3097 = vmatprep.mubr.bf16.mxu0 0
      %3098 = vmatmul.mubr.bf16.gmra.mxu0 %v2812
      %v3099 = vpop.f32.mrf.mxu0
      %v3100 = vadd.f32 0.0, %v3099
      %v3101 = vpop.f32.mrf.mxu0
      %v3102 = vpop.f32.mrf.mxu0
      %v3103 = vadd.f32 0.0, %v3102
      %v3104 = vpop.f32.mrf.mxu0
      %3105 = vdwg.mxu0
      %v3106 = vadd.f32 %v2556, %v2852
      %v3107 = vadd.f32 %v2557, %v2855
      %v3108 = vadd.f32 %v2558, %v2860
      %v3109 = vadd.f32 %v2559, %v2863
      %v3110 = vadd.f32 %v2560, %v2868
      %v3111 = vadd.f32 %v2561, %v2871
      %v3112 = vadd.f32 %v2562, %v2876
      %v3113 = vadd.f32 %v2563, %v2879
      %v3114 = vadd.f32 %v2564, %v2884
      %v3115 = vadd.f32 %v2565, %v2887
      %v3116 = vadd.f32 %v2566, %v2892
      %v3117 = vadd.f32 %v2567, %v2895
      %v3118 = vadd.f32 %v2568, %v2900
      %v3119 = vadd.f32 %v2569, %v2903
      %v3120 = vadd.f32 %v2570, %v2908
      %v3121 = vadd.f32 %v2571, %v2911
      %v3122 = vadd.f32 %v2572, %v2916
      %v3123 = vadd.f32 %v2573, %v2919
      %v3124 = vadd.f32 %v2574, %v2924
      %v3125 = vadd.f32 %v2575, %v2927
      %v3126 = vadd.f32 %v2576, %v2932
      %v3127 = vadd.f32 %v2577, %v2935
      %v3128 = vadd.f32 %v2578, %v2940
      %v3129 = vadd.f32 %v2579, %v2943
      %v3130 = vadd.f32 %v2580, %v2948
      %v3131 = vadd.f32 %v2581, %v2951
      %v3132 = vadd.f32 %v2582, %v2956
      %v3133 = vadd.f32 %v2583, %v2959
      %v3134 = vadd.f32 %v2584, %v2964
      %v3135 = vadd.f32 %v2585, %v2967
      %v3136 = vadd.f32 %v2586, %v2972
      %v3137 = vadd.f32 %v2587, %v2975
      %v3138 = vadd.f32 %v2588, %v2980
      %v3139 = vadd.f32 %v2589, %v2983
      %v3140 = vadd.f32 %v2590, %v2988
      %v3141 = vadd.f32 %v2591, %v2991
      %v3142 = vadd.f32 %v2592, %v2996
      %v3143 = vadd.f32 %v2593, %v2999
      %v3144 = vadd.f32 %v2594, %v3004
      %v3145 = vadd.f32 %v2595, %v3007
      %v3146 = vadd.f32 %v2596, %v3012
      %v3147 = vadd.f32 %v2597, %v3015
      %v3148 = vadd.f32 %v2598, %v3020
      %v3149 = vadd.f32 %v2599, %v3023
      %v3150 = vadd.f32 %v2600, %v3028
      %v3151 = vadd.f32 %v2601, %v3031
      %v3152 = vadd.f32 %v2602, %v3036
      %v3153 = vadd.f32 %v2603, %v3039
      %v3154 = vadd.f32 %v2604, %v3044
      %v3155 = vadd.f32 %v2605, %v3047
      %v3156 = vadd.f32 %v2606, %v3052
      %v3157 = vadd.f32 %v2607, %v3055
      %v3158 = vadd.f32 %v2608, %v3060
      %v3159 = vadd.f32 %v2609, %v3063
      %v3160 = vadd.f32 %v2610, %v3068
      %v3161 = vadd.f32 %v2611, %v3071
      %v3162 = vadd.f32 %v2612, %v3076
      %v3163 = vadd.f32 %v2613, %v3079
      %v3164 = vadd.f32 %v2614, %v3084
      %v3165 = vadd.f32 %v2615, %v3087
      %v3166 = vadd.f32 %v2616, %v3092
      %v3167 = vadd.f32 %v2617, %v3095
      %v3168 = vadd.f32 %v2618, %v3100
      %v3169 = vadd.f32 %v2619, %v3103
      %v3170 = vld [vmem:[%s1033 + $0x1] sm:$0xff]
      %v3171 = vld [vmem:[%s1033 + $0x9] sm:$0xff]
      %v3172 = vld [vmem:[%s1033 + $0x19] sm:$0xff]
      %v3173 = vld [vmem:[%s1033 + $0x21] sm:$0xff]
      %v3174 = vld [vmem:[%s1033 + $0x31] sm:$0xff]
      %v3175 = vld [vmem:[%s1033 + $0x39] sm:$0xff]
      %v3176 = vld [vmem:[%s1033 + $0x49] sm:$0xff]
      %v3177 = vld [vmem:[%s1033 + $0x51] sm:$0xff]
      %v3178 = vld [vmem:[%s1033 + $0x61] sm:$0xff]
      %v3179 = vld [vmem:[%s1033 + $0x69] sm:$0xff]
      %v3180 = vld [vmem:[%s1033 + $0x79] sm:$0xff]
      %v3181 = vld [vmem:[%s1033 + $0x81] sm:$0xff]
      %v3182 = vld [vmem:[%s1033 + $0x91] sm:$0xff]
      %v3183 = vld [vmem:[%s1033 + $0x99] sm:$0xff]
      %v3184 = vld [vmem:[%s1033 + $0xa9] sm:$0xff]
      %v3185 = vld [vmem:[%s1033 + $0xb1] sm:$0xff]
      %v3186 = vld [vmem:[%s1033 + $0xc1] sm:$0xff]
      %v3187 = vld [vmem:[%s1033 + $0xc9] sm:$0xff]
      %v3188 = vld [vmem:[%s1033 + $0xd9] sm:$0xff]
      %v3189 = vld [vmem:[%s1033 + $0xe1] sm:$0xff]
      %v3190 = vld [vmem:[%s1033 + $0xf1] sm:$0xff]
      %v3191 = vld [vmem:[%s1033 + $0xf9] sm:$0xff]
      %v3192 = vld [vmem:[%s1033 + $0x109] sm:$0xff]
      %v3193 = vld [vmem:[%s1033 + $0x111] sm:$0xff]
      %v3194 = vld [vmem:[%s1033 + $0x121] sm:$0xff]
      %v3195 = vld [vmem:[%s1033 + $0x129] sm:$0xff]
      %v3196 = vld [vmem:[%s1033 + $0x139] sm:$0xff]
      %v3197 = vld [vmem:[%s1033 + $0x141] sm:$0xff]
      %v3198 = vld [vmem:[%s1033 + $0x151] sm:$0xff]
      %v3199 = vld [vmem:[%s1033 + $0x159] sm:$0xff]
      %v3200 = vld [vmem:[%s1033 + $0x169] sm:$0xff]
      %v3201 = vld [vmem:[%s1033 + $0x171] sm:$0xff]
      %v3202 = vld [vmem:[%s1033 + $0x1b1] sm:$0xff]
      %v3203 = vld [vmem:[%s1033 + $0x1b9] sm:$0xff]
      %v3204 = vld [vmem:[%s1033 + $0x1c9] sm:$0xff]
      %v3205 = vld [vmem:[%s1033 + $0x1d1] sm:$0xff]
      %v3206 = vld [vmem:[%s1033 + $0x1e1] sm:$0xff]
      %v3207 = vld [vmem:[%s1033 + $0x1e9] sm:$0xff]
      %v3208 = vld [vmem:[%s1033 + $0x1f9] sm:$0xff]
      %v3209 = vld [vmem:[%s1033 + $0x201] sm:$0xff]
      %v3210 = vld [vmem:[%s1033 + $0x211] sm:$0xff]
      %v3211 = vld [vmem:[%s1033 + $0x219] sm:$0xff]
      %v3212 = vld [vmem:[%s1033 + $0x229] sm:$0xff]
      %v3213 = vld [vmem:[%s1033 + $0x231] sm:$0xff]
      %v3214 = vld [vmem:[%s1033 + $0x241] sm:$0xff]
      %v3215 = vld [vmem:[%s1033 + $0x249] sm:$0xff]
      %v3216 = vld [vmem:[%s1033 + $0x259] sm:$0xff]
      %v3217 = vld [vmem:[%s1033 + $0x261] sm:$0xff]
      %v3218 = vld [vmem:[%s1033 + $0x271] sm:$0xff]
      %v3219 = vld [vmem:[%s1033 + $0x279] sm:$0xff]
      %v3220 = vld [vmem:[%s1033 + $0x289] sm:$0xff]
      %v3221 = vld [vmem:[%s1033 + $0x291] sm:$0xff]
      %v3222 = vld [vmem:[%s1033 + $0x2a1] sm:$0xff]
      %v3223 = vld [vmem:[%s1033 + $0x2a9] sm:$0xff]
      %v3224 = vld [vmem:[%s1033 + $0x2b9] sm:$0xff]
      %v3225 = vld [vmem:[%s1033 + $0x2c1] sm:$0xff]
      %v3226 = vld [vmem:[%s1033 + $0x2d1] sm:$0xff]
      %v3227 = vld [vmem:[%s1033 + $0x2d9] sm:$0xff]
      %v3228 = vld [vmem:[%s1033 + $0x2e9] sm:$0xff]
      %v3229 = vld [vmem:[%s1033 + $0x2f1] sm:$0xff]
      %v3230 = vld [vmem:[%s1033 + $0x301] sm:$0xff]
      %v3231 = vld [vmem:[%s1033 + $0x309] sm:$0xff]
      %v3232 = vld [vmem:[%s1033 + $0x319] sm:$0xff]
      %v3233 = vld [vmem:[%s1033 + $0x321] sm:$0xff]
      %v3234 = vpack.c.bf16 %v3171, %v3170
      %v3235 = vpack.c.bf16 %v3173, %v3172
      %v3236 = vpack.c.bf16 %v3175, %v3174
      %v3237 = vpack.c.bf16 %v3177, %v3176
      %v3238 = vpack.c.bf16 %v3179, %v3178
      %v3239 = vpack.c.bf16 %v3181, %v3180
      %v3240 = vpack.c.bf16 %v3183, %v3182
      %v3241 = vpack.c.bf16 %v3185, %v3184
      %v3242 = vpack.c.bf16 %v3187, %v3186
      %v3243 = vpack.c.bf16 %v3189, %v3188
      %v3244 = vpack.c.bf16 %v3191, %v3190
      %v3245 = vpack.c.bf16 %v3193, %v3192
      %v3246 = vpack.c.bf16 %v3195, %v3194
      %v3247 = vpack.c.bf16 %v3197, %v3196
      %v3248 = vpack.c.bf16 %v3199, %v3198
      %v3249 = vpack.c.bf16 %v3201, %v3200
      %v3250 = vpack.c.bf16 %v3203, %v3202
      %v3251 = vpack.c.bf16 %v3205, %v3204
      %v3252 = vpack.c.bf16 %v3207, %v3206
      %v3253 = vpack.c.bf16 %v3209, %v3208
      %v3254 = vpack.c.bf16 %v3211, %v3210
      %v3255 = vpack.c.bf16 %v3213, %v3212
      %v3256 = vpack.c.bf16 %v3215, %v3214
      %v3257 = vpack.c.bf16 %v3217, %v3216
      %v3258 = vpack.c.bf16 %v3219, %v3218
      %v3259 = vpack.c.bf16 %v3221, %v3220
      %v3260 = vpack.c.bf16 %v3223, %v3222
      %v3261 = vpack.c.bf16 %v3225, %v3224
      %v3262 = vpack.c.bf16 %v3227, %v3226
      %v3263 = vpack.c.bf16 %v3229, %v3228
      %v3264 = vpack.c.bf16 %v3231, %v3230
      %v3265 = vpack.c.bf16 %v3233, %v3232
      %s3266 = scalar_lea.vmem %s3, 8
      %v3267 = vld [vmem:[%s3266] sm:$0x3]
      %v3269 = vsel %vm923, %v3234, 0
      %v3272 = vsel %vm923, %v3235, 0
      %v3275 = vsel %vm923, %v3236, 0
      %v3278 = vsel %vm923, %v3237, 0
      %v3281 = vsel %vm923, %v3238, 0
      %v3284 = vsel %vm923, %v3239, 0
      %v3287 = vsel %vm923, %v3240, 0
      %v3290 = vsel %vm923, %v3241, 0
      %v3293 = vsel %vm923, %v3242, 0
      %v3296 = vsel %vm923, %v3243, 0
      %v3299 = vsel %vm923, %v3244, 0
      %v3302 = vsel %vm923, %v3245, 0
      %v3305 = vsel %vm923, %v3246, 0
      %v3308 = vsel %vm923, %v3247, 0
      %v3311 = vsel %vm923, %v3248, 0
      %v3314 = vsel %vm923, %v3249, 0
      %v3317 = vsel %vm923, %v3250, 0
      %v3320 = vsel %vm923, %v3251, 0
      %v3323 = vsel %vm923, %v3252, 0
      %v3326 = vsel %vm923, %v3253, 0
      %v3329 = vsel %vm923, %v3254, 0
      %v3332 = vsel %vm923, %v3255, 0
      %v3335 = vsel %vm923, %v3256, 0
      %v3338 = vsel %vm923, %v3257, 0
      %v3341 = vsel %vm923, %v3258, 0
      %v3344 = vsel %vm923, %v3259, 0
      %v3347 = vsel %vm923, %v3260, 0
      %v3350 = vsel %vm923, %v3261, 0
      %v3353 = vsel %vm923, %v3262, 0
      %v3356 = vsel %vm923, %v3263, 0
      %v3359 = vsel %vm923, %v3264, 0
      %v3362 = vsel %vm923, %v3265, 0
      %v3365 = vsel %vm1389, %v3267, 0
      %3367 = vmatprep.subr.bf16.mxu0 0
      %3368 = vmatpush1.bf16.msra.mxu0 0
      %3369 = vmatprep.subr.bf16.mxu0 0
      %3370 = vmatpush1.bf16.msra.mxu0 0
      %3371 = vmatprep.subr.bf16.mxu0 0
      %3372 = vmatpush1.bf16.msra.mxu0 0
      %3373 = vmatprep.subr.bf16.mxu0 0
      %3374 = vmatpush1.bf16.msra.mxu0 0
      %3375 = vmatprep.subr.bf16.mxu0 0
      %3376 = vmatpush1.bf16.msra.mxu0 0
      %3377 = vmatprep.subr.bf16.mxu0 0
      %3378 = vmatpush1.bf16.msra.mxu0 0
      %3379 = vmatprep.subr.bf16.mxu0 0
      %3380 = vmatpush1.bf16.msra.mxu0 0
      %3381 = vmatprep.subr.bf16.mxu0 0
      %3382 = vmatpush1.bf16.msra.mxu0 %v3365
      %3383 = vmatprep.subr.bf16.mxu0 0
      %3384 = vmatpush2.bf16.msra.mxu0 0
      %3385 = vmatprep.subr.bf16.mxu0 0
      %3386 = vmatpush2.bf16.msra.mxu0 0
      %3387 = vmatprep.subr.bf16.mxu0 0
      %3388 = vmatpush2.bf16.msra.mxu0 0
      %3389 = vmatprep.subr.bf16.mxu0 0
      %3390 = vmatpush2.bf16.msra.mxu0 0
      %3391 = vmatprep.subr.bf16.mxu0 0
      %3392 = vmatpush2.bf16.msra.mxu0 0
      %3393 = vmatprep.subr.bf16.mxu0 0
      %3394 = vmatpush2.bf16.msra.mxu0 0
      %3395 = vmatprep.subr.bf16.mxu0 0
      %3396 = vmatpush2.bf16.msra.mxu0 0
      %3397 = vmatprep.subr.bf16.mxu0 0
      %3398 = vmatpush2.bf16.msra.mxu0 0
      %3399 = vmatprep.mubr.bf16.mxu0 0
      %3400 = vmatmul.mubr.bf16.gmra.mxu0 %v3269
      %v3401 = vpop.f32.mrf.mxu0
      %v3402 = vadd.f32 0.0, %v3401
      %v3403 = vpop.f32.mrf.mxu0
      %v3404 = vpop.f32.mrf.mxu0
      %v3405 = vadd.f32 0.0, %v3404
      %v3406 = vpop.f32.mrf.mxu0
      %3407 = vmatprep.mubr.bf16.mxu0 0
      %3408 = vmatmul.mubr.bf16.gmra.mxu0 %v3272
      %v3409 = vpop.f32.mrf.mxu0
      %v3410 = vadd.f32 0.0, %v3409
      %v3411 = vpop.f32.mrf.mxu0
      %v3412 = vpop.f32.mrf.mxu0
      %v3413 = vadd.f32 0.0, %v3412
      %v3414 = vpop.f32.mrf.mxu0
      %3415 = vmatprep.mubr.bf16.mxu0 0
      %3416 = vmatmul.mubr.bf16.gmra.mxu0 %v3275
      %v3417 = vpop.f32.mrf.mxu0
      %v3418 = vadd.f32 0.0, %v3417
      %v3419 = vpop.f32.mrf.mxu0
      %v3420 = vpop.f32.mrf.mxu0
      %v3421 = vadd.f32 0.0, %v3420
      %v3422 = vpop.f32.mrf.mxu0
      %3423 = vmatprep.mubr.bf16.mxu0 0
      %3424 = vmatmul.mubr.bf16.gmra.mxu0 %v3278
      %v3425 = vpop.f32.mrf.mxu0
      %v3426 = vadd.f32 0.0, %v3425
      %v3427 = vpop.f32.mrf.mxu0
      %v3428 = vpop.f32.mrf.mxu0
      %v3429 = vadd.f32 0.0, %v3428
      %v3430 = vpop.f32.mrf.mxu0
      %3431 = vmatprep.mubr.bf16.mxu0 0
      %3432 = vmatmul.mubr.bf16.gmra.mxu0 %v3281
      %v3433 = vpop.f32.mrf.mxu0
      %v3434 = vadd.f32 0.0, %v3433
      %v3435 = vpop.f32.mrf.mxu0
      %v3436 = vpop.f32.mrf.mxu0
      %v3437 = vadd.f32 0.0, %v3436
      %v3438 = vpop.f32.mrf.mxu0
      %3439 = vmatprep.mubr.bf16.mxu0 0
      %3440 = vmatmul.mubr.bf16.gmra.mxu0 %v3284
      %v3441 = vpop.f32.mrf.mxu0
      %v3442 = vadd.f32 0.0, %v3441
      %v3443 = vpop.f32.mrf.mxu0
      %v3444 = vpop.f32.mrf.mxu0
      %v3445 = vadd.f32 0.0, %v3444
      %v3446 = vpop.f32.mrf.mxu0
      %3447 = vmatprep.mubr.bf16.mxu0 0
      %3448 = vmatmul.mubr.bf16.gmra.mxu0 %v3287
      %v3449 = vpop.f32.mrf.mxu0
      %v3450 = vadd.f32 0.0, %v3449
      %v3451 = vpop.f32.mrf.mxu0
      %v3452 = vpop.f32.mrf.mxu0
      %v3453 = vadd.f32 0.0, %v3452
      %v3454 = vpop.f32.mrf.mxu0
      %3455 = vmatprep.mubr.bf16.mxu0 0
      %3456 = vmatmul.mubr.bf16.gmra.mxu0 %v3290
      %v3457 = vpop.f32.mrf.mxu0
      %v3458 = vadd.f32 0.0, %v3457
      %v3459 = vpop.f32.mrf.mxu0
      %v3460 = vpop.f32.mrf.mxu0
      %v3461 = vadd.f32 0.0, %v3460
      %v3462 = vpop.f32.mrf.mxu0
      %3463 = vmatprep.mubr.bf16.mxu0 0
      %3464 = vmatmul.mubr.bf16.gmra.mxu0 %v3293
      %v3465 = vpop.f32.mrf.mxu0
      %v3466 = vadd.f32 0.0, %v3465
      %v3467 = vpop.f32.mrf.mxu0
      %v3468 = vpop.f32.mrf.mxu0
      %v3469 = vadd.f32 0.0, %v3468
      %v3470 = vpop.f32.mrf.mxu0
      %3471 = vmatprep.mubr.bf16.mxu0 0
      %3472 = vmatmul.mubr.bf16.gmra.mxu0 %v3296
      %v3473 = vpop.f32.mrf.mxu0
      %v3474 = vadd.f32 0.0, %v3473
      %v3475 = vpop.f32.mrf.mxu0
      %v3476 = vpop.f32.mrf.mxu0
      %v3477 = vadd.f32 0.0, %v3476
      %v3478 = vpop.f32.mrf.mxu0
      %3479 = vmatprep.mubr.bf16.mxu0 0
      %3480 = vmatmul.mubr.bf16.gmra.mxu0 %v3299
      %v3481 = vpop.f32.mrf.mxu0
      %v3482 = vadd.f32 0.0, %v3481
      %v3483 = vpop.f32.mrf.mxu0
      %v3484 = vpop.f32.mrf.mxu0
      %v3485 = vadd.f32 0.0, %v3484
      %v3486 = vpop.f32.mrf.mxu0
      %3487 = vmatprep.mubr.bf16.mxu0 0
      %3488 = vmatmul.mubr.bf16.gmra.mxu0 %v3302
      %v3489 = vpop.f32.mrf.mxu0
      %v3490 = vadd.f32 0.0, %v3489
      %v3491 = vpop.f32.mrf.mxu0
      %v3492 = vpop.f32.mrf.mxu0
      %v3493 = vadd.f32 0.0, %v3492
      %v3494 = vpop.f32.mrf.mxu0
      %3495 = vmatprep.mubr.bf16.mxu0 0
      %3496 = vmatmul.mubr.bf16.gmra.mxu0 %v3305
      %v3497 = vpop.f32.mrf.mxu0
      %v3498 = vadd.f32 0.0, %v3497
      %v3499 = vpop.f32.mrf.mxu0
      %v3500 = vpop.f32.mrf.mxu0
      %v3501 = vadd.f32 0.0, %v3500
      %v3502 = vpop.f32.mrf.mxu0
      %3503 = vmatprep.mubr.bf16.mxu0 0
      %3504 = vmatmul.mubr.bf16.gmra.mxu0 %v3308
      %v3505 = vpop.f32.mrf.mxu0
      %v3506 = vadd.f32 0.0, %v3505
      %v3507 = vpop.f32.mrf.mxu0
      %v3508 = vpop.f32.mrf.mxu0
      %v3509 = vadd.f32 0.0, %v3508
      %v3510 = vpop.f32.mrf.mxu0
      %3511 = vmatprep.mubr.bf16.mxu0 0
      %3512 = vmatmul.mubr.bf16.gmra.mxu0 %v3311
      %v3513 = vpop.f32.mrf.mxu0
      %v3514 = vadd.f32 0.0, %v3513
      %v3515 = vpop.f32.mrf.mxu0
      %v3516 = vpop.f32.mrf.mxu0
      %v3517 = vadd.f32 0.0, %v3516
      %v3518 = vpop.f32.mrf.mxu0
      %3519 = vmatprep.mubr.bf16.mxu0 0
      %3520 = vmatmul.mubr.bf16.gmra.mxu0 %v3314
      %v3521 = vpop.f32.mrf.mxu0
      %v3522 = vadd.f32 0.0, %v3521
      %v3523 = vpop.f32.mrf.mxu0
      %v3524 = vpop.f32.mrf.mxu0
      %v3525 = vadd.f32 0.0, %v3524
      %v3526 = vpop.f32.mrf.mxu0
      %3527 = vmatprep.mubr.bf16.mxu0 0
      %3528 = vmatmul.mubr.bf16.gmra.mxu0 %v3317
      %v3529 = vpop.f32.mrf.mxu0
      %v3530 = vadd.f32 0.0, %v3529
      %v3531 = vpop.f32.mrf.mxu0
      %v3532 = vpop.f32.mrf.mxu0
      %v3533 = vadd.f32 0.0, %v3532
      %v3534 = vpop.f32.mrf.mxu0
      %3535 = vmatprep.mubr.bf16.mxu0 0
      %3536 = vmatmul.mubr.bf16.gmra.mxu0 %v3320
      %v3537 = vpop.f32.mrf.mxu0
      %v3538 = vadd.f32 0.0, %v3537
      %v3539 = vpop.f32.mrf.mxu0
      %v3540 = vpop.f32.mrf.mxu0
      %v3541 = vadd.f32 0.0, %v3540
      %v3542 = vpop.f32.mrf.mxu0
      %3543 = vmatprep.mubr.bf16.mxu0 0
      %3544 = vmatmul.mubr.bf16.gmra.mxu0 %v3323
      %v3545 = vpop.f32.mrf.mxu0
      %v3546 = vadd.f32 0.0, %v3545
      %v3547 = vpop.f32.mrf.mxu0
      %v3548 = vpop.f32.mrf.mxu0
      %v3549 = vadd.f32 0.0, %v3548
      %v3550 = vpop.f32.mrf.mxu0
      %3551 = vmatprep.mubr.bf16.mxu0 0
      %3552 = vmatmul.mubr.bf16.gmra.mxu0 %v3326
      %v3553 = vpop.f32.mrf.mxu0
      %v3554 = vadd.f32 0.0, %v3553
      %v3555 = vpop.f32.mrf.mxu0
      %v3556 = vpop.f32.mrf.mxu0
      %v3557 = vadd.f32 0.0, %v3556
      %v3558 = vpop.f32.mrf.mxu0
      %3559 = vmatprep.mubr.bf16.mxu0 0
      %3560 = vmatmul.mubr.bf16.gmra.mxu0 %v3329
      %v3561 = vpop.f32.mrf.mxu0
      %v3562 = vadd.f32 0.0, %v3561
      %v3563 = vpop.f32.mrf.mxu0
      %v3564 = vpop.f32.mrf.mxu0
      %v3565 = vadd.f32 0.0, %v3564
      %v3566 = vpop.f32.mrf.mxu0
      %3567 = vmatprep.mubr.bf16.mxu0 0
      %3568 = vmatmul.mubr.bf16.gmra.mxu0 %v3332
      %v3569 = vpop.f32.mrf.mxu0
      %v3570 = vadd.f32 0.0, %v3569
      %v3571 = vpop.f32.mrf.mxu0
      %v3572 = vpop.f32.mrf.mxu0
      %v3573 = vadd.f32 0.0, %v3572
      %v3574 = vpop.f32.mrf.mxu0
      %3575 = vmatprep.mubr.bf16.mxu0 0
      %3576 = vmatmul.mubr.bf16.gmra.mxu0 %v3335
      %v3577 = vpop.f32.mrf.mxu0
      %v3578 = vadd.f32 0.0, %v3577
      %v3579 = vpop.f32.mrf.mxu0
      %v3580 = vpop.f32.mrf.mxu0
      %v3581 = vadd.f32 0.0, %v3580
      %v3582 = vpop.f32.mrf.mxu0
      %3583 = vmatprep.mubr.bf16.mxu0 0
      %3584 = vmatmul.mubr.bf16.gmra.mxu0 %v3338
      %v3585 = vpop.f32.mrf.mxu0
      %v3586 = vadd.f32 0.0, %v3585
      %v3587 = vpop.f32.mrf.mxu0
      %v3588 = vpop.f32.mrf.mxu0
      %v3589 = vadd.f32 0.0, %v3588
      %v3590 = vpop.f32.mrf.mxu0
      %3591 = vmatprep.mubr.bf16.mxu0 0
      %3592 = vmatmul.mubr.bf16.gmra.mxu0 %v3341
      %v3593 = vpop.f32.mrf.mxu0
      %v3594 = vadd.f32 0.0, %v3593
      %v3595 = vpop.f32.mrf.mxu0
      %v3596 = vpop.f32.mrf.mxu0
      %v3597 = vadd.f32 0.0, %v3596
      %v3598 = vpop.f32.mrf.mxu0
      %3599 = vmatprep.mubr.bf16.mxu0 0
      %3600 = vmatmul.mubr.bf16.gmra.mxu0 %v3344
      %v3601 = vpop.f32.mrf.mxu0
      %v3602 = vadd.f32 0.0, %v3601
      %v3603 = vpop.f32.mrf.mxu0
      %v3604 = vpop.f32.mrf.mxu0
      %v3605 = vadd.f32 0.0, %v3604
      %v3606 = vpop.f32.mrf.mxu0
      %3607 = vmatprep.mubr.bf16.mxu0 0
      %3608 = vmatmul.mubr.bf16.gmra.mxu0 %v3347
      %v3609 = vpop.f32.mrf.mxu0
      %v3610 = vadd.f32 0.0, %v3609
      %v3611 = vpop.f32.mrf.mxu0
      %v3612 = vpop.f32.mrf.mxu0
      %v3613 = vadd.f32 0.0, %v3612
      %v3614 = vpop.f32.mrf.mxu0
      %3615 = vmatprep.mubr.bf16.mxu0 0
      %3616 = vmatmul.mubr.bf16.gmra.mxu0 %v3350
      %v3617 = vpop.f32.mrf.mxu0
      %v3618 = vadd.f32 0.0, %v3617
      %v3619 = vpop.f32.mrf.mxu0
      %v3620 = vpop.f32.mrf.mxu0
      %v3621 = vadd.f32 0.0, %v3620
      %v3622 = vpop.f32.mrf.mxu0
      %3623 = vmatprep.mubr.bf16.mxu0 0
      %3624 = vmatmul.mubr.bf16.gmra.mxu0 %v3353
      %v3625 = vpop.f32.mrf.mxu0
      %v3626 = vadd.f32 0.0, %v3625
      %v3627 = vpop.f32.mrf.mxu0
      %v3628 = vpop.f32.mrf.mxu0
      %v3629 = vadd.f32 0.0, %v3628
      %v3630 = vpop.f32.mrf.mxu0
      %3631 = vmatprep.mubr.bf16.mxu0 0
      %3632 = vmatmul.mubr.bf16.gmra.mxu0 %v3356
      %v3633 = vpop.f32.mrf.mxu0
      %v3634 = vadd.f32 0.0, %v3633
      %v3635 = vpop.f32.mrf.mxu0
      %v3636 = vpop.f32.mrf.mxu0
      %v3637 = vadd.f32 0.0, %v3636
      %v3638 = vpop.f32.mrf.mxu0
      %3639 = vmatprep.mubr.bf16.mxu0 0
      %3640 = vmatmul.mubr.bf16.gmra.mxu0 %v3359
      %v3641 = vpop.f32.mrf.mxu0
      %v3642 = vadd.f32 0.0, %v3641
      %v3643 = vpop.f32.mrf.mxu0
      %v3644 = vpop.f32.mrf.mxu0
      %v3645 = vadd.f32 0.0, %v3644
      %v3646 = vpop.f32.mrf.mxu0
      %3647 = vmatprep.mubr.bf16.mxu0 0
      %3648 = vmatmul.mubr.bf16.gmra.mxu0 %v3362
      %v3649 = vpop.f32.mrf.mxu0
      %v3650 = vadd.f32 0.0, %v3649
      %v3651 = vpop.f32.mrf.mxu0
      %v3652 = vpop.f32.mrf.mxu0
      %v3653 = vadd.f32 0.0, %v3652
      %v3654 = vpop.f32.mrf.mxu0
      %3655 = vdwg.mxu0
      %v3656 = vadd.f32 %v3106, %v3402
      %v3657 = vadd.f32 %v3107, %v3405
      %v3658 = vadd.f32 %v3108, %v3410
      %v3659 = vadd.f32 %v3109, %v3413
      %v3660 = vadd.f32 %v3110, %v3418
      %v3661 = vadd.f32 %v3111, %v3421
      %v3662 = vadd.f32 %v3112, %v3426
      %v3663 = vadd.f32 %v3113, %v3429
      %v3664 = vadd.f32 %v3114, %v3434
      %v3665 = vadd.f32 %v3115, %v3437
      %v3666 = vadd.f32 %v3116, %v3442
      %v3667 = vadd.f32 %v3117, %v3445
      %v3668 = vadd.f32 %v3118, %v3450
      %v3669 = vadd.f32 %v3119, %v3453
      %v3670 = vadd.f32 %v3120, %v3458
      %v3671 = vadd.f32 %v3121, %v3461
      %v3672 = vadd.f32 %v3122, %v3466
      %v3673 = vadd.f32 %v3123, %v3469
      %v3674 = vadd.f32 %v3124, %v3474
      %v3675 = vadd.f32 %v3125, %v3477
      %v3676 = vadd.f32 %v3126, %v3482
      %v3677 = vadd.f32 %v3127, %v3485
      %v3678 = vadd.f32 %v3128, %v3490
      %v3679 = vadd.f32 %v3129, %v3493
      %v3680 = vadd.f32 %v3130, %v3498
      %v3681 = vadd.f32 %v3131, %v3501
      %v3682 = vadd.f32 %v3132, %v3506
      %v3683 = vadd.f32 %v3133, %v3509
      %v3684 = vadd.f32 %v3134, %v3514
      %v3685 = vadd.f32 %v3135, %v3517
      %v3686 = vadd.f32 %v3136, %v3522
      %v3687 = vadd.f32 %v3137, %v3525
      %v3688 = vadd.f32 %v3138, %v3530
      %v3689 = vadd.f32 %v3139, %v3533
      %v3690 = vadd.f32 %v3140, %v3538
      %v3691 = vadd.f32 %v3141, %v3541
      %v3692 = vadd.f32 %v3142, %v3546
      %v3693 = vadd.f32 %v3143, %v3549
      %v3694 = vadd.f32 %v3144, %v3554
      %v3695 = vadd.f32 %v3145, %v3557
      %v3696 = vadd.f32 %v3146, %v3562
      %v3697 = vadd.f32 %v3147, %v3565
      %v3698 = vadd.f32 %v3148, %v3570
      %v3699 = vadd.f32 %v3149, %v3573
      %v3700 = vadd.f32 %v3150, %v3578
      %v3701 = vadd.f32 %v3151, %v3581
      %v3702 = vadd.f32 %v3152, %v3586
      %v3703 = vadd.f32 %v3153, %v3589
      %v3704 = vadd.f32 %v3154, %v3594
      %v3705 = vadd.f32 %v3155, %v3597
      %v3706 = vadd.f32 %v3156, %v3602
      %v3707 = vadd.f32 %v3157, %v3605
      %v3708 = vadd.f32 %v3158, %v3610
      %v3709 = vadd.f32 %v3159, %v3613
      %v3710 = vadd.f32 %v3160, %v3618
      %v3711 = vadd.f32 %v3161, %v3621
      %v3712 = vadd.f32 %v3162, %v3626
      %v3713 = vadd.f32 %v3163, %v3629
      %v3714 = vadd.f32 %v3164, %v3634
      %v3715 = vadd.f32 %v3165, %v3637
      %v3716 = vadd.f32 %v3166, %v3642
      %v3717 = vadd.f32 %v3167, %v3645
      %v3718 = vadd.f32 %v3168, %v3650
      %v3719 = vadd.f32 %v3169, %v3653
      %v3720 = vld [vmem:[%s1033 + $0x2] sm:$0xff]
      %v3721 = vld [vmem:[%s1033 + $0xa] sm:$0xff]
      %v3722 = vld [vmem:[%s1033 + $0x1a] sm:$0xff]
      %v3723 = vld [vmem:[%s1033 + $0x22] sm:$0xff]
      %v3724 = vld [vmem:[%s1033 + $0x32] sm:$0xff]
      %v3725 = vld [vmem:[%s1033 + $0x3a] sm:$0xff]
      %v3726 = vld [vmem:[%s1033 + $0x4a] sm:$0xff]
      %v3727 = vld [vmem:[%s1033 + $0x52] sm:$0xff]
      %v3728 = vld [vmem:[%s1033 + $0x62] sm:$0xff]
      %v3729 = vld [vmem:[%s1033 + $0x6a] sm:$0xff]
      %v3730 = vld [vmem:[%s1033 + $0x7a] sm:$0xff]
      %v3731 = vld [vmem:[%s1033 + $0x82] sm:$0xff]
      %v3732 = vld [vmem:[%s1033 + $0x92] sm:$0xff]
      %v3733 = vld [vmem:[%s1033 + $0x9a] sm:$0xff]
      %v3734 = vld [vmem:[%s1033 + $0xaa] sm:$0xff]
      %v3735 = vld [vmem:[%s1033 + $0xb2] sm:$0xff]
      %v3736 = vld [vmem:[%s1033 + $0xc2] sm:$0xff]
      %v3737 = vld [vmem:[%s1033 + $0xca] sm:$0xff]
      %v3738 = vld [vmem:[%s1033 + $0xda] sm:$0xff]
      %v3739 = vld [vmem:[%s1033 + $0xe2] sm:$0xff]
      %v3740 = vld [vmem:[%s1033 + $0xf2] sm:$0xff]
      %v3741 = vld [vmem:[%s1033 + $0xfa] sm:$0xff]
      %v3742 = vld [vmem:[%s1033 + $0x10a] sm:$0xff]
      %v3743 = vld [vmem:[%s1033 + $0x112] sm:$0xff]
      %v3744 = vld [vmem:[%s1033 + $0x122] sm:$0xff]
      %v3745 = vld [vmem:[%s1033 + $0x12a] sm:$0xff]
      %v3746 = vld [vmem:[%s1033 + $0x13a] sm:$0xff]
      %v3747 = vld [vmem:[%s1033 + $0x142] sm:$0xff]
      %v3748 = vld [vmem:[%s1033 + $0x152] sm:$0xff]
      %v3749 = vld [vmem:[%s1033 + $0x15a] sm:$0xff]
      %v3750 = vld [vmem:[%s1033 + $0x16a] sm:$0xff]
      %v3751 = vld [vmem:[%s1033 + $0x172] sm:$0xff]
      %v3752 = vld [vmem:[%s1033 + $0x1b2] sm:$0xff]
      %v3753 = vld [vmem:[%s1033 + $0x1ba] sm:$0xff]
      %v3754 = vld [vmem:[%s1033 + $0x1ca] sm:$0xff]
      %v3755 = vld [vmem:[%s1033 + $0x1d2] sm:$0xff]
      %v3756 = vld [vmem:[%s1033 + $0x1e2] sm:$0xff]
      %v3757 = vld [vmem:[%s1033 + $0x1ea] sm:$0xff]
      %v3758 = vld [vmem:[%s1033 + $0x1fa] sm:$0xff]
      %v3759 = vld [vmem:[%s1033 + $0x202] sm:$0xff]
      %v3760 = vld [vmem:[%s1033 + $0x212] sm:$0xff]
      %v3761 = vld [vmem:[%s1033 + $0x21a] sm:$0xff]
      %v3762 = vld [vmem:[%s1033 + $0x22a] sm:$0xff]
      %v3763 = vld [vmem:[%s1033 + $0x232] sm:$0xff]
      %v3764 = vld [vmem:[%s1033 + $0x242] sm:$0xff]
      %v3765 = vld [vmem:[%s1033 + $0x24a] sm:$0xff]
      %v3766 = vld [vmem:[%s1033 + $0x25a] sm:$0xff]
      %v3767 = vld [vmem:[%s1033 + $0x262] sm:$0xff]
      %v3768 = vld [vmem:[%s1033 + $0x272] sm:$0xff]
      %v3769 = vld [vmem:[%s1033 + $0x27a] sm:$0xff]
      %v3770 = vld [vmem:[%s1033 + $0x28a] sm:$0xff]
      %v3771 = vld [vmem:[%s1033 + $0x292] sm:$0xff]
      %v3772 = vld [vmem:[%s1033 + $0x2a2] sm:$0xff]
      %v3773 = vld [vmem:[%s1033 + $0x2aa] sm:$0xff]
      %v3774 = vld [vmem:[%s1033 + $0x2ba] sm:$0xff]
      %v3775 = vld [vmem:[%s1033 + $0x2c2] sm:$0xff]
      %v3776 = vld [vmem:[%s1033 + $0x2d2] sm:$0xff]
      %v3777 = vld [vmem:[%s1033 + $0x2da] sm:$0xff]
      %v3778 = vld [vmem:[%s1033 + $0x2ea] sm:$0xff]
      %v3779 = vld [vmem:[%s1033 + $0x2f2] sm:$0xff]
      %v3780 = vld [vmem:[%s1033 + $0x302] sm:$0xff]
      %v3781 = vld [vmem:[%s1033 + $0x30a] sm:$0xff]
      %v3782 = vld [vmem:[%s1033 + $0x31a] sm:$0xff]
      %v3783 = vld [vmem:[%s1033 + $0x322] sm:$0xff]
      %v3784 = vpack.c.bf16 %v3721, %v3720
      %v3785 = vpack.c.bf16 %v3723, %v3722
      %v3786 = vpack.c.bf16 %v3725, %v3724
      %v3787 = vpack.c.bf16 %v3727, %v3726
      %v3788 = vpack.c.bf16 %v3729, %v3728
      %v3789 = vpack.c.bf16 %v3731, %v3730
      %v3790 = vpack.c.bf16 %v3733, %v3732
      %v3791 = vpack.c.bf16 %v3735, %v3734
      %v3792 = vpack.c.bf16 %v3737, %v3736
      %v3793 = vpack.c.bf16 %v3739, %v3738
      %v3794 = vpack.c.bf16 %v3741, %v3740
      %v3795 = vpack.c.bf16 %v3743, %v3742
      %v3796 = vpack.c.bf16 %v3745, %v3744
      %v3797 = vpack.c.bf16 %v3747, %v3746
      %v3798 = vpack.c.bf16 %v3749, %v3748
      %v3799 = vpack.c.bf16 %v3751, %v3750
      %v3800 = vpack.c.bf16 %v3753, %v3752
      %v3801 = vpack.c.bf16 %v3755, %v3754
      %v3802 = vpack.c.bf16 %v3757, %v3756
      %v3803 = vpack.c.bf16 %v3759, %v3758
      %v3804 = vpack.c.bf16 %v3761, %v3760
      %v3805 = vpack.c.bf16 %v3763, %v3762
      %v3806 = vpack.c.bf16 %v3765, %v3764
      %v3807 = vpack.c.bf16 %v3767, %v3766
      %v3808 = vpack.c.bf16 %v3769, %v3768
      %v3809 = vpack.c.bf16 %v3771, %v3770
      %v3810 = vpack.c.bf16 %v3773, %v3772
      %v3811 = vpack.c.bf16 %v3775, %v3774
      %v3812 = vpack.c.bf16 %v3777, %v3776
      %v3813 = vpack.c.bf16 %v3779, %v3778
      %v3814 = vpack.c.bf16 %v3781, %v3780
      %v3815 = vpack.c.bf16 %v3783, %v3782
      %s3816 = scalar_lea.vmem %s3, 10
      %v3817 = vld [vmem:[%s3816] sm:$0x3]
      %v3819 = vsel %vm923, %v3784, 0
      %v3822 = vsel %vm923, %v3785, 0
      %v3825 = vsel %vm923, %v3786, 0
      %v3828 = vsel %vm923, %v3787, 0
      %v3831 = vsel %vm923, %v3788, 0
      %v3834 = vsel %vm923, %v3789, 0
      %v3837 = vsel %vm923, %v3790, 0
      %v3840 = vsel %vm923, %v3791, 0
      %v3843 = vsel %vm923, %v3792, 0
      %v3846 = vsel %vm923, %v3793, 0
      %v3849 = vsel %vm923, %v3794, 0
      %v3852 = vsel %vm923, %v3795, 0
      %v3855 = vsel %vm923, %v3796, 0
      %v3858 = vsel %vm923, %v3797, 0
      %v3861 = vsel %vm923, %v3798, 0
      %v3864 = vsel %vm923, %v3799, 0
      %v3867 = vsel %vm923, %v3800, 0
      %v3870 = vsel %vm923, %v3801, 0
      %v3873 = vsel %vm923, %v3802, 0
      %v3876 = vsel %vm923, %v3803, 0
      %v3879 = vsel %vm923, %v3804, 0
      %v3882 = vsel %vm923, %v3805, 0
      %v3885 = vsel %vm923, %v3806, 0
      %v3888 = vsel %vm923, %v3807, 0
      %v3891 = vsel %vm923, %v3808, 0
      %v3894 = vsel %vm923, %v3809, 0
      %v3897 = vsel %vm923, %v3810, 0
      %v3900 = vsel %vm923, %v3811, 0
      %v3903 = vsel %vm923, %v3812, 0
      %v3906 = vsel %vm923, %v3813, 0
      %v3909 = vsel %vm923, %v3814, 0
      %v3912 = vsel %vm923, %v3815, 0
      %v3915 = vsel %vm1389, %v3817, 0
      %3917 = vmatprep.subr.bf16.mxu0 0
      %3918 = vmatpush1.bf16.msra.mxu0 0
      %3919 = vmatprep.subr.bf16.mxu0 0
      %3920 = vmatpush1.bf16.msra.mxu0 0
      %3921 = vmatprep.subr.bf16.mxu0 0
      %3922 = vmatpush1.bf16.msra.mxu0 0
      %3923 = vmatprep.subr.bf16.mxu0 0
      %3924 = vmatpush1.bf16.msra.mxu0 0
      %3925 = vmatprep.subr.bf16.mxu0 0
      %3926 = vmatpush1.bf16.msra.mxu0 0
      %3927 = vmatprep.subr.bf16.mxu0 0
      %3928 = vmatpush1.bf16.msra.mxu0 0
      %3929 = vmatprep.subr.bf16.mxu0 0
      %3930 = vmatpush1.bf16.msra.mxu0 0
      %3931 = vmatprep.subr.bf16.mxu0 0
      %3932 = vmatpush1.bf16.msra.mxu0 %v3915
      %3933 = vmatprep.subr.bf16.mxu0 0
      %3934 = vmatpush2.bf16.msra.mxu0 0
      %3935 = vmatprep.subr.bf16.mxu0 0
      %3936 = vmatpush2.bf16.msra.mxu0 0
      %3937 = vmatprep.subr.bf16.mxu0 0
      %3938 = vmatpush2.bf16.msra.mxu0 0
      %3939 = vmatprep.subr.bf16.mxu0 0
      %3940 = vmatpush2.bf16.msra.mxu0 0
      %3941 = vmatprep.subr.bf16.mxu0 0
      %3942 = vmatpush2.bf16.msra.mxu0 0
      %3943 = vmatprep.subr.bf16.mxu0 0
      %3944 = vmatpush2.bf16.msra.mxu0 0
      %3945 = vmatprep.subr.bf16.mxu0 0
      %3946 = vmatpush2.bf16.msra.mxu0 0
      %3947 = vmatprep.subr.bf16.mxu0 0
      %3948 = vmatpush2.bf16.msra.mxu0 0
      %3949 = vmatprep.mubr.bf16.mxu0 0
      %3950 = vmatmul.mubr.bf16.gmra.mxu0 %v3819
      %v3951 = vpop.f32.mrf.mxu0
      %v3952 = vadd.f32 0.0, %v3951
      %v3953 = vpop.f32.mrf.mxu0
      %v3954 = vpop.f32.mrf.mxu0
      %v3955 = vadd.f32 0.0, %v3954
      %v3956 = vpop.f32.mrf.mxu0
      %3957 = vmatprep.mubr.bf16.mxu0 0
      %3958 = vmatmul.mubr.bf16.gmra.mxu0 %v3822
      %v3959 = vpop.f32.mrf.mxu0
      %v3960 = vadd.f32 0.0, %v3959
      %v3961 = vpop.f32.mrf.mxu0
      %v3962 = vpop.f32.mrf.mxu0
      %v3963 = vadd.f32 0.0, %v3962
      %v3964 = vpop.f32.mrf.mxu0
      %3965 = vmatprep.mubr.bf16.mxu0 0
      %3966 = vmatmul.mubr.bf16.gmra.mxu0 %v3825
      %v3967 = vpop.f32.mrf.mxu0
      %v3968 = vadd.f32 0.0, %v3967
      %v3969 = vpop.f32.mrf.mxu0
      %v3970 = vpop.f32.mrf.mxu0
      %v3971 = vadd.f32 0.0, %v3970
      %v3972 = vpop.f32.mrf.mxu0
      %3973 = vmatprep.mubr.bf16.mxu0 0
      %3974 = vmatmul.mubr.bf16.gmra.mxu0 %v3828
      %v3975 = vpop.f32.mrf.mxu0
      %v3976 = vadd.f32 0.0, %v3975
      %v3977 = vpop.f32.mrf.mxu0
      %v3978 = vpop.f32.mrf.mxu0
      %v3979 = vadd.f32 0.0, %v3978
      %v3980 = vpop.f32.mrf.mxu0
      %3981 = vmatprep.mubr.bf16.mxu0 0
      %3982 = vmatmul.mubr.bf16.gmra.mxu0 %v3831
      %v3983 = vpop.f32.mrf.mxu0
      %v3984 = vadd.f32 0.0, %v3983
      %v3985 = vpop.f32.mrf.mxu0
      %v3986 = vpop.f32.mrf.mxu0
      %v3987 = vadd.f32 0.0, %v3986
      %v3988 = vpop.f32.mrf.mxu0
      %3989 = vmatprep.mubr.bf16.mxu0 0
      %3990 = vmatmul.mubr.bf16.gmra.mxu0 %v3834
      %v3991 = vpop.f32.mrf.mxu0
      %v3992 = vadd.f32 0.0, %v3991
      %v3993 = vpop.f32.mrf.mxu0
      %v3994 = vpop.f32.mrf.mxu0
      %v3995 = vadd.f32 0.0, %v3994
      %v3996 = vpop.f32.mrf.mxu0
      %3997 = vmatprep.mubr.bf16.mxu0 0
      %3998 = vmatmul.mubr.bf16.gmra.mxu0 %v3837
      %v3999 = vpop.f32.mrf.mxu0
      %v4000 = vadd.f32 0.0, %v3999
      %v4001 = vpop.f32.mrf.mxu0
      %v4002 = vpop.f32.mrf.mxu0
      %v4003 = vadd.f32 0.0, %v4002
      %v4004 = vpop.f32.mrf.mxu0
      %4005 = vmatprep.mubr.bf16.mxu0 0
      %4006 = vmatmul.mubr.bf16.gmra.mxu0 %v3840
      %v4007 = vpop.f32.mrf.mxu0
      %v4008 = vadd.f32 0.0, %v4007
      %v4009 = vpop.f32.mrf.mxu0
      %v4010 = vpop.f32.mrf.mxu0
      %v4011 = vadd.f32 0.0, %v4010
      %v4012 = vpop.f32.mrf.mxu0
      %4013 = vmatprep.mubr.bf16.mxu0 0
      %4014 = vmatmul.mubr.bf16.gmra.mxu0 %v3843
      %v4015 = vpop.f32.mrf.mxu0
      %v4016 = vadd.f32 0.0, %v4015
      %v4017 = vpop.f32.mrf.mxu0
      %v4018 = vpop.f32.mrf.mxu0
      %v4019 = vadd.f32 0.0, %v4018
      %v4020 = vpop.f32.mrf.mxu0
      %4021 = vmatprep.mubr.bf16.mxu0 0
      %4022 = vmatmul.mubr.bf16.gmra.mxu0 %v3846
      %v4023 = vpop.f32.mrf.mxu0
      %v4024 = vadd.f32 0.0, %v4023
      %v4025 = vpop.f32.mrf.mxu0
      %v4026 = vpop.f32.mrf.mxu0
      %v4027 = vadd.f32 0.0, %v4026
      %v4028 = vpop.f32.mrf.mxu0
      %4029 = vmatprep.mubr.bf16.mxu0 0
      %4030 = vmatmul.mubr.bf16.gmra.mxu0 %v3849
      %v4031 = vpop.f32.mrf.mxu0
      %v4032 = vadd.f32 0.0, %v4031
      %v4033 = vpop.f32.mrf.mxu0
      %v4034 = vpop.f32.mrf.mxu0
      %v4035 = vadd.f32 0.0, %v4034
      %v4036 = vpop.f32.mrf.mxu0
      %4037 = vmatprep.mubr.bf16.mxu0 0
      %4038 = vmatmul.mubr.bf16.gmra.mxu0 %v3852
      %v4039 = vpop.f32.mrf.mxu0
      %v4040 = vadd.f32 0.0, %v4039
      %v4041 = vpop.f32.mrf.mxu0
      %v4042 = vpop.f32.mrf.mxu0
      %v4043 = vadd.f32 0.0, %v4042
      %v4044 = vpop.f32.mrf.mxu0
      %4045 = vmatprep.mubr.bf16.mxu0 0
      %4046 = vmatmul.mubr.bf16.gmra.mxu0 %v3855
      %v4047 = vpop.f32.mrf.mxu0
      %v4048 = vadd.f32 0.0, %v4047
      %v4049 = vpop.f32.mrf.mxu0
      %v4050 = vpop.f32.mrf.mxu0
      %v4051 = vadd.f32 0.0, %v4050
      %v4052 = vpop.f32.mrf.mxu0
      %4053 = vmatprep.mubr.bf16.mxu0 0
      %4054 = vmatmul.mubr.bf16.gmra.mxu0 %v3858
      %v4055 = vpop.f32.mrf.mxu0
      %v4056 = vadd.f32 0.0, %v4055
      %v4057 = vpop.f32.mrf.mxu0
      %v4058 = vpop.f32.mrf.mxu0
      %v4059 = vadd.f32 0.0, %v4058
      %v4060 = vpop.f32.mrf.mxu0
      %4061 = vmatprep.mubr.bf16.mxu0 0
      %4062 = vmatmul.mubr.bf16.gmra.mxu0 %v3861
      %v4063 = vpop.f32.mrf.mxu0
      %v4064 = vadd.f32 0.0, %v4063
      %v4065 = vpop.f32.mrf.mxu0
      %v4066 = vpop.f32.mrf.mxu0
      %v4067 = vadd.f32 0.0, %v4066
      %v4068 = vpop.f32.mrf.mxu0
      %4069 = vmatprep.mubr.bf16.mxu0 0
      %4070 = vmatmul.mubr.bf16.gmra.mxu0 %v3864
      %v4071 = vpop.f32.mrf.mxu0
      %v4072 = vadd.f32 0.0, %v4071
      %v4073 = vpop.f32.mrf.mxu0
      %v4074 = vpop.f32.mrf.mxu0
      %v4075 = vadd.f32 0.0, %v4074
      %v4076 = vpop.f32.mrf.mxu0
      %4077 = vmatprep.mubr.bf16.mxu0 0
      %4078 = vmatmul.mubr.bf16.gmra.mxu0 %v3867
      %v4079 = vpop.f32.mrf.mxu0
      %v4080 = vadd.f32 0.0, %v4079
      %v4081 = vpop.f32.mrf.mxu0
      %v4082 = vpop.f32.mrf.mxu0
      %v4083 = vadd.f32 0.0, %v4082
      %v4084 = vpop.f32.mrf.mxu0
      %4085 = vmatprep.mubr.bf16.mxu0 0
      %4086 = vmatmul.mubr.bf16.gmra.mxu0 %v3870
      %v4087 = vpop.f32.mrf.mxu0
      %v4088 = vadd.f32 0.0, %v4087
      %v4089 = vpop.f32.mrf.mxu0
      %v4090 = vpop.f32.mrf.mxu0
      %v4091 = vadd.f32 0.0, %v4090
      %v4092 = vpop.f32.mrf.mxu0
      %4093 = vmatprep.mubr.bf16.mxu0 0
      %4094 = vmatmul.mubr.bf16.gmra.mxu0 %v3873
      %v4095 = vpop.f32.mrf.mxu0
      %v4096 = vadd.f32 0.0, %v4095
      %v4097 = vpop.f32.mrf.mxu0
      %v4098 = vpop.f32.mrf.mxu0
      %v4099 = vadd.f32 0.0, %v4098
      %v4100 = vpop.f32.mrf.mxu0
      %4101 = vmatprep.mubr.bf16.mxu0 0
      %4102 = vmatmul.mubr.bf16.gmra.mxu0 %v3876
      %v4103 = vpop.f32.mrf.mxu0
      %v4104 = vadd.f32 0.0, %v4103
      %v4105 = vpop.f32.mrf.mxu0
      %v4106 = vpop.f32.mrf.mxu0
      %v4107 = vadd.f32 0.0, %v4106
      %v4108 = vpop.f32.mrf.mxu0
      %4109 = vmatprep.mubr.bf16.mxu0 0
      %4110 = vmatmul.mubr.bf16.gmra.mxu0 %v3879
      %v4111 = vpop.f32.mrf.mxu0
      %v4112 = vadd.f32 0.0, %v4111
      %v4113 = vpop.f32.mrf.mxu0
      %v4114 = vpop.f32.mrf.mxu0
      %v4115 = vadd.f32 0.0, %v4114
      %v4116 = vpop.f32.mrf.mxu0
      %4117 = vmatprep.mubr.bf16.mxu0 0
      %4118 = vmatmul.mubr.bf16.gmra.mxu0 %v3882
      %v4119 = vpop.f32.mrf.mxu0
      %v4120 = vadd.f32 0.0, %v4119
      %v4121 = vpop.f32.mrf.mxu0
      %v4122 = vpop.f32.mrf.mxu0
      %v4123 = vadd.f32 0.0, %v4122
      %v4124 = vpop.f32.mrf.mxu0
      %4125 = vmatprep.mubr.bf16.mxu0 0
      %4126 = vmatmul.mubr.bf16.gmra.mxu0 %v3885
      %v4127 = vpop.f32.mrf.mxu0
      %v4128 = vadd.f32 0.0, %v4127
      %v4129 = vpop.f32.mrf.mxu0
      %v4130 = vpop.f32.mrf.mxu0
      %v4131 = vadd.f32 0.0, %v4130
      %v4132 = vpop.f32.mrf.mxu0
      %4133 = vmatprep.mubr.bf16.mxu0 0
      %4134 = vmatmul.mubr.bf16.gmra.mxu0 %v3888
      %v4135 = vpop.f32.mrf.mxu0
      %v4136 = vadd.f32 0.0, %v4135
      %v4137 = vpop.f32.mrf.mxu0
      %v4138 = vpop.f32.mrf.mxu0
      %v4139 = vadd.f32 0.0, %v4138
      %v4140 = vpop.f32.mrf.mxu0
      %4141 = vmatprep.mubr.bf16.mxu0 0
      %4142 = vmatmul.mubr.bf16.gmra.mxu0 %v3891
      %v4143 = vpop.f32.mrf.mxu0
      %v4144 = vadd.f32 0.0, %v4143
      %v4145 = vpop.f32.mrf.mxu0
      %v4146 = vpop.f32.mrf.mxu0
      %v4147 = vadd.f32 0.0, %v4146
      %v4148 = vpop.f32.mrf.mxu0
      %4149 = vmatprep.mubr.bf16.mxu0 0
      %4150 = vmatmul.mubr.bf16.gmra.mxu0 %v3894
      %v4151 = vpop.f32.mrf.mxu0
      %v4152 = vadd.f32 0.0, %v4151
      %v4153 = vpop.f32.mrf.mxu0
      %v4154 = vpop.f32.mrf.mxu0
      %v4155 = vadd.f32 0.0, %v4154
      %v4156 = vpop.f32.mrf.mxu0
      %4157 = vmatprep.mubr.bf16.mxu0 0
      %4158 = vmatmul.mubr.bf16.gmra.mxu0 %v3897
      %v4159 = vpop.f32.mrf.mxu0
      %v4160 = vadd.f32 0.0, %v4159
      %v4161 = vpop.f32.mrf.mxu0
      %v4162 = vpop.f32.mrf.mxu0
      %v4163 = vadd.f32 0.0, %v4162
      %v4164 = vpop.f32.mrf.mxu0
      %4165 = vmatprep.mubr.bf16.mxu0 0
      %4166 = vmatmul.mubr.bf16.gmra.mxu0 %v3900
      %v4167 = vpop.f32.mrf.mxu0
      %v4168 = vadd.f32 0.0, %v4167
      %v4169 = vpop.f32.mrf.mxu0
      %v4170 = vpop.f32.mrf.mxu0
      %v4171 = vadd.f32 0.0, %v4170
      %v4172 = vpop.f32.mrf.mxu0
      %4173 = vmatprep.mubr.bf16.mxu0 0
      %4174 = vmatmul.mubr.bf16.gmra.mxu0 %v3903
      %v4175 = vpop.f32.mrf.mxu0
      %v4176 = vadd.f32 0.0, %v4175
      %v4177 = vpop.f32.mrf.mxu0
      %v4178 = vpop.f32.mrf.mxu0
      %v4179 = vadd.f32 0.0, %v4178
      %v4180 = vpop.f32.mrf.mxu0
      %4181 = vmatprep.mubr.bf16.mxu0 0
      %4182 = vmatmul.mubr.bf16.gmra.mxu0 %v3906
      %v4183 = vpop.f32.mrf.mxu0
      %v4184 = vadd.f32 0.0, %v4183
      %v4185 = vpop.f32.mrf.mxu0
      %v4186 = vpop.f32.mrf.mxu0
      %v4187 = vadd.f32 0.0, %v4186
      %v4188 = vpop.f32.mrf.mxu0
      %4189 = vmatprep.mubr.bf16.mxu0 0
      %4190 = vmatmul.mubr.bf16.gmra.mxu0 %v3909
      %v4191 = vpop.f32.mrf.mxu0
      %v4192 = vadd.f32 0.0, %v4191
      %v4193 = vpop.f32.mrf.mxu0
      %v4194 = vpop.f32.mrf.mxu0
      %v4195 = vadd.f32 0.0, %v4194
      %v4196 = vpop.f32.mrf.mxu0
      %4197 = vmatprep.mubr.bf16.mxu0 0
      %4198 = vmatmul.mubr.bf16.gmra.mxu0 %v3912
      %v4199 = vpop.f32.mrf.mxu0
      %v4200 = vadd.f32 0.0, %v4199
      %v4201 = vpop.f32.mrf.mxu0
      %v4202 = vpop.f32.mrf.mxu0
      %v4203 = vadd.f32 0.0, %v4202
      %v4204 = vpop.f32.mrf.mxu0
      %4205 = vdwg.mxu0
      %v4206 = vadd.f32 %v3656, %v3952
      %v4207 = vadd.f32 %v3657, %v3955
      %v4208 = vadd.f32 %v3658, %v3960
      %v4209 = vadd.f32 %v3659, %v3963
      %v4210 = vadd.f32 %v3660, %v3968
      %v4211 = vadd.f32 %v3661, %v3971
      %v4212 = vadd.f32 %v3662, %v3976
      %v4213 = vadd.f32 %v3663, %v3979
      %v4214 = vadd.f32 %v3664, %v3984
      %v4215 = vadd.f32 %v3665, %v3987
      %v4216 = vadd.f32 %v3666, %v3992
      %v4217 = vadd.f32 %v3667, %v3995
      %v4218 = vadd.f32 %v3668, %v4000
      %v4219 = vadd.f32 %v3669, %v4003
      %v4220 = vadd.f32 %v3670, %v4008
      %v4221 = vadd.f32 %v3671, %v4011
      %v4222 = vadd.f32 %v3672, %v4016
      %v4223 = vadd.f32 %v3673, %v4019
      %v4224 = vadd.f32 %v3674, %v4024
      %v4225 = vadd.f32 %v3675, %v4027
      %v4226 = vadd.f32 %v3676, %v4032
      %v4227 = vadd.f32 %v3677, %v4035
      %v4228 = vadd.f32 %v3678, %v4040
      %v4229 = vadd.f32 %v3679, %v4043
      %v4230 = vadd.f32 %v3680, %v4048
      %v4231 = vadd.f32 %v3681, %v4051
      %v4232 = vadd.f32 %v3682, %v4056
      %v4233 = vadd.f32 %v3683, %v4059
      %v4234 = vadd.f32 %v3684, %v4064
      %v4235 = vadd.f32 %v3685, %v4067
      %v4236 = vadd.f32 %v3686, %v4072
      %v4237 = vadd.f32 %v3687, %v4075
      %v4238 = vadd.f32 %v3688, %v4080
      %v4239 = vadd.f32 %v3689, %v4083
      %v4240 = vadd.f32 %v3690, %v4088
      %v4241 = vadd.f32 %v3691, %v4091
      %v4242 = vadd.f32 %v3692, %v4096
      %v4243 = vadd.f32 %v3693, %v4099
      %v4244 = vadd.f32 %v3694, %v4104
      %v4245 = vadd.f32 %v3695, %v4107
      %v4246 = vadd.f32 %v3696, %v4112
      %v4247 = vadd.f32 %v3697, %v4115
      %v4248 = vadd.f32 %v3698, %v4120
      %v4249 = vadd.f32 %v3699, %v4123
      %v4250 = vadd.f32 %v3700, %v4128
      %v4251 = vadd.f32 %v3701, %v4131
      %v4252 = vadd.f32 %v3702, %v4136
      %v4253 = vadd.f32 %v3703, %v4139
      %v4254 = vadd.f32 %v3704, %v4144
      %v4255 = vadd.f32 %v3705, %v4147
      %v4256 = vadd.f32 %v3706, %v4152
      %v4257 = vadd.f32 %v3707, %v4155
      %v4258 = vadd.f32 %v3708, %v4160
      %v4259 = vadd.f32 %v3709, %v4163
      %v4260 = vadd.f32 %v3710, %v4168
      %v4261 = vadd.f32 %v3711, %v4171
      %v4262 = vadd.f32 %v3712, %v4176
      %v4263 = vadd.f32 %v3713, %v4179
      %v4264 = vadd.f32 %v3714, %v4184
      %v4265 = vadd.f32 %v3715, %v4187
      %v4266 = vadd.f32 %v3716, %v4192
      %v4267 = vadd.f32 %v3717, %v4195
      %v4268 = vadd.f32 %v3718, %v4200
      %v4269 = vadd.f32 %v3719, %v4203
      %s4270 = scalar_lea.vmem [#allocation2], 48
      %v4271 = vld [vmem:[%s4270] sm:$0xff]
      %v4272 = vld [vmem:[%s4270 + $0x8] sm:$0xff]
      %v4273 = vld [vmem:[%s4270 + $0x18] sm:$0xff]
      %v4274 = vld [vmem:[%s4270 + $0x20] sm:$0xff]
      %v4275 = vld [vmem:[%s4270 + $0x30] sm:$0xff]
      %v4276 = vld [vmem:[%s4270 + $0x38] sm:$0xff]
      %v4277 = vld [vmem:[%s4270 + $0x48] sm:$0xff]
      %v4278 = vld [vmem:[%s4270 + $0x50] sm:$0xff]
      %v4279 = vld [vmem:[%s4270 + $0x60] sm:$0xff]
      %v4280 = vld [vmem:[%s4270 + $0x68] sm:$0xff]
      %v4281 = vld [vmem:[%s4270 + $0x78] sm:$0xff]
      %v4282 = vld [vmem:[%s4270 + $0x80] sm:$0xff]
      %v4283 = vld [vmem:[%s4270 + $0x90] sm:$0xff]
      %v4284 = vld [vmem:[%s4270 + $0x98] sm:$0xff]
      %v4285 = vld [vmem:[%s4270 + $0xa8] sm:$0xff]
      %v4286 = vld [vmem:[%s4270 + $0xb0] sm:$0xff]
      %v4287 = vld [vmem:[%s4270 + $0xc0] sm:$0xff]
      %v4288 = vld [vmem:[%s4270 + $0xc8] sm:$0xff]
      %v4289 = vld [vmem:[%s4270 + $0xd8] sm:$0xff]
      %v4290 = vld [vmem:[%s4270 + $0xe0] sm:$0xff]
      %v4291 = vld [vmem:[%s4270 + $0xf0] sm:$0xff]
      %v4292 = vld [vmem:[%s4270 + $0xf8] sm:$0xff]
      %v4293 = vld [vmem:[%s4270 + $0x108] sm:$0xff]
      %v4294 = vld [vmem:[%s4270 + $0x110] sm:$0xff]
      %v4295 = vld [vmem:[%s4270 + $0x120] sm:$0xff]
      %v4296 = vld [vmem:[%s4270 + $0x128] sm:$0xff]
      %v4297 = vld [vmem:[%s4270 + $0x138] sm:$0xff]
      %v4298 = vld [vmem:[%s4270 + $0x140] sm:$0xff]
      %v4299 = vld [vmem:[%s4270 + $0x150] sm:$0xff]
      %v4300 = vld [vmem:[%s4270 + $0x158] sm:$0xff]
      %v4301 = vld [vmem:[%s4270 + $0x168] sm:$0xff]
      %v4302 = vld [vmem:[%s4270 + $0x170] sm:$0xff]
      %v4303 = vld [vmem:[%s4270 + $0x1b0] sm:$0xff]
      %v4304 = vld [vmem:[%s4270 + $0x1b8] sm:$0xff]
      %v4305 = vld [vmem:[%s4270 + $0x1c8] sm:$0xff]
      %v4306 = vld [vmem:[%s4270 + $0x1d0] sm:$0xff]
      %v4307 = vld [vmem:[%s4270 + $0x1e0] sm:$0xff]
      %v4308 = vld [vmem:[%s4270 + $0x1e8] sm:$0xff]
      %v4309 = vld [vmem:[%s4270 + $0x1f8] sm:$0xff]
      %v4310 = vld [vmem:[%s4270 + $0x200] sm:$0xff]
      %v4311 = vld [vmem:[%s4270 + $0x210] sm:$0xff]
      %v4312 = vld [vmem:[%s4270 + $0x218] sm:$0xff]
      %v4313 = vld [vmem:[%s4270 + $0x228] sm:$0xff]
      %v4314 = vld [vmem:[%s4270 + $0x230] sm:$0xff]
      %v4315 = vld [vmem:[%s4270 + $0x240] sm:$0xff]
      %v4316 = vld [vmem:[%s4270 + $0x248] sm:$0xff]
      %v4317 = vld [vmem:[%s4270 + $0x258] sm:$0xff]
      %v4318 = vld [vmem:[%s4270 + $0x260] sm:$0xff]
      %v4319 = vld [vmem:[%s4270 + $0x270] sm:$0xff]
      %v4320 = vld [vmem:[%s4270 + $0x278] sm:$0xff]
      %v4321 = vld [vmem:[%s4270 + $0x288] sm:$0xff]
      %v4322 = vld [vmem:[%s4270 + $0x290] sm:$0xff]
      %v4323 = vld [vmem:[%s4270 + $0x2a0] sm:$0xff]
      %v4324 = vld [vmem:[%s4270 + $0x2a8] sm:$0xff]
      %v4325 = vld [vmem:[%s4270 + $0x2b8] sm:$0xff]
      %v4326 = vld [vmem:[%s4270 + $0x2c0] sm:$0xff]
      %v4327 = vld [vmem:[%s4270 + $0x2d0] sm:$0xff]
      %v4328 = vld [vmem:[%s4270 + $0x2d8] sm:$0xff]
      %v4329 = vld [vmem:[%s4270 + $0x2e8] sm:$0xff]
      %v4330 = vld [vmem:[%s4270 + $0x2f0] sm:$0xff]
      %v4331 = vld [vmem:[%s4270 + $0x300] sm:$0xff]
      %v4332 = vld [vmem:[%s4270 + $0x308] sm:$0xff]
      %v4333 = vld [vmem:[%s4270 + $0x318] sm:$0xff]
      %v4334 = vld [vmem:[%s4270 + $0x320] sm:$0xff]
      %v4335 = vpack.c.bf16 %v4272, %v4271
      %v4336 = vpack.c.bf16 %v4274, %v4273
      %v4337 = vpack.c.bf16 %v4276, %v4275
      %v4338 = vpack.c.bf16 %v4278, %v4277
      %v4339 = vpack.c.bf16 %v4280, %v4279
      %v4340 = vpack.c.bf16 %v4282, %v4281
      %v4341 = vpack.c.bf16 %v4284, %v4283
      %v4342 = vpack.c.bf16 %v4286, %v4285
      %v4343 = vpack.c.bf16 %v4288, %v4287
      %v4344 = vpack.c.bf16 %v4290, %v4289
      %v4345 = vpack.c.bf16 %v4292, %v4291
      %v4346 = vpack.c.bf16 %v4294, %v4293
      %v4347 = vpack.c.bf16 %v4296, %v4295
      %v4348 = vpack.c.bf16 %v4298, %v4297
      %v4349 = vpack.c.bf16 %v4300, %v4299
      %v4350 = vpack.c.bf16 %v4302, %v4301
      %v4351 = vpack.c.bf16 %v4304, %v4303
      %v4352 = vpack.c.bf16 %v4306, %v4305
      %v4353 = vpack.c.bf16 %v4308, %v4307
      %v4354 = vpack.c.bf16 %v4310, %v4309
      %v4355 = vpack.c.bf16 %v4312, %v4311
      %v4356 = vpack.c.bf16 %v4314, %v4313
      %v4357 = vpack.c.bf16 %v4316, %v4315
      %v4358 = vpack.c.bf16 %v4318, %v4317
      %v4359 = vpack.c.bf16 %v4320, %v4319
      %v4360 = vpack.c.bf16 %v4322, %v4321
      %v4361 = vpack.c.bf16 %v4324, %v4323
      %v4362 = vpack.c.bf16 %v4326, %v4325
      %v4363 = vpack.c.bf16 %v4328, %v4327
      %v4364 = vpack.c.bf16 %v4330, %v4329
      %v4365 = vpack.c.bf16 %v4332, %v4331
      %v4366 = vpack.c.bf16 %v4334, %v4333
      %s4367 = scalar_lea.vmem %s3, 12
      %v4368 = vld [vmem:[%s4367] sm:$0x3]
      %v4370 = vsel %vm923, %v4335, 0
      %v4373 = vsel %vm923, %v4336, 0
      %v4376 = vsel %vm923, %v4337, 0
      %v4379 = vsel %vm923, %v4338, 0
      %v4382 = vsel %vm923, %v4339, 0
      %v4385 = vsel %vm923, %v4340, 0
      %v4388 = vsel %vm923, %v4341, 0
      %v4391 = vsel %vm923, %v4342, 0
      %v4394 = vsel %vm923, %v4343, 0
      %v4397 = vsel %vm923, %v4344, 0
      %v4400 = vsel %vm923, %v4345, 0
      %v4403 = vsel %vm923, %v4346, 0
      %v4406 = vsel %vm923, %v4347, 0
      %v4409 = vsel %vm923, %v4348, 0
      %v4412 = vsel %vm923, %v4349, 0
      %v4415 = vsel %vm923, %v4350, 0
      %v4418 = vsel %vm923, %v4351, 0
      %v4421 = vsel %vm923, %v4352, 0
      %v4424 = vsel %vm923, %v4353, 0
      %v4427 = vsel %vm923, %v4354, 0
      %v4430 = vsel %vm923, %v4355, 0
      %v4433 = vsel %vm923, %v4356, 0
      %v4436 = vsel %vm923, %v4357, 0
      %v4439 = vsel %vm923, %v4358, 0
      %v4442 = vsel %vm923, %v4359, 0
      %v4445 = vsel %vm923, %v4360, 0
      %v4448 = vsel %vm923, %v4361, 0
      %v4451 = vsel %vm923, %v4362, 0
      %v4454 = vsel %vm923, %v4363, 0
      %v4457 = vsel %vm923, %v4364, 0
      %v4460 = vsel %vm923, %v4365, 0
      %v4463 = vsel %vm923, %v4366, 0
      %v4466 = vsel %vm1389, %v4368, 0
      %4468 = vmatprep.subr.bf16.mxu0 0
      %4469 = vmatpush1.bf16.msra.mxu0 0
      %4470 = vmatprep.subr.bf16.mxu0 0
      %4471 = vmatpush1.bf16.msra.mxu0 0
      %4472 = vmatprep.subr.bf16.mxu0 0
      %4473 = vmatpush1.bf16.msra.mxu0 0
      %4474 = vmatprep.subr.bf16.mxu0 0
      %4475 = vmatpush1.bf16.msra.mxu0 0
      %4476 = vmatprep.subr.bf16.mxu0 0
      %4477 = vmatpush1.bf16.msra.mxu0 0
      %4478 = vmatprep.subr.bf16.mxu0 0
      %4479 = vmatpush1.bf16.msra.mxu0 0
      %4480 = vmatprep.subr.bf16.mxu0 0
      %4481 = vmatpush1.bf16.msra.mxu0 0
      %4482 = vmatprep.subr.bf16.mxu0 0
      %4483 = vmatpush1.bf16.msra.mxu0 %v4466
      %4484 = vmatprep.subr.bf16.mxu0 0
      %4485 = vmatpush2.bf16.msra.mxu0 0
      %4486 = vmatprep.subr.bf16.mxu0 0
      %4487 = vmatpush2.bf16.msra.mxu0 0
      %4488 = vmatprep.subr.bf16.mxu0 0
      %4489 = vmatpush2.bf16.msra.mxu0 0
      %4490 = vmatprep.subr.bf16.mxu0 0
      %4491 = vmatpush2.bf16.msra.mxu0 0
      %4492 = vmatprep.subr.bf16.mxu0 0
      %4493 = vmatpush2.bf16.msra.mxu0 0
      %4494 = vmatprep.subr.bf16.mxu0 0
      %4495 = vmatpush2.bf16.msra.mxu0 0
      %4496 = vmatprep.subr.bf16.mxu0 0
      %4497 = vmatpush2.bf16.msra.mxu0 0
      %4498 = vmatprep.subr.bf16.mxu0 0
      %4499 = vmatpush2.bf16.msra.mxu0 0
      %4500 = vmatprep.mubr.bf16.mxu0 0
      %4501 = vmatmul.mubr.bf16.gmra.mxu0 %v4370
      %v4502 = vpop.f32.mrf.mxu0
      %v4503 = vadd.f32 0.0, %v4502
      %v4504 = vpop.f32.mrf.mxu0
      %v4505 = vpop.f32.mrf.mxu0
      %v4506 = vadd.f32 0.0, %v4505
      %v4507 = vpop.f32.mrf.mxu0
      %4508 = vmatprep.mubr.bf16.mxu0 0
      %4509 = vmatmul.mubr.bf16.gmra.mxu0 %v4373
      %v4510 = vpop.f32.mrf.mxu0
      %v4511 = vadd.f32 0.0, %v4510
      %v4512 = vpop.f32.mrf.mxu0
      %v4513 = vpop.f32.mrf.mxu0
      %v4514 = vadd.f32 0.0, %v4513
      %v4515 = vpop.f32.mrf.mxu0
      %4516 = vmatprep.mubr.bf16.mxu0 0
      %4517 = vmatmul.mubr.bf16.gmra.mxu0 %v4376
      %v4518 = vpop.f32.mrf.mxu0
      %v4519 = vadd.f32 0.0, %v4518
      %v4520 = vpop.f32.mrf.mxu0
      %v4521 = vpop.f32.mrf.mxu0
      %v4522 = vadd.f32 0.0, %v4521
      %v4523 = vpop.f32.mrf.mxu0
      %4524 = vmatprep.mubr.bf16.mxu0 0
      %4525 = vmatmul.mubr.bf16.gmra.mxu0 %v4379
      %v4526 = vpop.f32.mrf.mxu0
      %v4527 = vadd.f32 0.0, %v4526
      %v4528 = vpop.f32.mrf.mxu0
      %v4529 = vpop.f32.mrf.mxu0
      %v4530 = vadd.f32 0.0, %v4529
      %v4531 = vpop.f32.mrf.mxu0
      %4532 = vmatprep.mubr.bf16.mxu0 0
      %4533 = vmatmul.mubr.bf16.gmra.mxu0 %v4382
      %v4534 = vpop.f32.mrf.mxu0
      %v4535 = vadd.f32 0.0, %v4534
      %v4536 = vpop.f32.mrf.mxu0
      %v4537 = vpop.f32.mrf.mxu0
      %v4538 = vadd.f32 0.0, %v4537
      %v4539 = vpop.f32.mrf.mxu0
      %4540 = vmatprep.mubr.bf16.mxu0 0
      %4541 = vmatmul.mubr.bf16.gmra.mxu0 %v4385
      %v4542 = vpop.f32.mrf.mxu0
      %v4543 = vadd.f32 0.0, %v4542
      %v4544 = vpop.f32.mrf.mxu0
      %v4545 = vpop.f32.mrf.mxu0
      %v4546 = vadd.f32 0.0, %v4545
      %v4547 = vpop.f32.mrf.mxu0
      %4548 = vmatprep.mubr.bf16.mxu0 0
      %4549 = vmatmul.mubr.bf16.gmra.mxu0 %v4388
      %v4550 = vpop.f32.mrf.mxu0
      %v4551 = vadd.f32 0.0, %v4550
      %v4552 = vpop.f32.mrf.mxu0
      %v4553 = vpop.f32.mrf.mxu0
      %v4554 = vadd.f32 0.0, %v4553
      %v4555 = vpop.f32.mrf.mxu0
      %4556 = vmatprep.mubr.bf16.mxu0 0
      %4557 = vmatmul.mubr.bf16.gmra.mxu0 %v4391
      %v4558 = vpop.f32.mrf.mxu0
      %v4559 = vadd.f32 0.0, %v4558
      %v4560 = vpop.f32.mrf.mxu0
      %v4561 = vpop.f32.mrf.mxu0
      %v4562 = vadd.f32 0.0, %v4561
      %v4563 = vpop.f32.mrf.mxu0
      %4564 = vmatprep.mubr.bf16.mxu0 0
      %4565 = vmatmul.mubr.bf16.gmra.mxu0 %v4394
      %v4566 = vpop.f32.mrf.mxu0
      %v4567 = vadd.f32 0.0, %v4566
      %v4568 = vpop.f32.mrf.mxu0
      %v4569 = vpop.f32.mrf.mxu0
      %v4570 = vadd.f32 0.0, %v4569
      %v4571 = vpop.f32.mrf.mxu0
      %4572 = vmatprep.mubr.bf16.mxu0 0
      %4573 = vmatmul.mubr.bf16.gmra.mxu0 %v4397
      %v4574 = vpop.f32.mrf.mxu0
      %v4575 = vadd.f32 0.0, %v4574
      %v4576 = vpop.f32.mrf.mxu0
      %v4577 = vpop.f32.mrf.mxu0
      %v4578 = vadd.f32 0.0, %v4577
      %v4579 = vpop.f32.mrf.mxu0
      %4580 = vmatprep.mubr.bf16.mxu0 0
      %4581 = vmatmul.mubr.bf16.gmra.mxu0 %v4400
      %v4582 = vpop.f32.mrf.mxu0
      %v4583 = vadd.f32 0.0, %v4582
      %v4584 = vpop.f32.mrf.mxu0
      %v4585 = vpop.f32.mrf.mxu0
      %v4586 = vadd.f32 0.0, %v4585
      %v4587 = vpop.f32.mrf.mxu0
      %4588 = vmatprep.mubr.bf16.mxu0 0
      %4589 = vmatmul.mubr.bf16.gmra.mxu0 %v4403
      %v4590 = vpop.f32.mrf.mxu0
      %v4591 = vadd.f32 0.0, %v4590
      %v4592 = vpop.f32.mrf.mxu0
      %v4593 = vpop.f32.mrf.mxu0
      %v4594 = vadd.f32 0.0, %v4593
      %v4595 = vpop.f32.mrf.mxu0
      %4596 = vmatprep.mubr.bf16.mxu0 0
      %4597 = vmatmul.mubr.bf16.gmra.mxu0 %v4406
      %v4598 = vpop.f32.mrf.mxu0
      %v4599 = vadd.f32 0.0, %v4598
      %v4600 = vpop.f32.mrf.mxu0
      %v4601 = vpop.f32.mrf.mxu0
      %v4602 = vadd.f32 0.0, %v4601
      %v4603 = vpop.f32.mrf.mxu0
      %4604 = vmatprep.mubr.bf16.mxu0 0
      %4605 = vmatmul.mubr.bf16.gmra.mxu0 %v4409
      %v4606 = vpop.f32.mrf.mxu0
      %v4607 = vadd.f32 0.0, %v4606
      %v4608 = vpop.f32.mrf.mxu0
      %v4609 = vpop.f32.mrf.mxu0
      %v4610 = vadd.f32 0.0, %v4609
      %v4611 = vpop.f32.mrf.mxu0
      %4612 = vmatprep.mubr.bf16.mxu0 0
      %4613 = vmatmul.mubr.bf16.gmra.mxu0 %v4412
      %v4614 = vpop.f32.mrf.mxu0
      %v4615 = vadd.f32 0.0, %v4614
      %v4616 = vpop.f32.mrf.mxu0
      %v4617 = vpop.f32.mrf.mxu0
      %v4618 = vadd.f32 0.0, %v4617
      %v4619 = vpop.f32.mrf.mxu0
      %4620 = vmatprep.mubr.bf16.mxu0 0
      %4621 = vmatmul.mubr.bf16.gmra.mxu0 %v4415
      %v4622 = vpop.f32.mrf.mxu0
      %v4623 = vadd.f32 0.0, %v4622
      %v4624 = vpop.f32.mrf.mxu0
      %v4625 = vpop.f32.mrf.mxu0
      %v4626 = vadd.f32 0.0, %v4625
      %v4627 = vpop.f32.mrf.mxu0
      %4628 = vmatprep.mubr.bf16.mxu0 0
      %4629 = vmatmul.mubr.bf16.gmra.mxu0 %v4418
      %v4630 = vpop.f32.mrf.mxu0
      %v4631 = vadd.f32 0.0, %v4630
      %v4632 = vpop.f32.mrf.mxu0
      %v4633 = vpop.f32.mrf.mxu0
      %v4634 = vadd.f32 0.0, %v4633
      %v4635 = vpop.f32.mrf.mxu0
      %4636 = vmatprep.mubr.bf16.mxu0 0
      %4637 = vmatmul.mubr.bf16.gmra.mxu0 %v4421
      %v4638 = vpop.f32.mrf.mxu0
      %v4639 = vadd.f32 0.0, %v4638
      %v4640 = vpop.f32.mrf.mxu0
      %v4641 = vpop.f32.mrf.mxu0
      %v4642 = vadd.f32 0.0, %v4641
      %v4643 = vpop.f32.mrf.mxu0
      %4644 = vmatprep.mubr.bf16.mxu0 0
      %4645 = vmatmul.mubr.bf16.gmra.mxu0 %v4424
      %v4646 = vpop.f32.mrf.mxu0
      %v4647 = vadd.f32 0.0, %v4646
      %v4648 = vpop.f32.mrf.mxu0
      %v4649 = vpop.f32.mrf.mxu0
      %v4650 = vadd.f32 0.0, %v4649
      %v4651 = vpop.f32.mrf.mxu0
      %4652 = vmatprep.mubr.bf16.mxu0 0
      %4653 = vmatmul.mubr.bf16.gmra.mxu0 %v4427
      %v4654 = vpop.f32.mrf.mxu0
      %v4655 = vadd.f32 0.0, %v4654
      %v4656 = vpop.f32.mrf.mxu0
      %v4657 = vpop.f32.mrf.mxu0
      %v4658 = vadd.f32 0.0, %v4657
      %v4659 = vpop.f32.mrf.mxu0
      %4660 = vmatprep.mubr.bf16.mxu0 0
      %4661 = vmatmul.mubr.bf16.gmra.mxu0 %v4430
      %v4662 = vpop.f32.mrf.mxu0
      %v4663 = vadd.f32 0.0, %v4662
      %v4664 = vpop.f32.mrf.mxu0
      %v4665 = vpop.f32.mrf.mxu0
      %v4666 = vadd.f32 0.0, %v4665
      %v4667 = vpop.f32.mrf.mxu0
      %4668 = vmatprep.mubr.bf16.mxu0 0
      %4669 = vmatmul.mubr.bf16.gmra.mxu0 %v4433
      %v4670 = vpop.f32.mrf.mxu0
      %v4671 = vadd.f32 0.0, %v4670
      %v4672 = vpop.f32.mrf.mxu0
      %v4673 = vpop.f32.mrf.mxu0
      %v4674 = vadd.f32 0.0, %v4673
      %v4675 = vpop.f32.mrf.mxu0
      %4676 = vmatprep.mubr.bf16.mxu0 0
      %4677 = vmatmul.mubr.bf16.gmra.mxu0 %v4436
      %v4678 = vpop.f32.mrf.mxu0
      %v4679 = vadd.f32 0.0, %v4678
      %v4680 = vpop.f32.mrf.mxu0
      %v4681 = vpop.f32.mrf.mxu0
      %v4682 = vadd.f32 0.0, %v4681
      %v4683 = vpop.f32.mrf.mxu0
      %4684 = vmatprep.mubr.bf16.mxu0 0
      %4685 = vmatmul.mubr.bf16.gmra.mxu0 %v4439
      %v4686 = vpop.f32.mrf.mxu0
      %v4687 = vadd.f32 0.0, %v4686
      %v4688 = vpop.f32.mrf.mxu0
      %v4689 = vpop.f32.mrf.mxu0
      %v4690 = vadd.f32 0.0, %v4689
      %v4691 = vpop.f32.mrf.mxu0
      %4692 = vmatprep.mubr.bf16.mxu0 0
      %4693 = vmatmul.mubr.bf16.gmra.mxu0 %v4442
      %v4694 = vpop.f32.mrf.mxu0
      %v4695 = vadd.f32 0.0, %v4694
      %v4696 = vpop.f32.mrf.mxu0
      %v4697 = vpop.f32.mrf.mxu0
      %v4698 = vadd.f32 0.0, %v4697
      %v4699 = vpop.f32.mrf.mxu0
      %4700 = vmatprep.mubr.bf16.mxu0 0
      %4701 = vmatmul.mubr.bf16.gmra.mxu0 %v4445
      %v4702 = vpop.f32.mrf.mxu0
      %v4703 = vadd.f32 0.0, %v4702
      %v4704 = vpop.f32.mrf.mxu0
      %v4705 = vpop.f32.mrf.mxu0
      %v4706 = vadd.f32 0.0, %v4705
      %v4707 = vpop.f32.mrf.mxu0
      %4708 = vmatprep.mubr.bf16.mxu0 0
      %4709 = vmatmul.mubr.bf16.gmra.mxu0 %v4448
      %v4710 = vpop.f32.mrf.mxu0
      %v4711 = vadd.f32 0.0, %v4710
      %v4712 = vpop.f32.mrf.mxu0
      %v4713 = vpop.f32.mrf.mxu0
      %v4714 = vadd.f32 0.0, %v4713
      %v4715 = vpop.f32.mrf.mxu0
      %4716 = vmatprep.mubr.bf16.mxu0 0
      %4717 = vmatmul.mubr.bf16.gmra.mxu0 %v4451
      %v4718 = vpop.f32.mrf.mxu0
      %v4719 = vadd.f32 0.0, %v4718
      %v4720 = vpop.f32.mrf.mxu0
      %v4721 = vpop.f32.mrf.mxu0
      %v4722 = vadd.f32 0.0, %v4721
      %v4723 = vpop.f32.mrf.mxu0
      %4724 = vmatprep.mubr.bf16.mxu0 0
      %4725 = vmatmul.mubr.bf16.gmra.mxu0 %v4454
      %v4726 = vpop.f32.mrf.mxu0
      %v4727 = vadd.f32 0.0, %v4726
      %v4728 = vpop.f32.mrf.mxu0
      %v4729 = vpop.f32.mrf.mxu0
      %v4730 = vadd.f32 0.0, %v4729
      %v4731 = vpop.f32.mrf.mxu0
      %4732 = vmatprep.mubr.bf16.mxu0 0
      %4733 = vmatmul.mubr.bf16.gmra.mxu0 %v4457
      %v4734 = vpop.f32.mrf.mxu0
      %v4735 = vadd.f32 0.0, %v4734
      %v4736 = vpop.f32.mrf.mxu0
      %v4737 = vpop.f32.mrf.mxu0
      %v4738 = vadd.f32 0.0, %v4737
      %v4739 = vpop.f32.mrf.mxu0
      %4740 = vmatprep.mubr.bf16.mxu0 0
      %4741 = vmatmul.mubr.bf16.gmra.mxu0 %v4460
      %v4742 = vpop.f32.mrf.mxu0
      %v4743 = vadd.f32 0.0, %v4742
      %v4744 = vpop.f32.mrf.mxu0
      %v4745 = vpop.f32.mrf.mxu0
      %v4746 = vadd.f32 0.0, %v4745
      %v4747 = vpop.f32.mrf.mxu0
      %4748 = vmatprep.mubr.bf16.mxu0 0
      %4749 = vmatmul.mubr.bf16.gmra.mxu0 %v4463
      %v4750 = vpop.f32.mrf.mxu0
      %v4751 = vadd.f32 0.0, %v4750
      %v4752 = vpop.f32.mrf.mxu0
      %v4753 = vpop.f32.mrf.mxu0
      %v4754 = vadd.f32 0.0, %v4753
      %v4755 = vpop.f32.mrf.mxu0
      %4756 = vdwg.mxu0
      %v4757 = vadd.f32 %v4206, %v4503
      %v4758 = vadd.f32 %v4207, %v4506
      %v4759 = vadd.f32 %v4208, %v4511
      %v4760 = vadd.f32 %v4209, %v4514
      %v4761 = vadd.f32 %v4210, %v4519
      %v4762 = vadd.f32 %v4211, %v4522
      %v4763 = vadd.f32 %v4212, %v4527
      %v4764 = vadd.f32 %v4213, %v4530
      %v4765 = vadd.f32 %v4214, %v4535
      %v4766 = vadd.f32 %v4215, %v4538
      %v4767 = vadd.f32 %v4216, %v4543
      %v4768 = vadd.f32 %v4217, %v4546
      %v4769 = vadd.f32 %v4218, %v4551
      %v4770 = vadd.f32 %v4219, %v4554
      %v4771 = vadd.f32 %v4220, %v4559
      %v4772 = vadd.f32 %v4221, %v4562
      %v4773 = vadd.f32 %v4222, %v4567
      %v4774 = vadd.f32 %v4223, %v4570
      %v4775 = vadd.f32 %v4224, %v4575
      %v4776 = vadd.f32 %v4225, %v4578
      %v4777 = vadd.f32 %v4226, %v4583
      %v4778 = vadd.f32 %v4227, %v4586
      %v4779 = vadd.f32 %v4228, %v4591
      %v4780 = vadd.f32 %v4229, %v4594
      %v4781 = vadd.f32 %v4230, %v4599
      %v4782 = vadd.f32 %v4231, %v4602
      %v4783 = vadd.f32 %v4232, %v4607
      %v4784 = vadd.f32 %v4233, %v4610
      %v4785 = vadd.f32 %v4234, %v4615
      %v4786 = vadd.f32 %v4235, %v4618
      %v4787 = vadd.f32 %v4236, %v4623
      %v4788 = vadd.f32 %v4237, %v4626
      %v4789 = vadd.f32 %v4238, %v4631
      %v4790 = vadd.f32 %v4239, %v4634
      %v4791 = vadd.f32 %v4240, %v4639
      %v4792 = vadd.f32 %v4241, %v4642
      %v4793 = vadd.f32 %v4242, %v4647
      %v4794 = vadd.f32 %v4243, %v4650
      %v4795 = vadd.f32 %v4244, %v4655
      %v4796 = vadd.f32 %v4245, %v4658
      %v4797 = vadd.f32 %v4246, %v4663
      %v4798 = vadd.f32 %v4247, %v4666
      %v4799 = vadd.f32 %v4248, %v4671
      %v4800 = vadd.f32 %v4249, %v4674
      %v4801 = vadd.f32 %v4250, %v4679
      %v4802 = vadd.f32 %v4251, %v4682
      %v4803 = vadd.f32 %v4252, %v4687
      %v4804 = vadd.f32 %v4253, %v4690
      %v4805 = vadd.f32 %v4254, %v4695
      %v4806 = vadd.f32 %v4255, %v4698
      %v4807 = vadd.f32 %v4256, %v4703
      %v4808 = vadd.f32 %v4257, %v4706
      %v4809 = vadd.f32 %v4258, %v4711
      %v4810 = vadd.f32 %v4259, %v4714
      %v4811 = vadd.f32 %v4260, %v4719
      %v4812 = vadd.f32 %v4261, %v4722
      %v4813 = vadd.f32 %v4262, %v4727
      %v4814 = vadd.f32 %v4263, %v4730
      %v4815 = vadd.f32 %v4264, %v4735
      %v4816 = vadd.f32 %v4265, %v4738
      %v4817 = vadd.f32 %v4266, %v4743
      %v4818 = vadd.f32 %v4267, %v4746
      %v4819 = vadd.f32 %v4268, %v4751
      %v4820 = vadd.f32 %v4269, %v4754
      %v4821 = vld [vmem:[%s4270 + $0x1] sm:$0xff]
      %v4822 = vld [vmem:[%s4270 + $0x9] sm:$0xff]
      %v4823 = vld [vmem:[%s4270 + $0x19] sm:$0xff]
      %v4824 = vld [vmem:[%s4270 + $0x21] sm:$0xff]
      %v4825 = vld [vmem:[%s4270 + $0x31] sm:$0xff]
      %v4826 = vld [vmem:[%s4270 + $0x39] sm:$0xff]
      %v4827 = vld [vmem:[%s4270 + $0x49] sm:$0xff]
      %v4828 = vld [vmem:[%s4270 + $0x51] sm:$0xff]
      %v4829 = vld [vmem:[%s4270 + $0x61] sm:$0xff]
      %v4830 = vld [vmem:[%s4270 + $0x69] sm:$0xff]
      %v4831 = vld [vmem:[%s4270 + $0x79] sm:$0xff]
      %v4832 = vld [vmem:[%s4270 + $0x81] sm:$0xff]
      %v4833 = vld [vmem:[%s4270 + $0x91] sm:$0xff]
      %v4834 = vld [vmem:[%s4270 + $0x99] sm:$0xff]
      %v4835 = vld [vmem:[%s4270 + $0xa9] sm:$0xff]
      %v4836 = vld [vmem:[%s4270 + $0xb1] sm:$0xff]
      %v4837 = vld [vmem:[%s4270 + $0xc1] sm:$0xff]
      %v4838 = vld [vmem:[%s4270 + $0xc9] sm:$0xff]
      %v4839 = vld [vmem:[%s4270 + $0xd9] sm:$0xff]
      %v4840 = vld [vmem:[%s4270 + $0xe1] sm:$0xff]
      %v4841 = vld [vmem:[%s4270 + $0xf1] sm:$0xff]
      %v4842 = vld [vmem:[%s4270 + $0xf9] sm:$0xff]
      %v4843 = vld [vmem:[%s4270 + $0x109] sm:$0xff]
      %v4844 = vld [vmem:[%s4270 + $0x111] sm:$0xff]
      %v4845 = vld [vmem:[%s4270 + $0x121] sm:$0xff]
      %v4846 = vld [vmem:[%s4270 + $0x129] sm:$0xff]
      %v4847 = vld [vmem:[%s4270 + $0x139] sm:$0xff]
      %v4848 = vld [vmem:[%s4270 + $0x141] sm:$0xff]
      %v4849 = vld [vmem:[%s4270 + $0x151] sm:$0xff]
      %v4850 = vld [vmem:[%s4270 + $0x159] sm:$0xff]
      %v4851 = vld [vmem:[%s4270 + $0x169] sm:$0xff]
      %v4852 = vld [vmem:[%s4270 + $0x171] sm:$0xff]
      %v4853 = vld [vmem:[%s4270 + $0x1b1] sm:$0xff]
      %v4854 = vld [vmem:[%s4270 + $0x1b9] sm:$0xff]
      %v4855 = vld [vmem:[%s4270 + $0x1c9] sm:$0xff]
      %v4856 = vld [vmem:[%s4270 + $0x1d1] sm:$0xff]
      %v4857 = vld [vmem:[%s4270 + $0x1e1] sm:$0xff]
      %v4858 = vld [vmem:[%s4270 + $0x1e9] sm:$0xff]
      %v4859 = vld [vmem:[%s4270 + $0x1f9] sm:$0xff]
      %v4860 = vld [vmem:[%s4270 + $0x201] sm:$0xff]
      %v4861 = vld [vmem:[%s4270 + $0x211] sm:$0xff]
      %v4862 = vld [vmem:[%s4270 + $0x219] sm:$0xff]
      %v4863 = vld [vmem:[%s4270 + $0x229] sm:$0xff]
      %v4864 = vld [vmem:[%s4270 + $0x231] sm:$0xff]
      %v4865 = vld [vmem:[%s4270 + $0x241] sm:$0xff]
      %v4866 = vld [vmem:[%s4270 + $0x249] sm:$0xff]
      %v4867 = vld [vmem:[%s4270 + $0x259] sm:$0xff]
      %v4868 = vld [vmem:[%s4270 + $0x261] sm:$0xff]
      %v4869 = vld [vmem:[%s4270 + $0x271] sm:$0xff]
      %v4870 = vld [vmem:[%s4270 + $0x279] sm:$0xff]
      %v4871 = vld [vmem:[%s4270 + $0x289] sm:$0xff]
      %v4872 = vld [vmem:[%s4270 + $0x291] sm:$0xff]
      %v4873 = vld [vmem:[%s4270 + $0x2a1] sm:$0xff]
      %v4874 = vld [vmem:[%s4270 + $0x2a9] sm:$0xff]
      %v4875 = vld [vmem:[%s4270 + $0x2b9] sm:$0xff]
      %v4876 = vld [vmem:[%s4270 + $0x2c1] sm:$0xff]
      %v4877 = vld [vmem:[%s4270 + $0x2d1] sm:$0xff]
      %v4878 = vld [vmem:[%s4270 + $0x2d9] sm:$0xff]
      %v4879 = vld [vmem:[%s4270 + $0x2e9] sm:$0xff]
      %v4880 = vld [vmem:[%s4270 + $0x2f1] sm:$0xff]
      %v4881 = vld [vmem:[%s4270 + $0x301] sm:$0xff]
      %v4882 = vld [vmem:[%s4270 + $0x309] sm:$0xff]
      %v4883 = vld [vmem:[%s4270 + $0x319] sm:$0xff]
      %v4884 = vld [vmem:[%s4270 + $0x321] sm:$0xff]
      %v4885 = vpack.c.bf16 %v4822, %v4821
      %v4886 = vpack.c.bf16 %v4824, %v4823
      %v4887 = vpack.c.bf16 %v4826, %v4825
      %v4888 = vpack.c.bf16 %v4828, %v4827
      %v4889 = vpack.c.bf16 %v4830, %v4829
      %v4890 = vpack.c.bf16 %v4832, %v4831
      %v4891 = vpack.c.bf16 %v4834, %v4833
      %v4892 = vpack.c.bf16 %v4836, %v4835
      %v4893 = vpack.c.bf16 %v4838, %v4837
      %v4894 = vpack.c.bf16 %v4840, %v4839
      %v4895 = vpack.c.bf16 %v4842, %v4841
      %v4896 = vpack.c.bf16 %v4844, %v4843
      %v4897 = vpack.c.bf16 %v4846, %v4845
      %v4898 = vpack.c.bf16 %v4848, %v4847
      %v4899 = vpack.c.bf16 %v4850, %v4849
      %v4900 = vpack.c.bf16 %v4852, %v4851
      %v4901 = vpack.c.bf16 %v4854, %v4853
      %v4902 = vpack.c.bf16 %v4856, %v4855
      %v4903 = vpack.c.bf16 %v4858, %v4857
      %v4904 = vpack.c.bf16 %v4860, %v4859
      %v4905 = vpack.c.bf16 %v4862, %v4861
      %v4906 = vpack.c.bf16 %v4864, %v4863
      %v4907 = vpack.c.bf16 %v4866, %v4865
      %v4908 = vpack.c.bf16 %v4868, %v4867
      %v4909 = vpack.c.bf16 %v4870, %v4869
      %v4910 = vpack.c.bf16 %v4872, %v4871
      %v4911 = vpack.c.bf16 %v4874, %v4873
      %v4912 = vpack.c.bf16 %v4876, %v4875
      %v4913 = vpack.c.bf16 %v4878, %v4877
      %v4914 = vpack.c.bf16 %v4880, %v4879
      %v4915 = vpack.c.bf16 %v4882, %v4881
      %v4916 = vpack.c.bf16 %v4884, %v4883
      %s4917 = scalar_lea.vmem %s3, 14
      %v4918 = vld [vmem:[%s4917] sm:$0x3]
      %v4920 = vsel %vm923, %v4885, 0
      %v4923 = vsel %vm923, %v4886, 0
      %v4926 = vsel %vm923, %v4887, 0
      %v4929 = vsel %vm923, %v4888, 0
      %v4932 = vsel %vm923, %v4889, 0
      %v4935 = vsel %vm923, %v4890, 0
      %v4938 = vsel %vm923, %v4891, 0
      %v4941 = vsel %vm923, %v4892, 0
      %v4944 = vsel %vm923, %v4893, 0
      %v4947 = vsel %vm923, %v4894, 0
      %v4950 = vsel %vm923, %v4895, 0
      %v4953 = vsel %vm923, %v4896, 0
      %v4956 = vsel %vm923, %v4897, 0
      %v4959 = vsel %vm923, %v4898, 0
      %v4962 = vsel %vm923, %v4899, 0
      %v4965 = vsel %vm923, %v4900, 0
      %v4968 = vsel %vm923, %v4901, 0
      %v4971 = vsel %vm923, %v4902, 0
      %v4974 = vsel %vm923, %v4903, 0
      %v4977 = vsel %vm923, %v4904, 0
      %v4980 = vsel %vm923, %v4905, 0
      %v4983 = vsel %vm923, %v4906, 0
      %v4986 = vsel %vm923, %v4907, 0
      %v4989 = vsel %vm923, %v4908, 0
      %v4992 = vsel %vm923, %v4909, 0
      %v4995 = vsel %vm923, %v4910, 0
      %v4998 = vsel %vm923, %v4911, 0
      %v5001 = vsel %vm923, %v4912, 0
      %v5004 = vsel %vm923, %v4913, 0
      %v5007 = vsel %vm923, %v4914, 0
      %v5010 = vsel %vm923, %v4915, 0
      %v5013 = vsel %vm923, %v4916, 0
      %v5016 = vsel %vm1389, %v4918, 0
      %5018 = vmatprep.subr.bf16.mxu0 0
      %5019 = vmatpush1.bf16.msra.mxu0 0
      %5020 = vmatprep.subr.bf16.mxu0 0
      %5021 = vmatpush1.bf16.msra.mxu0 0
      %5022 = vmatprep.subr.bf16.mxu0 0
      %5023 = vmatpush1.bf16.msra.mxu0 0
      %5024 = vmatprep.subr.bf16.mxu0 0
      %5025 = vmatpush1.bf16.msra.mxu0 0
      %5026 = vmatprep.subr.bf16.mxu0 0
      %5027 = vmatpush1.bf16.msra.mxu0 0
      %5028 = vmatprep.subr.bf16.mxu0 0
      %5029 = vmatpush1.bf16.msra.mxu0 0
      %5030 = vmatprep.subr.bf16.mxu0 0
      %5031 = vmatpush1.bf16.msra.mxu0 0
      %5032 = vmatprep.subr.bf16.mxu0 0
      %5033 = vmatpush1.bf16.msra.mxu0 %v5016
      %5034 = vmatprep.subr.bf16.mxu0 0
      %5035 = vmatpush2.bf16.msra.mxu0 0
      %5036 = vmatprep.subr.bf16.mxu0 0
      %5037 = vmatpush2.bf16.msra.mxu0 0
      %5038 = vmatprep.subr.bf16.mxu0 0
      %5039 = vmatpush2.bf16.msra.mxu0 0
      %5040 = vmatprep.subr.bf16.mxu0 0
      %5041 = vmatpush2.bf16.msra.mxu0 0
      %5042 = vmatprep.subr.bf16.mxu0 0
      %5043 = vmatpush2.bf16.msra.mxu0 0
      %5044 = vmatprep.subr.bf16.mxu0 0
      %5045 = vmatpush2.bf16.msra.mxu0 0
      %5046 = vmatprep.subr.bf16.mxu0 0
      %5047 = vmatpush2.bf16.msra.mxu0 0
      %5048 = vmatprep.subr.bf16.mxu0 0
      %5049 = vmatpush2.bf16.msra.mxu0 0
      %5050 = vmatprep.mubr.bf16.mxu0 0
      %5051 = vmatmul.mubr.bf16.gmra.mxu0 %v4920
      %v5052 = vpop.f32.mrf.mxu0
      %v5053 = vadd.f32 0.0, %v5052
      %v5054 = vpop.f32.mrf.mxu0
      %v5055 = vpop.f32.mrf.mxu0
      %v5056 = vadd.f32 0.0, %v5055
      %v5057 = vpop.f32.mrf.mxu0
      %5058 = vmatprep.mubr.bf16.mxu0 0
      %5059 = vmatmul.mubr.bf16.gmra.mxu0 %v4923
      %v5060 = vpop.f32.mrf.mxu0
      %v5061 = vadd.f32 0.0, %v5060
      %v5062 = vpop.f32.mrf.mxu0
      %v5063 = vpop.f32.mrf.mxu0
      %v5064 = vadd.f32 0.0, %v5063
      %v5065 = vpop.f32.mrf.mxu0
      %5066 = vmatprep.mubr.bf16.mxu0 0
      %5067 = vmatmul.mubr.bf16.gmra.mxu0 %v4926
      %v5068 = vpop.f32.mrf.mxu0
      %v5069 = vadd.f32 0.0, %v5068
      %v5070 = vpop.f32.mrf.mxu0
      %v5071 = vpop.f32.mrf.mxu0
      %v5072 = vadd.f32 0.0, %v5071
      %v5073 = vpop.f32.mrf.mxu0
      %5074 = vmatprep.mubr.bf16.mxu0 0
      %5075 = vmatmul.mubr.bf16.gmra.mxu0 %v4929
      %v5076 = vpop.f32.mrf.mxu0
      %v5077 = vadd.f32 0.0, %v5076
      %v5078 = vpop.f32.mrf.mxu0
      %v5079 = vpop.f32.mrf.mxu0
      %v5080 = vadd.f32 0.0, %v5079
      %v5081 = vpop.f32.mrf.mxu0
      %5082 = vmatprep.mubr.bf16.mxu0 0
      %5083 = vmatmul.mubr.bf16.gmra.mxu0 %v4932
      %v5084 = vpop.f32.mrf.mxu0
      %v5085 = vadd.f32 0.0, %v5084
      %v5086 = vpop.f32.mrf.mxu0
      %v5087 = vpop.f32.mrf.mxu0
      %v5088 = vadd.f32 0.0, %v5087
      %v5089 = vpop.f32.mrf.mxu0
      %5090 = vmatprep.mubr.bf16.mxu0 0
      %5091 = vmatmul.mubr.bf16.gmra.mxu0 %v4935
      %v5092 = vpop.f32.mrf.mxu0
      %v5093 = vadd.f32 0.0, %v5092
      %v5094 = vpop.f32.mrf.mxu0
      %v5095 = vpop.f32.mrf.mxu0
      %v5096 = vadd.f32 0.0, %v5095
      %v5097 = vpop.f32.mrf.mxu0
      %5098 = vmatprep.mubr.bf16.mxu0 0
      %5099 = vmatmul.mubr.bf16.gmra.mxu0 %v4938
      %v5100 = vpop.f32.mrf.mxu0
      %v5101 = vadd.f32 0.0, %v5100
      %v5102 = vpop.f32.mrf.mxu0
      %v5103 = vpop.f32.mrf.mxu0
      %v5104 = vadd.f32 0.0, %v5103
      %v5105 = vpop.f32.mrf.mxu0
      %5106 = vmatprep.mubr.bf16.mxu0 0
      %5107 = vmatmul.mubr.bf16.gmra.mxu0 %v4941
      %v5108 = vpop.f32.mrf.mxu0
      %v5109 = vadd.f32 0.0, %v5108
      %v5110 = vpop.f32.mrf.mxu0
      %v5111 = vpop.f32.mrf.mxu0
      %v5112 = vadd.f32 0.0, %v5111
      %v5113 = vpop.f32.mrf.mxu0
      %5114 = vmatprep.mubr.bf16.mxu0 0
      %5115 = vmatmul.mubr.bf16.gmra.mxu0 %v4944
      %v5116 = vpop.f32.mrf.mxu0
      %v5117 = vadd.f32 0.0, %v5116
      %v5118 = vpop.f32.mrf.mxu0
      %v5119 = vpop.f32.mrf.mxu0
      %v5120 = vadd.f32 0.0, %v5119
      %v5121 = vpop.f32.mrf.mxu0
      %5122 = vmatprep.mubr.bf16.mxu0 0
      %5123 = vmatmul.mubr.bf16.gmra.mxu0 %v4947
      %v5124 = vpop.f32.mrf.mxu0
      %v5125 = vadd.f32 0.0, %v5124
      %v5126 = vpop.f32.mrf.mxu0
      %v5127 = vpop.f32.mrf.mxu0
      %v5128 = vadd.f32 0.0, %v5127
      %v5129 = vpop.f32.mrf.mxu0
      %5130 = vmatprep.mubr.bf16.mxu0 0
      %5131 = vmatmul.mubr.bf16.gmra.mxu0 %v4950
      %v5132 = vpop.f32.mrf.mxu0
      %v5133 = vadd.f32 0.0, %v5132
      %v5134 = vpop.f32.mrf.mxu0
      %v5135 = vpop.f32.mrf.mxu0
      %v5136 = vadd.f32 0.0, %v5135
      %v5137 = vpop.f32.mrf.mxu0
      %5138 = vmatprep.mubr.bf16.mxu0 0
      %5139 = vmatmul.mubr.bf16.gmra.mxu0 %v4953
      %v5140 = vpop.f32.mrf.mxu0
      %v5141 = vadd.f32 0.0, %v5140
      %v5142 = vpop.f32.mrf.mxu0
      %v5143 = vpop.f32.mrf.mxu0
      %v5144 = vadd.f32 0.0, %v5143
      %v5145 = vpop.f32.mrf.mxu0
      %5146 = vmatprep.mubr.bf16.mxu0 0
      %5147 = vmatmul.mubr.bf16.gmra.mxu0 %v4956
      %v5148 = vpop.f32.mrf.mxu0
      %v5149 = vadd.f32 0.0, %v5148
      %v5150 = vpop.f32.mrf.mxu0
      %v5151 = vpop.f32.mrf.mxu0
      %v5152 = vadd.f32 0.0, %v5151
      %v5153 = vpop.f32.mrf.mxu0
      %5154 = vmatprep.mubr.bf16.mxu0 0
      %5155 = vmatmul.mubr.bf16.gmra.mxu0 %v4959
      %v5156 = vpop.f32.mrf.mxu0
      %v5157 = vadd.f32 0.0, %v5156
      %v5158 = vpop.f32.mrf.mxu0
      %v5159 = vpop.f32.mrf.mxu0
      %v5160 = vadd.f32 0.0, %v5159
      %v5161 = vpop.f32.mrf.mxu0
      %5162 = vmatprep.mubr.bf16.mxu0 0
      %5163 = vmatmul.mubr.bf16.gmra.mxu0 %v4962
      %v5164 = vpop.f32.mrf.mxu0
      %v5165 = vadd.f32 0.0, %v5164
      %v5166 = vpop.f32.mrf.mxu0
      %v5167 = vpop.f32.mrf.mxu0
      %v5168 = vadd.f32 0.0, %v5167
      %v5169 = vpop.f32.mrf.mxu0
      %5170 = vmatprep.mubr.bf16.mxu0 0
      %5171 = vmatmul.mubr.bf16.gmra.mxu0 %v4965
      %v5172 = vpop.f32.mrf.mxu0
      %v5173 = vadd.f32 0.0, %v5172
      %v5174 = vpop.f32.mrf.mxu0
      %v5175 = vpop.f32.mrf.mxu0
      %v5176 = vadd.f32 0.0, %v5175
      %v5177 = vpop.f32.mrf.mxu0
      %5178 = vmatprep.mubr.bf16.mxu0 0
      %5179 = vmatmul.mubr.bf16.gmra.mxu0 %v4968
      %v5180 = vpop.f32.mrf.mxu0
      %v5181 = vadd.f32 0.0, %v5180
      %v5182 = vpop.f32.mrf.mxu0
      %v5183 = vpop.f32.mrf.mxu0
      %v5184 = vadd.f32 0.0, %v5183
      %v5185 = vpop.f32.mrf.mxu0
      %5186 = vmatprep.mubr.bf16.mxu0 0
      %5187 = vmatmul.mubr.bf16.gmra.mxu0 %v4971
      %v5188 = vpop.f32.mrf.mxu0
      %v5189 = vadd.f32 0.0, %v5188
      %v5190 = vpop.f32.mrf.mxu0
      %v5191 = vpop.f32.mrf.mxu0
      %v5192 = vadd.f32 0.0, %v5191
      %v5193 = vpop.f32.mrf.mxu0
      %5194 = vmatprep.mubr.bf16.mxu0 0
      %5195 = vmatmul.mubr.bf16.gmra.mxu0 %v4974
      %v5196 = vpop.f32.mrf.mxu0
      %v5197 = vadd.f32 0.0, %v5196
      %v5198 = vpop.f32.mrf.mxu0
      %v5199 = vpop.f32.mrf.mxu0
      %v5200 = vadd.f32 0.0, %v5199
      %v5201 = vpop.f32.mrf.mxu0
      %5202 = vmatprep.mubr.bf16.mxu0 0
      %5203 = vmatmul.mubr.bf16.gmra.mxu0 %v4977
      %v5204 = vpop.f32.mrf.mxu0
      %v5205 = vadd.f32 0.0, %v5204
      %v5206 = vpop.f32.mrf.mxu0
      %v5207 = vpop.f32.mrf.mxu0
      %v5208 = vadd.f32 0.0, %v5207
      %v5209 = vpop.f32.mrf.mxu0
      %5210 = vmatprep.mubr.bf16.mxu0 0
      %5211 = vmatmul.mubr.bf16.gmra.mxu0 %v4980
      %v5212 = vpop.f32.mrf.mxu0
      %v5213 = vadd.f32 0.0, %v5212
      %v5214 = vpop.f32.mrf.mxu0
      %v5215 = vpop.f32.mrf.mxu0
      %v5216 = vadd.f32 0.0, %v5215
      %v5217 = vpop.f32.mrf.mxu0
      %5218 = vmatprep.mubr.bf16.mxu0 0
      %5219 = vmatmul.mubr.bf16.gmra.mxu0 %v4983
      %v5220 = vpop.f32.mrf.mxu0
      %v5221 = vadd.f32 0.0, %v5220
      %v5222 = vpop.f32.mrf.mxu0
      %v5223 = vpop.f32.mrf.mxu0
      %v5224 = vadd.f32 0.0, %v5223
      %v5225 = vpop.f32.mrf.mxu0
      %5226 = vmatprep.mubr.bf16.mxu0 0
      %5227 = vmatmul.mubr.bf16.gmra.mxu0 %v4986
      %v5228 = vpop.f32.mrf.mxu0
      %v5229 = vadd.f32 0.0, %v5228
      %v5230 = vpop.f32.mrf.mxu0
      %v5231 = vpop.f32.mrf.mxu0
      %v5232 = vadd.f32 0.0, %v5231
      %v5233 = vpop.f32.mrf.mxu0
      %5234 = vmatprep.mubr.bf16.mxu0 0
      %5235 = vmatmul.mubr.bf16.gmra.mxu0 %v4989
      %v5236 = vpop.f32.mrf.mxu0
      %v5237 = vadd.f32 0.0, %v5236
      %v5238 = vpop.f32.mrf.mxu0
      %v5239 = vpop.f32.mrf.mxu0
      %v5240 = vadd.f32 0.0, %v5239
      %v5241 = vpop.f32.mrf.mxu0
      %5242 = vmatprep.mubr.bf16.mxu0 0
      %5243 = vmatmul.mubr.bf16.gmra.mxu0 %v4992
      %v5244 = vpop.f32.mrf.mxu0
      %v5245 = vadd.f32 0.0, %v5244
      %v5246 = vpop.f32.mrf.mxu0
      %v5247 = vpop.f32.mrf.mxu0
      %v5248 = vadd.f32 0.0, %v5247
      %v5249 = vpop.f32.mrf.mxu0
      %5250 = vmatprep.mubr.bf16.mxu0 0
      %5251 = vmatmul.mubr.bf16.gmra.mxu0 %v4995
      %v5252 = vpop.f32.mrf.mxu0
      %v5253 = vadd.f32 0.0, %v5252
      %v5254 = vpop.f32.mrf.mxu0
      %v5255 = vpop.f32.mrf.mxu0
      %v5256 = vadd.f32 0.0, %v5255
      %v5257 = vpop.f32.mrf.mxu0
      %5258 = vmatprep.mubr.bf16.mxu0 0
      %5259 = vmatmul.mubr.bf16.gmra.mxu0 %v4998
      %v5260 = vpop.f32.mrf.mxu0
      %v5261 = vadd.f32 0.0, %v5260
      %v5262 = vpop.f32.mrf.mxu0
      %v5263 = vpop.f32.mrf.mxu0
      %v5264 = vadd.f32 0.0, %v5263
      %v5265 = vpop.f32.mrf.mxu0
      %5266 = vmatprep.mubr.bf16.mxu0 0
      %5267 = vmatmul.mubr.bf16.gmra.mxu0 %v5001
      %v5268 = vpop.f32.mrf.mxu0
      %v5269 = vadd.f32 0.0, %v5268
      %v5270 = vpop.f32.mrf.mxu0
      %v5271 = vpop.f32.mrf.mxu0
      %v5272 = vadd.f32 0.0, %v5271
      %v5273 = vpop.f32.mrf.mxu0
      %5274 = vmatprep.mubr.bf16.mxu0 0
      %5275 = vmatmul.mubr.bf16.gmra.mxu0 %v5004
      %v5276 = vpop.f32.mrf.mxu0
      %v5277 = vadd.f32 0.0, %v5276
      %v5278 = vpop.f32.mrf.mxu0
      %v5279 = vpop.f32.mrf.mxu0
      %v5280 = vadd.f32 0.0, %v5279
      %v5281 = vpop.f32.mrf.mxu0
      %5282 = vmatprep.mubr.bf16.mxu0 0
      %5283 = vmatmul.mubr.bf16.gmra.mxu0 %v5007
      %v5284 = vpop.f32.mrf.mxu0
      %v5285 = vadd.f32 0.0, %v5284
      %v5286 = vpop.f32.mrf.mxu0
      %v5287 = vpop.f32.mrf.mxu0
      %v5288 = vadd.f32 0.0, %v5287
      %v5289 = vpop.f32.mrf.mxu0
      %5290 = vmatprep.mubr.bf16.mxu0 0
      %5291 = vmatmul.mubr.bf16.gmra.mxu0 %v5010
      %v5292 = vpop.f32.mrf.mxu0
      %v5293 = vadd.f32 0.0, %v5292
      %v5294 = vpop.f32.mrf.mxu0
      %v5295 = vpop.f32.mrf.mxu0
      %v5296 = vadd.f32 0.0, %v5295
      %v5297 = vpop.f32.mrf.mxu0
      %5298 = vmatprep.mubr.bf16.mxu0 0
      %5299 = vmatmul.mubr.bf16.gmra.mxu0 %v5013
      %v5300 = vpop.f32.mrf.mxu0
      %v5301 = vadd.f32 0.0, %v5300
      %v5302 = vpop.f32.mrf.mxu0
      %v5303 = vpop.f32.mrf.mxu0
      %v5304 = vadd.f32 0.0, %v5303
      %v5305 = vpop.f32.mrf.mxu0
      %5306 = vdwg.mxu0
      %v5307 = vadd.f32 %v4757, %v5053
      %v5308 = vadd.f32 %v4758, %v5056
      %v5309 = vadd.f32 %v4759, %v5061
      %v5310 = vadd.f32 %v4760, %v5064
      %v5311 = vadd.f32 %v4761, %v5069
      %v5312 = vadd.f32 %v4762, %v5072
      %v5313 = vadd.f32 %v4763, %v5077
      %v5314 = vadd.f32 %v4764, %v5080
      %v5315 = vadd.f32 %v4765, %v5085
      %v5316 = vadd.f32 %v4766, %v5088
      %v5317 = vadd.f32 %v4767, %v5093
      %v5318 = vadd.f32 %v4768, %v5096
      %v5319 = vadd.f32 %v4769, %v5101
      %v5320 = vadd.f32 %v4770, %v5104
      %v5321 = vadd.f32 %v4771, %v5109
      %v5322 = vadd.f32 %v4772, %v5112
      %v5323 = vadd.f32 %v4773, %v5117
      %v5324 = vadd.f32 %v4774, %v5120
      %v5325 = vadd.f32 %v4775, %v5125
      %v5326 = vadd.f32 %v4776, %v5128
      %v5327 = vadd.f32 %v4777, %v5133
      %v5328 = vadd.f32 %v4778, %v5136
      %v5329 = vadd.f32 %v4779, %v5141
      %v5330 = vadd.f32 %v4780, %v5144
      %v5331 = vadd.f32 %v4781, %v5149
      %v5332 = vadd.f32 %v4782, %v5152
      %v5333 = vadd.f32 %v4783, %v5157
      %v5334 = vadd.f32 %v4784, %v5160
      %v5335 = vadd.f32 %v4785, %v5165
      %v5336 = vadd.f32 %v4786, %v5168
      %v5337 = vadd.f32 %v4787, %v5173
      %v5338 = vadd.f32 %v4788, %v5176
      %v5339 = vadd.f32 %v4789, %v5181
      %v5340 = vadd.f32 %v4790, %v5184
      %v5341 = vadd.f32 %v4791, %v5189
      %v5342 = vadd.f32 %v4792, %v5192
      %v5343 = vadd.f32 %v4793, %v5197
      %v5344 = vadd.f32 %v4794, %v5200
      %v5345 = vadd.f32 %v4795, %v5205
      %v5346 = vadd.f32 %v4796, %v5208
      %v5347 = vadd.f32 %v4797, %v5213
      %v5348 = vadd.f32 %v4798, %v5216
      %v5349 = vadd.f32 %v4799, %v5221
      %v5350 = vadd.f32 %v4800, %v5224
      %v5351 = vadd.f32 %v4801, %v5229
      %v5352 = vadd.f32 %v4802, %v5232
      %v5353 = vadd.f32 %v4803, %v5237
      %v5354 = vadd.f32 %v4804, %v5240
      %v5355 = vadd.f32 %v4805, %v5245
      %v5356 = vadd.f32 %v4806, %v5248
      %v5357 = vadd.f32 %v4807, %v5253
      %v5358 = vadd.f32 %v4808, %v5256
      %v5359 = vadd.f32 %v4809, %v5261
      %v5360 = vadd.f32 %v4810, %v5264
      %v5361 = vadd.f32 %v4811, %v5269
      %v5362 = vadd.f32 %v4812, %v5272
      %v5363 = vadd.f32 %v4813, %v5277
      %v5364 = vadd.f32 %v4814, %v5280
      %v5365 = vadd.f32 %v4815, %v5285
      %v5366 = vadd.f32 %v4816, %v5288
      %v5367 = vadd.f32 %v4817, %v5293
      %v5368 = vadd.f32 %v4818, %v5296
      %v5369 = vadd.f32 %v4819, %v5301
      %v5370 = vadd.f32 %v4820, %v5304
      %v5371 = vld [vmem:[%s4270 + $0x2] sm:$0xff]
      %v5372 = vld [vmem:[%s4270 + $0xa] sm:$0xff]
      %v5373 = vld [vmem:[%s4270 + $0x1a] sm:$0xff]
      %v5374 = vld [vmem:[%s4270 + $0x22] sm:$0xff]
      %v5375 = vld [vmem:[%s4270 + $0x32] sm:$0xff]
      %v5376 = vld [vmem:[%s4270 + $0x3a] sm:$0xff]
      %v5377 = vld [vmem:[%s4270 + $0x4a] sm:$0xff]
      %v5378 = vld [vmem:[%s4270 + $0x52] sm:$0xff]
      %v5379 = vld [vmem:[%s4270 + $0x62] sm:$0xff]
      %v5380 = vld [vmem:[%s4270 + $0x6a] sm:$0xff]
      %v5381 = vld [vmem:[%s4270 + $0x7a] sm:$0xff]
      %v5382 = vld [vmem:[%s4270 + $0x82] sm:$0xff]
      %v5383 = vld [vmem:[%s4270 + $0x92] sm:$0xff]
      %v5384 = vld [vmem:[%s4270 + $0x9a] sm:$0xff]
      %v5385 = vld [vmem:[%s4270 + $0xaa] sm:$0xff]
      %v5386 = vld [vmem:[%s4270 + $0xb2] sm:$0xff]
      %v5387 = vld [vmem:[%s4270 + $0xc2] sm:$0xff]
      %v5388 = vld [vmem:[%s4270 + $0xca] sm:$0xff]
      %v5389 = vld [vmem:[%s4270 + $0xda] sm:$0xff]
      %v5390 = vld [vmem:[%s4270 + $0xe2] sm:$0xff]
      %v5391 = vld [vmem:[%s4270 + $0xf2] sm:$0xff]
      %v5392 = vld [vmem:[%s4270 + $0xfa] sm:$0xff]
      %v5393 = vld [vmem:[%s4270 + $0x10a] sm:$0xff]
      %v5394 = vld [vmem:[%s4270 + $0x112] sm:$0xff]
      %v5395 = vld [vmem:[%s4270 + $0x122] sm:$0xff]
      %v5396 = vld [vmem:[%s4270 + $0x12a] sm:$0xff]
      %v5397 = vld [vmem:[%s4270 + $0x13a] sm:$0xff]
      %v5398 = vld [vmem:[%s4270 + $0x142] sm:$0xff]
      %v5399 = vld [vmem:[%s4270 + $0x152] sm:$0xff]
      %v5400 = vld [vmem:[%s4270 + $0x15a] sm:$0xff]
      %v5401 = vld [vmem:[%s4270 + $0x16a] sm:$0xff]
      %v5402 = vld [vmem:[%s4270 + $0x172] sm:$0xff]
      %v5403 = vld [vmem:[%s4270 + $0x1b2] sm:$0xff]
      %v5404 = vld [vmem:[%s4270 + $0x1ba] sm:$0xff]
      %v5405 = vld [vmem:[%s4270 + $0x1ca] sm:$0xff]
      %v5406 = vld [vmem:[%s4270 + $0x1d2] sm:$0xff]
      %v5407 = vld [vmem:[%s4270 + $0x1e2] sm:$0xff]
      %v5408 = vld [vmem:[%s4270 + $0x1ea] sm:$0xff]
      %v5409 = vld [vmem:[%s4270 + $0x1fa] sm:$0xff]
      %v5410 = vld [vmem:[%s4270 + $0x202] sm:$0xff]
      %v5411 = vld [vmem:[%s4270 + $0x212] sm:$0xff]
      %v5412 = vld [vmem:[%s4270 + $0x21a] sm:$0xff]
      %v5413 = vld [vmem:[%s4270 + $0x22a] sm:$0xff]
      %v5414 = vld [vmem:[%s4270 + $0x232] sm:$0xff]
      %v5415 = vld [vmem:[%s4270 + $0x242] sm:$0xff]
      %v5416 = vld [vmem:[%s4270 + $0x24a] sm:$0xff]
      %v5417 = vld [vmem:[%s4270 + $0x25a] sm:$0xff]
      %v5418 = vld [vmem:[%s4270 + $0x262] sm:$0xff]
      %v5419 = vld [vmem:[%s4270 + $0x272] sm:$0xff]
      %v5420 = vld [vmem:[%s4270 + $0x27a] sm:$0xff]
      %v5421 = vld [vmem:[%s4270 + $0x28a] sm:$0xff]
      %v5422 = vld [vmem:[%s4270 + $0x292] sm:$0xff]
      %v5423 = vld [vmem:[%s4270 + $0x2a2] sm:$0xff]
      %v5424 = vld [vmem:[%s4270 + $0x2aa] sm:$0xff]
      %v5425 = vld [vmem:[%s4270 + $0x2ba] sm:$0xff]
      %v5426 = vld [vmem:[%s4270 + $0x2c2] sm:$0xff]
      %v5427 = vld [vmem:[%s4270 + $0x2d2] sm:$0xff]
      %v5428 = vld [vmem:[%s4270 + $0x2da] sm:$0xff]
      %v5429 = vld [vmem:[%s4270 + $0x2ea] sm:$0xff]
      %v5430 = vld [vmem:[%s4270 + $0x2f2] sm:$0xff]
      %v5431 = vld [vmem:[%s4270 + $0x302] sm:$0xff]
      %v5432 = vld [vmem:[%s4270 + $0x30a] sm:$0xff]
      %v5433 = vld [vmem:[%s4270 + $0x31a] sm:$0xff]
      %v5434 = vld [vmem:[%s4270 + $0x322] sm:$0xff]
      %v5435 = vpack.c.bf16 %v5372, %v5371
      %v5436 = vpack.c.bf16 %v5374, %v5373
      %v5437 = vpack.c.bf16 %v5376, %v5375
      %v5438 = vpack.c.bf16 %v5378, %v5377
      %v5439 = vpack.c.bf16 %v5380, %v5379
      %v5440 = vpack.c.bf16 %v5382, %v5381
      %v5441 = vpack.c.bf16 %v5384, %v5383
      %v5442 = vpack.c.bf16 %v5386, %v5385
      %v5443 = vpack.c.bf16 %v5388, %v5387
      %v5444 = vpack.c.bf16 %v5390, %v5389
      %v5445 = vpack.c.bf16 %v5392, %v5391
      %v5446 = vpack.c.bf16 %v5394, %v5393
      %v5447 = vpack.c.bf16 %v5396, %v5395
      %v5448 = vpack.c.bf16 %v5398, %v5397
      %v5449 = vpack.c.bf16 %v5400, %v5399
      %v5450 = vpack.c.bf16 %v5402, %v5401
      %v5451 = vpack.c.bf16 %v5404, %v5403
      %v5452 = vpack.c.bf16 %v5406, %v5405
      %v5453 = vpack.c.bf16 %v5408, %v5407
      %v5454 = vpack.c.bf16 %v5410, %v5409
      %v5455 = vpack.c.bf16 %v5412, %v5411
      %v5456 = vpack.c.bf16 %v5414, %v5413
      %v5457 = vpack.c.bf16 %v5416, %v5415
      %v5458 = vpack.c.bf16 %v5418, %v5417
      %v5459 = vpack.c.bf16 %v5420, %v5419
      %v5460 = vpack.c.bf16 %v5422, %v5421
      %v5461 = vpack.c.bf16 %v5424, %v5423
      %v5462 = vpack.c.bf16 %v5426, %v5425
      %v5463 = vpack.c.bf16 %v5428, %v5427
      %v5464 = vpack.c.bf16 %v5430, %v5429
      %v5465 = vpack.c.bf16 %v5432, %v5431
      %v5466 = vpack.c.bf16 %v5434, %v5433
      %s5467 = scalar_lea.vmem %s3, 16
      %v5468 = vld [vmem:[%s5467] sm:$0x3]
      %v5470 = vsel %vm923, %v5435, 0
      %v5473 = vsel %vm923, %v5436, 0
      %v5476 = vsel %vm923, %v5437, 0
      %v5479 = vsel %vm923, %v5438, 0
      %v5482 = vsel %vm923, %v5439, 0
      %v5485 = vsel %vm923, %v5440, 0
      %v5488 = vsel %vm923, %v5441, 0
      %v5491 = vsel %vm923, %v5442, 0
      %v5494 = vsel %vm923, %v5443, 0
      %v5497 = vsel %vm923, %v5444, 0
      %v5500 = vsel %vm923, %v5445, 0
      %v5503 = vsel %vm923, %v5446, 0
      %v5506 = vsel %vm923, %v5447, 0
      %v5509 = vsel %vm923, %v5448, 0
      %v5512 = vsel %vm923, %v5449, 0
      %v5515 = vsel %vm923, %v5450, 0
      %v5518 = vsel %vm923, %v5451, 0
      %v5521 = vsel %vm923, %v5452, 0
      %v5524 = vsel %vm923, %v5453, 0
      %v5527 = vsel %vm923, %v5454, 0
      %v5530 = vsel %vm923, %v5455, 0
      %v5533 = vsel %vm923, %v5456, 0
      %v5536 = vsel %vm923, %v5457, 0
      %v5539 = vsel %vm923, %v5458, 0
      %v5542 = vsel %vm923, %v5459, 0
      %v5545 = vsel %vm923, %v5460, 0
      %v5548 = vsel %vm923, %v5461, 0
      %v5551 = vsel %vm923, %v5462, 0
      %v5554 = vsel %vm923, %v5463, 0
      %v5557 = vsel %vm923, %v5464, 0
      %v5560 = vsel %vm923, %v5465, 0
      %v5563 = vsel %vm923, %v5466, 0
      %v5566 = vsel %vm1389, %v5468, 0
      %5568 = vmatprep.subr.bf16.mxu0 0
      %5569 = vmatpush1.bf16.msra.mxu0 0
      %5570 = vmatprep.subr.bf16.mxu0 0
      %5571 = vmatpush1.bf16.msra.mxu0 0
      %5572 = vmatprep.subr.bf16.mxu0 0
      %5573 = vmatpush1.bf16.msra.mxu0 0
      %5574 = vmatprep.subr.bf16.mxu0 0
      %5575 = vmatpush1.bf16.msra.mxu0 0
      %5576 = vmatprep.subr.bf16.mxu0 0
      %5577 = vmatpush1.bf16.msra.mxu0 0
      %5578 = vmatprep.subr.bf16.mxu0 0
      %5579 = vmatpush1.bf16.msra.mxu0 0
      %5580 = vmatprep.subr.bf16.mxu0 0
      %5581 = vmatpush1.bf16.msra.mxu0 0
      %5582 = vmatprep.subr.bf16.mxu0 0
      %5583 = vmatpush1.bf16.msra.mxu0 %v5566
      %5584 = vmatprep.subr.bf16.mxu0 0
      %5585 = vmatpush2.bf16.msra.mxu0 0
      %5586 = vmatprep.subr.bf16.mxu0 0
      %5587 = vmatpush2.bf16.msra.mxu0 0
      %5588 = vmatprep.subr.bf16.mxu0 0
      %5589 = vmatpush2.bf16.msra.mxu0 0
      %5590 = vmatprep.subr.bf16.mxu0 0
      %5591 = vmatpush2.bf16.msra.mxu0 0
      %5592 = vmatprep.subr.bf16.mxu0 0
      %5593 = vmatpush2.bf16.msra.mxu0 0
      %5594 = vmatprep.subr.bf16.mxu0 0
      %5595 = vmatpush2.bf16.msra.mxu0 0
      %5596 = vmatprep.subr.bf16.mxu0 0
      %5597 = vmatpush2.bf16.msra.mxu0 0
      %5598 = vmatprep.subr.bf16.mxu0 0
      %5599 = vmatpush2.bf16.msra.mxu0 0
      %5600 = vmatprep.mubr.bf16.mxu0 0
      %5601 = vmatmul.mubr.bf16.gmra.mxu0 %v5470
      %v5602 = vpop.f32.mrf.mxu0
      %v5603 = vadd.f32 0.0, %v5602
      %v5604 = vpop.f32.mrf.mxu0
      %v5605 = vpop.f32.mrf.mxu0
      %v5606 = vadd.f32 0.0, %v5605
      %v5607 = vpop.f32.mrf.mxu0
      %5608 = vmatprep.mubr.bf16.mxu0 0
      %5609 = vmatmul.mubr.bf16.gmra.mxu0 %v5473
      %v5610 = vpop.f32.mrf.mxu0
      %v5611 = vadd.f32 0.0, %v5610
      %v5612 = vpop.f32.mrf.mxu0
      %v5613 = vpop.f32.mrf.mxu0
      %v5614 = vadd.f32 0.0, %v5613
      %v5615 = vpop.f32.mrf.mxu0
      %5616 = vmatprep.mubr.bf16.mxu0 0
      %5617 = vmatmul.mubr.bf16.gmra.mxu0 %v5476
      %v5618 = vpop.f32.mrf.mxu0
      %v5619 = vadd.f32 0.0, %v5618
      %v5620 = vpop.f32.mrf.mxu0
      %v5621 = vpop.f32.mrf.mxu0
      %v5622 = vadd.f32 0.0, %v5621
      %v5623 = vpop.f32.mrf.mxu0
      %5624 = vmatprep.mubr.bf16.mxu0 0
      %5625 = vmatmul.mubr.bf16.gmra.mxu0 %v5479
      %v5626 = vpop.f32.mrf.mxu0
      %v5627 = vadd.f32 0.0, %v5626
      %v5628 = vpop.f32.mrf.mxu0
      %v5629 = vpop.f32.mrf.mxu0
      %v5630 = vadd.f32 0.0, %v5629
      %v5631 = vpop.f32.mrf.mxu0
      %5632 = vmatprep.mubr.bf16.mxu0 0
      %5633 = vmatmul.mubr.bf16.gmra.mxu0 %v5482
      %v5634 = vpop.f32.mrf.mxu0
      %v5635 = vadd.f32 0.0, %v5634
      %v5636 = vpop.f32.mrf.mxu0
      %v5637 = vpop.f32.mrf.mxu0
      %v5638 = vadd.f32 0.0, %v5637
      %v5639 = vpop.f32.mrf.mxu0
      %5640 = vmatprep.mubr.bf16.mxu0 0
      %5641 = vmatmul.mubr.bf16.gmra.mxu0 %v5485
      %v5642 = vpop.f32.mrf.mxu0
      %v5643 = vadd.f32 0.0, %v5642
      %v5644 = vpop.f32.mrf.mxu0
      %v5645 = vpop.f32.mrf.mxu0
      %v5646 = vadd.f32 0.0, %v5645
      %v5647 = vpop.f32.mrf.mxu0
      %5648 = vmatprep.mubr.bf16.mxu0 0
      %5649 = vmatmul.mubr.bf16.gmra.mxu0 %v5488
      %v5650 = vpop.f32.mrf.mxu0
      %v5651 = vadd.f32 0.0, %v5650
      %v5652 = vpop.f32.mrf.mxu0
      %v5653 = vpop.f32.mrf.mxu0
      %v5654 = vadd.f32 0.0, %v5653
      %v5655 = vpop.f32.mrf.mxu0
      %5656 = vmatprep.mubr.bf16.mxu0 0
      %5657 = vmatmul.mubr.bf16.gmra.mxu0 %v5491
      %v5658 = vpop.f32.mrf.mxu0
      %v5659 = vadd.f32 0.0, %v5658
      %v5660 = vpop.f32.mrf.mxu0
      %v5661 = vpop.f32.mrf.mxu0
      %v5662 = vadd.f32 0.0, %v5661
      %v5663 = vpop.f32.mrf.mxu0
      %5664 = vmatprep.mubr.bf16.mxu0 0
      %5665 = vmatmul.mubr.bf16.gmra.mxu0 %v5494
      %v5666 = vpop.f32.mrf.mxu0
      %v5667 = vadd.f32 0.0, %v5666
      %v5668 = vpop.f32.mrf.mxu0
      %v5669 = vpop.f32.mrf.mxu0
      %v5670 = vadd.f32 0.0, %v5669
      %v5671 = vpop.f32.mrf.mxu0
      %5672 = vmatprep.mubr.bf16.mxu0 0
      %5673 = vmatmul.mubr.bf16.gmra.mxu0 %v5497
      %v5674 = vpop.f32.mrf.mxu0
      %v5675 = vadd.f32 0.0, %v5674
      %v5676 = vpop.f32.mrf.mxu0
      %v5677 = vpop.f32.mrf.mxu0
      %v5678 = vadd.f32 0.0, %v5677
      %v5679 = vpop.f32.mrf.mxu0
      %5680 = vmatprep.mubr.bf16.mxu0 0
      %5681 = vmatmul.mubr.bf16.gmra.mxu0 %v5500
      %v5682 = vpop.f32.mrf.mxu0
      %v5683 = vadd.f32 0.0, %v5682
      %v5684 = vpop.f32.mrf.mxu0
      %v5685 = vpop.f32.mrf.mxu0
      %v5686 = vadd.f32 0.0, %v5685
      %v5687 = vpop.f32.mrf.mxu0
      %5688 = vmatprep.mubr.bf16.mxu0 0
      %5689 = vmatmul.mubr.bf16.gmra.mxu0 %v5503
      %v5690 = vpop.f32.mrf.mxu0
      %v5691 = vadd.f32 0.0, %v5690
      %v5692 = vpop.f32.mrf.mxu0
      %v5693 = vpop.f32.mrf.mxu0
      %v5694 = vadd.f32 0.0, %v5693
      %v5695 = vpop.f32.mrf.mxu0
      %5696 = vmatprep.mubr.bf16.mxu0 0
      %5697 = vmatmul.mubr.bf16.gmra.mxu0 %v5506
      %v5698 = vpop.f32.mrf.mxu0
      %v5699 = vadd.f32 0.0, %v5698
      %v5700 = vpop.f32.mrf.mxu0
      %v5701 = vpop.f32.mrf.mxu0
      %v5702 = vadd.f32 0.0, %v5701
      %v5703 = vpop.f32.mrf.mxu0
      %5704 = vmatprep.mubr.bf16.mxu0 0
      %5705 = vmatmul.mubr.bf16.gmra.mxu0 %v5509
      %v5706 = vpop.f32.mrf.mxu0
      %v5707 = vadd.f32 0.0, %v5706
      %v5708 = vpop.f32.mrf.mxu0
      %v5709 = vpop.f32.mrf.mxu0
      %v5710 = vadd.f32 0.0, %v5709
      %v5711 = vpop.f32.mrf.mxu0
      %5712 = vmatprep.mubr.bf16.mxu0 0
      %5713 = vmatmul.mubr.bf16.gmra.mxu0 %v5512
      %v5714 = vpop.f32.mrf.mxu0
      %v5715 = vadd.f32 0.0, %v5714
      %v5716 = vpop.f32.mrf.mxu0
      %v5717 = vpop.f32.mrf.mxu0
      %v5718 = vadd.f32 0.0, %v5717
      %v5719 = vpop.f32.mrf.mxu0
      %5720 = vmatprep.mubr.bf16.mxu0 0
      %5721 = vmatmul.mubr.bf16.gmra.mxu0 %v5515
      %v5722 = vpop.f32.mrf.mxu0
      %v5723 = vadd.f32 0.0, %v5722
      %v5724 = vpop.f32.mrf.mxu0
      %v5725 = vpop.f32.mrf.mxu0
      %v5726 = vadd.f32 0.0, %v5725
      %v5727 = vpop.f32.mrf.mxu0
      %5728 = vmatprep.mubr.bf16.mxu0 0
      %5729 = vmatmul.mubr.bf16.gmra.mxu0 %v5518
      %v5730 = vpop.f32.mrf.mxu0
      %v5731 = vadd.f32 0.0, %v5730
      %v5732 = vpop.f32.mrf.mxu0
      %v5733 = vpop.f32.mrf.mxu0
      %v5734 = vadd.f32 0.0, %v5733
      %v5735 = vpop.f32.mrf.mxu0
      %5736 = vmatprep.mubr.bf16.mxu0 0
      %5737 = vmatmul.mubr.bf16.gmra.mxu0 %v5521
      %v5738 = vpop.f32.mrf.mxu0
      %v5739 = vadd.f32 0.0, %v5738
      %v5740 = vpop.f32.mrf.mxu0
      %v5741 = vpop.f32.mrf.mxu0
      %v5742 = vadd.f32 0.0, %v5741
      %v5743 = vpop.f32.mrf.mxu0
      %5744 = vmatprep.mubr.bf16.mxu0 0
      %5745 = vmatmul.mubr.bf16.gmra.mxu0 %v5524
      %v5746 = vpop.f32.mrf.mxu0
      %v5747 = vadd.f32 0.0, %v5746
      %v5748 = vpop.f32.mrf.mxu0
      %v5749 = vpop.f32.mrf.mxu0
      %v5750 = vadd.f32 0.0, %v5749
      %v5751 = vpop.f32.mrf.mxu0
      %5752 = vmatprep.mubr.bf16.mxu0 0
      %5753 = vmatmul.mubr.bf16.gmra.mxu0 %v5527
      %v5754 = vpop.f32.mrf.mxu0
      %v5755 = vadd.f32 0.0, %v5754
      %v5756 = vpop.f32.mrf.mxu0
      %v5757 = vpop.f32.mrf.mxu0
      %v5758 = vadd.f32 0.0, %v5757
      %v5759 = vpop.f32.mrf.mxu0
      %5760 = vmatprep.mubr.bf16.mxu0 0
      %5761 = vmatmul.mubr.bf16.gmra.mxu0 %v5530
      %v5762 = vpop.f32.mrf.mxu0
      %v5763 = vadd.f32 0.0, %v5762
      %v5764 = vpop.f32.mrf.mxu0
      %v5765 = vpop.f32.mrf.mxu0
      %v5766 = vadd.f32 0.0, %v5765
      %v5767 = vpop.f32.mrf.mxu0
      %5768 = vmatprep.mubr.bf16.mxu0 0
      %5769 = vmatmul.mubr.bf16.gmra.mxu0 %v5533
      %v5770 = vpop.f32.mrf.mxu0
      %v5771 = vadd.f32 0.0, %v5770
      %v5772 = vpop.f32.mrf.mxu0
      %v5773 = vpop.f32.mrf.mxu0
      %v5774 = vadd.f32 0.0, %v5773
      %v5775 = vpop.f32.mrf.mxu0
      %5776 = vmatprep.mubr.bf16.mxu0 0
      %5777 = vmatmul.mubr.bf16.gmra.mxu0 %v5536
      %v5778 = vpop.f32.mrf.mxu0
      %v5779 = vadd.f32 0.0, %v5778
      %v5780 = vpop.f32.mrf.mxu0
      %v5781 = vpop.f32.mrf.mxu0
      %v5782 = vadd.f32 0.0, %v5781
      %v5783 = vpop.f32.mrf.mxu0
      %5784 = vmatprep.mubr.bf16.mxu0 0
      %5785 = vmatmul.mubr.bf16.gmra.mxu0 %v5539
      %v5786 = vpop.f32.mrf.mxu0
      %v5787 = vadd.f32 0.0, %v5786
      %v5788 = vpop.f32.mrf.mxu0
      %v5789 = vpop.f32.mrf.mxu0
      %v5790 = vadd.f32 0.0, %v5789
      %v5791 = vpop.f32.mrf.mxu0
      %5792 = vmatprep.mubr.bf16.mxu0 0
      %5793 = vmatmul.mubr.bf16.gmra.mxu0 %v5542
      %v5794 = vpop.f32.mrf.mxu0
      %v5795 = vadd.f32 0.0, %v5794
      %v5796 = vpop.f32.mrf.mxu0
      %v5797 = vpop.f32.mrf.mxu0
      %v5798 = vadd.f32 0.0, %v5797
      %v5799 = vpop.f32.mrf.mxu0
      %5800 = vmatprep.mubr.bf16.mxu0 0
      %5801 = vmatmul.mubr.bf16.gmra.mxu0 %v5545
      %v5802 = vpop.f32.mrf.mxu0
      %v5803 = vadd.f32 0.0, %v5802
      %v5804 = vpop.f32.mrf.mxu0
      %v5805 = vpop.f32.mrf.mxu0
      %v5806 = vadd.f32 0.0, %v5805
      %v5807 = vpop.f32.mrf.mxu0
      %5808 = vmatprep.mubr.bf16.mxu0 0
      %5809 = vmatmul.mubr.bf16.gmra.mxu0 %v5548
      %v5810 = vpop.f32.mrf.mxu0
      %v5811 = vadd.f32 0.0, %v5810
      %v5812 = vpop.f32.mrf.mxu0
      %v5813 = vpop.f32.mrf.mxu0
      %v5814 = vadd.f32 0.0, %v5813
      %v5815 = vpop.f32.mrf.mxu0
      %5816 = vmatprep.mubr.bf16.mxu0 0
      %5817 = vmatmul.mubr.bf16.gmra.mxu0 %v5551
      %v5818 = vpop.f32.mrf.mxu0
      %v5819 = vadd.f32 0.0, %v5818
      %v5820 = vpop.f32.mrf.mxu0
      %v5821 = vpop.f32.mrf.mxu0
      %v5822 = vadd.f32 0.0, %v5821
      %v5823 = vpop.f32.mrf.mxu0
      %5824 = vmatprep.mubr.bf16.mxu0 0
      %5825 = vmatmul.mubr.bf16.gmra.mxu0 %v5554
      %v5826 = vpop.f32.mrf.mxu0
      %v5827 = vadd.f32 0.0, %v5826
      %v5828 = vpop.f32.mrf.mxu0
      %v5829 = vpop.f32.mrf.mxu0
      %v5830 = vadd.f32 0.0, %v5829
      %v5831 = vpop.f32.mrf.mxu0
      %5832 = vmatprep.mubr.bf16.mxu0 0
      %5833 = vmatmul.mubr.bf16.gmra.mxu0 %v5557
      %v5834 = vpop.f32.mrf.mxu0
      %v5835 = vadd.f32 0.0, %v5834
      %v5836 = vpop.f32.mrf.mxu0
      %v5837 = vpop.f32.mrf.mxu0
      %v5838 = vadd.f32 0.0, %v5837
      %v5839 = vpop.f32.mrf.mxu0
      %5840 = vmatprep.mubr.bf16.mxu0 0
      %5841 = vmatmul.mubr.bf16.gmra.mxu0 %v5560
      %v5842 = vpop.f32.mrf.mxu0
      %v5843 = vadd.f32 0.0, %v5842
      %v5844 = vpop.f32.mrf.mxu0
      %v5845 = vpop.f32.mrf.mxu0
      %v5846 = vadd.f32 0.0, %v5845
      %v5847 = vpop.f32.mrf.mxu0
      %5848 = vmatprep.mubr.bf16.mxu0 0
      %5849 = vmatmul.mubr.bf16.gmra.mxu0 %v5563
      %v5850 = vpop.f32.mrf.mxu0
      %v5851 = vadd.f32 0.0, %v5850
      %v5852 = vpop.f32.mrf.mxu0
      %v5853 = vpop.f32.mrf.mxu0
      %v5854 = vadd.f32 0.0, %v5853
      %v5855 = vpop.f32.mrf.mxu0
      %5856 = vdwg.mxu0
      %v5857 = vadd.f32 %v5307, %v5603
      %v5858 = vadd.f32 %v5308, %v5606
      %v5859 = vadd.f32 %v5309, %v5611
      %v5860 = vadd.f32 %v5310, %v5614
      %v5861 = vadd.f32 %v5311, %v5619
      %v5862 = vadd.f32 %v5312, %v5622
      %v5863 = vadd.f32 %v5313, %v5627
      %v5864 = vadd.f32 %v5314, %v5630
      %v5865 = vadd.f32 %v5315, %v5635
      %v5866 = vadd.f32 %v5316, %v5638
      %v5867 = vadd.f32 %v5317, %v5643
      %v5868 = vadd.f32 %v5318, %v5646
      %v5869 = vadd.f32 %v5319, %v5651
      %v5870 = vadd.f32 %v5320, %v5654
      %v5871 = vadd.f32 %v5321, %v5659
      %v5872 = vadd.f32 %v5322, %v5662
      %v5873 = vadd.f32 %v5323, %v5667
      %v5874 = vadd.f32 %v5324, %v5670
      %v5875 = vadd.f32 %v5325, %v5675
      %v5876 = vadd.f32 %v5326, %v5678
      %v5877 = vadd.f32 %v5327, %v5683
      %v5878 = vadd.f32 %v5328, %v5686
      %v5879 = vadd.f32 %v5329, %v5691
      %v5880 = vadd.f32 %v5330, %v5694
      %v5881 = vadd.f32 %v5331, %v5699
      %v5882 = vadd.f32 %v5332, %v5702
      %v5883 = vadd.f32 %v5333, %v5707
      %v5884 = vadd.f32 %v5334, %v5710
      %v5885 = vadd.f32 %v5335, %v5715
      %v5886 = vadd.f32 %v5336, %v5718
      %v5887 = vadd.f32 %v5337, %v5723
      %v5888 = vadd.f32 %v5338, %v5726
      %v5889 = vadd.f32 %v5339, %v5731
      %v5890 = vadd.f32 %v5340, %v5734
      %v5891 = vadd.f32 %v5341, %v5739
      %v5892 = vadd.f32 %v5342, %v5742
      %v5893 = vadd.f32 %v5343, %v5747
      %v5894 = vadd.f32 %v5344, %v5750
      %v5895 = vadd.f32 %v5345, %v5755
      %v5896 = vadd.f32 %v5346, %v5758
      %v5897 = vadd.f32 %v5347, %v5763
      %v5898 = vadd.f32 %v5348, %v5766
      %v5899 = vadd.f32 %v5349, %v5771
      %v5900 = vadd.f32 %v5350, %v5774
      %v5901 = vadd.f32 %v5351, %v5779
      %v5902 = vadd.f32 %v5352, %v5782
      %v5903 = vadd.f32 %v5353, %v5787
      %v5904 = vadd.f32 %v5354, %v5790
      %v5905 = vadd.f32 %v5355, %v5795
      %v5906 = vadd.f32 %v5356, %v5798
      %v5907 = vadd.f32 %v5357, %v5803
      %v5908 = vadd.f32 %v5358, %v5806
      %v5909 = vadd.f32 %v5359, %v5811
      %v5910 = vadd.f32 %v5360, %v5814
      %v5911 = vadd.f32 %v5361, %v5819
      %v5912 = vadd.f32 %v5362, %v5822
      %v5913 = vadd.f32 %v5363, %v5827
      %v5914 = vadd.f32 %v5364, %v5830
      %v5915 = vadd.f32 %v5365, %v5835
      %v5916 = vadd.f32 %v5366, %v5838
      %v5917 = vadd.f32 %v5367, %v5843
      %v5918 = vadd.f32 %v5368, %v5846
      %v5919 = vadd.f32 %v5369, %v5851
      %v5920 = vadd.f32 %v5370, %v5854
      %v5921 = vld [vmem:[%s4] sm:$0x1]
      %v5923 = vlaneseq
      %v5924 = vshrl.u32 %v5923, 7
      %v5925 = vsub.s32 0, %v5924
      %v5926 = vrot.slane %v5921, %v5925
      %v5928 = vadd.f32 %v5857, %v5926
      %v5929 = vadd.f32 %v5858, %v5926
      %v5930 = vadd.f32 %v5859, %v5926
      %v5931 = vadd.f32 %v5860, %v5926
      %v5932 = vadd.f32 %v5861, %v5926
      %v5933 = vadd.f32 %v5862, %v5926
      %v5934 = vadd.f32 %v5863, %v5926
      %v5935 = vadd.f32 %v5864, %v5926
      %v5936 = vadd.f32 %v5865, %v5926
      %v5937 = vadd.f32 %v5866, %v5926
      %v5938 = vadd.f32 %v5867, %v5926
      %v5939 = vadd.f32 %v5868, %v5926
      %v5940 = vadd.f32 %v5869, %v5926
      %v5941 = vadd.f32 %v5870, %v5926
      %v5942 = vadd.f32 %v5871, %v5926
      %v5943 = vadd.f32 %v5872, %v5926
      %v5944 = vadd.f32 %v5873, %v5926
      %v5945 = vadd.f32 %v5874, %v5926
      %v5946 = vadd.f32 %v5875, %v5926
      %v5947 = vadd.f32 %v5876, %v5926
      %v5948 = vadd.f32 %v5877, %v5926
      %v5949 = vadd.f32 %v5878, %v5926
      %v5950 = vadd.f32 %v5879, %v5926
      %v5951 = vadd.f32 %v5880, %v5926
      %v5952 = vadd.f32 %v5881, %v5926
      %v5953 = vadd.f32 %v5882, %v5926
      %v5954 = vadd.f32 %v5883, %v5926
      %v5955 = vadd.f32 %v5884, %v5926
      %v5956 = vadd.f32 %v5885, %v5926
      %v5957 = vadd.f32 %v5886, %v5926
      %v5958 = vadd.f32 %v5887, %v5926
      %v5959 = vadd.f32 %v5888, %v5926
      %v5960 = vadd.f32 %v5889, %v5926
      %v5961 = vadd.f32 %v5890, %v5926
      %v5962 = vadd.f32 %v5891, %v5926
      %v5963 = vadd.f32 %v5892, %v5926
      %v5964 = vadd.f32 %v5893, %v5926
      %v5965 = vadd.f32 %v5894, %v5926
      %v5966 = vadd.f32 %v5895, %v5926
      %v5967 = vadd.f32 %v5896, %v5926
      %v5968 = vadd.f32 %v5897, %v5926
      %v5969 = vadd.f32 %v5898, %v5926
      %v5970 = vadd.f32 %v5899, %v5926
      %v5971 = vadd.f32 %v5900, %v5926
      %v5972 = vadd.f32 %v5901, %v5926
      %v5973 = vadd.f32 %v5902, %v5926
      %v5974 = vadd.f32 %v5903, %v5926
      %v5975 = vadd.f32 %v5904, %v5926
      %v5976 = vadd.f32 %v5905, %v5926
      %v5977 = vadd.f32 %v5906, %v5926
      %v5978 = vadd.f32 %v5907, %v5926
      %v5979 = vadd.f32 %v5908, %v5926
      %v5980 = vadd.f32 %v5909, %v5926
      %v5981 = vadd.f32 %v5910, %v5926
      %v5982 = vadd.f32 %v5911, %v5926
      %v5983 = vadd.f32 %v5912, %v5926
      %v5984 = vadd.f32 %v5913, %v5926
      %v5985 = vadd.f32 %v5914, %v5926
      %v5986 = vadd.f32 %v5915, %v5926
      %v5987 = vadd.f32 %v5916, %v5926
      %v5988 = vadd.f32 %v5917, %v5926
      %v5989 = vadd.f32 %v5918, %v5926
      %v5990 = vadd.f32 %v5919, %v5926
      %v5991 = vadd.f32 %v5920, %v5926
      %v5992 = vmax.f32 %v5928, 0.0
      %v5993 = vmax.f32 %v5929, 0.0
      %v5994 = vmax.f32 %v5930, 0.0
      %v5995 = vmax.f32 %v5931, 0.0
      %v5996 = vmax.f32 %v5932, 0.0
      %v5997 = vmax.f32 %v5933, 0.0
      %v5998 = vmax.f32 %v5934, 0.0
      %v5999 = vmax.f32 %v5935, 0.0
      %v6000 = vmax.f32 %v5936, 0.0
      %v6001 = vmax.f32 %v5937, 0.0
      %v6002 = vmax.f32 %v5938, 0.0
      %v6003 = vmax.f32 %v5939, 0.0
      %v6004 = vmax.f32 %v5940, 0.0
      %v6005 = vmax.f32 %v5941, 0.0
      %v6006 = vmax.f32 %v5942, 0.0
      %v6007 = vmax.f32 %v5943, 0.0
      %v6008 = vmax.f32 %v5944, 0.0
      %v6009 = vmax.f32 %v5945, 0.0
      %v6010 = vmax.f32 %v5946, 0.0
      %v6011 = vmax.f32 %v5947, 0.0
      %v6012 = vmax.f32 %v5948, 0.0
      %v6013 = vmax.f32 %v5949, 0.0
      %v6014 = vmax.f32 %v5950, 0.0
      %v6015 = vmax.f32 %v5951, 0.0
      %v6016 = vmax.f32 %v5952, 0.0
      %v6017 = vmax.f32 %v5953, 0.0
      %v6018 = vmax.f32 %v5954, 0.0
      %v6019 = vmax.f32 %v5955, 0.0
      %v6020 = vmax.f32 %v5956, 0.0
      %v6021 = vmax.f32 %v5957, 0.0
      %v6022 = vmax.f32 %v5958, 0.0
      %v6023 = vmax.f32 %v5959, 0.0
      %v6024 = vmax.f32 %v5960, 0.0
      %v6025 = vmax.f32 %v5961, 0.0
      %v6026 = vmax.f32 %v5962, 0.0
      %v6027 = vmax.f32 %v5963, 0.0
      %v6028 = vmax.f32 %v5964, 0.0
      %v6029 = vmax.f32 %v5965, 0.0
      %v6030 = vmax.f32 %v5966, 0.0
      %v6031 = vmax.f32 %v5967, 0.0
      %v6032 = vmax.f32 %v5968, 0.0
      %v6033 = vmax.f32 %v5969, 0.0
      %v6034 = vmax.f32 %v5970, 0.0
      %v6035 = vmax.f32 %v5971, 0.0
      %v6036 = vmax.f32 %v5972, 0.0
      %v6037 = vmax.f32 %v5973, 0.0
      %v6038 = vmax.f32 %v5974, 0.0
      %v6039 = vmax.f32 %v5975, 0.0
      %v6040 = vmax.f32 %v5976, 0.0
      %v6041 = vmax.f32 %v5977, 0.0
      %v6042 = vmax.f32 %v5978, 0.0
      %v6043 = vmax.f32 %v5979, 0.0
      %v6044 = vmax.f32 %v5980, 0.0
      %v6045 = vmax.f32 %v5981, 0.0
      %v6046 = vmax.f32 %v5982, 0.0
      %v6047 = vmax.f32 %v5983, 0.0
      %v6048 = vmax.f32 %v5984, 0.0
      %v6049 = vmax.f32 %v5985, 0.0
      %v6050 = vmax.f32 %v5986, 0.0
      %v6051 = vmax.f32 %v5987, 0.0
      %v6052 = vmax.f32 %v5988, 0.0
      %v6053 = vmax.f32 %v5989, 0.0
      %v6054 = vmax.f32 %v5990, 0.0
      %v6055 = vmax.f32 %v5991, 0.0
      %v6056 = vpack.c.bf16 %v5993, %v5992
      %v6057 = vpack.c.bf16 %v5995, %v5994
      %v6058 = vpack.c.bf16 %v5997, %v5996
      %v6059 = vpack.c.bf16 %v5999, %v5998
      %v6060 = vpack.c.bf16 %v6001, %v6000
      %v6061 = vpack.c.bf16 %v6003, %v6002
      %v6062 = vpack.c.bf16 %v6005, %v6004
      %v6063 = vpack.c.bf16 %v6007, %v6006
      %v6064 = vpack.c.bf16 %v6009, %v6008
      %v6065 = vpack.c.bf16 %v6011, %v6010
      %v6066 = vpack.c.bf16 %v6013, %v6012
      %v6067 = vpack.c.bf16 %v6015, %v6014
      %v6068 = vpack.c.bf16 %v6017, %v6016
      %v6069 = vpack.c.bf16 %v6019, %v6018
      %v6070 = vpack.c.bf16 %v6021, %v6020
      %v6071 = vpack.c.bf16 %v6023, %v6022
      %v6072 = vpack.c.bf16 %v6025, %v6024
      %v6073 = vpack.c.bf16 %v6027, %v6026
      %v6074 = vpack.c.bf16 %v6029, %v6028
      %v6075 = vpack.c.bf16 %v6031, %v6030
      %v6076 = vpack.c.bf16 %v6033, %v6032
      %v6077 = vpack.c.bf16 %v6035, %v6034
      %v6078 = vpack.c.bf16 %v6037, %v6036
      %v6079 = vpack.c.bf16 %v6039, %v6038
      %v6080 = vpack.c.bf16 %v6041, %v6040
      %v6081 = vpack.c.bf16 %v6043, %v6042
      %v6082 = vpack.c.bf16 %v6045, %v6044
      %v6083 = vpack.c.bf16 %v6047, %v6046
      %v6084 = vpack.c.bf16 %v6049, %v6048
      %v6085 = vpack.c.bf16 %v6051, %v6050
      %v6086 = vpack.c.bf16 %v6053, %v6052
      %v6087 = vpack.c.bf16 %v6055, %v6054
      %v6120 = vunpack.c.l.b16 %v6056
      %v6121 = vunpack.c.h.b16 %v6056
      %v6122 = vunpack.c.l.b16 %v6057
      %v6123 = vunpack.c.h.b16 %v6057
      %v6124 = vunpack.c.l.b16 %v6058
      %v6125 = vunpack.c.h.b16 %v6058
      %v6126 = vunpack.c.l.b16 %v6059
      %v6127 = vunpack.c.h.b16 %v6059
      %v6128 = vunpack.c.l.b16 %v6060
      %v6129 = vunpack.c.h.b16 %v6060
      %v6130 = vunpack.c.l.b16 %v6061
      %v6131 = vunpack.c.h.b16 %v6061
      %v6132 = vunpack.c.l.b16 %v6062
      %v6133 = vunpack.c.h.b16 %v6062
      %v6134 = vunpack.c.l.b16 %v6063
      %v6135 = vunpack.c.h.b16 %v6063
      %v6136 = vunpack.c.l.b16 %v6064
      %v6137 = vunpack.c.h.b16 %v6064
      %v6138 = vunpack.c.l.b16 %v6065
      %v6139 = vunpack.c.h.b16 %v6065
      %v6140 = vunpack.c.l.b16 %v6066
      %v6141 = vunpack.c.h.b16 %v6066
      %v6142 = vunpack.c.l.b16 %v6067
      %v6143 = vunpack.c.h.b16 %v6067
      %v6144 = vunpack.c.l.b16 %v6068
      %v6145 = vunpack.c.h.b16 %v6068
      %v6146 = vunpack.c.l.b16 %v6069
      %v6147 = vunpack.c.h.b16 %v6069
      %v6148 = vunpack.c.l.b16 %v6070
      %v6149 = vunpack.c.h.b16 %v6070
      %v6150 = vunpack.c.l.b16 %v6071
      %v6151 = vunpack.c.h.b16 %v6071
      %v6152 = vunpack.c.l.b16 %v6072
      %v6153 = vunpack.c.h.b16 %v6072
      %v6154 = vunpack.c.l.b16 %v6073
      %v6155 = vunpack.c.h.b16 %v6073
      %v6156 = vunpack.c.l.b16 %v6074
      %v6157 = vunpack.c.h.b16 %v6074
      %v6158 = vunpack.c.l.b16 %v6075
      %v6159 = vunpack.c.h.b16 %v6075
      %v6160 = vunpack.c.l.b16 %v6076
      %v6161 = vunpack.c.h.b16 %v6076
      %v6162 = vunpack.c.l.b16 %v6077
      %v6163 = vunpack.c.h.b16 %v6077
      %v6164 = vunpack.c.l.b16 %v6078
      %v6165 = vunpack.c.h.b16 %v6078
      %v6166 = vunpack.c.l.b16 %v6079
      %v6167 = vunpack.c.h.b16 %v6079
      %v6168 = vunpack.c.l.b16 %v6080
      %v6169 = vunpack.c.h.b16 %v6080
      %v6170 = vunpack.c.l.b16 %v6081
      %v6171 = vunpack.c.h.b16 %v6081
      %v6172 = vunpack.c.l.b16 %v6082
      %v6173 = vunpack.c.h.b16 %v6082
      %v6174 = vunpack.c.l.b16 %v6083
      %v6175 = vunpack.c.h.b16 %v6083
      %v6176 = vunpack.c.l.b16 %v6084
      %v6177 = vunpack.c.h.b16 %v6084
      %v6178 = vunpack.c.l.b16 %v6085
      %v6179 = vunpack.c.h.b16 %v6085
      %v6180 = vunpack.c.l.b16 %v6086
      %v6181 = vunpack.c.h.b16 %v6086
      %v6182 = vunpack.c.l.b16 %v6087
      %v6183 = vunpack.c.h.b16 %v6087
      %v6184 = vpack.c.b16 %v6120, %v6120
      %v6185 = vpack.c.b16 %v6121, %v6121
      %v6186 = vpack.c.b16 %v6122, %v6122
      %v6187 = vpack.c.b16 %v6123, %v6123
      %v6188 = vpack.c.b16 %v6124, %v6124
      %v6189 = vpack.c.b16 %v6125, %v6125
      %v6190 = vpack.c.b16 %v6126, %v6126
      %v6191 = vpack.c.b16 %v6127, %v6127
      %v6192 = vpack.c.b16 %v6128, %v6128
      %v6193 = vpack.c.b16 %v6129, %v6129
      %v6194 = vpack.c.b16 %v6130, %v6130
      %v6195 = vpack.c.b16 %v6131, %v6131
      %v6196 = vpack.c.b16 %v6132, %v6132
      %v6197 = vpack.c.b16 %v6133, %v6133
      %v6198 = vpack.c.b16 %v6134, %v6134
      %v6199 = vpack.c.b16 %v6135, %v6135
      %v6200 = vpack.c.b16 %v6136, %v6136
      %v6201 = vpack.c.b16 %v6137, %v6137
      %v6202 = vpack.c.b16 %v6138, %v6138
      %v6203 = vpack.c.b16 %v6139, %v6139
      %v6204 = vpack.c.b16 %v6140, %v6140
      %v6205 = vpack.c.b16 %v6141, %v6141
      %v6206 = vpack.c.b16 %v6142, %v6142
      %v6207 = vpack.c.b16 %v6143, %v6143
      %v6208 = vpack.c.b16 %v6144, %v6144
      %v6209 = vpack.c.b16 %v6145, %v6145
      %v6210 = vpack.c.b16 %v6146, %v6146
      %v6211 = vpack.c.b16 %v6147, %v6147
      %v6212 = vpack.c.b16 %v6148, %v6148
      %v6213 = vpack.c.b16 %v6149, %v6149
      %v6214 = vpack.c.b16 %v6150, %v6150
      %v6215 = vpack.c.b16 %v6151, %v6151
      %v6216 = vpack.c.b16 %v6152, %v6152
      %v6217 = vpack.c.b16 %v6153, %v6153
      %v6218 = vpack.c.b16 %v6154, %v6154
      %v6219 = vpack.c.b16 %v6155, %v6155
      %v6220 = vpack.c.b16 %v6156, %v6156
      %v6221 = vpack.c.b16 %v6157, %v6157
      %v6222 = vpack.c.b16 %v6158, %v6158
      %v6223 = vpack.c.b16 %v6159, %v6159
      %v6224 = vpack.c.b16 %v6160, %v6160
      %v6225 = vpack.c.b16 %v6161, %v6161
      %v6226 = vpack.c.b16 %v6162, %v6162
      %v6227 = vpack.c.b16 %v6163, %v6163
      %v6228 = vpack.c.b16 %v6164, %v6164
      %v6229 = vpack.c.b16 %v6165, %v6165
      %v6230 = vpack.c.b16 %v6166, %v6166
      %v6231 = vpack.c.b16 %v6167, %v6167
      %v6232 = vpack.c.b16 %v6168, %v6168
      %v6233 = vpack.c.b16 %v6169, %v6169
      %v6234 = vpack.c.b16 %v6170, %v6170
      %v6235 = vpack.c.b16 %v6171, %v6171
      %v6236 = vpack.c.b16 %v6172, %v6172
      %v6237 = vpack.c.b16 %v6173, %v6173
      %v6238 = vpack.c.b16 %v6174, %v6174
      %v6239 = vpack.c.b16 %v6175, %v6175
      %v6240 = vpack.c.b16 %v6176, %v6176
      %v6241 = vpack.c.b16 %v6177, %v6177
      %v6242 = vpack.c.b16 %v6178, %v6178
      %v6243 = vpack.c.b16 %v6179, %v6179
      %v6244 = vpack.c.b16 %v6180, %v6180
      %v6245 = vpack.c.b16 %v6181, %v6181
      %v6246 = vpack.c.b16 %v6182, %v6182
      %v6247 = vpack.c.b16 %v6183, %v6183
      %vm6312 = vcmask 27648
      %6313 = vst.msk [vmem:[%s231] sm:$0xf] %vm6312, %v6184
      %6314 = vst.msk [vmem:[%s231 + $0x4] sm:$0xf] %vm6312, %v6185
      %6315 = vst.msk [vmem:[%s231 + $0x8] sm:$0xf] %vm6312, %v6186
      %6316 = vst.msk [vmem:[%s231 + $0xc] sm:$0xf] %vm6312, %v6187
      %6317 = vst.msk [vmem:[%s231 + $0x10] sm:$0xf] %vm6312, %v6188
      %6318 = vst.msk [vmem:[%s231 + $0x14] sm:$0xf] %vm6312, %v6189
      %6319 = vst.msk [vmem:[%s231 + $0x18] sm:$0xf] %vm6312, %v6190
      %6320 = vst.msk [vmem:[%s231 + $0x1c] sm:$0xf] %vm6312, %v6191
      %6321 = vst.msk [vmem:[%s231 + $0x20] sm:$0xf] %vm6312, %v6192
      %6322 = vst.msk [vmem:[%s231 + $0x24] sm:$0xf] %vm6312, %v6193
      %6323 = vst.msk [vmem:[%s231 + $0x28] sm:$0xf] %vm6312, %v6194
      %6324 = vst.msk [vmem:[%s231 + $0x2c] sm:$0xf] %vm6312, %v6195
      %6325 = vst.msk [vmem:[%s231 + $0x30] sm:$0xf] %vm6312, %v6196
      %6326 = vst.msk [vmem:[%s231 + $0x34] sm:$0xf] %vm6312, %v6197
      %6327 = vst.msk [vmem:[%s231 + $0x38] sm:$0xf] %vm6312, %v6198
      %6328 = vst.msk [vmem:[%s231 + $0x3c] sm:$0xf] %vm6312, %v6199
      %6329 = vst.msk [vmem:[%s231 + $0x40] sm:$0xf] %vm6312, %v6200
      %6330 = vst.msk [vmem:[%s231 + $0x44] sm:$0xf] %vm6312, %v6201
      %6331 = vst.msk [vmem:[%s231 + $0x48] sm:$0xf] %vm6312, %v6202
      %6332 = vst.msk [vmem:[%s231 + $0x4c] sm:$0xf] %vm6312, %v6203
      %6333 = vst.msk [vmem:[%s231 + $0x50] sm:$0xf] %vm6312, %v6204
      %6334 = vst.msk [vmem:[%s231 + $0x54] sm:$0xf] %vm6312, %v6205
      %6335 = vst.msk [vmem:[%s231 + $0x58] sm:$0xf] %vm6312, %v6206
      %6336 = vst.msk [vmem:[%s231 + $0x5c] sm:$0xf] %vm6312, %v6207
      %6337 = vst.msk [vmem:[%s231 + $0x60] sm:$0xf] %vm6312, %v6208
      %6338 = vst.msk [vmem:[%s231 + $0x64] sm:$0xf] %vm6312, %v6209
      %6339 = vst.msk [vmem:[%s231 + $0x68] sm:$0xf] %vm6312, %v6210
      %6340 = vst.msk [vmem:[%s231 + $0x6c] sm:$0xf] %vm6312, %v6211
      %6341 = vst.msk [vmem:[%s231 + $0x70] sm:$0xf] %vm6312, %v6212
      %6342 = vst.msk [vmem:[%s231 + $0x74] sm:$0xf] %vm6312, %v6213
      %6343 = vst.msk [vmem:[%s231 + $0x78] sm:$0xf] %vm6312, %v6214
      %6344 = vst.msk [vmem:[%s231 + $0x7c] sm:$0xf] %vm6312, %v6215
      %6345 = vst.msk [vmem:[%s231 + $0x80] sm:$0xf] %vm6312, %v6216
      %6346 = vst.msk [vmem:[%s231 + $0x84] sm:$0xf] %vm6312, %v6217
      %6347 = vst.msk [vmem:[%s231 + $0x88] sm:$0xf] %vm6312, %v6218
      %6348 = vst.msk [vmem:[%s231 + $0x8c] sm:$0xf] %vm6312, %v6219
      %6349 = vst.msk [vmem:[%s231 + $0x90] sm:$0xf] %vm6312, %v6220
      %6350 = vst.msk [vmem:[%s231 + $0x94] sm:$0xf] %vm6312, %v6221
      %6351 = vst.msk [vmem:[%s231 + $0x98] sm:$0xf] %vm6312, %v6222
      %6352 = vst.msk [vmem:[%s231 + $0x9c] sm:$0xf] %vm6312, %v6223
      %6353 = vst.msk [vmem:[%s231 + $0xa0] sm:$0xf] %vm6312, %v6224
      %6354 = vst.msk [vmem:[%s231 + $0xa4] sm:$0xf] %vm6312, %v6225
      %6355 = vst.msk [vmem:[%s231 + $0xa8] sm:$0xf] %vm6312, %v6226
      %6356 = vst.msk [vmem:[%s231 + $0xac] sm:$0xf] %vm6312, %v6227
      %6357 = vst.msk [vmem:[%s231 + $0xb0] sm:$0xf] %vm6312, %v6228
      %6358 = vst.msk [vmem:[%s231 + $0xb4] sm:$0xf] %vm6312, %v6229
      %6359 = vst.msk [vmem:[%s231 + $0xb8] sm:$0xf] %vm6312, %v6230
      %6360 = vst.msk [vmem:[%s231 + $0xbc] sm:$0xf] %vm6312, %v6231
      %6361 = vst.msk [vmem:[%s231 + $0xc0] sm:$0xf] %vm6312, %v6232
      %6362 = vst.msk [vmem:[%s231 + $0xc4] sm:$0xf] %vm6312, %v6233
      %6363 = vst.msk [vmem:[%s231 + $0xc8] sm:$0xf] %vm6312, %v6234
      %6364 = vst.msk [vmem:[%s231 + $0xcc] sm:$0xf] %vm6312, %v6235
      %6365 = vst.msk [vmem:[%s231 + $0xd0] sm:$0xf] %vm6312, %v6236
      %6366 = vst.msk [vmem:[%s231 + $0xd4] sm:$0xf] %vm6312, %v6237
      %6367 = vst.msk [vmem:[%s231 + $0xd8] sm:$0xf] %vm6312, %v6238
      %6368 = vst.msk [vmem:[%s231 + $0xdc] sm:$0xf] %vm6312, %v6239
      %6369 = vst.msk [vmem:[%s231 + $0xe0] sm:$0xf] %vm6312, %v6240
      %6370 = vst.msk [vmem:[%s231 + $0xe4] sm:$0xf] %vm6312, %v6241
      %6371 = vst.msk [vmem:[%s231 + $0xe8] sm:$0xf] %vm6312, %v6242
      %6372 = vst.msk [vmem:[%s231 + $0xec] sm:$0xf] %vm6312, %v6243
      %6373 = vst.msk [vmem:[%s231 + $0xf0] sm:$0xf] %vm6312, %v6244
      %6374 = vst.msk [vmem:[%s231 + $0xf4] sm:$0xf] %vm6312, %v6245
      %6375 = vst.msk [vmem:[%s231 + $0xf8] sm:$0xf] %vm6312, %v6246
      %6376 = vst.msk [vmem:[%s231 + $0xfc] sm:$0xf] %vm6312, %v6247
      %s6377 = smul.u32 2, %s16
      %p6378 = scmp.lt.s32.totalorder %s6377, 15
      %s6379 = scalar_select %p6378, %s6377, 15
      %s6380 = smul.addr %s6379, 32
      %s6381 = smul.addr %s6380, 4
      %s6382 = scalar_lea.vmem %s5, %s6381
      // Predicated region
      $region41: #{bottleneck_forward.3} parent=39 // pred_check
        %p6383 = pneg %p144
      $region42: #{bottleneck_forward.3} parent=39 // pred_check_branch
        %6385 = sbr.rel (%p6383) target = $region44
      $region43: #{bottleneck_forward.3} parent=39 // pred_region
        %s6386 = smul.u32 2, %s16
      $region44: #{bottleneck_forward.3} parent=39 // pred_fallthru
        _
    $region40: #{bottleneck_forward.3} parent=5 // pred_fallthru
      _
    %p6387 = scmp.le.s32.totalorder 2, %s11
    // Predicated region
    $region45: #{bottleneck_forward.3} parent=5 // pred_check
      %p6388 = pneg %p6387
    $region46: #{bottleneck_forward.3} parent=5 // pred_check_branch
      %6390 = sbr.rel (%p6388) target = $region48
    $region47: #{bottleneck_forward.3} parent=5 // pred_region
      %s6391 = ssub.s32 %s11, 2
      // Predicated region
      $region49: #{bottleneck_forward.3} parent=47 // pred_check
        %p6392 = pneg %p150
      $region50: #{bottleneck_forward.3} parent=47 // pred_check_branch
        %6394 = sbr.rel (%p6392) target = $region52
      $region51: #{bottleneck_forward.3} parent=47 // pred_region
        %s6395 = smul.u32 2, %s17
        %p6396 = scmp.lt.s32.totalorder %s6395, 15
        %s6397 = scalar_select %p6396, %s6395, 15
        %s6398 = smul.addr %s6397, 32
        %s6399 = smul.addr %s6398, 4
        %s6400 = scalar_lea.vmem %s5, %s6399
      $region52: #{bottleneck_forward.3} parent=47 // pred_fallthru
        _
    $region48: #{bottleneck_forward.3} parent=5 // pred_fallthru
      _
  $region6: #{bottleneck_forward.3} parent=0 // loop_footer
    %s15 = sadd.s32 1, %s11
  $region7: #{bottleneck_forward.3} parent=0 // loop_footer_branch
    %10 = sbr.rel target = $region3
  $region8: #{bottleneck_forward.3} parent=0 // loop_exit
    _

</llo_original>
